<compile_context>
chip_gen: v6e
topology: v6e:2x2x1
jax: 0.10.0
libtpu: 0.0.40
codegen_flags: <defaults>
</compile_context>

<pallas_src>
from functools import partial

import jax
import jax.numpy as jnp
from jax.experimental import pallas as pl
from jax.experimental.pallas import tpu as pltpu

# ---------------------------------------------------------------------------
# "DNA" string parameterizing the Act activation, parsed exactly like the
# PyTorch __init__: split on '|', 2-hex-char segments.
# "0804|0402" -> out_s = [[8, 4], [4, 2]]
#   => Act(x) = where(x > 0, (4/8) * x, (2/8) * x)
# ---------------------------------------------------------------------------
DNA_STRING = "0804|0402"

LAYER_DIMS = [28 * 28, 128, 64, 36, 18, 9, 18, 36, 64, 128, 28 * 28]
N_LAYERS = len(LAYER_DIMS) - 1  # 10 Linear layers (encoder + decoder)
MAX_OUT = max(LAYER_DIMS[1:])   # 784, width of the packed bias buffer


def parse_dna(dna_string):
    """Replicates AutoEncoderActivation.__init__ segment parsing."""
    out_s = []
    for chromosome in dna_string.split("|"):
        segs = []
        for i, ch in enumerate(chromosome):
            if i % 2 == 0:
                segs.append(ch)
            else:
                segs[-1] += ch
        out_s.append([int(s, 16) for s in segs])
    return out_s


def act_coefficients(out_s):
    """Replicates Act.forward coefficient math (div2 reuses out_s[0][0],
    exactly as in the original module)."""
    div1 = out_s[0][0]
    coefs1 = tuple(num / div1 for num in out_s[0][1:])
    div2 = out_s[0][0]  # intentional: original code reuses out_s[0][0]
    coefs2 = tuple(num / div2 for num in out_s[1][1:])
    return coefs1, coefs2


def _pow_term(x, exponent):
    """Cheap special cases; generic pow only when unavoidable."""
    if exponent == 1.0:
        return x
    if exponent == 0.5:
        return jnp.sqrt(x)
    return jnp.power(x, exponent)


def _act(x, coefs1, coefs2):
    """Act.forward:  where(x > 0, sum_i c1_i * x^(1/(i+1)),
                                   sum_i c2_i * x^(1/(i+1)))"""
    if len(coefs1) == 1 and len(coefs2) == 1:
        # Single exponent-1 term per branch (this DNA): leaky-ReLU-like form,
        # select on the coefficient — also NaN-free on negative x.
        return x * jnp.where(x > 0, jnp.float32(coefs1[0]), jnp.float32(coefs2[0]))

    def branch(coefs):
        terms = [jnp.float32(c) * _pow_term(x, 1.0 / (i + 1))
                 for i, c in enumerate(coefs)]
        out = terms[0]
        for t in terms[1:]:
            out = out + t
        return out

    # NOTE: like torch.pow, jnp.power(negative, non-integer) -> NaN in the
    # unselected branch; jnp.where discards it (forward semantics match torch).
    return jnp.where(x > 0, branch(coefs1), branch(coefs2))


# ---------------------------------------------------------------------------
# Pallas kernel: full autoencoder forward for one (TM, 784) batch tile.
# refs = (x, W_1..W_10 (bf16), bias_packed, out)
# ---------------------------------------------------------------------------
def _autoencoder_kernel(*refs, coefs1, coefs2):
    x_ref = refs[0]
    w_refs = refs[1: 1 + N_LAYERS]
    b_ref = refs[1 + N_LAYERS]
    o_ref = refs[2 + N_LAYERS]

    h = x_ref[...].astype(jnp.float32)
    for l in range(N_LAYERS):
        out_dim = LAYER_DIMS[l + 1]
        # bf16 MXU matmul, f32 accumulation.
        h = jnp.dot(h.astype(jnp.bfloat16), w_refs[l][...],
                    preferred_element_type=jnp.float32)
        # Static (1, out_dim) slice of the packed bias buffer, f32 VPU add.
        h = h + b_ref[l:l + 1, 0:out_dim]
        if l < N_LAYERS - 1:
            h = _act(h, coefs1, coefs2)
        else:
            # sigmoid(h) == 0.5 * (1 + tanh(0.5 * h)): single EUP op.
            h = 0.5 * (1.0 + jnp.tanh(0.5 * h))
    o_ref[...] = h.astype(o_ref.dtype)


def autoencoder_forward(x, weights_bf16, bias_packed, out_s, *, tm=256):
    coefs1, coefs2 = act_coefficients(out_s)
    kernel = partial(_autoencoder_kernel, coefs1=coefs1, coefs2=coefs2)

    batch, d_in = x.shape
    d_out = LAYER_DIMS[-1]
    tm = min(tm, batch)

    x_spec = pl.BlockSpec((tm, d_in), lambda i: (i, 0))
    o_spec = pl.BlockSpec((tm, d_out), lambda i: (i, 0))
    # Grid-invariant full-array blocks: fetched once, reused every grid step.
    w_specs = [pl.BlockSpec(w.shape, lambda i: (0, 0)) for w in weights_bf16]
    b_spec = pl.BlockSpec(bias_packed.shape, lambda i: (0, 0))

    return pl.pallas_call(
        kernel,
        out_shape=jax.ShapeDtypeStruct((batch, d_out), x.dtype),
        grid=(pl.cdiv(batch, tm),),
        in_specs=[x_spec] + w_specs + [b_spec],
        out_specs=o_spec,
        compiler_params=pltpu.CompilerParams(
            dimension_semantics=("parallel",)),
    )(x, *weights_bf16, bias_packed)


# ---------------------------------------------------------------------------
# Pure-JAX reference (same math: bf16 matmul inputs, f32 accumulation).
# ---------------------------------------------------------------------------
def reference_forward(x, weights_bf16, biases, out_s):
    coefs1, coefs2 = act_coefficients(out_s)
    h = x.astype(jnp.float32)
    for l in range(N_LAYERS):
        h = jnp.dot(h.astype(jnp.bfloat16), weights_bf16[l],
                    preferred_element_type=jnp.float32) + biases[l]
        if l < N_LAYERS - 1:
            h = _act(h, coefs1, coefs2)
        else:
            h = jax.nn.sigmoid(h)
    return h.astype(x.dtype)


def init_params(key):
    """Deterministic init mimicking torch.nn.Linear default (U[-1/sqrt(fan_in), ...]).
    Weights stored as [in, out] (transpose of torch's (out, in))."""
    weights, biases = [], []
    for l in range(N_LAYERS):
        key, kw, kb = jax.random.split(key, 3)
        fan_in, fan_out = LAYER_DIMS[l], LAYER_DIMS[l + 1]
        bound = fan_in ** -0.5
        w = jax.random.uniform(kw, (fan_in, fan_out), jnp.float32, -bound, bound)
        b = jax.random.uniform(kb, (1, fan_out), jnp.float32, -bound, bound)
        weights.append(w)
        biases.append(b)
    return weights, biases


def pack_biases(biases):
    """Pack the 10 biases into one (N_LAYERS, 784) f32 buffer (row l = bias l,
    zero-padded) -> a single DMA instead of ten padded tiny buffers."""
    packed = jnp.zeros((N_LAYERS, MAX_OUT), jnp.float32)
    for l, b in enumerate(biases):
        packed = packed.at[l, : b.shape[-1]].set(b.reshape(-1))
    return packed


if __name__ == "__main__":
    out_s = parse_dna(DNA_STRING)

    key = jax.random.PRNGKey(0)
    key, pkey, xkey = jax.random.split(key, 3)
    weights, biases = init_params(pkey)
    weights_bf16 = [w.astype(jnp.bfloat16) for w in weights]
    bias_packed = pack_biases(biases)

    batch = 512  # multiple of TM=256 so the grid has 2 full, parallel steps
    x = jax.random.uniform(xkey, (batch, 28 * 28), jnp.float32)  # image-like in [0, 1)

    out = autoencoder_forward(x, weights_bf16, bias_packed, out_s, tm=256)
    out = jax.block_until_ready(out)

    ref = jax.block_until_ready(reference_forward(x, weights_bf16, biases, out_s))
    assert out.shape == (batch, 28 * 28) and out.dtype == jnp.float32
    # bf16 matmul inputs in both paths; tolerance covers MXU-vs-XLA accumulation
    # order and the tanh-form sigmoid.
    assert jnp.allclose(out, ref, atol=1e-2, rtol=1e-2), "Pallas kernel mismatch vs reference"

    print("KERNEL_OK")
</pallas_src>

<mosaic_0001>
module attributes {stable_mosaic.version = 11 : i64} {
  func.func @_autoencoder_kernel(%arg0: i32, %arg1: memref<256x784xf32, #tpu.memory_space<vmem>>, %arg2: memref<784x128xbf16, #tpu.memory_space<vmem>>, %arg3: memref<128x64xbf16, #tpu.memory_space<vmem>>, %arg4: memref<64x36xbf16, #tpu.memory_space<vmem>>, %arg5: memref<36x18xbf16, #tpu.memory_space<vmem>>, %arg6: memref<18x9xbf16, #tpu.memory_space<vmem>>, %arg7: memref<9x18xbf16, #tpu.memory_space<vmem>>, %arg8: memref<18x36xbf16, #tpu.memory_space<vmem>>, %arg9: memref<36x64xbf16, #tpu.memory_space<vmem>>, %arg10: memref<64x128xbf16, #tpu.memory_space<vmem>>, %arg11: memref<128x784xbf16, #tpu.memory_space<vmem>>, %arg12: memref<10x784xf32, #tpu.memory_space<vmem>>, %arg13: memref<256x784xf32, #tpu.memory_space<vmem>>) attributes {dimension_semantics = [#tpu.dimension_semantics<parallel>], iteration_bounds = array<i64: 2>, scalar_prefetch = 0 : i64, scratch_operands = 0 : i64, tpu.core_type = #tpu.core_type<tc>, window_params = [{transform_indices = @transform_0, window_bounds = array<i64: 256, 784>}, {pipeline_mode = #tpu.pipeline_mode<synchronous>, transform_indices = @transform_1, window_bounds = array<i64: 784, 128>}, {pipeline_mode = #tpu.pipeline_mode<synchronous>, transform_indices = @transform_2, window_bounds = array<i64: 128, 64>}, {pipeline_mode = #tpu.pipeline_mode<synchronous>, transform_indices = @transform_3, window_bounds = array<i64: 64, 36>}, {pipeline_mode = #tpu.pipeline_mode<synchronous>, transform_indices = @transform_4, window_bounds = array<i64: 36, 18>}, {pipeline_mode = #tpu.pipeline_mode<synchronous>, transform_indices = @transform_5, window_bounds = array<i64: 18, 9>}, {pipeline_mode = #tpu.pipeline_mode<synchronous>, transform_indices = @transform_6, window_bounds = array<i64: 9, 18>}, {pipeline_mode = #tpu.pipeline_mode<synchronous>, transform_indices = @transform_7, window_bounds = array<i64: 18, 36>}, {pipeline_mode = #tpu.pipeline_mode<synchronous>, transform_indices = @transform_8, window_bounds = array<i64: 36, 64>}, {pipeline_mode = #tpu.pipeline_mode<synchronous>, transform_indices = @transform_9, window_bounds = array<i64: 64, 128>}, {pipeline_mode = #tpu.pipeline_mode<synchronous>, transform_indices = @transform_10, window_bounds = array<i64: 128, 784>}, {pipeline_mode = #tpu.pipeline_mode<synchronous>, transform_indices = @transform_11, window_bounds = array<i64: 10, 784>}, {transform_indices = @transform_12, window_bounds = array<i64: 256, 784>}]} {
    %c0 = arith.constant 0 : index
    %c0_0 = arith.constant 0 : index
    %0 = vector.load %arg1[%c0, %c0_0] : memref<256x784xf32, #tpu.memory_space<vmem>>, vector<256x784xf32>
    %1 = arith.truncf %0 : vector<256x784xf32> to vector<256x784xbf16>
    %c0_1 = arith.constant 0 : index
    %c0_2 = arith.constant 0 : index
    %2 = vector.load %arg2[%c0_1, %c0_2] : memref<784x128xbf16, #tpu.memory_space<vmem>>, vector<784x128xbf16>
    %cst = arith.constant dense<0.000000e+00> : vector<256x128xf32>
    %3 = tpu.matmul %1, %2, %cst {dimension_numbers = #tpu.dot_dimension_numbers<[1], [0], [0], [1], [0, 0, 1, 1], [], []>} : vector<256x784xbf16>, vector<784x128xbf16>, vector<256x128xf32> -> vector<256x128xf32>
    %c0_3 = arith.constant 0 : index
    %c0_4 = arith.constant 0 : index
    %4 = vector.load %arg12[%c0_3, %c0_4] : memref<10x784xf32, #tpu.memory_space<vmem>>, vector<1x128xf32>
    %5 = vector.broadcast %4 : vector<1x128xf32> to vector<256x128xf32>
    %6 = arith.addf %3, %5 : vector<256x128xf32>
    %cst_5 = arith.constant 0.000000e+00 : f32
    %7 = vector.broadcast %cst_5 : f32 to vector<256x128xf32>
    %8 = arith.cmpf ogt, %6, %7 : vector<256x128xf32>
    %cst_6 = arith.constant 5.000000e-01 : f32
    %cst_7 = arith.constant 2.500000e-01 : f32
    %9 = vector.broadcast %cst_6 : f32 to vector<256x128xf32>
    %10 = vector.broadcast %cst_7 : f32 to vector<256x128xf32>
    %11 = arith.select %8, %9, %10 : vector<256x128xi1>, vector<256x128xf32>
    %12 = arith.mulf %6, %11 : vector<256x128xf32>
    %13 = arith.truncf %12 : vector<256x128xf32> to vector<256x128xbf16>
    %c0_8 = arith.constant 0 : index
    %c0_9 = arith.constant 0 : index
    %14 = vector.load %arg3[%c0_8, %c0_9] : memref<128x64xbf16, #tpu.memory_space<vmem>>, vector<128x64xbf16>
    %cst_10 = arith.constant dense<0.000000e+00> : vector<256x64xf32>
    %15 = tpu.matmul %13, %14, %cst_10 {dimension_numbers = #tpu.dot_dimension_numbers<[1], [0], [0], [1], [0, 0, 1, 1], [], []>} : vector<256x128xbf16>, vector<128x64xbf16>, vector<256x64xf32> -> vector<256x64xf32>
    %c1 = arith.constant 1 : index
    %c0_11 = arith.constant 0 : index
    %16 = vector.load %arg12[%c1, %c0_11] : memref<10x784xf32, #tpu.memory_space<vmem>>, vector<1x64xf32>
    %17 = vector.broadcast %16 : vector<1x64xf32> to vector<256x64xf32>
    %18 = arith.addf %15, %17 : vector<256x64xf32>
    %cst_12 = arith.constant 0.000000e+00 : f32
    %19 = vector.broadcast %cst_12 : f32 to vector<256x64xf32>
    %20 = arith.cmpf ogt, %18, %19 : vector<256x64xf32>
    %cst_13 = arith.constant 5.000000e-01 : f32
    %cst_14 = arith.constant 2.500000e-01 : f32
    %21 = vector.broadcast %cst_13 : f32 to vector<256x64xf32>
    %22 = vector.broadcast %cst_14 : f32 to vector<256x64xf32>
    %23 = arith.select %20, %21, %22 : vector<256x64xi1>, vector<256x64xf32>
    %24 = arith.mulf %18, %23 : vector<256x64xf32>
    %25 = arith.truncf %24 : vector<256x64xf32> to vector<256x64xbf16>
    %c0_15 = arith.constant 0 : index
    %c0_16 = arith.constant 0 : index
    %26 = vector.load %arg4[%c0_15, %c0_16] : memref<64x36xbf16, #tpu.memory_space<vmem>>, vector<64x36xbf16>
    %cst_17 = arith.constant dense<0.000000e+00> : vector<256x36xf32>
    %27 = tpu.matmul %25, %26, %cst_17 {dimension_numbers = #tpu.dot_dimension_numbers<[1], [0], [0], [1], [0, 0, 1, 1], [], []>} : vector<256x64xbf16>, vector<64x36xbf16>, vector<256x36xf32> -> vector<256x36xf32>
    %c2 = arith.constant 2 : index
    %c0_18 = arith.constant 0 : index
    %28 = vector.load %arg12[%c2, %c0_18] : memref<10x784xf32, #tpu.memory_space<vmem>>, vector<1x36xf32>
    %29 = vector.broadcast %28 : vector<1x36xf32> to vector<256x36xf32>
    %30 = arith.addf %27, %29 : vector<256x36xf32>
    %cst_19 = arith.constant 0.000000e+00 : f32
    %31 = vector.broadcast %cst_19 : f32 to vector<256x36xf32>
    %32 = arith.cmpf ogt, %30, %31 : vector<256x36xf32>
    %cst_20 = arith.constant 5.000000e-01 : f32
    %cst_21 = arith.constant 2.500000e-01 : f32
    %33 = vector.broadcast %cst_20 : f32 to vector<256x36xf32>
    %34 = vector.broadcast %cst_21 : f32 to vector<256x36xf32>
    %35 = arith.select %32, %33, %34 : vector<256x36xi1>, vector<256x36xf32>
    %36 = arith.mulf %30, %35 : vector<256x36xf32>
    %37 = arith.truncf %36 : vector<256x36xf32> to vector<256x36xbf16>
    %c0_22 = arith.constant 0 : index
    %c0_23 = arith.constant 0 : index
    %38 = vector.load %arg5[%c0_22, %c0_23] : memref<36x18xbf16, #tpu.memory_space<vmem>>, vector<36x18xbf16>
    %cst_24 = arith.constant dense<0.000000e+00> : vector<256x18xf32>
    %39 = tpu.matmul %37, %38, %cst_24 {dimension_numbers = #tpu.dot_dimension_numbers<[1], [0], [0], [1], [0, 0, 1, 1], [], []>} : vector<256x36xbf16>, vector<36x18xbf16>, vector<256x18xf32> -> vector<256x18xf32>
    %c3 = arith.constant 3 : index
    %c0_25 = arith.constant 0 : index
    %40 = vector.load %arg12[%c3, %c0_25] : memref<10x784xf32, #tpu.memory_space<vmem>>, vector<1x18xf32>
    %41 = vector.broadcast %40 : vector<1x18xf32> to vector<256x18xf32>
    %42 = arith.addf %39, %41 : vector<256x18xf32>
    %cst_26 = arith.constant 0.000000e+00 : f32
    %43 = vector.broadcast %cst_26 : f32 to vector<256x18xf32>
    %44 = arith.cmpf ogt, %42, %43 : vector<256x18xf32>
    %cst_27 = arith.constant 5.000000e-01 : f32
    %cst_28 = arith.constant 2.500000e-01 : f32
    %45 = vector.broadcast %cst_27 : f32 to vector<256x18xf32>
    %46 = vector.broadcast %cst_28 : f32 to vector<256x18xf32>
    %47 = arith.select %44, %45, %46 : vector<256x18xi1>, vector<256x18xf32>
    %48 = arith.mulf %42, %47 : vector<256x18xf32>
    %49 = arith.truncf %48 : vector<256x18xf32> to vector<256x18xbf16>
    %c0_29 = arith.constant 0 : index
    %c0_30 = arith.constant 0 : index
    %50 = vector.load %arg6[%c0_29, %c0_30] : memref<18x9xbf16, #tpu.memory_space<vmem>>, vector<18x9xbf16>
    %cst_31 = arith.constant dense<0.000000e+00> : vector<256x9xf32>
    %51 = tpu.matmul %49, %50, %cst_31 {dimension_numbers = #tpu.dot_dimension_numbers<[1], [0], [0], [1], [0, 0, 1, 1], [], []>} : vector<256x18xbf16>, vector<18x9xbf16>, vector<256x9xf32> -> vector<256x9xf32>
    %c4 = arith.constant 4 : index
    %c0_32 = arith.constant 0 : index
    %52 = vector.load %arg12[%c4, %c0_32] : memref<10x784xf32, #tpu.memory_space<vmem>>, vector<1x9xf32>
    %53 = vector.broadcast %52 : vector<1x9xf32> to vector<256x9xf32>
    %54 = arith.addf %51, %53 : vector<256x9xf32>
    %cst_33 = arith.constant 0.000000e+00 : f32
    %55 = vector.broadcast %cst_33 : f32 to vector<256x9xf32>
    %56 = arith.cmpf ogt, %54, %55 : vector<256x9xf32>
    %cst_34 = arith.constant 5.000000e-01 : f32
    %cst_35 = arith.constant 2.500000e-01 : f32
    %57 = vector.broadcast %cst_34 : f32 to vector<256x9xf32>
    %58 = vector.broadcast %cst_35 : f32 to vector<256x9xf32>
    %59 = arith.select %56, %57, %58 : vector<256x9xi1>, vector<256x9xf32>
    %60 = arith.mulf %54, %59 : vector<256x9xf32>
    %61 = arith.truncf %60 : vector<256x9xf32> to vector<256x9xbf16>
    %c0_36 = arith.constant 0 : index
    %c0_37 = arith.constant 0 : index
    %62 = vector.load %arg7[%c0_36, %c0_37] : memref<9x18xbf16, #tpu.memory_space<vmem>>, vector<9x18xbf16>
    %cst_38 = arith.constant dense<0.000000e+00> : vector<256x18xf32>
    %63 = tpu.matmul %61, %62, %cst_38 {dimension_numbers = #tpu.dot_dimension_numbers<[1], [0], [0], [1], [0, 0, 1, 1], [], []>} : vector<256x9xbf16>, vector<9x18xbf16>, vector<256x18xf32> -> vector<256x18xf32>
    %c5 = arith.constant 5 : index
    %c0_39 = arith.constant 0 : index
    %64 = vector.load %arg12[%c5, %c0_39] : memref<10x784xf32, #tpu.memory_space<vmem>>, vector<1x18xf32>
    %65 = vector.broadcast %64 : vector<1x18xf32> to vector<256x18xf32>
    %66 = arith.addf %63, %65 : vector<256x18xf32>
    %cst_40 = arith.constant 0.000000e+00 : f32
    %67 = vector.broadcast %cst_40 : f32 to vector<256x18xf32>
    %68 = arith.cmpf ogt, %66, %67 : vector<256x18xf32>
    %cst_41 = arith.constant 5.000000e-01 : f32
    %cst_42 = arith.constant 2.500000e-01 : f32
    %69 = vector.broadcast %cst_41 : f32 to vector<256x18xf32>
    %70 = vector.broadcast %cst_42 : f32 to vector<256x18xf32>
    %71 = arith.select %68, %69, %70 : vector<256x18xi1>, vector<256x18xf32>
    %72 = arith.mulf %66, %71 : vector<256x18xf32>
    %73 = arith.truncf %72 : vector<256x18xf32> to vector<256x18xbf16>
    %c0_43 = arith.constant 0 : index
    %c0_44 = arith.constant 0 : index
    %74 = vector.load %arg8[%c0_43, %c0_44] : memref<18x36xbf16, #tpu.memory_space<vmem>>, vector<18x36xbf16>
    %cst_45 = arith.constant dense<0.000000e+00> : vector<256x36xf32>
    %75 = tpu.matmul %73, %74, %cst_45 {dimension_numbers = #tpu.dot_dimension_numbers<[1], [0], [0], [1], [0, 0, 1, 1], [], []>} : vector<256x18xbf16>, vector<18x36xbf16>, vector<256x36xf32> -> vector<256x36xf32>
    %c6 = arith.constant 6 : index
    %c0_46 = arith.constant 0 : index
    %76 = vector.load %arg12[%c6, %c0_46] : memref<10x784xf32, #tpu.memory_space<vmem>>, vector<1x36xf32>
    %77 = vector.broadcast %76 : vector<1x36xf32> to vector<256x36xf32>
    %78 = arith.addf %75, %77 : vector<256x36xf32>
    %cst_47 = arith.constant 0.000000e+00 : f32
    %79 = vector.broadcast %cst_47 : f32 to vector<256x36xf32>
    %80 = arith.cmpf ogt, %78, %79 : vector<256x36xf32>
    %cst_48 = arith.constant 5.000000e-01 : f32
    %cst_49 = arith.constant 2.500000e-01 : f32
    %81 = vector.broadcast %cst_48 : f32 to vector<256x36xf32>
    %82 = vector.broadcast %cst_49 : f32 to vector<256x36xf32>
    %83 = arith.select %80, %81, %82 : vector<256x36xi1>, vector<256x36xf32>
    %84 = arith.mulf %78, %83 : vector<256x36xf32>
    %85 = arith.truncf %84 : vector<256x36xf32> to vector<256x36xbf16>
    %c0_50 = arith.constant 0 : index
    %c0_51 = arith.constant 0 : index
    %86 = vector.load %arg9[%c0_50, %c0_51] : memref<36x64xbf16, #tpu.memory_space<vmem>>, vector<36x64xbf16>
    %cst_52 = arith.constant dense<0.000000e+00> : vector<256x64xf32>
    %87 = tpu.matmul %85, %86, %cst_52 {dimension_numbers = #tpu.dot_dimension_numbers<[1], [0], [0], [1], [0, 0, 1, 1], [], []>} : vector<256x36xbf16>, vector<36x64xbf16>, vector<256x64xf32> -> vector<256x64xf32>
    %c7 = arith.constant 7 : index
    %c0_53 = arith.constant 0 : index
    %88 = vector.load %arg12[%c7, %c0_53] : memref<10x784xf32, #tpu.memory_space<vmem>>, vector<1x64xf32>
    %89 = vector.broadcast %88 : vector<1x64xf32> to vector<256x64xf32>
    %90 = arith.addf %87, %89 : vector<256x64xf32>
    %cst_54 = arith.constant 0.000000e+00 : f32
    %91 = vector.broadcast %cst_54 : f32 to vector<256x64xf32>
    %92 = arith.cmpf ogt, %90, %91 : vector<256x64xf32>
    %cst_55 = arith.constant 5.000000e-01 : f32
    %cst_56 = arith.constant 2.500000e-01 : f32
    %93 = vector.broadcast %cst_55 : f32 to vector<256x64xf32>
    %94 = vector.broadcast %cst_56 : f32 to vector<256x64xf32>
    %95 = arith.select %92, %93, %94 : vector<256x64xi1>, vector<256x64xf32>
    %96 = arith.mulf %90, %95 : vector<256x64xf32>
    %97 = arith.truncf %96 : vector<256x64xf32> to vector<256x64xbf16>
    %c0_57 = arith.constant 0 : index
    %c0_58 = arith.constant 0 : index
    %98 = vector.load %arg10[%c0_57, %c0_58] : memref<64x128xbf16, #tpu.memory_space<vmem>>, vector<64x128xbf16>
    %cst_59 = arith.constant dense<0.000000e+00> : vector<256x128xf32>
    %99 = tpu.matmul %97, %98, %cst_59 {dimension_numbers = #tpu.dot_dimension_numbers<[1], [0], [0], [1], [0, 0, 1, 1], [], []>} : vector<256x64xbf16>, vector<64x128xbf16>, vector<256x128xf32> -> vector<256x128xf32>
    %c8 = arith.constant 8 : index
    %c0_60 = arith.constant 0 : index
    %100 = vector.load %arg12[%c8, %c0_60] : memref<10x784xf32, #tpu.memory_space<vmem>>, vector<1x128xf32>
    %101 = vector.broadcast %100 : vector<1x128xf32> to vector<256x128xf32>
    %102 = arith.addf %99, %101 : vector<256x128xf32>
    %cst_61 = arith.constant 0.000000e+00 : f32
    %103 = vector.broadcast %cst_61 : f32 to vector<256x128xf32>
    %104 = arith.cmpf ogt, %102, %103 : vector<256x128xf32>
    %cst_62 = arith.constant 5.000000e-01 : f32
    %cst_63 = arith.constant 2.500000e-01 : f32
    %105 = vector.broadcast %cst_62 : f32 to vector<256x128xf32>
    %106 = vector.broadcast %cst_63 : f32 to vector<256x128xf32>
    %107 = arith.select %104, %105, %106 : vector<256x128xi1>, vector<256x128xf32>
    %108 = arith.mulf %102, %107 : vector<256x128xf32>
    %109 = arith.truncf %108 : vector<256x128xf32> to vector<256x128xbf16>
    %c0_64 = arith.constant 0 : index
    %c0_65 = arith.constant 0 : index
    %110 = vector.load %arg11[%c0_64, %c0_65] : memref<128x784xbf16, #tpu.memory_space<vmem>>, vector<128x784xbf16>
    %cst_66 = arith.constant dense<0.000000e+00> : vector<256x784xf32>
    %111 = tpu.matmul %109, %110, %cst_66 {dimension_numbers = #tpu.dot_dimension_numbers<[1], [0], [0], [1], [0, 0, 1, 1], [], []>} : vector<256x128xbf16>, vector<128x784xbf16>, vector<256x784xf32> -> vector<256x784xf32>
    %c9 = arith.constant 9 : index
    %c0_67 = arith.constant 0 : index
    %112 = vector.load %arg12[%c9, %c0_67] : memref<10x784xf32, #tpu.memory_space<vmem>>, vector<1x784xf32>
    %113 = vector.broadcast %112 : vector<1x784xf32> to vector<256x784xf32>
    %114 = arith.addf %111, %113 : vector<256x784xf32>
    %cst_68 = arith.constant 5.000000e-01 : f32
    %115 = vector.broadcast %cst_68 : f32 to vector<256x784xf32>
    %116 = arith.mulf %115, %114 : vector<256x784xf32>
    %117 = math.tanh %116 : vector<256x784xf32>
    %cst_69 = arith.constant 1.000000e+00 : f32
    %118 = vector.broadcast %cst_69 : f32 to vector<256x784xf32>
    %119 = arith.addf %118, %117 : vector<256x784xf32>
    %cst_70 = arith.constant 5.000000e-01 : f32
    %120 = vector.broadcast %cst_70 : f32 to vector<256x784xf32>
    %121 = arith.mulf %120, %119 : vector<256x784xf32>
    %c0_71 = arith.constant 0 : index
    %c0_72 = arith.constant 0 : index
    %122 = vector.load %arg13[%c0_71, %c0_72] : memref<256x784xf32, #tpu.memory_space<vmem>>, vector<256x784xf32>
    tpu.vector_store %arg13[%c0_71, %c0_72], %121 {strides = array<i32>} : memref<256x784xf32, #tpu.memory_space<vmem>>, vector<256x784xf32>,
    return
  }
  func.func @transform_0(%arg0: i32) -> (i32, i32) {
    %c0_i32 = arith.constant 0 : i32
    %c0_i32_0 = arith.constant 0 : i32
    return %arg0, %c0_i32 : i32, i32
  }
  func.func @transform_1(%arg0: i32) -> (i32, i32) {
    %c0_i32 = arith.constant 0 : i32
    %c0_i32_0 = arith.constant 0 : i32
    %c0_i32_1 = arith.constant 0 : i32
    return %c0_i32, %c0_i32_0 : i32, i32
  }
  func.func @transform_2(%arg0: i32) -> (i32, i32) {
    %c0_i32 = arith.constant 0 : i32
    %c0_i32_0 = arith.constant 0 : i32
    %c0_i32_1 = arith.constant 0 : i32
    return %c0_i32, %c0_i32_0 : i32, i32
  }
  func.func @transform_3(%arg0: i32) -> (i32, i32) {
    %c0_i32 = arith.constant 0 : i32
    %c0_i32_0 = arith.constant 0 : i32
    %c0_i32_1 = arith.constant 0 : i32
    return %c0_i32, %c0_i32_0 : i32, i32
  }
  func.func @transform_4(%arg0: i32) -> (i32, i32) {
    %c0_i32 = arith.constant 0 : i32
    %c0_i32_0 = arith.constant 0 : i32
    %c0_i32_1 = arith.constant 0 : i32
    return %c0_i32, %c0_i32_0 : i32, i32
  }
  func.func @transform_5(%arg0: i32) -> (i32, i32) {
    %c0_i32 = arith.constant 0 : i32
    %c0_i32_0 = arith.constant 0 : i32
    %c0_i32_1 = arith.constant 0 : i32
    return %c0_i32, %c0_i32_0 : i32, i32
  }
  func.func @transform_6(%arg0: i32) -> (i32, i32) {
    %c0_i32 = arith.constant 0 : i32
    %c0_i32_0 = arith.constant 0 : i32
    %c0_i32_1 = arith.constant 0 : i32
    return %c0_i32, %c0_i32_0 : i32, i32
  }
  func.func @transform_7(%arg0: i32) -> (i32, i32) {
    %c0_i32 = arith.constant 0 : i32
    %c0_i32_0 = arith.constant 0 : i32
    %c0_i32_1 = arith.constant 0 : i32
    return %c0_i32, %c0_i32_0 : i32, i32
  }
  func.func @transform_8(%arg0: i32) -> (i32, i32) {
    %c0_i32 = arith.constant 0 : i32
    %c0_i32_0 = arith.constant 0 : i32
    %c0_i32_1 = arith.constant 0 : i32
    return %c0_i32, %c0_i32_0 : i32, i32
  }
  func.func @transform_9(%arg0: i32) -> (i32, i32) {
    %c0_i32 = arith.constant 0 : i32
    %c0_i32_0 = arith.constant 0 : i32
    %c0_i32_1 = arith.constant 0 : i32
    return %c0_i32, %c0_i32_0 : i32, i32
  }
  func.func @transform_10(%arg0: i32) -> (i32, i32) {
    %c0_i32 = arith.constant 0 : i32
    %c0_i32_0 = arith.constant 0 : i32
    %c0_i32_1 = arith.constant 0 : i32
    return %c0_i32, %c0_i32_0 : i32, i32
  }
  func.func @transform_11(%arg0: i32) -> (i32, i32) {
    %c0_i32 = arith.constant 0 : i32
    %c0_i32_0 = arith.constant 0 : i32
    %c0_i32_1 = arith.constant 0 : i32
    return %c0_i32, %c0_i32_0 : i32, i32
  }
  func.func @transform_12(%arg0: i32) -> (i32, i32) {
    %c0_i32 = arith.constant 0 : i32
    %c0_i32_0 = arith.constant 0 : i32
    return %arg0, %c0_i32 : i32, i32
  }
}

</mosaic_0001>

<llo_original>
// kernel: tpu_custom_call.1
$region0: #{tpu_custom_call.1}
  #allocation0 [shape = 'u32[]', space=smem, size = 0x4, offset = 0x4, fixed_abs, tag = 'smem constant byte address 0x4 - core index']
  #allocation1 [shape = 'u32[144,128]{1,0:T(1,128)}', space=vmem, size = 0x12000, scoped, tag = 'internal scratch']
  %s0 = inlined_call_operand.vmem [shape: f32[512,784], index: 0, kind: input, shape index: {}]
  %s1 = inlined_call_operand.vmem [shape: bf16[784,128], index: 1, kind: input, shape index: {}]
  %s2 = inlined_call_operand.vmem [shape: bf16[128,64], index: 2, kind: input, shape index: {}]
  %s3 = inlined_call_operand.vmem [shape: bf16[64,36], index: 3, kind: input, shape index: {}]
  %s4 = inlined_call_operand.vmem [shape: bf16[36,18], index: 4, kind: input, shape index: {}]
  %s5 = inlined_call_operand.vmem [shape: bf16[18,9], index: 5, kind: input, shape index: {}]
  %s6 = inlined_call_operand.vmem [shape: bf16[9,18], index: 6, kind: input, shape index: {}]
  %s7 = inlined_call_operand.vmem [shape: bf16[18,36], index: 7, kind: input, shape index: {}]
  %s8 = inlined_call_operand.vmem [shape: bf16[36,64], index: 8, kind: input, shape index: {}]
  %s9 = inlined_call_operand.vmem [shape: bf16[64,128], index: 9, kind: input, shape index: {}]
  %s10 = inlined_call_operand.vmem [shape: bf16[128,784], index: 10, kind: input, shape index: {}]
  %s11 = inlined_call_operand.vmem [shape: f32[10,784], index: 11, kind: input, shape index: {}]
  %s12 = inlined_call_operand.vmem [shape: f32[512,784], index: 12, kind: output, shape index: {}]
  %s13 = sld [smem:[#allocation0]]
  $region81: #{tpu_custom_call.1} parent=0
    _
  %s15 = ssub.s32 1, %s13
  %s16 = scalar_select 0, %s15, %s13
  loop: start=0, step=1, limit=4
  $region2: #{tpu_custom_call.1} parent=0 // loop_pre_header
    _
  $region3: #{tpu_custom_call.1} parent=0 // loop_header
    %s18 = sphi 0, %s22
    %p19 = scmp.ge.s32.totalorder %s18, 4
    %s28 = sphi 0, %s30
    %s31 = sphi 0, %s28
    %s32 = sphi 0, %s31
    %s48 = sphi 0, %s32
    %s52 = sphi 0, %s52
    %s54 = sphi 0, %s52
    %s55 = sphi 0, %s54
    %s69 = sphi 0, %s55
    %s73 = sphi 0, %s73
    %s75 = sphi 0, %s73
    %s76 = sphi 0, %s75
    %s90 = sphi 0, %s76
    %s94 = sphi 0, %s94
    %s96 = sphi 0, %s94
    %s97 = sphi 0, %s96
    %s111 = sphi 0, %s97
    %s115 = sphi 0, %s115
    %s117 = sphi 0, %s115
    %s118 = sphi 0, %s117
    %s132 = sphi 0, %s118
    %s136 = sphi 0, %s136
    %s138 = sphi 0, %s136
    %s139 = sphi 0, %s138
    %s153 = sphi 0, %s139
    %s157 = sphi 0, %s157
    %s159 = sphi 0, %s157
    %s160 = sphi 0, %s159
    %s174 = sphi 0, %s160
    %s178 = sphi 0, %s178
    %s180 = sphi 0, %s178
    %s181 = sphi 0, %s180
    %s195 = sphi 0, %s181
    %s199 = sphi 0, %s199
    %s201 = sphi 0, %s199
    %s202 = sphi 0, %s201
    %s216 = sphi 0, %s202
    %s220 = sphi 0, %s220
    %s222 = sphi 0, %s220
    %s223 = sphi 0, %s222
    %s237 = sphi 0, %s223
    %s241 = sphi 0, %s241
    %s243 = sphi 0, %s241
    %s244 = sphi 0, %s243
    %s258 = sphi 0, %s244
    %s262 = sphi 0, %s262
    %s264 = sphi 0, %s262
    %s265 = sphi 0, %s264
    %s279 = sphi 0, %s265
    %s285 = sphi 0, %s287
    %s288 = sphi 0, %s285
    %s289 = sphi 0, %s288
    %s305 = sphi 0, %s289
  $region4: #{tpu_custom_call.1} parent=0 // loop_header_branch
    %21 = sbr.rel (%p19) target = $region8
  $region5: #{tpu_custom_call.1} parent=0 // loop_body
    %s23 = ssub.s32 %s18, 1
    %s24 = ssub.s32 %s18, 2
    %s25 = sadd.s32 %s18, 1
    %s26 = ssub.s32 %s18, %s25
    %p27 = scmp.eq.s32.totalorder %s26, 0
    %s29 = sadd.s32 %s28, 1
    %s30 = scalar_select %p27, %s28, %s29
    %p33 = pneg %p27
    %p34 = scmp.eq.s32.totalorder %s18, 1
    %p35 = por %p33, %p34
    %p36 = scmp.ne.s32.totalorder %s28, %s31
    %p37 = scmp.eq.s32.totalorder %s18, 0
    %p38 = por %p36, %p37
    %p39 = scmp.ne.s32.totalorder %s28, %s31
    %p40 = scmp.eq.s32.totalorder %s23, 1
    %p41 = por %p39, %p40
    %p42 = scmp.ne.s32.totalorder %s31, %s32
    %p43 = scmp.eq.s32.totalorder %s23, 0
    %p44 = por %p42, %p43
    %p45 = scmp.ne.s32.totalorder %s31, %s32
    %p46 = scmp.eq.s32.totalorder %s24, 1
    %p47 = por %p45, %p46
    %p49 = scmp.ne.s32.totalorder %s32, %s48
    %p50 = scmp.eq.s32.totalorder %s24, 0
    %p51 = por %p49, %p50
    %s53 = sadd.s32 %s52, 1
    %p56 = scmp.eq.s32.totalorder %s18, 1
    %p57 = scmp.ne.s32.totalorder %s52, %s54
    %p58 = scmp.eq.s32.totalorder %s18, 0
    %p59 = por %p57, %p58
    %p60 = scmp.ne.s32.totalorder %s52, %s54
    %p61 = scmp.eq.s32.totalorder %s23, 1
    %p62 = por %p60, %p61
    %p63 = scmp.ne.s32.totalorder %s54, %s55
    %p64 = scmp.eq.s32.totalorder %s23, 0
    %p65 = por %p63, %p64
    %p66 = scmp.ne.s32.totalorder %s54, %s55
    %p67 = scmp.eq.s32.totalorder %s24, 1
    %p68 = por %p66, %p67
    %p70 = scmp.ne.s32.totalorder %s55, %s69
    %p71 = scmp.eq.s32.totalorder %s24, 0
    %p72 = por %p70, %p71
    %s74 = sadd.s32 %s73, 1
    %p77 = scmp.eq.s32.totalorder %s18, 1
    %p78 = scmp.ne.s32.totalorder %s73, %s75
    %p79 = scmp.eq.s32.totalorder %s18, 0
    %p80 = por %p78, %p79
    %p81 = scmp.ne.s32.totalorder %s73, %s75
    %p82 = scmp.eq.s32.totalorder %s23, 1
    %p83 = por %p81, %p82
    %p84 = scmp.ne.s32.totalorder %s75, %s76
    %p85 = scmp.eq.s32.totalorder %s23, 0
    %p86 = por %p84, %p85
    %p87 = scmp.ne.s32.totalorder %s75, %s76
    %p88 = scmp.eq.s32.totalorder %s24, 1
    %p89 = por %p87, %p88
    %p91 = scmp.ne.s32.totalorder %s76, %s90
    %p92 = scmp.eq.s32.totalorder %s24, 0
    %p93 = por %p91, %p92
    %s95 = sadd.s32 %s94, 1
    %p98 = scmp.eq.s32.totalorder %s18, 1
    %p99 = scmp.ne.s32.totalorder %s94, %s96
    %p100 = scmp.eq.s32.totalorder %s18, 0
    %p101 = por %p99, %p100
    %p102 = scmp.ne.s32.totalorder %s94, %s96
    %p103 = scmp.eq.s32.totalorder %s23, 1
    %p104 = por %p102, %p103
    %p105 = scmp.ne.s32.totalorder %s96, %s97
    %p106 = scmp.eq.s32.totalorder %s23, 0
    %p107 = por %p105, %p106
    %p108 = scmp.ne.s32.totalorder %s96, %s97
    %p109 = scmp.eq.s32.totalorder %s24, 1
    %p110 = por %p108, %p109
    %p112 = scmp.ne.s32.totalorder %s97, %s111
    %p113 = scmp.eq.s32.totalorder %s24, 0
    %p114 = por %p112, %p113
    %s116 = sadd.s32 %s115, 1
    %p119 = scmp.eq.s32.totalorder %s18, 1
    %p120 = scmp.ne.s32.totalorder %s115, %s117
    %p121 = scmp.eq.s32.totalorder %s18, 0
    %p122 = por %p120, %p121
    %p123 = scmp.ne.s32.totalorder %s115, %s117
    %p124 = scmp.eq.s32.totalorder %s23, 1
    %p125 = por %p123, %p124
    %p126 = scmp.ne.s32.totalorder %s117, %s118
    %p127 = scmp.eq.s32.totalorder %s23, 0
    %p128 = por %p126, %p127
    %p129 = scmp.ne.s32.totalorder %s117, %s118
    %p130 = scmp.eq.s32.totalorder %s24, 1
    %p131 = por %p129, %p130
    %p133 = scmp.ne.s32.totalorder %s118, %s132
    %p134 = scmp.eq.s32.totalorder %s24, 0
    %p135 = por %p133, %p134
    %s137 = sadd.s32 %s136, 1
    %p140 = scmp.eq.s32.totalorder %s18, 1
    %p141 = scmp.ne.s32.totalorder %s136, %s138
    %p142 = scmp.eq.s32.totalorder %s18, 0
    %p143 = por %p141, %p142
    %p144 = scmp.ne.s32.totalorder %s136, %s138
    %p145 = scmp.eq.s32.totalorder %s23, 1
    %p146 = por %p144, %p145
    %p147 = scmp.ne.s32.totalorder %s138, %s139
    %p148 = scmp.eq.s32.totalorder %s23, 0
    %p149 = por %p147, %p148
    %p150 = scmp.ne.s32.totalorder %s138, %s139
    %p151 = scmp.eq.s32.totalorder %s24, 1
    %p152 = por %p150, %p151
    %p154 = scmp.ne.s32.totalorder %s139, %s153
    %p155 = scmp.eq.s32.totalorder %s24, 0
    %p156 = por %p154, %p155
    %s158 = sadd.s32 %s157, 1
    %p161 = scmp.eq.s32.totalorder %s18, 1
    %p162 = scmp.ne.s32.totalorder %s157, %s159
    %p163 = scmp.eq.s32.totalorder %s18, 0
    %p164 = por %p162, %p163
    %p165 = scmp.ne.s32.totalorder %s157, %s159
    %p166 = scmp.eq.s32.totalorder %s23, 1
    %p167 = por %p165, %p166
    %p168 = scmp.ne.s32.totalorder %s159, %s160
    %p169 = scmp.eq.s32.totalorder %s23, 0
    %p170 = por %p168, %p169
    %p171 = scmp.ne.s32.totalorder %s159, %s160
    %p172 = scmp.eq.s32.totalorder %s24, 1
    %p173 = por %p171, %p172
    %p175 = scmp.ne.s32.totalorder %s160, %s174
    %p176 = scmp.eq.s32.totalorder %s24, 0
    %p177 = por %p175, %p176
    %s179 = sadd.s32 %s178, 1
    %p182 = scmp.eq.s32.totalorder %s18, 1
    %p183 = scmp.ne.s32.totalorder %s178, %s180
    %p184 = scmp.eq.s32.totalorder %s18, 0
    %p185 = por %p183, %p184
    %p186 = scmp.ne.s32.totalorder %s178, %s180
    %p187 = scmp.eq.s32.totalorder %s23, 1
    %p188 = por %p186, %p187
    %p189 = scmp.ne.s32.totalorder %s180, %s181
    %p190 = scmp.eq.s32.totalorder %s23, 0
    %p191 = por %p189, %p190
    %p192 = scmp.ne.s32.totalorder %s180, %s181
    %p193 = scmp.eq.s32.totalorder %s24, 1
    %p194 = por %p192, %p193
    %p196 = scmp.ne.s32.totalorder %s181, %s195
    %p197 = scmp.eq.s32.totalorder %s24, 0
    %p198 = por %p196, %p197
    %s200 = sadd.s32 %s199, 1
    %p203 = scmp.eq.s32.totalorder %s18, 1
    %p204 = scmp.ne.s32.totalorder %s199, %s201
    %p205 = scmp.eq.s32.totalorder %s18, 0
    %p206 = por %p204, %p205
    %p207 = scmp.ne.s32.totalorder %s199, %s201
    %p208 = scmp.eq.s32.totalorder %s23, 1
    %p209 = por %p207, %p208
    %p210 = scmp.ne.s32.totalorder %s201, %s202
    %p211 = scmp.eq.s32.totalorder %s23, 0
    %p212 = por %p210, %p211
    %p213 = scmp.ne.s32.totalorder %s201, %s202
    %p214 = scmp.eq.s32.totalorder %s24, 1
    %p215 = por %p213, %p214
    %p217 = scmp.ne.s32.totalorder %s202, %s216
    %p218 = scmp.eq.s32.totalorder %s24, 0
    %p219 = por %p217, %p218
    %s221 = sadd.s32 %s220, 1
    %p224 = scmp.eq.s32.totalorder %s18, 1
    %p225 = scmp.ne.s32.totalorder %s220, %s222
    %p226 = scmp.eq.s32.totalorder %s18, 0
    %p227 = por %p225, %p226
    %p228 = scmp.ne.s32.totalorder %s220, %s222
    %p229 = scmp.eq.s32.totalorder %s23, 1
    %p230 = por %p228, %p229
    %p231 = scmp.ne.s32.totalorder %s222, %s223
    %p232 = scmp.eq.s32.totalorder %s23, 0
    %p233 = por %p231, %p232
    %p234 = scmp.ne.s32.totalorder %s222, %s223
    %p235 = scmp.eq.s32.totalorder %s24, 1
    %p236 = por %p234, %p235
    %p238 = scmp.ne.s32.totalorder %s223, %s237
    %p239 = scmp.eq.s32.totalorder %s24, 0
    %p240 = por %p238, %p239
    %s242 = sadd.s32 %s241, 1
    %p245 = scmp.eq.s32.totalorder %s18, 1
    %p246 = scmp.ne.s32.totalorder %s241, %s243
    %p247 = scmp.eq.s32.totalorder %s18, 0
    %p248 = por %p246, %p247
    %p249 = scmp.ne.s32.totalorder %s241, %s243
    %p250 = scmp.eq.s32.totalorder %s23, 1
    %p251 = por %p249, %p250
    %p252 = scmp.ne.s32.totalorder %s243, %s244
    %p253 = scmp.eq.s32.totalorder %s23, 0
    %p254 = por %p252, %p253
    %p255 = scmp.ne.s32.totalorder %s243, %s244
    %p256 = scmp.eq.s32.totalorder %s24, 1
    %p257 = por %p255, %p256
    %p259 = scmp.ne.s32.totalorder %s244, %s258
    %p260 = scmp.eq.s32.totalorder %s24, 0
    %p261 = por %p259, %p260
    %s263 = sadd.s32 %s262, 1
    %p266 = scmp.eq.s32.totalorder %s18, 1
    %p267 = scmp.ne.s32.totalorder %s262, %s264
    %p268 = scmp.eq.s32.totalorder %s18, 0
    %p269 = por %p267, %p268
    %p270 = scmp.ne.s32.totalorder %s262, %s264
    %p271 = scmp.eq.s32.totalorder %s23, 1
    %p272 = por %p270, %p271
    %p273 = scmp.ne.s32.totalorder %s264, %s265
    %p274 = scmp.eq.s32.totalorder %s23, 0
    %p275 = por %p273, %p274
    %p276 = scmp.ne.s32.totalorder %s264, %s265
    %p277 = scmp.eq.s32.totalorder %s24, 1
    %p278 = por %p276, %p277
    %p280 = scmp.ne.s32.totalorder %s265, %s279
    %p281 = scmp.eq.s32.totalorder %s24, 0
    %p282 = por %p280, %p281
    %s283 = ssub.s32 %s18, %s25
    %p284 = scmp.eq.s32.totalorder %s283, 0
    %s286 = sadd.s32 %s285, 1
    %s287 = scalar_select %p284, %s285, %s286
    %p290 = pneg %p284
    %p291 = scmp.eq.s32.totalorder %s18, 1
    %p292 = por %p290, %p291
    %p293 = scmp.ne.s32.totalorder %s285, %s288
    %p294 = scmp.eq.s32.totalorder %s18, 0
    %p295 = por %p293, %p294
    %p296 = scmp.ne.s32.totalorder %s285, %s288
    %p297 = scmp.eq.s32.totalorder %s23, 1
    %p298 = por %p296, %p297
    %p299 = scmp.ne.s32.totalorder %s288, %s289
    %p300 = scmp.eq.s32.totalorder %s23, 0
    %p301 = por %p299, %p300
    %p302 = scmp.ne.s32.totalorder %s288, %s289
    %p303 = scmp.eq.s32.totalorder %s24, 1
    %p304 = por %p302, %p303
    %p306 = scmp.ne.s32.totalorder %s289, %s305
    %p307 = scmp.eq.s32.totalorder %s24, 0
    %p308 = por %p306, %p307
    %p309 = scmp.le.s32.totalorder 1, %s18
    %p310 = scmp.lt.s32.totalorder %s18, 3
    %p311 = pnand %p309, %p310
    %p312 = pneg %p311
    // Predicated region
    $region9: #{tpu_custom_call.1} parent=5 // pred_check
      _
    $region10: #{tpu_custom_call.1} parent=5 // pred_check_branch
      %314 = sbr.rel (%p311) target = $region12
    $region11: #{tpu_custom_call.1} parent=5 // pred_region
      %s315 = ssub.s32 %s18, 1
      // Predicated region
      $region13: #{tpu_custom_call.1} parent=11 // pred_check
        %p316 = pneg %p65
      $region14: #{tpu_custom_call.1} parent=11 // pred_check_branch
        %318 = sbr.rel (%p316) target = $region16
      $region15: #{tpu_custom_call.1} parent=11 // pred_region
        _
      $region16: #{tpu_custom_call.1} parent=11 // pred_fallthru
        _
      // Predicated region
      $region17: #{tpu_custom_call.1} parent=11 // pred_check
        %p319 = pneg %p86
      $region18: #{tpu_custom_call.1} parent=11 // pred_check_branch
        %321 = sbr.rel (%p319) target = $region20
      $region19: #{tpu_custom_call.1} parent=11 // pred_region
        _
      $region20: #{tpu_custom_call.1} parent=11 // pred_fallthru
        _
      // Predicated region
      $region21: #{tpu_custom_call.1} parent=11 // pred_check
        %p322 = pneg %p107
      $region22: #{tpu_custom_call.1} parent=11 // pred_check_branch
        %324 = sbr.rel (%p322) target = $region24
      $region23: #{tpu_custom_call.1} parent=11 // pred_region
        _
      $region24: #{tpu_custom_call.1} parent=11 // pred_fallthru
        _
      // Predicated region
      $region25: #{tpu_custom_call.1} parent=11 // pred_check
        %p325 = pneg %p128
      $region26: #{tpu_custom_call.1} parent=11 // pred_check_branch
        %327 = sbr.rel (%p325) target = $region28
      $region27: #{tpu_custom_call.1} parent=11 // pred_region
        _
      $region28: #{tpu_custom_call.1} parent=11 // pred_fallthru
        _
      // Predicated region
      $region29: #{tpu_custom_call.1} parent=11 // pred_check
        %p328 = pneg %p149
      $region30: #{tpu_custom_call.1} parent=11 // pred_check_branch
        %330 = sbr.rel (%p328) target = $region32
      $region31: #{tpu_custom_call.1} parent=11 // pred_region
        _
      $region32: #{tpu_custom_call.1} parent=11 // pred_fallthru
        _
      // Predicated region
      $region33: #{tpu_custom_call.1} parent=11 // pred_check
        %p331 = pneg %p170
      $region34: #{tpu_custom_call.1} parent=11 // pred_check_branch
        %333 = sbr.rel (%p331) target = $region36
      $region35: #{tpu_custom_call.1} parent=11 // pred_region
        _
      $region36: #{tpu_custom_call.1} parent=11 // pred_fallthru
        _
      // Predicated region
      $region37: #{tpu_custom_call.1} parent=11 // pred_check
        %p334 = pneg %p191
      $region38: #{tpu_custom_call.1} parent=11 // pred_check_branch
        %336 = sbr.rel (%p334) target = $region40
      $region39: #{tpu_custom_call.1} parent=11 // pred_region
        _
      $region40: #{tpu_custom_call.1} parent=11 // pred_fallthru
        _
      // Predicated region
      $region41: #{tpu_custom_call.1} parent=11 // pred_check
        %p337 = pneg %p212
      $region42: #{tpu_custom_call.1} parent=11 // pred_check_branch
        %339 = sbr.rel (%p337) target = $region44
      $region43: #{tpu_custom_call.1} parent=11 // pred_region
        _
      $region44: #{tpu_custom_call.1} parent=11 // pred_fallthru
        _
      // Predicated region
      $region45: #{tpu_custom_call.1} parent=11 // pred_check
        %p340 = pneg %p233
      $region46: #{tpu_custom_call.1} parent=11 // pred_check_branch
        %342 = sbr.rel (%p340) target = $region48
      $region47: #{tpu_custom_call.1} parent=11 // pred_region
        _
      $region48: #{tpu_custom_call.1} parent=11 // pred_fallthru
        _
      // Predicated region
      $region49: #{tpu_custom_call.1} parent=11 // pred_check
        %p343 = pneg %p254
      $region50: #{tpu_custom_call.1} parent=11 // pred_check_branch
        %345 = sbr.rel (%p343) target = $region52
      $region51: #{tpu_custom_call.1} parent=11 // pred_region
        _
      $region52: #{tpu_custom_call.1} parent=11 // pred_fallthru
        _
      // Predicated region
      $region53: #{tpu_custom_call.1} parent=11 // pred_check
        %p346 = pneg %p275
      $region54: #{tpu_custom_call.1} parent=11 // pred_check_branch
        %348 = sbr.rel (%p346) target = $region56
      $region55: #{tpu_custom_call.1} parent=11 // pred_region
        _
      $region56: #{tpu_custom_call.1} parent=11 // pred_fallthru
        _
    $region12: #{tpu_custom_call.1} parent=5 // pred_fallthru
      _
    %p349 = scmp.lt.s32.totalorder %s18, 2
    // Predicated region
    $region57: #{tpu_custom_call.1} parent=5 // pred_check
      %p350 = pneg %p349
    $region58: #{tpu_custom_call.1} parent=5 // pred_check_branch
      %352 = sbr.rel (%p350) target = $region60
    $region59: #{tpu_custom_call.1} parent=5 // pred_region
      // Predicated region
      $region61: #{tpu_custom_call.1} parent=59 // pred_check
        %p353 = pneg %p38
      $region62: #{tpu_custom_call.1} parent=59 // pred_check_branch
        %355 = sbr.rel (%p353) target = $region64
      $region63: #{tpu_custom_call.1} parent=59 // pred_region
        %s356 = smul.u32 32, %s18
        %p357 = scmp.lt.s32.totalorder %s356, 63
        %s358 = scalar_select %p357, %s356, 63
        %s359 = smul.addr %s358, 7
        %s360 = smul.addr %s359, 8
        %s361 = scalar_lea.vmem %s0, %s360
        %s362 = smul.u32 32, %s18
      $region64: #{tpu_custom_call.1} parent=59 // pred_fallthru
        _
    $region60: #{tpu_custom_call.1} parent=5 // pred_fallthru
      _
    %p363 = scmp.le.s32.totalorder 1, %s18
    %p364 = scmp.lt.s32.totalorder %s18, 3
    %p365 = pnand %p363, %p364
    %p366 = pneg %p365
    // Predicated region
    $region65: #{tpu_custom_call.1} parent=5 // pred_check
      _
    $region66: #{tpu_custom_call.1} parent=5 // pred_check_branch
      %368 = sbr.rel (%p365) target = $region68
    $region67: #{tpu_custom_call.1} parent=5 // pred_region
      %s369 = ssub.s32 %s18, 1
      %s370 = smul.u32 32, %s23
      %p371 = scmp.lt.s32.totalorder %s370, 63
      %s372 = scalar_select %p371, %s370, 63
      %s373 = smul.addr %s372, 7
      %s374 = smul.addr %s373, 8
      %s375 = scalar_lea.vmem %s0, %s374
      %p376 = pneg %p44
      %p377 = pneg %p41
      %p378 = pneg %p65
      %p379 = pneg %p62
      %p380 = pneg %p86
      %p381 = pneg %p83
      %p382 = pneg %p107
      %p383 = pneg %p104
      %p384 = pneg %p128
      %p385 = pneg %p125
      %p386 = pneg %p149
      %p387 = pneg %p146
      %p388 = pneg %p170
      %p389 = pneg %p167
      %p390 = pneg %p191
      %p391 = pneg %p188
      %p392 = pneg %p212
      %p393 = pneg %p209
      %p394 = pneg %p233
      %p395 = pneg %p230
      %p396 = pneg %p254
      %p397 = pneg %p251
      %p398 = pneg %p275
      %p399 = pneg %p272
      %p400 = pneg %p301
      %p401 = pneg %p298
      %s402 = smul.u32 32, %s23
      %p403 = scmp.lt.s32.totalorder %s402, 63
      %s404 = scalar_select %p403, %s402, 63
      %s405 = smul.addr %s404, 7
      %s406 = smul.addr %s405, 8
      %s407 = scalar_lea.vmem %s12, %s406
      %s408 = smul.u32 32, %s23
      %p409 = scmp.lt.s32.totalorder %s408, 63
      %s410 = scalar_select %p409, %s408, 63
      %s411 = smul.addr %s410, 7
      %s412 = smul.addr %s411, 8
      %s413 = scalar_lea.vmem %s0, %s412
      %s414 = smul.u32 32, %s23
      %s415 = smul.u32 32, %s23
      %p416 = scmp.lt.s32.totalorder %s415, 63
      %s417 = scalar_select %p416, %s415, 63
      %s418 = smul.addr %s417, 7
      %s419 = smul.addr %s418, 8
      %s420 = scalar_lea.vmem %s12, %s419
      %s421 = smul.u32 32, %s23
      %v423 = vld [vmem:[%s413] sm:$0xff]
      %v424 = vld [vmem:[%s413 + $0x8] sm:$0xff]
      %v425 = vld [vmem:[%s413 + $0x10] sm:$0xff]
      %v426 = vld [vmem:[%s413 + $0x18] sm:$0xff]
      %v427 = vld [vmem:[%s413 + $0x20] sm:$0xff]
      %v428 = vld [vmem:[%s413 + $0x28] sm:$0xff]
      %v429 = vld [vmem:[%s413 + $0x30] sm:$0xff]
      %v430 = vld [vmem:[%s413 + $0x38] sm:$0xff]
      %v431 = vld [vmem:[%s413 + $0x40] sm:$0xff]
      %v432 = vld [vmem:[%s413 + $0x48] sm:$0xff]
      %v433 = vld [vmem:[%s413 + $0x50] sm:$0xff]
      %v434 = vld [vmem:[%s413 + $0x58] sm:$0xff]
      %v435 = vld [vmem:[%s413 + $0x60] sm:$0xff]
      %v436 = vld [vmem:[%s413 + $0x68] sm:$0xff]
      %v437 = vld [vmem:[%s413 + $0x70] sm:$0xff]
      %v438 = vld [vmem:[%s413 + $0x78] sm:$0xff]
      %v439 = vld [vmem:[%s413 + $0x80] sm:$0xff]
      %v440 = vld [vmem:[%s413 + $0x88] sm:$0xff]
      %v441 = vld [vmem:[%s413 + $0x90] sm:$0xff]
      %v442 = vld [vmem:[%s413 + $0x98] sm:$0xff]
      %v443 = vld [vmem:[%s413 + $0xa0] sm:$0xff]
      %v444 = vld [vmem:[%s413 + $0xa8] sm:$0xff]
      %v445 = vld [vmem:[%s413 + $0xb0] sm:$0xff]
      %v446 = vld [vmem:[%s413 + $0xb8] sm:$0xff]
      %v447 = vld [vmem:[%s413 + $0xc0] sm:$0xff]
      %v448 = vld [vmem:[%s413 + $0xc8] sm:$0xff]
      %v449 = vld [vmem:[%s413 + $0xd0] sm:$0xff]
      %v450 = vld [vmem:[%s413 + $0xd8] sm:$0xff]
      %v451 = vld [vmem:[%s413 + $0xe0] sm:$0xff]
      %v452 = vld [vmem:[%s413 + $0xe8] sm:$0xff]
      %v453 = vld [vmem:[%s413 + $0xf0] sm:$0xff]
      %v454 = vld [vmem:[%s413 + $0xf8] sm:$0xff]
      %v455 = vld [vmem:[%s413 + $0x100] sm:$0xff]
      %v456 = vld [vmem:[%s413 + $0x108] sm:$0xff]
      %v457 = vld [vmem:[%s413 + $0x110] sm:$0xff]
      %v458 = vld [vmem:[%s413 + $0x118] sm:$0xff]
      %v459 = vld [vmem:[%s413 + $0x120] sm:$0xff]
      %v460 = vld [vmem:[%s413 + $0x128] sm:$0xff]
      %v461 = vld [vmem:[%s413 + $0x130] sm:$0xff]
      %v462 = vld [vmem:[%s413 + $0x138] sm:$0xff]
      %v463 = vld [vmem:[%s413 + $0x140] sm:$0xff]
      %v464 = vld [vmem:[%s413 + $0x148] sm:$0xff]
      %v465 = vld [vmem:[%s413 + $0x150] sm:$0xff]
      %v466 = vld [vmem:[%s413 + $0x158] sm:$0xff]
      %v467 = vld [vmem:[%s413 + $0x160] sm:$0xff]
      %v468 = vld [vmem:[%s413 + $0x168] sm:$0xff]
      %v469 = vld [vmem:[%s413 + $0x170] sm:$0xff]
      %v470 = vld [vmem:[%s413 + $0x178] sm:$0xff]
      %v471 = vld [vmem:[%s413 + $0x180] sm:$0xff]
      %v472 = vld [vmem:[%s413 + $0x188] sm:$0xff]
      %v473 = vld [vmem:[%s413 + $0x190] sm:$0xff]
      %v474 = vld [vmem:[%s413 + $0x198] sm:$0xff]
      %v475 = vld [vmem:[%s413 + $0x1a0] sm:$0xff]
      %v476 = vld [vmem:[%s413 + $0x1a8] sm:$0xff]
      %v477 = vld [vmem:[%s413 + $0x1b0] sm:$0xff]
      %v478 = vld [vmem:[%s413 + $0x1b8] sm:$0xff]
      %v479 = vld [vmem:[%s413 + $0x1c0] sm:$0xff]
      %v480 = vld [vmem:[%s413 + $0x1c8] sm:$0xff]
      %v481 = vld [vmem:[%s413 + $0x1d0] sm:$0xff]
      %v482 = vld [vmem:[%s413 + $0x1d8] sm:$0xff]
      %v483 = vld [vmem:[%s413 + $0x1e0] sm:$0xff]
      %v484 = vld [vmem:[%s413 + $0x1e8] sm:$0xff]
      %v485 = vld [vmem:[%s413 + $0x1f0] sm:$0xff]
      %v486 = vld [vmem:[%s413 + $0x1f8] sm:$0xff]
      %v487 = vld [vmem:[%s413 + $0x200] sm:$0xff]
      %v488 = vld [vmem:[%s413 + $0x208] sm:$0xff]
      %v489 = vld [vmem:[%s413 + $0x210] sm:$0xff]
      %v490 = vld [vmem:[%s413 + $0x218] sm:$0xff]
      %v491 = vld [vmem:[%s413 + $0x220] sm:$0xff]
      %v492 = vld [vmem:[%s413 + $0x228] sm:$0xff]
      %v493 = vld [vmem:[%s413 + $0x230] sm:$0xff]
      %v494 = vld [vmem:[%s413 + $0x238] sm:$0xff]
      %v495 = vld [vmem:[%s413 + $0x240] sm:$0xff]
      %v496 = vld [vmem:[%s413 + $0x248] sm:$0xff]
      %v497 = vld [vmem:[%s413 + $0x250] sm:$0xff]
      %v498 = vld [vmem:[%s413 + $0x258] sm:$0xff]
      %v499 = vld [vmem:[%s413 + $0x260] sm:$0xff]
      %v500 = vld [vmem:[%s413 + $0x268] sm:$0xff]
      %v501 = vld [vmem:[%s413 + $0x270] sm:$0xff]
      %v502 = vld [vmem:[%s413 + $0x278] sm:$0xff]
      %v503 = vld [vmem:[%s413 + $0x280] sm:$0xff]
      %v504 = vld [vmem:[%s413 + $0x288] sm:$0xff]
      %v505 = vld [vmem:[%s413 + $0x290] sm:$0xff]
      %v506 = vld [vmem:[%s413 + $0x298] sm:$0xff]
      %v507 = vld [vmem:[%s413 + $0x2a0] sm:$0xff]
      %v508 = vld [vmem:[%s413 + $0x2a8] sm:$0xff]
      %v509 = vld [vmem:[%s413 + $0x2b0] sm:$0xff]
      %v510 = vld [vmem:[%s413 + $0x2b8] sm:$0xff]
      %v511 = vld [vmem:[%s413 + $0x2c0] sm:$0xff]
      %v512 = vld [vmem:[%s413 + $0x2c8] sm:$0xff]
      %v513 = vld [vmem:[%s413 + $0x2d0] sm:$0xff]
      %v514 = vld [vmem:[%s413 + $0x2d8] sm:$0xff]
      %v515 = vld [vmem:[%s413 + $0x2e0] sm:$0xff]
      %v516 = vld [vmem:[%s413 + $0x2e8] sm:$0xff]
      %v517 = vld [vmem:[%s413 + $0x2f0] sm:$0xff]
      %v518 = vld [vmem:[%s413 + $0x2f8] sm:$0xff]
      %v519 = vld [vmem:[%s413 + $0x300] sm:$0xff]
      %v520 = vld [vmem:[%s413 + $0x308] sm:$0xff]
      %v521 = vld [vmem:[%s413 + $0x310] sm:$0xff]
      %v522 = vld [vmem:[%s413 + $0x318] sm:$0xff]
      %v523 = vld [vmem:[%s413 + $0x320] sm:$0xff]
      %v524 = vld [vmem:[%s413 + $0x328] sm:$0xff]
      %v525 = vld [vmem:[%s413 + $0x330] sm:$0xff]
      %v526 = vld [vmem:[%s413 + $0x338] sm:$0xff]
      %v527 = vld [vmem:[%s413 + $0x340] sm:$0xff]
      %v528 = vld [vmem:[%s413 + $0x348] sm:$0xff]
      %v529 = vld [vmem:[%s413 + $0x350] sm:$0xff]
      %v530 = vld [vmem:[%s413 + $0x358] sm:$0xff]
      %v531 = vld [vmem:[%s413 + $0x360] sm:$0xff]
      %v532 = vld [vmem:[%s413 + $0x368] sm:$0xff]
      %v533 = vld [vmem:[%s413 + $0x370] sm:$0xff]
      %v534 = vld [vmem:[%s413 + $0x378] sm:$0xff]
      %v535 = vld [vmem:[%s413 + $0x380] sm:$0xff]
      %v536 = vld [vmem:[%s413 + $0x388] sm:$0xff]
      %v537 = vld [vmem:[%s413 + $0x390] sm:$0xff]
      %v538 = vld [vmem:[%s413 + $0x398] sm:$0xff]
      %v539 = vld [vmem:[%s413 + $0x3a0] sm:$0xff]
      %v540 = vld [vmem:[%s413 + $0x3a8] sm:$0xff]
      %v541 = vld [vmem:[%s413 + $0x3b0] sm:$0xff]
      %v542 = vld [vmem:[%s413 + $0x3b8] sm:$0xff]
      %v543 = vld [vmem:[%s413 + $0x3c0] sm:$0xff]
      %v544 = vld [vmem:[%s413 + $0x3c8] sm:$0xff]
      %v545 = vld [vmem:[%s413 + $0x3d0] sm:$0xff]
      %v546 = vld [vmem:[%s413 + $0x3d8] sm:$0xff]
      %v547 = vld [vmem:[%s413 + $0x3e0] sm:$0xff]
      %v548 = vld [vmem:[%s413 + $0x3e8] sm:$0xff]
      %v549 = vld [vmem:[%s413 + $0x3f0] sm:$0xff]
      %v550 = vld [vmem:[%s413 + $0x3f8] sm:$0xff]
      %v551 = vld [vmem:[%s413 + $0x400] sm:$0xff]
      %v552 = vld [vmem:[%s413 + $0x408] sm:$0xff]
      %v553 = vld [vmem:[%s413 + $0x410] sm:$0xff]
      %v554 = vld [vmem:[%s413 + $0x418] sm:$0xff]
      %v555 = vld [vmem:[%s413 + $0x420] sm:$0xff]
      %v556 = vld [vmem:[%s413 + $0x428] sm:$0xff]
      %v557 = vld [vmem:[%s413 + $0x430] sm:$0xff]
      %v558 = vld [vmem:[%s413 + $0x438] sm:$0xff]
      %v559 = vld [vmem:[%s413 + $0x440] sm:$0xff]
      %v560 = vld [vmem:[%s413 + $0x448] sm:$0xff]
      %v561 = vld [vmem:[%s413 + $0x450] sm:$0xff]
      %v562 = vld [vmem:[%s413 + $0x458] sm:$0xff]
      %v563 = vld [vmem:[%s413 + $0x460] sm:$0xff]
      %v564 = vld [vmem:[%s413 + $0x468] sm:$0xff]
      %v565 = vld [vmem:[%s413 + $0x470] sm:$0xff]
      %v566 = vld [vmem:[%s413 + $0x478] sm:$0xff]
      %v567 = vld [vmem:[%s413 + $0x480] sm:$0xff]
      %v568 = vld [vmem:[%s413 + $0x488] sm:$0xff]
      %v569 = vld [vmem:[%s413 + $0x490] sm:$0xff]
      %v570 = vld [vmem:[%s413 + $0x498] sm:$0xff]
      %v571 = vld [vmem:[%s413 + $0x4a0] sm:$0xff]
      %v572 = vld [vmem:[%s413 + $0x4a8] sm:$0xff]
      %v573 = vld [vmem:[%s413 + $0x4b0] sm:$0xff]
      %v574 = vld [vmem:[%s413 + $0x4b8] sm:$0xff]
      %v575 = vld [vmem:[%s413 + $0x4c0] sm:$0xff]
      %v576 = vld [vmem:[%s413 + $0x4c8] sm:$0xff]
      %v577 = vld [vmem:[%s413 + $0x4d0] sm:$0xff]
      %v578 = vld [vmem:[%s413 + $0x4d8] sm:$0xff]
      %v579 = vld [vmem:[%s413 + $0x4e0] sm:$0xff]
      %v580 = vld [vmem:[%s413 + $0x4e8] sm:$0xff]
      %v581 = vld [vmem:[%s413 + $0x4f0] sm:$0xff]
      %v582 = vld [vmem:[%s413 + $0x4f8] sm:$0xff]
      %v583 = vld [vmem:[%s413 + $0x500] sm:$0xff]
      %v584 = vld [vmem:[%s413 + $0x508] sm:$0xff]
      %v585 = vld [vmem:[%s413 + $0x510] sm:$0xff]
      %v586 = vld [vmem:[%s413 + $0x518] sm:$0xff]
      %v587 = vld [vmem:[%s413 + $0x520] sm:$0xff]
      %v588 = vld [vmem:[%s413 + $0x528] sm:$0xff]
      %v589 = vld [vmem:[%s413 + $0x530] sm:$0xff]
      %v590 = vld [vmem:[%s413 + $0x538] sm:$0xff]
      %v591 = vld [vmem:[%s413 + $0x540] sm:$0xff]
      %v592 = vld [vmem:[%s413 + $0x548] sm:$0xff]
      %v593 = vld [vmem:[%s413 + $0x550] sm:$0xff]
      %v594 = vld [vmem:[%s413 + $0x558] sm:$0xff]
      %v595 = vld [vmem:[%s413 + $0x560] sm:$0xff]
      %v596 = vld [vmem:[%s413 + $0x568] sm:$0xff]
      %v597 = vld [vmem:[%s413 + $0x570] sm:$0xff]
      %v598 = vld [vmem:[%s413 + $0x578] sm:$0xff]
      %v599 = vld [vmem:[%s413 + $0x580] sm:$0xff]
      %v600 = vld [vmem:[%s413 + $0x588] sm:$0xff]
      %v601 = vld [vmem:[%s413 + $0x590] sm:$0xff]
      %v602 = vld [vmem:[%s413 + $0x598] sm:$0xff]
      %v603 = vld [vmem:[%s413 + $0x5a0] sm:$0xff]
      %v604 = vld [vmem:[%s413 + $0x5a8] sm:$0xff]
      %v605 = vld [vmem:[%s413 + $0x5b0] sm:$0xff]
      %v606 = vld [vmem:[%s413 + $0x5b8] sm:$0xff]
      %v607 = vld [vmem:[%s413 + $0x5c0] sm:$0xff]
      %v608 = vld [vmem:[%s413 + $0x5c8] sm:$0xff]
      %v609 = vld [vmem:[%s413 + $0x5d0] sm:$0xff]
      %v610 = vld [vmem:[%s413 + $0x5d8] sm:$0xff]
      %v611 = vld [vmem:[%s413 + $0x5e0] sm:$0xff]
      %v612 = vld [vmem:[%s413 + $0x5e8] sm:$0xff]
      %v613 = vld [vmem:[%s413 + $0x5f0] sm:$0xff]
      %v614 = vld [vmem:[%s413 + $0x5f8] sm:$0xff]
      %v615 = vld [vmem:[%s413 + $0x600] sm:$0xff]
      %v616 = vld [vmem:[%s413 + $0x608] sm:$0xff]
      %v617 = vld [vmem:[%s413 + $0x610] sm:$0xff]
      %v618 = vld [vmem:[%s413 + $0x618] sm:$0xff]
      %v619 = vld [vmem:[%s413 + $0x620] sm:$0xff]
      %v620 = vld [vmem:[%s413 + $0x628] sm:$0xff]
      %v621 = vld [vmem:[%s413 + $0x630] sm:$0xff]
      %v622 = vld [vmem:[%s413 + $0x638] sm:$0xff]
      %v623 = vld [vmem:[%s413 + $0x640] sm:$0xff]
      %v624 = vld [vmem:[%s413 + $0x648] sm:$0xff]
      %v625 = vld [vmem:[%s413 + $0x650] sm:$0xff]
      %v626 = vld [vmem:[%s413 + $0x658] sm:$0xff]
      %v627 = vld [vmem:[%s413 + $0x660] sm:$0xff]
      %v628 = vld [vmem:[%s413 + $0x668] sm:$0xff]
      %v629 = vld [vmem:[%s413 + $0x670] sm:$0xff]
      %v630 = vld [vmem:[%s413 + $0x678] sm:$0xff]
      %v631 = vld [vmem:[%s413 + $0x680] sm:$0xff]
      %v632 = vld [vmem:[%s413 + $0x688] sm:$0xff]
      %v633 = vld [vmem:[%s413 + $0x690] sm:$0xff]
      %v634 = vld [vmem:[%s413 + $0x698] sm:$0xff]
      %v635 = vld [vmem:[%s413 + $0x6a0] sm:$0xff]
      %v636 = vld [vmem:[%s413 + $0x6a8] sm:$0xff]
      %v637 = vld [vmem:[%s413 + $0x6b0] sm:$0xff]
      %v638 = vld [vmem:[%s413 + $0x6b8] sm:$0xff]
      %v639 = vld [vmem:[%s413 + $0x6c0] sm:$0xff]
      %v640 = vld [vmem:[%s413 + $0x6c8] sm:$0xff]
      %v641 = vld [vmem:[%s413 + $0x6d0] sm:$0xff]
      %v642 = vld [vmem:[%s413 + $0x6d8] sm:$0xff]
      %v643 = vld [vmem:[%s413 + $0x6e0] sm:$0xff]
      %v644 = vld [vmem:[%s413 + $0x6e8] sm:$0xff]
      %v645 = vld [vmem:[%s413 + $0x6f0] sm:$0xff]
      %v646 = vld [vmem:[%s413 + $0x6f8] sm:$0xff]
      %v647 = vpack.c.bf16 %v430, %v423
      %v648 = vpack.c.bf16 %v431, %v424
      %v649 = vpack.c.bf16 %v432, %v425
      %v650 = vpack.c.bf16 %v433, %v426
      %v651 = vpack.c.bf16 %v434, %v427
      %v652 = vpack.c.bf16 %v435, %v428
      %v653 = vpack.c.bf16 %v436, %v429
      %v654 = vpack.c.bf16 %v444, %v437
      %v655 = vpack.c.bf16 %v445, %v438
      %v656 = vpack.c.bf16 %v446, %v439
      %v657 = vpack.c.bf16 %v447, %v440
      %v658 = vpack.c.bf16 %v448, %v441
      %v659 = vpack.c.bf16 %v449, %v442
      %v660 = vpack.c.bf16 %v450, %v443
      %v661 = vpack.c.bf16 %v458, %v451
      %v662 = vpack.c.bf16 %v459, %v452
      %v663 = vpack.c.bf16 %v460, %v453
      %v664 = vpack.c.bf16 %v461, %v454
      %v665 = vpack.c.bf16 %v462, %v455
      %v666 = vpack.c.bf16 %v463, %v456
      %v667 = vpack.c.bf16 %v464, %v457
      %v668 = vpack.c.bf16 %v472, %v465
      %v669 = vpack.c.bf16 %v473, %v466
      %v670 = vpack.c.bf16 %v474, %v467
      %v671 = vpack.c.bf16 %v475, %v468
      %v672 = vpack.c.bf16 %v476, %v469
      %v673 = vpack.c.bf16 %v477, %v470
      %v674 = vpack.c.bf16 %v478, %v471
      %v675 = vpack.c.bf16 %v486, %v479
      %v676 = vpack.c.bf16 %v487, %v480
      %v677 = vpack.c.bf16 %v488, %v481
      %v678 = vpack.c.bf16 %v489, %v482
      %v679 = vpack.c.bf16 %v490, %v483
      %v680 = vpack.c.bf16 %v491, %v484
      %v681 = vpack.c.bf16 %v492, %v485
      %v682 = vpack.c.bf16 %v500, %v493
      %v683 = vpack.c.bf16 %v501, %v494
      %v684 = vpack.c.bf16 %v502, %v495
      %v685 = vpack.c.bf16 %v503, %v496
      %v686 = vpack.c.bf16 %v504, %v497
      %v687 = vpack.c.bf16 %v505, %v498
      %v688 = vpack.c.bf16 %v506, %v499
      %v689 = vpack.c.bf16 %v514, %v507
      %v690 = vpack.c.bf16 %v515, %v508
      %v691 = vpack.c.bf16 %v516, %v509
      %v692 = vpack.c.bf16 %v517, %v510
      %v693 = vpack.c.bf16 %v518, %v511
      %v694 = vpack.c.bf16 %v519, %v512
      %v695 = vpack.c.bf16 %v520, %v513
      %v696 = vpack.c.bf16 %v528, %v521
      %v697 = vpack.c.bf16 %v529, %v522
      %v698 = vpack.c.bf16 %v530, %v523
      %v699 = vpack.c.bf16 %v531, %v524
      %v700 = vpack.c.bf16 %v532, %v525
      %v701 = vpack.c.bf16 %v533, %v526
      %v702 = vpack.c.bf16 %v534, %v527
      %v703 = vpack.c.bf16 %v542, %v535
      %v704 = vpack.c.bf16 %v543, %v536
      %v705 = vpack.c.bf16 %v544, %v537
      %v706 = vpack.c.bf16 %v545, %v538
      %v707 = vpack.c.bf16 %v546, %v539
      %v708 = vpack.c.bf16 %v547, %v540
      %v709 = vpack.c.bf16 %v548, %v541
      %v710 = vpack.c.bf16 %v556, %v549
      %v711 = vpack.c.bf16 %v557, %v550
      %v712 = vpack.c.bf16 %v558, %v551
      %v713 = vpack.c.bf16 %v559, %v552
      %v714 = vpack.c.bf16 %v560, %v553
      %v715 = vpack.c.bf16 %v561, %v554
      %v716 = vpack.c.bf16 %v562, %v555
      %v717 = vpack.c.bf16 %v570, %v563
      %v718 = vpack.c.bf16 %v571, %v564
      %v719 = vpack.c.bf16 %v572, %v565
      %v720 = vpack.c.bf16 %v573, %v566
      %v721 = vpack.c.bf16 %v574, %v567
      %v722 = vpack.c.bf16 %v575, %v568
      %v723 = vpack.c.bf16 %v576, %v569
      %v724 = vpack.c.bf16 %v584, %v577
      %v725 = vpack.c.bf16 %v585, %v578
      %v726 = vpack.c.bf16 %v586, %v579
      %v727 = vpack.c.bf16 %v587, %v580
      %v728 = vpack.c.bf16 %v588, %v581
      %v729 = vpack.c.bf16 %v589, %v582
      %v730 = vpack.c.bf16 %v590, %v583
      %v731 = vpack.c.bf16 %v598, %v591
      %v732 = vpack.c.bf16 %v599, %v592
      %v733 = vpack.c.bf16 %v600, %v593
      %v734 = vpack.c.bf16 %v601, %v594
      %v735 = vpack.c.bf16 %v602, %v595
      %v736 = vpack.c.bf16 %v603, %v596
      %v737 = vpack.c.bf16 %v604, %v597
      %v738 = vpack.c.bf16 %v612, %v605
      %v739 = vpack.c.bf16 %v613, %v606
      %v740 = vpack.c.bf16 %v614, %v607
      %v741 = vpack.c.bf16 %v615, %v608
      %v742 = vpack.c.bf16 %v616, %v609
      %v743 = vpack.c.bf16 %v617, %v610
      %v744 = vpack.c.bf16 %v618, %v611
      %v745 = vpack.c.bf16 %v626, %v619
      %v746 = vpack.c.bf16 %v627, %v620
      %v747 = vpack.c.bf16 %v628, %v621
      %v748 = vpack.c.bf16 %v629, %v622
      %v749 = vpack.c.bf16 %v630, %v623
      %v750 = vpack.c.bf16 %v631, %v624
      %v751 = vpack.c.bf16 %v632, %v625
      %v752 = vpack.c.bf16 %v640, %v633
      %v753 = vpack.c.bf16 %v641, %v634
      %v754 = vpack.c.bf16 %v642, %v635
      %v755 = vpack.c.bf16 %v643, %v636
      %v756 = vpack.c.bf16 %v644, %v637
      %v757 = vpack.c.bf16 %v645, %v638
      %v758 = vpack.c.bf16 %v646, %v639
      %v759 = vld [vmem:[%s1] sm:$0xf]
      %v760 = vld [vmem:[%s1 + $0x4] sm:$0xf]
      %v761 = vld [vmem:[%s1 + $0x8] sm:$0xf]
      %v762 = vld [vmem:[%s1 + $0xc] sm:$0xf]
      %v763 = vld [vmem:[%s1 + $0x10] sm:$0xf]
      %v764 = vld [vmem:[%s1 + $0x14] sm:$0xf]
      %v765 = vld [vmem:[%s1 + $0x18] sm:$0xf]
      %v766 = vld [vmem:[%s1 + $0x1c] sm:$0xf]
      %v767 = vld [vmem:[%s1 + $0x20] sm:$0xf]
      %v768 = vld [vmem:[%s1 + $0x24] sm:$0xf]
      %v769 = vld [vmem:[%s1 + $0x28] sm:$0xf]
      %v770 = vld [vmem:[%s1 + $0x2c] sm:$0xf]
      %v771 = vld [vmem:[%s1 + $0x30] sm:$0xf]
      %v772 = vld [vmem:[%s1 + $0x34] sm:$0xf]
      %v773 = vld [vmem:[%s1 + $0x38] sm:$0xf]
      %v774 = vld [vmem:[%s1 + $0x3c] sm:$0xf]
      %v775 = vld [vmem:[%s1 + $0x40] sm:$0xf]
      %v776 = vld [vmem:[%s1 + $0x44] sm:$0xf]
      %v777 = vld [vmem:[%s1 + $0x48] sm:$0xf]
      %v778 = vld [vmem:[%s1 + $0x4c] sm:$0xf]
      %v779 = vld [vmem:[%s1 + $0x50] sm:$0xf]
      %v780 = vld [vmem:[%s1 + $0x54] sm:$0xf]
      %v781 = vld [vmem:[%s1 + $0x58] sm:$0xf]
      %v782 = vld [vmem:[%s1 + $0x5c] sm:$0xf]
      %v783 = vld [vmem:[%s1 + $0x60] sm:$0xf]
      %v784 = vld [vmem:[%s1 + $0x64] sm:$0xf]
      %v785 = vld [vmem:[%s1 + $0x68] sm:$0xf]
      %v786 = vld [vmem:[%s1 + $0x6c] sm:$0xf]
      %v787 = vld [vmem:[%s1 + $0x70] sm:$0xf]
      %v788 = vld [vmem:[%s1 + $0x74] sm:$0xf]
      %v789 = vld [vmem:[%s1 + $0x78] sm:$0xf]
      %v790 = vld [vmem:[%s1 + $0x7c] sm:$0xf]
      %v791 = vld [vmem:[%s1 + $0x80] sm:$0xf]
      %v792 = vld [vmem:[%s1 + $0x84] sm:$0xf]
      %v793 = vld [vmem:[%s1 + $0x88] sm:$0xf]
      %v794 = vld [vmem:[%s1 + $0x8c] sm:$0xf]
      %v795 = vld [vmem:[%s1 + $0x90] sm:$0xf]
      %v796 = vld [vmem:[%s1 + $0x94] sm:$0xf]
      %v797 = vld [vmem:[%s1 + $0x98] sm:$0xf]
      %v798 = vld [vmem:[%s1 + $0x9c] sm:$0xf]
      %v799 = vld [vmem:[%s1 + $0xa0] sm:$0xf]
      %v800 = vld [vmem:[%s1 + $0xa4] sm:$0xf]
      %v801 = vld [vmem:[%s1 + $0xa8] sm:$0xf]
      %v802 = vld [vmem:[%s1 + $0xac] sm:$0xf]
      %v803 = vld [vmem:[%s1 + $0xb0] sm:$0xf]
      %v804 = vld [vmem:[%s1 + $0xb4] sm:$0xf]
      %v805 = vld [vmem:[%s1 + $0xb8] sm:$0xf]
      %v806 = vld [vmem:[%s1 + $0xbc] sm:$0xf]
      %v807 = vld [vmem:[%s1 + $0xc0] sm:$0xf]
      %v808 = vld [vmem:[%s1 + $0xc4] sm:$0xf]
      %v809 = vld [vmem:[%s1 + $0xc8] sm:$0xf]
      %v810 = vld [vmem:[%s1 + $0xcc] sm:$0xf]
      %v811 = vld [vmem:[%s1 + $0xd0] sm:$0xf]
      %v812 = vld [vmem:[%s1 + $0xd4] sm:$0xf]
      %v813 = vld [vmem:[%s1 + $0xd8] sm:$0xf]
      %v814 = vld [vmem:[%s1 + $0xdc] sm:$0xf]
      %v815 = vld [vmem:[%s1 + $0xe0] sm:$0xf]
      %v816 = vld [vmem:[%s1 + $0xe4] sm:$0xf]
      %v817 = vld [vmem:[%s1 + $0xe8] sm:$0xf]
      %v818 = vld [vmem:[%s1 + $0xec] sm:$0xf]
      %v819 = vld [vmem:[%s1 + $0xf0] sm:$0xf]
      %v820 = vld [vmem:[%s1 + $0xf4] sm:$0xf]
      %v821 = vld [vmem:[%s1 + $0xf8] sm:$0xf]
      %v822 = vld [vmem:[%s1 + $0xfc] sm:$0xf]
      %v823 = vld [vmem:[%s1 + $0x100] sm:$0xf]
      %v824 = vld [vmem:[%s1 + $0x104] sm:$0xf]
      %v825 = vld [vmem:[%s1 + $0x108] sm:$0xf]
      %v826 = vld [vmem:[%s1 + $0x10c] sm:$0xf]
      %v827 = vld [vmem:[%s1 + $0x110] sm:$0xf]
      %v828 = vld [vmem:[%s1 + $0x114] sm:$0xf]
      %v829 = vld [vmem:[%s1 + $0x118] sm:$0xf]
      %v830 = vld [vmem:[%s1 + $0x11c] sm:$0xf]
      %v831 = vld [vmem:[%s1 + $0x120] sm:$0xf]
      %v832 = vld [vmem:[%s1 + $0x124] sm:$0xf]
      %v833 = vld [vmem:[%s1 + $0x128] sm:$0xf]
      %v834 = vld [vmem:[%s1 + $0x12c] sm:$0xf]
      %v835 = vld [vmem:[%s1 + $0x130] sm:$0xf]
      %v836 = vld [vmem:[%s1 + $0x134] sm:$0xf]
      %v837 = vld [vmem:[%s1 + $0x138] sm:$0xf]
      %v838 = vld [vmem:[%s1 + $0x13c] sm:$0xf]
      %v839 = vld [vmem:[%s1 + $0x140] sm:$0xf]
      %v840 = vld [vmem:[%s1 + $0x144] sm:$0xf]
      %v841 = vld [vmem:[%s1 + $0x148] sm:$0xf]
      %v842 = vld [vmem:[%s1 + $0x14c] sm:$0xf]
      %v843 = vld [vmem:[%s1 + $0x150] sm:$0xf]
      %v844 = vld [vmem:[%s1 + $0x154] sm:$0xf]
      %v845 = vld [vmem:[%s1 + $0x158] sm:$0xf]
      %v846 = vld [vmem:[%s1 + $0x15c] sm:$0xf]
      %v847 = vld [vmem:[%s1 + $0x160] sm:$0xf]
      %v848 = vld [vmem:[%s1 + $0x164] sm:$0xf]
      %v849 = vld [vmem:[%s1 + $0x168] sm:$0xf]
      %v850 = vld [vmem:[%s1 + $0x16c] sm:$0xf]
      %v851 = vld [vmem:[%s1 + $0x170] sm:$0xf]
      %v852 = vld [vmem:[%s1 + $0x174] sm:$0xf]
      %v853 = vld [vmem:[%s1 + $0x178] sm:$0xf]
      %v854 = vld [vmem:[%s1 + $0x17c] sm:$0xf]
      %v855 = vld [vmem:[%s1 + $0x180] sm:$0xf]
      %v856 = vld [vmem:[%s1 + $0x184] sm:$0xf]
      %v857 = vld [vmem:[%s11] ss:$0 sm:$0xff]
      %v956 = vunpack.c.l.b16 %v759
      %v957 = vunpack.c.l.b16 %v760
      %v958 = vunpack.c.l.b16 %v761
      %v959 = vunpack.c.l.b16 %v762
      %v960 = vunpack.c.l.b16 %v763
      %v961 = vunpack.c.l.b16 %v764
      %v962 = vunpack.c.l.b16 %v765
      %v963 = vunpack.c.l.b16 %v766
      %v964 = vunpack.c.l.b16 %v767
      %v965 = vunpack.c.l.b16 %v768
      %v966 = vunpack.c.l.b16 %v769
      %v967 = vunpack.c.l.b16 %v770
      %v968 = vunpack.c.l.b16 %v771
      %v969 = vunpack.c.l.b16 %v772
      %v970 = vunpack.c.l.b16 %v773
      %v971 = vunpack.c.l.b16 %v774
      %v972 = vunpack.c.l.b16 %v775
      %v973 = vunpack.c.l.b16 %v776
      %v974 = vunpack.c.l.b16 %v777
      %v975 = vunpack.c.l.b16 %v778
      %v976 = vunpack.c.l.b16 %v779
      %v977 = vunpack.c.l.b16 %v780
      %v978 = vunpack.c.l.b16 %v781
      %v979 = vunpack.c.l.b16 %v782
      %v980 = vunpack.c.l.b16 %v783
      %v981 = vunpack.c.l.b16 %v784
      %v982 = vunpack.c.l.b16 %v785
      %v983 = vunpack.c.l.b16 %v786
      %v984 = vunpack.c.l.b16 %v787
      %v985 = vunpack.c.l.b16 %v788
      %v986 = vunpack.c.l.b16 %v789
      %v987 = vunpack.c.l.b16 %v790
      %v988 = vunpack.c.l.b16 %v791
      %v989 = vunpack.c.l.b16 %v792
      %v990 = vunpack.c.l.b16 %v793
      %v991 = vunpack.c.l.b16 %v794
      %v992 = vunpack.c.l.b16 %v795
      %v993 = vunpack.c.l.b16 %v796
      %v994 = vunpack.c.l.b16 %v797
      %v995 = vunpack.c.l.b16 %v798
      %v996 = vunpack.c.l.b16 %v799
      %v997 = vunpack.c.l.b16 %v800
      %v998 = vunpack.c.l.b16 %v801
      %v999 = vunpack.c.l.b16 %v802
      %v1000 = vunpack.c.l.b16 %v803
      %v1001 = vunpack.c.l.b16 %v804
      %v1002 = vunpack.c.l.b16 %v805
      %v1003 = vunpack.c.l.b16 %v806
      %v1004 = vunpack.c.l.b16 %v807
      %v1005 = vunpack.c.l.b16 %v808
      %v1006 = vunpack.c.l.b16 %v809
      %v1007 = vunpack.c.l.b16 %v810
      %v1008 = vunpack.c.l.b16 %v811
      %v1009 = vunpack.c.l.b16 %v812
      %v1010 = vunpack.c.l.b16 %v813
      %v1011 = vunpack.c.l.b16 %v814
      %v1012 = vunpack.c.l.b16 %v815
      %v1013 = vunpack.c.l.b16 %v816
      %v1014 = vunpack.c.l.b16 %v817
      %v1015 = vunpack.c.l.b16 %v818
      %v1016 = vunpack.c.l.b16 %v819
      %v1017 = vunpack.c.l.b16 %v820
      %v1018 = vunpack.c.l.b16 %v821
      %v1019 = vunpack.c.l.b16 %v822
      %v1020 = vunpack.c.l.b16 %v823
      %v1021 = vunpack.c.l.b16 %v824
      %v1022 = vunpack.c.l.b16 %v825
      %v1023 = vunpack.c.l.b16 %v826
      %v1024 = vunpack.c.l.b16 %v827
      %v1025 = vunpack.c.l.b16 %v828
      %v1026 = vunpack.c.l.b16 %v829
      %v1027 = vunpack.c.l.b16 %v830
      %v1028 = vunpack.c.l.b16 %v831
      %v1029 = vunpack.c.l.b16 %v832
      %v1030 = vunpack.c.l.b16 %v833
      %v1031 = vunpack.c.l.b16 %v834
      %v1032 = vunpack.c.l.b16 %v835
      %v1033 = vunpack.c.l.b16 %v836
      %v1034 = vunpack.c.l.b16 %v837
      %v1035 = vunpack.c.l.b16 %v838
      %v1036 = vunpack.c.l.b16 %v839
      %v1037 = vunpack.c.l.b16 %v840
      %v1038 = vunpack.c.l.b16 %v841
      %v1039 = vunpack.c.l.b16 %v842
      %v1040 = vunpack.c.l.b16 %v843
      %v1041 = vunpack.c.l.b16 %v844
      %v1042 = vunpack.c.l.b16 %v845
      %v1043 = vunpack.c.l.b16 %v846
      %v1044 = vunpack.c.l.b16 %v847
      %v1045 = vunpack.c.l.b16 %v848
      %v1046 = vunpack.c.l.b16 %v849
      %v1047 = vunpack.c.l.b16 %v850
      %v1048 = vunpack.c.l.b16 %v851
      %v1049 = vunpack.c.l.b16 %v852
      %v1050 = vunpack.c.l.b16 %v853
      %v1051 = vunpack.c.l.b16 %v854
      %v1052 = vunpack.c.l.b16 %v855
      %v1053 = vunpack.c.l.b16 %v856
      %v1054 = vpack.c.b16 %v957, %v956
      %v1055 = vpack.c.b16 %v959, %v958
      %v1056 = vpack.c.b16 %v961, %v960
      %v1057 = vpack.c.b16 %v963, %v962
      %v1058 = vpack.c.b16 %v965, %v964
      %v1059 = vpack.c.b16 %v967, %v966
      %v1060 = vpack.c.b16 %v969, %v968
      %v1061 = vpack.c.b16 %v971, %v970
      %v1062 = vpack.c.b16 %v973, %v972
      %v1063 = vpack.c.b16 %v975, %v974
      %v1064 = vpack.c.b16 %v977, %v976
      %v1065 = vpack.c.b16 %v979, %v978
      %v1066 = vpack.c.b16 %v981, %v980
      %v1067 = vpack.c.b16 %v983, %v982
      %v1068 = vpack.c.b16 %v985, %v984
      %v1069 = vpack.c.b16 %v987, %v986
      %v1070 = vpack.c.b16 %v989, %v988
      %v1071 = vpack.c.b16 %v991, %v990
      %v1072 = vpack.c.b16 %v993, %v992
      %v1073 = vpack.c.b16 %v995, %v994
      %v1074 = vpack.c.b16 %v997, %v996
      %v1075 = vpack.c.b16 %v999, %v998
      %v1076 = vpack.c.b16 %v1001, %v1000
      %v1077 = vpack.c.b16 %v1003, %v1002
      %v1078 = vpack.c.b16 %v1005, %v1004
      %v1079 = vpack.c.b16 %v1007, %v1006
      %v1080 = vpack.c.b16 %v1009, %v1008
      %v1081 = vpack.c.b16 %v1011, %v1010
      %v1082 = vpack.c.b16 %v1013, %v1012
      %v1083 = vpack.c.b16 %v1015, %v1014
      %v1084 = vpack.c.b16 %v1017, %v1016
      %v1085 = vpack.c.b16 %v1019, %v1018
      %v1086 = vpack.c.b16 %v1021, %v1020
      %v1087 = vpack.c.b16 %v1023, %v1022
      %v1088 = vpack.c.b16 %v1025, %v1024
      %v1089 = vpack.c.b16 %v1027, %v1026
      %v1090 = vpack.c.b16 %v1029, %v1028
      %v1091 = vpack.c.b16 %v1031, %v1030
      %v1092 = vpack.c.b16 %v1033, %v1032
      %v1093 = vpack.c.b16 %v1035, %v1034
      %v1094 = vpack.c.b16 %v1037, %v1036
      %v1095 = vpack.c.b16 %v1039, %v1038
      %v1096 = vpack.c.b16 %v1041, %v1040
      %v1097 = vpack.c.b16 %v1043, %v1042
      %v1098 = vpack.c.b16 %v1045, %v1044
      %v1099 = vpack.c.b16 %v1047, %v1046
      %v1100 = vpack.c.b16 %v1049, %v1048
      %v1101 = vpack.c.b16 %v1051, %v1050
      %v1102 = vpack.c.b16 %v1053, %v1052
      %vm1152 = vcmask 130048
      %v1154 = vsel %vm1152, %v653, 0
      %v1157 = vsel %vm1152, %v660, 0
      %v1160 = vsel %vm1152, %v667, 0
      %v1163 = vsel %vm1152, %v674, 0
      %v1166 = vsel %vm1152, %v681, 0
      %v1169 = vsel %vm1152, %v688, 0
      %v1172 = vsel %vm1152, %v695, 0
      %v1175 = vsel %vm1152, %v702, 0
      %v1178 = vsel %vm1152, %v709, 0
      %v1181 = vsel %vm1152, %v716, 0
      %v1184 = vsel %vm1152, %v723, 0
      %v1187 = vsel %vm1152, %v730, 0
      %v1190 = vsel %vm1152, %v737, 0
      %v1193 = vsel %vm1152, %v744, 0
      %v1196 = vsel %vm1152, %v751, 0
      %v1199 = vsel %vm1152, %v758, 0
      %1201 = vmatprep.subr.bf16.mxu0 0
      %1202 = vmatpush1.bf16.msra.mxu0 %v1061
      %1203 = vmatprep.subr.bf16.mxu0 0
      %1204 = vmatpush1.bf16.msra.mxu0 %v1060
      %1205 = vmatprep.subr.bf16.mxu0 0
      %1206 = vmatpush1.bf16.msra.mxu0 %v1059
      %1207 = vmatprep.subr.bf16.mxu0 0
      %1208 = vmatpush1.bf16.msra.mxu0 %v1058
      %1209 = vmatprep.subr.bf16.mxu0 0
      %1210 = vmatpush1.bf16.msra.mxu0 %v1057
      %1211 = vmatprep.subr.bf16.mxu0 0
      %1212 = vmatpush1.bf16.msra.mxu0 %v1056
      %1213 = vmatprep.subr.bf16.mxu0 0
      %1214 = vmatpush1.bf16.msra.mxu0 %v1055
      %1215 = vmatprep.subr.bf16.mxu0 0
      %1216 = vmatpush1.bf16.msra.mxu0 %v1054
      %1217 = vmatprep.subr.bf16.mxu0 0
      %1218 = vmatpush2.bf16.msra.mxu0 %v1069
      %1219 = vmatprep.subr.bf16.mxu0 0
      %1220 = vmatpush2.bf16.msra.mxu0 %v1068
      %1221 = vmatprep.subr.bf16.mxu0 0
      %1222 = vmatpush2.bf16.msra.mxu0 %v1067
      %1223 = vmatprep.subr.bf16.mxu0 0
      %1224 = vmatpush2.bf16.msra.mxu0 %v1066
      %1225 = vmatprep.subr.bf16.mxu0 0
      %1226 = vmatpush2.bf16.msra.mxu0 %v1065
      %1227 = vmatprep.subr.bf16.mxu0 0
      %1228 = vmatpush2.bf16.msra.mxu0 %v1064
      %1229 = vmatprep.subr.bf16.mxu0 0
      %1230 = vmatpush2.bf16.msra.mxu0 %v1063
      %1231 = vmatprep.subr.bf16.mxu0 0
      %1232 = vmatpush2.bf16.msra.mxu0 %v1062
      %1233 = vmatprep.mubr.bf16.mxu0 %v648
      %1234 = vmatmul.mubr.bf16.gmra.mxu0 %v647
      %v1235 = vpop.f32.mrf.mxu0
      %v1236 = vadd.f32 %v857, %v1235
      %v1237 = vpop.f32.mrf.mxu0
      %v1238 = vpop.f32.mrf.mxu0
      %v1239 = vadd.f32 %v857, %v1238
      %v1240 = vpop.f32.mrf.mxu0
      %1241 = vmatprep.mubr.bf16.mxu0 %v655
      %1242 = vmatmul.mubr.bf16.gmra.mxu0 %v654
      %v1243 = vpop.f32.mrf.mxu0
      %v1244 = vadd.f32 %v857, %v1243
      %v1245 = vpop.f32.mrf.mxu0
      %v1246 = vpop.f32.mrf.mxu0
      %v1247 = vadd.f32 %v857, %v1246
      %v1248 = vpop.f32.mrf.mxu0
      %1249 = vmatprep.mubr.bf16.mxu0 %v662
      %1250 = vmatmul.mubr.bf16.gmra.mxu0 %v661
      %v1251 = vpop.f32.mrf.mxu0
      %v1252 = vadd.f32 %v857, %v1251
      %v1253 = vpop.f32.mrf.mxu0
      %v1254 = vpop.f32.mrf.mxu0
      %v1255 = vadd.f32 %v857, %v1254
      %v1256 = vpop.f32.mrf.mxu0
      %1257 = vmatprep.mubr.bf16.mxu0 %v669
      %1258 = vmatmul.mubr.bf16.gmra.mxu0 %v668
      %v1259 = vpop.f32.mrf.mxu0
      %v1260 = vadd.f32 %v857, %v1259
      %v1261 = vpop.f32.mrf.mxu0
      %v1262 = vpop.f32.mrf.mxu0
      %v1263 = vadd.f32 %v857, %v1262
      %v1264 = vpop.f32.mrf.mxu0
      %1265 = vmatprep.mubr.bf16.mxu0 %v676
      %1266 = vmatmul.mubr.bf16.gmra.mxu0 %v675
      %v1267 = vpop.f32.mrf.mxu0
      %v1268 = vadd.f32 %v857, %v1267
      %v1269 = vpop.f32.mrf.mxu0
      %v1270 = vpop.f32.mrf.mxu0
      %v1271 = vadd.f32 %v857, %v1270
      %v1272 = vpop.f32.mrf.mxu0
      %1273 = vmatprep.mubr.bf16.mxu0 %v683
      %1274 = vmatmul.mubr.bf16.gmra.mxu0 %v682
      %v1275 = vpop.f32.mrf.mxu0
      %v1276 = vadd.f32 %v857, %v1275
      %v1277 = vpop.f32.mrf.mxu0
      %v1278 = vpop.f32.mrf.mxu0
      %v1279 = vadd.f32 %v857, %v1278
      %v1280 = vpop.f32.mrf.mxu0
      %1281 = vmatprep.mubr.bf16.mxu0 %v690
      %1282 = vmatmul.mubr.bf16.gmra.mxu0 %v689
      %v1283 = vpop.f32.mrf.mxu0
      %v1284 = vadd.f32 %v857, %v1283
      %v1285 = vpop.f32.mrf.mxu0
      %v1286 = vpop.f32.mrf.mxu0
      %v1287 = vadd.f32 %v857, %v1286
      %v1288 = vpop.f32.mrf.mxu0
      %1289 = vmatprep.mubr.bf16.mxu0 %v697
      %1290 = vmatmul.mubr.bf16.gmra.mxu0 %v696
      %v1291 = vpop.f32.mrf.mxu0
      %v1292 = vadd.f32 %v857, %v1291
      %v1293 = vpop.f32.mrf.mxu0
      %v1294 = vpop.f32.mrf.mxu0
      %v1295 = vadd.f32 %v857, %v1294
      %v1296 = vpop.f32.mrf.mxu0
      %1297 = vmatprep.mubr.bf16.mxu0 %v704
      %1298 = vmatmul.mubr.bf16.gmra.mxu0 %v703
      %v1299 = vpop.f32.mrf.mxu0
      %v1300 = vadd.f32 %v857, %v1299
      %v1301 = vpop.f32.mrf.mxu0
      %v1302 = vpop.f32.mrf.mxu0
      %v1303 = vadd.f32 %v857, %v1302
      %v1304 = vpop.f32.mrf.mxu0
      %1305 = vmatprep.mubr.bf16.mxu0 %v711
      %1306 = vmatmul.mubr.bf16.gmra.mxu0 %v710
      %v1307 = vpop.f32.mrf.mxu0
      %v1308 = vadd.f32 %v857, %v1307
      %v1309 = vpop.f32.mrf.mxu0
      %v1310 = vpop.f32.mrf.mxu0
      %v1311 = vadd.f32 %v857, %v1310
      %v1312 = vpop.f32.mrf.mxu0
      %1313 = vmatprep.mubr.bf16.mxu0 %v718
      %1314 = vmatmul.mubr.bf16.gmra.mxu0 %v717
      %v1315 = vpop.f32.mrf.mxu0
      %v1316 = vadd.f32 %v857, %v1315
      %v1317 = vpop.f32.mrf.mxu0
      %v1318 = vpop.f32.mrf.mxu0
      %v1319 = vadd.f32 %v857, %v1318
      %v1320 = vpop.f32.mrf.mxu0
      %1321 = vmatprep.mubr.bf16.mxu0 %v725
      %1322 = vmatmul.mubr.bf16.gmra.mxu0 %v724
      %v1323 = vpop.f32.mrf.mxu0
      %v1324 = vadd.f32 %v857, %v1323
      %v1325 = vpop.f32.mrf.mxu0
      %v1326 = vpop.f32.mrf.mxu0
      %v1327 = vadd.f32 %v857, %v1326
      %v1328 = vpop.f32.mrf.mxu0
      %1329 = vmatprep.mubr.bf16.mxu0 %v732
      %1330 = vmatmul.mubr.bf16.gmra.mxu0 %v731
      %v1331 = vpop.f32.mrf.mxu0
      %v1332 = vadd.f32 %v857, %v1331
      %v1333 = vpop.f32.mrf.mxu0
      %v1334 = vpop.f32.mrf.mxu0
      %v1335 = vadd.f32 %v857, %v1334
      %v1336 = vpop.f32.mrf.mxu0
      %1337 = vmatprep.mubr.bf16.mxu0 %v739
      %1338 = vmatmul.mubr.bf16.gmra.mxu0 %v738
      %v1339 = vpop.f32.mrf.mxu0
      %v1340 = vadd.f32 %v857, %v1339
      %v1341 = vpop.f32.mrf.mxu0
      %v1342 = vpop.f32.mrf.mxu0
      %v1343 = vadd.f32 %v857, %v1342
      %v1344 = vpop.f32.mrf.mxu0
      %1345 = vmatprep.mubr.bf16.mxu0 %v746
      %1346 = vmatmul.mubr.bf16.gmra.mxu0 %v745
      %v1347 = vpop.f32.mrf.mxu0
      %v1348 = vadd.f32 %v857, %v1347
      %v1349 = vpop.f32.mrf.mxu0
      %v1350 = vpop.f32.mrf.mxu0
      %v1351 = vadd.f32 %v857, %v1350
      %v1352 = vpop.f32.mrf.mxu0
      %1353 = vmatprep.mubr.bf16.mxu0 %v753
      %1354 = vmatmul.mubr.bf16.gmra.mxu0 %v752
      %v1355 = vpop.f32.mrf.mxu0
      %v1356 = vadd.f32 %v857, %v1355
      %v1357 = vpop.f32.mrf.mxu0
      %v1358 = vpop.f32.mrf.mxu0
      %v1359 = vadd.f32 %v857, %v1358
      %v1360 = vpop.f32.mrf.mxu0
      %1361 = vdwg.mxu0
      %1362 = vmatprep.subr.bf16.mxu0 0
      %1363 = vmatpush1.bf16.msra.mxu0 %v1077
      %1364 = vmatprep.subr.bf16.mxu0 0
      %1365 = vmatpush1.bf16.msra.mxu0 %v1076
      %1366 = vmatprep.subr.bf16.mxu0 0
      %1367 = vmatpush1.bf16.msra.mxu0 %v1075
      %1368 = vmatprep.subr.bf16.mxu0 0
      %1369 = vmatpush1.bf16.msra.mxu0 %v1074
      %1370 = vmatprep.subr.bf16.mxu0 0
      %1371 = vmatpush1.bf16.msra.mxu0 %v1073
      %1372 = vmatprep.subr.bf16.mxu0 0
      %1373 = vmatpush1.bf16.msra.mxu0 %v1072
      %1374 = vmatprep.subr.bf16.mxu0 0
      %1375 = vmatpush1.bf16.msra.mxu0 %v1071
      %1376 = vmatprep.subr.bf16.mxu0 0
      %1377 = vmatpush1.bf16.msra.mxu0 %v1070
      %1378 = vmatprep.subr.bf16.mxu0 0
      %1379 = vmatpush2.bf16.msra.mxu0 %v1085
      %1380 = vmatprep.subr.bf16.mxu0 0
      %1381 = vmatpush2.bf16.msra.mxu0 %v1084
      %1382 = vmatprep.subr.bf16.mxu0 0
      %1383 = vmatpush2.bf16.msra.mxu0 %v1083
      %1384 = vmatprep.subr.bf16.mxu0 0
      %1385 = vmatpush2.bf16.msra.mxu0 %v1082
      %1386 = vmatprep.subr.bf16.mxu0 0
      %1387 = vmatpush2.bf16.msra.mxu0 %v1081
      %1388 = vmatprep.subr.bf16.mxu0 0
      %1389 = vmatpush2.bf16.msra.mxu0 %v1080
      %1390 = vmatprep.subr.bf16.mxu0 0
      %1391 = vmatpush2.bf16.msra.mxu0 %v1079
      %1392 = vmatprep.subr.bf16.mxu0 0
      %1393 = vmatpush2.bf16.msra.mxu0 %v1078
      %1394 = vmatprep.mubr.bf16.mxu0 %v650
      %1395 = vmatmul.mubr.bf16.gmra.mxu0 %v649
      %v1396 = vpop.f32.mrf.mxu0
      %v1397 = vadd.f32 %v1236, %v1396
      %v1398 = vpop.f32.mrf.mxu0
      %v1399 = vpop.f32.mrf.mxu0
      %v1400 = vadd.f32 %v1239, %v1399
      %v1401 = vpop.f32.mrf.mxu0
      %1402 = vmatprep.mubr.bf16.mxu0 %v657
      %1403 = vmatmul.mubr.bf16.gmra.mxu0 %v656
      %v1404 = vpop.f32.mrf.mxu0
      %v1405 = vadd.f32 %v1244, %v1404
      %v1406 = vpop.f32.mrf.mxu0
      %v1407 = vpop.f32.mrf.mxu0
      %v1408 = vadd.f32 %v1247, %v1407
      %v1409 = vpop.f32.mrf.mxu0
      %1410 = vmatprep.mubr.bf16.mxu0 %v664
      %1411 = vmatmul.mubr.bf16.gmra.mxu0 %v663
      %v1412 = vpop.f32.mrf.mxu0
      %v1413 = vadd.f32 %v1252, %v1412
      %v1414 = vpop.f32.mrf.mxu0
      %v1415 = vpop.f32.mrf.mxu0
      %v1416 = vadd.f32 %v1255, %v1415
      %v1417 = vpop.f32.mrf.mxu0
      %1418 = vmatprep.mubr.bf16.mxu0 %v671
      %1419 = vmatmul.mubr.bf16.gmra.mxu0 %v670
      %v1420 = vpop.f32.mrf.mxu0
      %v1421 = vadd.f32 %v1260, %v1420
      %v1422 = vpop.f32.mrf.mxu0
      %v1423 = vpop.f32.mrf.mxu0
      %v1424 = vadd.f32 %v1263, %v1423
      %v1425 = vpop.f32.mrf.mxu0
      %1426 = vmatprep.mubr.bf16.mxu0 %v678
      %1427 = vmatmul.mubr.bf16.gmra.mxu0 %v677
      %v1428 = vpop.f32.mrf.mxu0
      %v1429 = vadd.f32 %v1268, %v1428
      %v1430 = vpop.f32.mrf.mxu0
      %v1431 = vpop.f32.mrf.mxu0
      %v1432 = vadd.f32 %v1271, %v1431
      %v1433 = vpop.f32.mrf.mxu0
      %1434 = vmatprep.mubr.bf16.mxu0 %v685
      %1435 = vmatmul.mubr.bf16.gmra.mxu0 %v684
      %v1436 = vpop.f32.mrf.mxu0
      %v1437 = vadd.f32 %v1276, %v1436
      %v1438 = vpop.f32.mrf.mxu0
      %v1439 = vpop.f32.mrf.mxu0
      %v1440 = vadd.f32 %v1279, %v1439
      %v1441 = vpop.f32.mrf.mxu0
      %1442 = vmatprep.mubr.bf16.mxu0 %v692
      %1443 = vmatmul.mubr.bf16.gmra.mxu0 %v691
      %v1444 = vpop.f32.mrf.mxu0
      %v1445 = vadd.f32 %v1284, %v1444
      %v1446 = vpop.f32.mrf.mxu0
      %v1447 = vpop.f32.mrf.mxu0
      %v1448 = vadd.f32 %v1287, %v1447
      %v1449 = vpop.f32.mrf.mxu0
      %1450 = vmatprep.mubr.bf16.mxu0 %v699
      %1451 = vmatmul.mubr.bf16.gmra.mxu0 %v698
      %v1452 = vpop.f32.mrf.mxu0
      %v1453 = vadd.f32 %v1292, %v1452
      %v1454 = vpop.f32.mrf.mxu0
      %v1455 = vpop.f32.mrf.mxu0
      %v1456 = vadd.f32 %v1295, %v1455
      %v1457 = vpop.f32.mrf.mxu0
      %1458 = vmatprep.mubr.bf16.mxu0 %v706
      %1459 = vmatmul.mubr.bf16.gmra.mxu0 %v705
      %v1460 = vpop.f32.mrf.mxu0
      %v1461 = vadd.f32 %v1300, %v1460
      %v1462 = vpop.f32.mrf.mxu0
      %v1463 = vpop.f32.mrf.mxu0
      %v1464 = vadd.f32 %v1303, %v1463
      %v1465 = vpop.f32.mrf.mxu0
      %1466 = vmatprep.mubr.bf16.mxu0 %v713
      %1467 = vmatmul.mubr.bf16.gmra.mxu0 %v712
      %v1468 = vpop.f32.mrf.mxu0
      %v1469 = vadd.f32 %v1308, %v1468
      %v1470 = vpop.f32.mrf.mxu0
      %v1471 = vpop.f32.mrf.mxu0
      %v1472 = vadd.f32 %v1311, %v1471
      %v1473 = vpop.f32.mrf.mxu0
      %1474 = vmatprep.mubr.bf16.mxu0 %v720
      %1475 = vmatmul.mubr.bf16.gmra.mxu0 %v719
      %v1476 = vpop.f32.mrf.mxu0
      %v1477 = vadd.f32 %v1316, %v1476
      %v1478 = vpop.f32.mrf.mxu0
      %v1479 = vpop.f32.mrf.mxu0
      %v1480 = vadd.f32 %v1319, %v1479
      %v1481 = vpop.f32.mrf.mxu0
      %1482 = vmatprep.mubr.bf16.mxu0 %v727
      %1483 = vmatmul.mubr.bf16.gmra.mxu0 %v726
      %v1484 = vpop.f32.mrf.mxu0
      %v1485 = vadd.f32 %v1324, %v1484
      %v1486 = vpop.f32.mrf.mxu0
      %v1487 = vpop.f32.mrf.mxu0
      %v1488 = vadd.f32 %v1327, %v1487
      %v1489 = vpop.f32.mrf.mxu0
      %1490 = vmatprep.mubr.bf16.mxu0 %v734
      %1491 = vmatmul.mubr.bf16.gmra.mxu0 %v733
      %v1492 = vpop.f32.mrf.mxu0
      %v1493 = vadd.f32 %v1332, %v1492
      %v1494 = vpop.f32.mrf.mxu0
      %v1495 = vpop.f32.mrf.mxu0
      %v1496 = vadd.f32 %v1335, %v1495
      %v1497 = vpop.f32.mrf.mxu0
      %1498 = vmatprep.mubr.bf16.mxu0 %v741
      %1499 = vmatmul.mubr.bf16.gmra.mxu0 %v740
      %v1500 = vpop.f32.mrf.mxu0
      %v1501 = vadd.f32 %v1340, %v1500
      %v1502 = vpop.f32.mrf.mxu0
      %v1503 = vpop.f32.mrf.mxu0
      %v1504 = vadd.f32 %v1343, %v1503
      %v1505 = vpop.f32.mrf.mxu0
      %1506 = vmatprep.mubr.bf16.mxu0 %v748
      %1507 = vmatmul.mubr.bf16.gmra.mxu0 %v747
      %v1508 = vpop.f32.mrf.mxu0
      %v1509 = vadd.f32 %v1348, %v1508
      %v1510 = vpop.f32.mrf.mxu0
      %v1511 = vpop.f32.mrf.mxu0
      %v1512 = vadd.f32 %v1351, %v1511
      %v1513 = vpop.f32.mrf.mxu0
      %1514 = vmatprep.mubr.bf16.mxu0 %v755
      %1515 = vmatmul.mubr.bf16.gmra.mxu0 %v754
      %v1516 = vpop.f32.mrf.mxu0
      %v1517 = vadd.f32 %v1356, %v1516
      %v1518 = vpop.f32.mrf.mxu0
      %v1519 = vpop.f32.mrf.mxu0
      %v1520 = vadd.f32 %v1359, %v1519
      %v1521 = vpop.f32.mrf.mxu0
      %1522 = vdwg.mxu0
      %1523 = vmatprep.subr.bf16.mxu0 0
      %1524 = vmatpush1.bf16.msra.mxu0 %v1093
      %1525 = vmatprep.subr.bf16.mxu0 0
      %1526 = vmatpush1.bf16.msra.mxu0 %v1092
      %1527 = vmatprep.subr.bf16.mxu0 0
      %1528 = vmatpush1.bf16.msra.mxu0 %v1091
      %1529 = vmatprep.subr.bf16.mxu0 0
      %1530 = vmatpush1.bf16.msra.mxu0 %v1090
      %1531 = vmatprep.subr.bf16.mxu0 0
      %1532 = vmatpush1.bf16.msra.mxu0 %v1089
      %1533 = vmatprep.subr.bf16.mxu0 0
      %1534 = vmatpush1.bf16.msra.mxu0 %v1088
      %1535 = vmatprep.subr.bf16.mxu0 0
      %1536 = vmatpush1.bf16.msra.mxu0 %v1087
      %1537 = vmatprep.subr.bf16.mxu0 0
      %1538 = vmatpush1.bf16.msra.mxu0 %v1086
      %1539 = vmatprep.subr.bf16.mxu0 0
      %1540 = vmatpush2.bf16.msra.mxu0 %v1101
      %1541 = vmatprep.subr.bf16.mxu0 0
      %1542 = vmatpush2.bf16.msra.mxu0 %v1100
      %1543 = vmatprep.subr.bf16.mxu0 0
      %1544 = vmatpush2.bf16.msra.mxu0 %v1099
      %1545 = vmatprep.subr.bf16.mxu0 0
      %1546 = vmatpush2.bf16.msra.mxu0 %v1098
      %1547 = vmatprep.subr.bf16.mxu0 0
      %1548 = vmatpush2.bf16.msra.mxu0 %v1097
      %1549 = vmatprep.subr.bf16.mxu0 0
      %1550 = vmatpush2.bf16.msra.mxu0 %v1096
      %1551 = vmatprep.subr.bf16.mxu0 0
      %1552 = vmatpush2.bf16.msra.mxu0 %v1095
      %1553 = vmatprep.subr.bf16.mxu0 0
      %1554 = vmatpush2.bf16.msra.mxu0 %v1094
      %1555 = vmatprep.mubr.bf16.mxu0 %v652
      %1556 = vmatmul.mubr.bf16.gmra.mxu0 %v651
      %v1557 = vpop.f32.mrf.mxu0
      %v1558 = vadd.f32 %v1397, %v1557
      %v1559 = vpop.f32.mrf.mxu0
      %v1560 = vpop.f32.mrf.mxu0
      %v1561 = vadd.f32 %v1400, %v1560
      %v1562 = vpop.f32.mrf.mxu0
      %1563 = vmatprep.mubr.bf16.mxu0 %v659
      %1564 = vmatmul.mubr.bf16.gmra.mxu0 %v658
      %v1565 = vpop.f32.mrf.mxu0
      %v1566 = vadd.f32 %v1405, %v1565
      %v1567 = vpop.f32.mrf.mxu0
      %v1568 = vpop.f32.mrf.mxu0
      %v1569 = vadd.f32 %v1408, %v1568
      %v1570 = vpop.f32.mrf.mxu0
      %1571 = vmatprep.mubr.bf16.mxu0 %v666
      %1572 = vmatmul.mubr.bf16.gmra.mxu0 %v665
      %v1573 = vpop.f32.mrf.mxu0
      %v1574 = vadd.f32 %v1413, %v1573
      %v1575 = vpop.f32.mrf.mxu0
      %v1576 = vpop.f32.mrf.mxu0
      %v1577 = vadd.f32 %v1416, %v1576
      %v1578 = vpop.f32.mrf.mxu0
      %1579 = vmatprep.mubr.bf16.mxu0 %v673
      %1580 = vmatmul.mubr.bf16.gmra.mxu0 %v672
      %v1581 = vpop.f32.mrf.mxu0
      %v1582 = vadd.f32 %v1421, %v1581
      %v1583 = vpop.f32.mrf.mxu0
      %v1584 = vpop.f32.mrf.mxu0
      %v1585 = vadd.f32 %v1424, %v1584
      %v1586 = vpop.f32.mrf.mxu0
      %1587 = vmatprep.mubr.bf16.mxu0 %v680
      %1588 = vmatmul.mubr.bf16.gmra.mxu0 %v679
      %v1589 = vpop.f32.mrf.mxu0
      %v1590 = vadd.f32 %v1429, %v1589
      %v1591 = vpop.f32.mrf.mxu0
      %v1592 = vpop.f32.mrf.mxu0
      %v1593 = vadd.f32 %v1432, %v1592
      %v1594 = vpop.f32.mrf.mxu0
      %1595 = vmatprep.mubr.bf16.mxu0 %v687
      %1596 = vmatmul.mubr.bf16.gmra.mxu0 %v686
      %v1597 = vpop.f32.mrf.mxu0
      %v1598 = vadd.f32 %v1437, %v1597
      %v1599 = vpop.f32.mrf.mxu0
      %v1600 = vpop.f32.mrf.mxu0
      %v1601 = vadd.f32 %v1440, %v1600
      %v1602 = vpop.f32.mrf.mxu0
      %1603 = vmatprep.mubr.bf16.mxu0 %v694
      %1604 = vmatmul.mubr.bf16.gmra.mxu0 %v693
      %v1605 = vpop.f32.mrf.mxu0
      %v1606 = vadd.f32 %v1445, %v1605
      %v1607 = vpop.f32.mrf.mxu0
      %v1608 = vpop.f32.mrf.mxu0
      %v1609 = vadd.f32 %v1448, %v1608
      %v1610 = vpop.f32.mrf.mxu0
      %1611 = vmatprep.mubr.bf16.mxu0 %v701
      %1612 = vmatmul.mubr.bf16.gmra.mxu0 %v700
      %v1613 = vpop.f32.mrf.mxu0
      %v1614 = vadd.f32 %v1453, %v1613
      %v1615 = vpop.f32.mrf.mxu0
      %v1616 = vpop.f32.mrf.mxu0
      %v1617 = vadd.f32 %v1456, %v1616
      %v1618 = vpop.f32.mrf.mxu0
      %1619 = vmatprep.mubr.bf16.mxu0 %v708
      %1620 = vmatmul.mubr.bf16.gmra.mxu0 %v707
      %v1621 = vpop.f32.mrf.mxu0
      %v1622 = vadd.f32 %v1461, %v1621
      %v1623 = vpop.f32.mrf.mxu0
      %v1624 = vpop.f32.mrf.mxu0
      %v1625 = vadd.f32 %v1464, %v1624
      %v1626 = vpop.f32.mrf.mxu0
      %1627 = vmatprep.mubr.bf16.mxu0 %v715
      %1628 = vmatmul.mubr.bf16.gmra.mxu0 %v714
      %v1629 = vpop.f32.mrf.mxu0
      %v1630 = vadd.f32 %v1469, %v1629
      %v1631 = vpop.f32.mrf.mxu0
      %v1632 = vpop.f32.mrf.mxu0
      %v1633 = vadd.f32 %v1472, %v1632
      %v1634 = vpop.f32.mrf.mxu0
      %1635 = vmatprep.mubr.bf16.mxu0 %v722
      %1636 = vmatmul.mubr.bf16.gmra.mxu0 %v721
      %v1637 = vpop.f32.mrf.mxu0
      %v1638 = vadd.f32 %v1477, %v1637
      %v1639 = vpop.f32.mrf.mxu0
      %v1640 = vpop.f32.mrf.mxu0
      %v1641 = vadd.f32 %v1480, %v1640
      %v1642 = vpop.f32.mrf.mxu0
      %1643 = vmatprep.mubr.bf16.mxu0 %v729
      %1644 = vmatmul.mubr.bf16.gmra.mxu0 %v728
      %v1645 = vpop.f32.mrf.mxu0
      %v1646 = vadd.f32 %v1485, %v1645
      %v1647 = vpop.f32.mrf.mxu0
      %v1648 = vpop.f32.mrf.mxu0
      %v1649 = vadd.f32 %v1488, %v1648
      %v1650 = vpop.f32.mrf.mxu0
      %1651 = vmatprep.mubr.bf16.mxu0 %v736
      %1652 = vmatmul.mubr.bf16.gmra.mxu0 %v735
      %v1653 = vpop.f32.mrf.mxu0
      %v1654 = vadd.f32 %v1493, %v1653
      %v1655 = vpop.f32.mrf.mxu0
      %v1656 = vpop.f32.mrf.mxu0
      %v1657 = vadd.f32 %v1496, %v1656
      %v1658 = vpop.f32.mrf.mxu0
      %1659 = vmatprep.mubr.bf16.mxu0 %v743
      %1660 = vmatmul.mubr.bf16.gmra.mxu0 %v742
      %v1661 = vpop.f32.mrf.mxu0
      %v1662 = vadd.f32 %v1501, %v1661
      %v1663 = vpop.f32.mrf.mxu0
      %v1664 = vpop.f32.mrf.mxu0
      %v1665 = vadd.f32 %v1504, %v1664
      %v1666 = vpop.f32.mrf.mxu0
      %1667 = vmatprep.mubr.bf16.mxu0 %v750
      %1668 = vmatmul.mubr.bf16.gmra.mxu0 %v749
      %v1669 = vpop.f32.mrf.mxu0
      %v1670 = vadd.f32 %v1509, %v1669
      %v1671 = vpop.f32.mrf.mxu0
      %v1672 = vpop.f32.mrf.mxu0
      %v1673 = vadd.f32 %v1512, %v1672
      %v1674 = vpop.f32.mrf.mxu0
      %1675 = vmatprep.mubr.bf16.mxu0 %v757
      %1676 = vmatmul.mubr.bf16.gmra.mxu0 %v756
      %v1677 = vpop.f32.mrf.mxu0
      %v1678 = vadd.f32 %v1517, %v1677
      %v1679 = vpop.f32.mrf.mxu0
      %v1680 = vpop.f32.mrf.mxu0
      %v1681 = vadd.f32 %v1520, %v1680
      %v1682 = vpop.f32.mrf.mxu0
      %1683 = vdwg.mxu0
      %1684 = vmatprep.subr.bf16.mxu0 0
      %1685 = vmatpush1.bf16.msra.mxu0 0
      %1686 = vmatprep.subr.bf16.mxu0 0
      %1687 = vmatpush1.bf16.msra.mxu0 0
      %1688 = vmatprep.subr.bf16.mxu0 0
      %1689 = vmatpush1.bf16.msra.mxu0 0
      %1690 = vmatprep.subr.bf16.mxu0 0
      %1691 = vmatpush1.bf16.msra.mxu0 0
      %1692 = vmatprep.subr.bf16.mxu0 0
      %1693 = vmatpush1.bf16.msra.mxu0 0
      %1694 = vmatprep.subr.bf16.mxu0 0
      %1695 = vmatpush1.bf16.msra.mxu0 0
      %1696 = vmatprep.subr.bf16.mxu0 0
      %1697 = vmatpush1.bf16.msra.mxu0 0
      %1698 = vmatprep.subr.bf16.mxu0 0
      %1699 = vmatpush1.bf16.msra.mxu0 %v1102
      %1700 = vmatprep.subr.bf16.mxu0 0
      %1701 = vmatpush2.bf16.msra.mxu0 0
      %1702 = vmatprep.subr.bf16.mxu0 0
      %1703 = vmatpush2.bf16.msra.mxu0 0
      %1704 = vmatprep.subr.bf16.mxu0 0
      %1705 = vmatpush2.bf16.msra.mxu0 0
      %1706 = vmatprep.subr.bf16.mxu0 0
      %1707 = vmatpush2.bf16.msra.mxu0 0
      %1708 = vmatprep.subr.bf16.mxu0 0
      %1709 = vmatpush2.bf16.msra.mxu0 0
      %1710 = vmatprep.subr.bf16.mxu0 0
      %1711 = vmatpush2.bf16.msra.mxu0 0
      %1712 = vmatprep.subr.bf16.mxu0 0
      %1713 = vmatpush2.bf16.msra.mxu0 0
      %1714 = vmatprep.subr.bf16.mxu0 0
      %1715 = vmatpush2.bf16.msra.mxu0 0
      %1716 = vmatprep.mubr.bf16.mxu0 0
      %1717 = vmatmul.mubr.bf16.gmra.mxu0 %v1154
      %v1718 = vpop.f32.mrf.mxu0
      %v1719 = vadd.f32 %v1558, %v1718
      %v1720 = vpop.f32.mrf.mxu0
      %v1721 = vpop.f32.mrf.mxu0
      %v1722 = vadd.f32 %v1561, %v1721
      %v1723 = vpop.f32.mrf.mxu0
      %1724 = vmatprep.mubr.bf16.mxu0 0
      %1725 = vmatmul.mubr.bf16.gmra.mxu0 %v1157
      %v1726 = vpop.f32.mrf.mxu0
      %v1727 = vadd.f32 %v1566, %v1726
      %v1728 = vpop.f32.mrf.mxu0
      %v1729 = vpop.f32.mrf.mxu0
      %v1730 = vadd.f32 %v1569, %v1729
      %v1731 = vpop.f32.mrf.mxu0
      %1732 = vmatprep.mubr.bf16.mxu0 0
      %1733 = vmatmul.mubr.bf16.gmra.mxu0 %v1160
      %v1734 = vpop.f32.mrf.mxu0
      %v1735 = vadd.f32 %v1574, %v1734
      %v1736 = vpop.f32.mrf.mxu0
      %v1737 = vpop.f32.mrf.mxu0
      %v1738 = vadd.f32 %v1577, %v1737
      %v1739 = vpop.f32.mrf.mxu0
      %1740 = vmatprep.mubr.bf16.mxu0 0
      %1741 = vmatmul.mubr.bf16.gmra.mxu0 %v1163
      %v1742 = vpop.f32.mrf.mxu0
      %v1743 = vadd.f32 %v1582, %v1742
      %v1744 = vpop.f32.mrf.mxu0
      %v1745 = vpop.f32.mrf.mxu0
      %v1746 = vadd.f32 %v1585, %v1745
      %v1747 = vpop.f32.mrf.mxu0
      %1748 = vmatprep.mubr.bf16.mxu0 0
      %1749 = vmatmul.mubr.bf16.gmra.mxu0 %v1166
      %v1750 = vpop.f32.mrf.mxu0
      %v1751 = vadd.f32 %v1590, %v1750
      %v1752 = vpop.f32.mrf.mxu0
      %v1753 = vpop.f32.mrf.mxu0
      %v1754 = vadd.f32 %v1593, %v1753
      %v1755 = vpop.f32.mrf.mxu0
      %1756 = vmatprep.mubr.bf16.mxu0 0
      %1757 = vmatmul.mubr.bf16.gmra.mxu0 %v1169
      %v1758 = vpop.f32.mrf.mxu0
      %v1759 = vadd.f32 %v1598, %v1758
      %v1760 = vpop.f32.mrf.mxu0
      %v1761 = vpop.f32.mrf.mxu0
      %v1762 = vadd.f32 %v1601, %v1761
      %v1763 = vpop.f32.mrf.mxu0
      %1764 = vmatprep.mubr.bf16.mxu0 0
      %1765 = vmatmul.mubr.bf16.gmra.mxu0 %v1172
      %v1766 = vpop.f32.mrf.mxu0
      %v1767 = vadd.f32 %v1606, %v1766
      %v1768 = vpop.f32.mrf.mxu0
      %v1769 = vpop.f32.mrf.mxu0
      %v1770 = vadd.f32 %v1609, %v1769
      %v1771 = vpop.f32.mrf.mxu0
      %1772 = vmatprep.mubr.bf16.mxu0 0
      %1773 = vmatmul.mubr.bf16.gmra.mxu0 %v1175
      %v1774 = vpop.f32.mrf.mxu0
      %v1775 = vadd.f32 %v1614, %v1774
      %v1776 = vpop.f32.mrf.mxu0
      %v1777 = vpop.f32.mrf.mxu0
      %v1778 = vadd.f32 %v1617, %v1777
      %v1779 = vpop.f32.mrf.mxu0
      %1780 = vmatprep.mubr.bf16.mxu0 0
      %1781 = vmatmul.mubr.bf16.gmra.mxu0 %v1178
      %v1782 = vpop.f32.mrf.mxu0
      %v1783 = vadd.f32 %v1622, %v1782
      %v1784 = vpop.f32.mrf.mxu0
      %v1785 = vpop.f32.mrf.mxu0
      %v1786 = vadd.f32 %v1625, %v1785
      %v1787 = vpop.f32.mrf.mxu0
      %1788 = vmatprep.mubr.bf16.mxu0 0
      %1789 = vmatmul.mubr.bf16.gmra.mxu0 %v1181
      %v1790 = vpop.f32.mrf.mxu0
      %v1791 = vadd.f32 %v1630, %v1790
      %v1792 = vpop.f32.mrf.mxu0
      %v1793 = vpop.f32.mrf.mxu0
      %v1794 = vadd.f32 %v1633, %v1793
      %v1795 = vpop.f32.mrf.mxu0
      %1796 = vmatprep.mubr.bf16.mxu0 0
      %1797 = vmatmul.mubr.bf16.gmra.mxu0 %v1184
      %v1798 = vpop.f32.mrf.mxu0
      %v1799 = vadd.f32 %v1638, %v1798
      %v1800 = vpop.f32.mrf.mxu0
      %v1801 = vpop.f32.mrf.mxu0
      %v1802 = vadd.f32 %v1641, %v1801
      %v1803 = vpop.f32.mrf.mxu0
      %1804 = vmatprep.mubr.bf16.mxu0 0
      %1805 = vmatmul.mubr.bf16.gmra.mxu0 %v1187
      %v1806 = vpop.f32.mrf.mxu0
      %v1807 = vadd.f32 %v1646, %v1806
      %v1808 = vpop.f32.mrf.mxu0
      %v1809 = vpop.f32.mrf.mxu0
      %v1810 = vadd.f32 %v1649, %v1809
      %v1811 = vpop.f32.mrf.mxu0
      %1812 = vmatprep.mubr.bf16.mxu0 0
      %1813 = vmatmul.mubr.bf16.gmra.mxu0 %v1190
      %v1814 = vpop.f32.mrf.mxu0
      %v1815 = vadd.f32 %v1654, %v1814
      %v1816 = vpop.f32.mrf.mxu0
      %v1817 = vpop.f32.mrf.mxu0
      %v1818 = vadd.f32 %v1657, %v1817
      %v1819 = vpop.f32.mrf.mxu0
      %1820 = vmatprep.mubr.bf16.mxu0 0
      %1821 = vmatmul.mubr.bf16.gmra.mxu0 %v1193
      %v1822 = vpop.f32.mrf.mxu0
      %v1823 = vadd.f32 %v1662, %v1822
      %v1824 = vpop.f32.mrf.mxu0
      %v1825 = vpop.f32.mrf.mxu0
      %v1826 = vadd.f32 %v1665, %v1825
      %v1827 = vpop.f32.mrf.mxu0
      %1828 = vmatprep.mubr.bf16.mxu0 0
      %1829 = vmatmul.mubr.bf16.gmra.mxu0 %v1196
      %v1830 = vpop.f32.mrf.mxu0
      %v1831 = vadd.f32 %v1670, %v1830
      %v1832 = vpop.f32.mrf.mxu0
      %v1833 = vpop.f32.mrf.mxu0
      %v1834 = vadd.f32 %v1673, %v1833
      %v1835 = vpop.f32.mrf.mxu0
      %1836 = vmatprep.mubr.bf16.mxu0 0
      %1837 = vmatmul.mubr.bf16.gmra.mxu0 %v1199
      %v1838 = vpop.f32.mrf.mxu0
      %v1839 = vadd.f32 %v1678, %v1838
      %v1840 = vpop.f32.mrf.mxu0
      %v1841 = vpop.f32.mrf.mxu0
      %v1842 = vadd.f32 %v1681, %v1841
      %v1843 = vpop.f32.mrf.mxu0
      %1844 = vdwg.mxu0
      %vm1845 = vcmp.gt.f32.partialorder %v1719, 0.0
      %vm1846 = vcmp.gt.f32.partialorder %v1722, 0.0
      %vm1847 = vcmp.gt.f32.partialorder %v1727, 0.0
      %vm1848 = vcmp.gt.f32.partialorder %v1730, 0.0
      %vm1849 = vcmp.gt.f32.partialorder %v1735, 0.0
      %vm1850 = vcmp.gt.f32.partialorder %v1738, 0.0
      %vm1851 = vcmp.gt.f32.partialorder %v1743, 0.0
      %vm1852 = vcmp.gt.f32.partialorder %v1746, 0.0
      %vm1853 = vcmp.gt.f32.partialorder %v1751, 0.0
      %vm1854 = vcmp.gt.f32.partialorder %v1754, 0.0
      %vm1855 = vcmp.gt.f32.partialorder %v1759, 0.0
      %vm1856 = vcmp.gt.f32.partialorder %v1762, 0.0
      %vm1857 = vcmp.gt.f32.partialorder %v1767, 0.0
      %vm1858 = vcmp.gt.f32.partialorder %v1770, 0.0
      %vm1859 = vcmp.gt.f32.partialorder %v1775, 0.0
      %vm1860 = vcmp.gt.f32.partialorder %v1778, 0.0
      %vm1861 = vcmp.gt.f32.partialorder %v1783, 0.0
      %vm1862 = vcmp.gt.f32.partialorder %v1786, 0.0
      %vm1863 = vcmp.gt.f32.partialorder %v1791, 0.0
      %vm1864 = vcmp.gt.f32.partialorder %v1794, 0.0
      %vm1865 = vcmp.gt.f32.partialorder %v1799, 0.0
      %vm1866 = vcmp.gt.f32.partialorder %v1802, 0.0
      %vm1867 = vcmp.gt.f32.partialorder %v1807, 0.0
      %vm1868 = vcmp.gt.f32.partialorder %v1810, 0.0
      %vm1869 = vcmp.gt.f32.partialorder %v1815, 0.0
      %vm1870 = vcmp.gt.f32.partialorder %v1818, 0.0
      %vm1871 = vcmp.gt.f32.partialorder %v1823, 0.0
      %vm1872 = vcmp.gt.f32.partialorder %v1826, 0.0
      %vm1873 = vcmp.gt.f32.partialorder %v1831, 0.0
      %vm1874 = vcmp.gt.f32.partialorder %v1834, 0.0
      %vm1875 = vcmp.gt.f32.partialorder %v1839, 0.0
      %vm1876 = vcmp.gt.f32.partialorder %v1842, 0.0
      %v1877 = vsel %vm1845, 0.5, 0.25
      %v1878 = vsel %vm1846, 0.5, 0.25
      %v1879 = vsel %vm1847, 0.5, 0.25
      %v1880 = vsel %vm1848, 0.5, 0.25
      %v1881 = vsel %vm1849, 0.5, 0.25
      %v1882 = vsel %vm1850, 0.5, 0.25
      %v1883 = vsel %vm1851, 0.5, 0.25
      %v1884 = vsel %vm1852, 0.5, 0.25
      %v1885 = vsel %vm1853, 0.5, 0.25
      %v1886 = vsel %vm1854, 0.5, 0.25
      %v1887 = vsel %vm1855, 0.5, 0.25
      %v1888 = vsel %vm1856, 0.5, 0.25
      %v1889 = vsel %vm1857, 0.5, 0.25
      %v1890 = vsel %vm1858, 0.5, 0.25
      %v1891 = vsel %vm1859, 0.5, 0.25
      %v1892 = vsel %vm1860, 0.5, 0.25
      %v1893 = vsel %vm1861, 0.5, 0.25
      %v1894 = vsel %vm1862, 0.5, 0.25
      %v1895 = vsel %vm1863, 0.5, 0.25
      %v1896 = vsel %vm1864, 0.5, 0.25
      %v1897 = vsel %vm1865, 0.5, 0.25
      %v1898 = vsel %vm1866, 0.5, 0.25
      %v1899 = vsel %vm1867, 0.5, 0.25
      %v1900 = vsel %vm1868, 0.5, 0.25
      %v1901 = vsel %vm1869, 0.5, 0.25
      %v1902 = vsel %vm1870, 0.5, 0.25
      %v1903 = vsel %vm1871, 0.5, 0.25
      %v1904 = vsel %vm1872, 0.5, 0.25
      %v1905 = vsel %vm1873, 0.5, 0.25
      %v1906 = vsel %vm1874, 0.5, 0.25
      %v1907 = vsel %vm1875, 0.5, 0.25
      %v1908 = vsel %vm1876, 0.5, 0.25
      %v1909 = vmul.f32 %v1719, %v1877
      %v1910 = vmul.f32 %v1722, %v1878
      %v1911 = vmul.f32 %v1727, %v1879
      %v1912 = vmul.f32 %v1730, %v1880
      %v1913 = vmul.f32 %v1735, %v1881
      %v1914 = vmul.f32 %v1738, %v1882
      %v1915 = vmul.f32 %v1743, %v1883
      %v1916 = vmul.f32 %v1746, %v1884
      %v1917 = vmul.f32 %v1751, %v1885
      %v1918 = vmul.f32 %v1754, %v1886
      %v1919 = vmul.f32 %v1759, %v1887
      %v1920 = vmul.f32 %v1762, %v1888
      %v1921 = vmul.f32 %v1767, %v1889
      %v1922 = vmul.f32 %v1770, %v1890
      %v1923 = vmul.f32 %v1775, %v1891
      %v1924 = vmul.f32 %v1778, %v1892
      %v1925 = vmul.f32 %v1783, %v1893
      %v1926 = vmul.f32 %v1786, %v1894
      %v1927 = vmul.f32 %v1791, %v1895
      %v1928 = vmul.f32 %v1794, %v1896
      %v1929 = vmul.f32 %v1799, %v1897
      %v1930 = vmul.f32 %v1802, %v1898
      %v1931 = vmul.f32 %v1807, %v1899
      %v1932 = vmul.f32 %v1810, %v1900
      %v1933 = vmul.f32 %v1815, %v1901
      %v1934 = vmul.f32 %v1818, %v1902
      %v1935 = vmul.f32 %v1823, %v1903
      %v1936 = vmul.f32 %v1826, %v1904
      %v1937 = vmul.f32 %v1831, %v1905
      %v1938 = vmul.f32 %v1834, %v1906
      %v1939 = vmul.f32 %v1839, %v1907
      %v1940 = vmul.f32 %v1842, %v1908
      %v1941 = vpack.c.bf16 %v1910, %v1909
      %v1942 = vpack.c.bf16 %v1912, %v1911
      %v1943 = vpack.c.bf16 %v1914, %v1913
      %v1944 = vpack.c.bf16 %v1916, %v1915
      %v1945 = vpack.c.bf16 %v1918, %v1917
      %v1946 = vpack.c.bf16 %v1920, %v1919
      %v1947 = vpack.c.bf16 %v1922, %v1921
      %v1948 = vpack.c.bf16 %v1924, %v1923
      %v1949 = vpack.c.bf16 %v1926, %v1925
      %v1950 = vpack.c.bf16 %v1928, %v1927
      %v1951 = vpack.c.bf16 %v1930, %v1929
      %v1952 = vpack.c.bf16 %v1932, %v1931
      %v1953 = vpack.c.bf16 %v1934, %v1933
      %v1954 = vpack.c.bf16 %v1936, %v1935
      %v1955 = vpack.c.bf16 %v1938, %v1937
      %v1956 = vpack.c.bf16 %v1940, %v1939
      %v1957 = vld [vmem:[%s2] sm:$0xf]
      %v1958 = vld [vmem:[%s2 + $0x4] sm:$0xf]
      %v1959 = vld [vmem:[%s2 + $0x8] sm:$0xf]
      %v1960 = vld [vmem:[%s2 + $0xc] sm:$0xf]
      %v1961 = vld [vmem:[%s2 + $0x10] sm:$0xf]
      %v1962 = vld [vmem:[%s2 + $0x14] sm:$0xf]
      %v1963 = vld [vmem:[%s2 + $0x18] sm:$0xf]
      %v1964 = vld [vmem:[%s2 + $0x1c] sm:$0xf]
      %v1965 = vld [vmem:[%s2 + $0x20] sm:$0xf]
      %v1966 = vld [vmem:[%s2 + $0x24] sm:$0xf]
      %v1967 = vld [vmem:[%s2 + $0x28] sm:$0xf]
      %v1968 = vld [vmem:[%s2 + $0x2c] sm:$0xf]
      %v1969 = vld [vmem:[%s2 + $0x30] sm:$0xf]
      %v1970 = vld [vmem:[%s2 + $0x34] sm:$0xf]
      %v1971 = vld [vmem:[%s2 + $0x38] sm:$0xf]
      %v1972 = vld [vmem:[%s2 + $0x3c] sm:$0xf]
      %v1973 = vld [vmem:[%s11 + $0x1] ss:$0 sm:$0xff]
      %v1990 = vunpack.c.l.b16 %v1957
      %v1991 = vunpack.c.l.b16 %v1958
      %v1992 = vunpack.c.l.b16 %v1959
      %v1993 = vunpack.c.l.b16 %v1960
      %v1994 = vunpack.c.l.b16 %v1961
      %v1995 = vunpack.c.l.b16 %v1962
      %v1996 = vunpack.c.l.b16 %v1963
      %v1997 = vunpack.c.l.b16 %v1964
      %v1998 = vunpack.c.l.b16 %v1965
      %v1999 = vunpack.c.l.b16 %v1966
      %v2000 = vunpack.c.l.b16 %v1967
      %v2001 = vunpack.c.l.b16 %v1968
      %v2002 = vunpack.c.l.b16 %v1969
      %v2003 = vunpack.c.l.b16 %v1970
      %v2004 = vunpack.c.l.b16 %v1971
      %v2005 = vunpack.c.l.b16 %v1972
      %v2006 = vpack.c.b16 %v1991, %v1990
      %v2007 = vpack.c.b16 %v1993, %v1992
      %v2008 = vpack.c.b16 %v1995, %v1994
      %v2009 = vpack.c.b16 %v1997, %v1996
      %v2010 = vpack.c.b16 %v1999, %v1998
      %v2011 = vpack.c.b16 %v2001, %v2000
      %v2012 = vpack.c.b16 %v2003, %v2002
      %v2013 = vpack.c.b16 %v2005, %v2004
      %2022 = vmatprep.subr.bf16.mxu0 0
      %2023 = vmatpush1.bf16.msra.mxu0 %v2013
      %2024 = vmatprep.subr.bf16.mxu0 0
      %2025 = vmatpush1.bf16.msra.mxu0 %v2012
      %2026 = vmatprep.subr.bf16.mxu0 0
      %2027 = vmatpush1.bf16.msra.mxu0 %v2011
      %2028 = vmatprep.subr.bf16.mxu0 0
      %2029 = vmatpush1.bf16.msra.mxu0 %v2010
      %2030 = vmatprep.subr.bf16.mxu0 0
      %2031 = vmatpush1.bf16.msra.mxu0 %v2009
      %2032 = vmatprep.subr.bf16.mxu0 0
      %2033 = vmatpush1.bf16.msra.mxu0 %v2008
      %2034 = vmatprep.subr.bf16.mxu0 0
      %2035 = vmatpush1.bf16.msra.mxu0 %v2007
      %2036 = vmatprep.subr.bf16.mxu0 0
      %2037 = vmatpush1.bf16.msra.mxu0 %v2006
      %2038 = vmatprep.subr.bf16.mxu0 0
      %2039 = vmatpush2.bf16.msra.mxu0 0
      %2040 = vmatprep.subr.bf16.mxu0 0
      %2041 = vmatpush2.bf16.msra.mxu0 0
      %2042 = vmatprep.subr.bf16.mxu0 0
      %2043 = vmatpush2.bf16.msra.mxu0 0
      %2044 = vmatprep.subr.bf16.mxu0 0
      %2045 = vmatpush2.bf16.msra.mxu0 0
      %2046 = vmatprep.subr.bf16.mxu0 0
      %2047 = vmatpush2.bf16.msra.mxu0 0
      %2048 = vmatprep.subr.bf16.mxu0 0
      %2049 = vmatpush2.bf16.msra.mxu0 0
      %2050 = vmatprep.subr.bf16.mxu0 0
      %2051 = vmatpush2.bf16.msra.mxu0 0
      %2052 = vmatprep.subr.bf16.mxu0 0
      %2053 = vmatpush2.bf16.msra.mxu0 0
      %2054 = vmatprep.mubr.bf16.mxu0 0
      %2055 = vmatmul.mubr.bf16.gmra.mxu0 %v1941
      %v2056 = vpop.f32.mrf.mxu0
      %v2057 = vadd.f32 %v1973, %v2056
      %v2058 = vpop.f32.mrf.mxu0
      %v2059 = vpop.f32.mrf.mxu0
      %v2060 = vadd.f32 %v1973, %v2059
      %v2061 = vpop.f32.mrf.mxu0
      %2062 = vmatprep.mubr.bf16.mxu0 0
      %2063 = vmatmul.mubr.bf16.gmra.mxu0 %v1942
      %v2064 = vpop.f32.mrf.mxu0
      %v2065 = vadd.f32 %v1973, %v2064
      %v2066 = vpop.f32.mrf.mxu0
      %v2067 = vpop.f32.mrf.mxu0
      %v2068 = vadd.f32 %v1973, %v2067
      %v2069 = vpop.f32.mrf.mxu0
      %2070 = vmatprep.mubr.bf16.mxu0 0
      %2071 = vmatmul.mubr.bf16.gmra.mxu0 %v1943
      %v2072 = vpop.f32.mrf.mxu0
      %v2073 = vadd.f32 %v1973, %v2072
      %v2074 = vpop.f32.mrf.mxu0
      %v2075 = vpop.f32.mrf.mxu0
      %v2076 = vadd.f32 %v1973, %v2075
      %v2077 = vpop.f32.mrf.mxu0
      %2078 = vmatprep.mubr.bf16.mxu0 0
      %2079 = vmatmul.mubr.bf16.gmra.mxu0 %v1944
      %v2080 = vpop.f32.mrf.mxu0
      %v2081 = vadd.f32 %v1973, %v2080
      %v2082 = vpop.f32.mrf.mxu0
      %v2083 = vpop.f32.mrf.mxu0
      %v2084 = vadd.f32 %v1973, %v2083
      %v2085 = vpop.f32.mrf.mxu0
      %2086 = vmatprep.mubr.bf16.mxu0 0
      %2087 = vmatmul.mubr.bf16.gmra.mxu0 %v1945
      %v2088 = vpop.f32.mrf.mxu0
      %v2089 = vadd.f32 %v1973, %v2088
      %v2090 = vpop.f32.mrf.mxu0
      %v2091 = vpop.f32.mrf.mxu0
      %v2092 = vadd.f32 %v1973, %v2091
      %v2093 = vpop.f32.mrf.mxu0
      %2094 = vmatprep.mubr.bf16.mxu0 0
      %2095 = vmatmul.mubr.bf16.gmra.mxu0 %v1946
      %v2096 = vpop.f32.mrf.mxu0
      %v2097 = vadd.f32 %v1973, %v2096
      %v2098 = vpop.f32.mrf.mxu0
      %v2099 = vpop.f32.mrf.mxu0
      %v2100 = vadd.f32 %v1973, %v2099
      %v2101 = vpop.f32.mrf.mxu0
      %2102 = vmatprep.mubr.bf16.mxu0 0
      %2103 = vmatmul.mubr.bf16.gmra.mxu0 %v1947
      %v2104 = vpop.f32.mrf.mxu0
      %v2105 = vadd.f32 %v1973, %v2104
      %v2106 = vpop.f32.mrf.mxu0
      %v2107 = vpop.f32.mrf.mxu0
      %v2108 = vadd.f32 %v1973, %v2107
      %v2109 = vpop.f32.mrf.mxu0
      %2110 = vmatprep.mubr.bf16.mxu0 0
      %2111 = vmatmul.mubr.bf16.gmra.mxu0 %v1948
      %v2112 = vpop.f32.mrf.mxu0
      %v2113 = vadd.f32 %v1973, %v2112
      %v2114 = vpop.f32.mrf.mxu0
      %v2115 = vpop.f32.mrf.mxu0
      %v2116 = vadd.f32 %v1973, %v2115
      %v2117 = vpop.f32.mrf.mxu0
      %2118 = vmatprep.mubr.bf16.mxu0 0
      %2119 = vmatmul.mubr.bf16.gmra.mxu0 %v1949
      %v2120 = vpop.f32.mrf.mxu0
      %v2121 = vadd.f32 %v1973, %v2120
      %v2122 = vpop.f32.mrf.mxu0
      %v2123 = vpop.f32.mrf.mxu0
      %v2124 = vadd.f32 %v1973, %v2123
      %v2125 = vpop.f32.mrf.mxu0
      %2126 = vmatprep.mubr.bf16.mxu0 0
      %2127 = vmatmul.mubr.bf16.gmra.mxu0 %v1950
      %v2128 = vpop.f32.mrf.mxu0
      %v2129 = vadd.f32 %v1973, %v2128
      %v2130 = vpop.f32.mrf.mxu0
      %v2131 = vpop.f32.mrf.mxu0
      %v2132 = vadd.f32 %v1973, %v2131
      %v2133 = vpop.f32.mrf.mxu0
      %2134 = vmatprep.mubr.bf16.mxu0 0
      %2135 = vmatmul.mubr.bf16.gmra.mxu0 %v1951
      %v2136 = vpop.f32.mrf.mxu0
      %v2137 = vadd.f32 %v1973, %v2136
      %v2138 = vpop.f32.mrf.mxu0
      %v2139 = vpop.f32.mrf.mxu0
      %v2140 = vadd.f32 %v1973, %v2139
      %v2141 = vpop.f32.mrf.mxu0
      %2142 = vmatprep.mubr.bf16.mxu0 0
      %2143 = vmatmul.mubr.bf16.gmra.mxu0 %v1952
      %v2144 = vpop.f32.mrf.mxu0
      %v2145 = vadd.f32 %v1973, %v2144
      %v2146 = vpop.f32.mrf.mxu0
      %v2147 = vpop.f32.mrf.mxu0
      %v2148 = vadd.f32 %v1973, %v2147
      %v2149 = vpop.f32.mrf.mxu0
      %2150 = vmatprep.mubr.bf16.mxu0 0
      %2151 = vmatmul.mubr.bf16.gmra.mxu0 %v1953
      %v2152 = vpop.f32.mrf.mxu0
      %v2153 = vadd.f32 %v1973, %v2152
      %v2154 = vpop.f32.mrf.mxu0
      %v2155 = vpop.f32.mrf.mxu0
      %v2156 = vadd.f32 %v1973, %v2155
      %v2157 = vpop.f32.mrf.mxu0
      %2158 = vmatprep.mubr.bf16.mxu0 0
      %2159 = vmatmul.mubr.bf16.gmra.mxu0 %v1954
      %v2160 = vpop.f32.mrf.mxu0
      %v2161 = vadd.f32 %v1973, %v2160
      %v2162 = vpop.f32.mrf.mxu0
      %v2163 = vpop.f32.mrf.mxu0
      %v2164 = vadd.f32 %v1973, %v2163
      %v2165 = vpop.f32.mrf.mxu0
      %2166 = vmatprep.mubr.bf16.mxu0 0
      %2167 = vmatmul.mubr.bf16.gmra.mxu0 %v1955
      %v2168 = vpop.f32.mrf.mxu0
      %v2169 = vadd.f32 %v1973, %v2168
      %v2170 = vpop.f32.mrf.mxu0
      %v2171 = vpop.f32.mrf.mxu0
      %v2172 = vadd.f32 %v1973, %v2171
      %v2173 = vpop.f32.mrf.mxu0
      %2174 = vmatprep.mubr.bf16.mxu0 0
      %2175 = vmatmul.mubr.bf16.gmra.mxu0 %v1956
      %v2176 = vpop.f32.mrf.mxu0
      %v2177 = vadd.f32 %v1973, %v2176
      %v2178 = vpop.f32.mrf.mxu0
      %v2179 = vpop.f32.mrf.mxu0
      %v2180 = vadd.f32 %v1973, %v2179
      %v2181 = vpop.f32.mrf.mxu0
      %2182 = vdwg.mxu0
      %vm2183 = vcmp.gt.f32.partialorder %v2057, 0.0
      %vm2184 = vcmp.gt.f32.partialorder %v2060, 0.0
      %vm2185 = vcmp.gt.f32.partialorder %v2065, 0.0
      %vm2186 = vcmp.gt.f32.partialorder %v2068, 0.0
      %vm2187 = vcmp.gt.f32.partialorder %v2073, 0.0
      %vm2188 = vcmp.gt.f32.partialorder %v2076, 0.0
      %vm2189 = vcmp.gt.f32.partialorder %v2081, 0.0
      %vm2190 = vcmp.gt.f32.partialorder %v2084, 0.0
      %vm2191 = vcmp.gt.f32.partialorder %v2089, 0.0
      %vm2192 = vcmp.gt.f32.partialorder %v2092, 0.0
      %vm2193 = vcmp.gt.f32.partialorder %v2097, 0.0
      %vm2194 = vcmp.gt.f32.partialorder %v2100, 0.0
      %vm2195 = vcmp.gt.f32.partialorder %v2105, 0.0
      %vm2196 = vcmp.gt.f32.partialorder %v2108, 0.0
      %vm2197 = vcmp.gt.f32.partialorder %v2113, 0.0
      %vm2198 = vcmp.gt.f32.partialorder %v2116, 0.0
      %vm2199 = vcmp.gt.f32.partialorder %v2121, 0.0
      %vm2200 = vcmp.gt.f32.partialorder %v2124, 0.0
      %vm2201 = vcmp.gt.f32.partialorder %v2129, 0.0
      %vm2202 = vcmp.gt.f32.partialorder %v2132, 0.0
      %vm2203 = vcmp.gt.f32.partialorder %v2137, 0.0
      %vm2204 = vcmp.gt.f32.partialorder %v2140, 0.0
      %vm2205 = vcmp.gt.f32.partialorder %v2145, 0.0
      %vm2206 = vcmp.gt.f32.partialorder %v2148, 0.0
      %vm2207 = vcmp.gt.f32.partialorder %v2153, 0.0
      %vm2208 = vcmp.gt.f32.partialorder %v2156, 0.0
      %vm2209 = vcmp.gt.f32.partialorder %v2161, 0.0
      %vm2210 = vcmp.gt.f32.partialorder %v2164, 0.0
      %vm2211 = vcmp.gt.f32.partialorder %v2169, 0.0
      %vm2212 = vcmp.gt.f32.partialorder %v2172, 0.0
      %vm2213 = vcmp.gt.f32.partialorder %v2177, 0.0
      %vm2214 = vcmp.gt.f32.partialorder %v2180, 0.0
      %v2215 = vsel %vm2183, 0.5, 0.25
      %v2216 = vsel %vm2184, 0.5, 0.25
      %v2217 = vsel %vm2185, 0.5, 0.25
      %v2218 = vsel %vm2186, 0.5, 0.25
      %v2219 = vsel %vm2187, 0.5, 0.25
      %v2220 = vsel %vm2188, 0.5, 0.25
      %v2221 = vsel %vm2189, 0.5, 0.25
      %v2222 = vsel %vm2190, 0.5, 0.25
      %v2223 = vsel %vm2191, 0.5, 0.25
      %v2224 = vsel %vm2192, 0.5, 0.25
      %v2225 = vsel %vm2193, 0.5, 0.25
      %v2226 = vsel %vm2194, 0.5, 0.25
      %v2227 = vsel %vm2195, 0.5, 0.25
      %v2228 = vsel %vm2196, 0.5, 0.25
      %v2229 = vsel %vm2197, 0.5, 0.25
      %v2230 = vsel %vm2198, 0.5, 0.25
      %v2231 = vsel %vm2199, 0.5, 0.25
      %v2232 = vsel %vm2200, 0.5, 0.25
      %v2233 = vsel %vm2201, 0.5, 0.25
      %v2234 = vsel %vm2202, 0.5, 0.25
      %v2235 = vsel %vm2203, 0.5, 0.25
      %v2236 = vsel %vm2204, 0.5, 0.25
      %v2237 = vsel %vm2205, 0.5, 0.25
      %v2238 = vsel %vm2206, 0.5, 0.25
      %v2239 = vsel %vm2207, 0.5, 0.25
      %v2240 = vsel %vm2208, 0.5, 0.25
      %v2241 = vsel %vm2209, 0.5, 0.25
      %v2242 = vsel %vm2210, 0.5, 0.25
      %v2243 = vsel %vm2211, 0.5, 0.25
      %v2244 = vsel %vm2212, 0.5, 0.25
      %v2245 = vsel %vm2213, 0.5, 0.25
      %v2246 = vsel %vm2214, 0.5, 0.25
      %v2247 = vmul.f32 %v2057, %v2215
      %v2248 = vmul.f32 %v2060, %v2216
      %v2249 = vmul.f32 %v2065, %v2217
      %v2250 = vmul.f32 %v2068, %v2218
      %v2251 = vmul.f32 %v2073, %v2219
      %v2252 = vmul.f32 %v2076, %v2220
      %v2253 = vmul.f32 %v2081, %v2221
      %v2254 = vmul.f32 %v2084, %v2222
      %v2255 = vmul.f32 %v2089, %v2223
      %v2256 = vmul.f32 %v2092, %v2224
      %v2257 = vmul.f32 %v2097, %v2225
      %v2258 = vmul.f32 %v2100, %v2226
      %v2259 = vmul.f32 %v2105, %v2227
      %v2260 = vmul.f32 %v2108, %v2228
      %v2261 = vmul.f32 %v2113, %v2229
      %v2262 = vmul.f32 %v2116, %v2230
      %v2263 = vmul.f32 %v2121, %v2231
      %v2264 = vmul.f32 %v2124, %v2232
      %v2265 = vmul.f32 %v2129, %v2233
      %v2266 = vmul.f32 %v2132, %v2234
      %v2267 = vmul.f32 %v2137, %v2235
      %v2268 = vmul.f32 %v2140, %v2236
      %v2269 = vmul.f32 %v2145, %v2237
      %v2270 = vmul.f32 %v2148, %v2238
      %v2271 = vmul.f32 %v2153, %v2239
      %v2272 = vmul.f32 %v2156, %v2240
      %v2273 = vmul.f32 %v2161, %v2241
      %v2274 = vmul.f32 %v2164, %v2242
      %v2275 = vmul.f32 %v2169, %v2243
      %v2276 = vmul.f32 %v2172, %v2244
      %v2277 = vmul.f32 %v2177, %v2245
      %v2278 = vmul.f32 %v2180, %v2246
      %v2279 = vpack.c.bf16 %v2248, %v2247
      %v2280 = vpack.c.bf16 %v2250, %v2249
      %v2281 = vpack.c.bf16 %v2252, %v2251
      %v2282 = vpack.c.bf16 %v2254, %v2253
      %v2283 = vpack.c.bf16 %v2256, %v2255
      %v2284 = vpack.c.bf16 %v2258, %v2257
      %v2285 = vpack.c.bf16 %v2260, %v2259
      %v2286 = vpack.c.bf16 %v2262, %v2261
      %v2287 = vpack.c.bf16 %v2264, %v2263
      %v2288 = vpack.c.bf16 %v2266, %v2265
      %v2289 = vpack.c.bf16 %v2268, %v2267
      %v2290 = vpack.c.bf16 %v2270, %v2269
      %v2291 = vpack.c.bf16 %v2272, %v2271
      %v2292 = vpack.c.bf16 %v2274, %v2273
      %v2293 = vpack.c.bf16 %v2276, %v2275
      %v2294 = vpack.c.bf16 %v2278, %v2277
      %v2295 = vld [vmem:[%s3] sm:$0xf]
      %v2296 = vld [vmem:[%s3 + $0x4] sm:$0xf]
      %v2297 = vld [vmem:[%s3 + $0x8] sm:$0xf]
      %v2298 = vld [vmem:[%s3 + $0xc] sm:$0xf]
      %v2299 = vld [vmem:[%s3 + $0x10] sm:$0xf]
      %v2300 = vld [vmem:[%s3 + $0x14] sm:$0xf]
      %v2301 = vld [vmem:[%s3 + $0x18] sm:$0xf]
      %v2302 = vld [vmem:[%s3 + $0x1c] sm:$0xf]
      %v2303 = vld [vmem:[%s11 + $0x2] ss:$0 sm:$0xff]
      %v2312 = vunpack.c.l.b16 %v2295
      %v2313 = vunpack.c.l.b16 %v2296
      %v2314 = vunpack.c.l.b16 %v2297
      %v2315 = vunpack.c.l.b16 %v2298
      %v2316 = vunpack.c.l.b16 %v2299
      %v2317 = vunpack.c.l.b16 %v2300
      %v2318 = vunpack.c.l.b16 %v2301
      %v2319 = vunpack.c.l.b16 %v2302
      %v2320 = vpack.c.b16 %v2313, %v2312
      %v2321 = vpack.c.b16 %v2315, %v2314
      %v2322 = vpack.c.b16 %v2317, %v2316
      %v2323 = vpack.c.b16 %v2319, %v2318
      %vm2328 = vcmask 523264
      %v2330 = vsel %vm2328, %v2279, 0
      %v2333 = vsel %vm2328, %v2280, 0
      %v2336 = vsel %vm2328, %v2281, 0
      %v2339 = vsel %vm2328, %v2282, 0
      %v2342 = vsel %vm2328, %v2283, 0
      %v2345 = vsel %vm2328, %v2284, 0
      %v2348 = vsel %vm2328, %v2285, 0
      %v2351 = vsel %vm2328, %v2286, 0
      %v2354 = vsel %vm2328, %v2287, 0
      %v2357 = vsel %vm2328, %v2288, 0
      %v2360 = vsel %vm2328, %v2289, 0
      %v2363 = vsel %vm2328, %v2290, 0
      %v2366 = vsel %vm2328, %v2291, 0
      %v2369 = vsel %vm2328, %v2292, 0
      %v2372 = vsel %vm2328, %v2293, 0
      %v2375 = vsel %vm2328, %v2294, 0
      %2377 = vmatprep.subr.bf16.mxu0 0
      %2378 = vmatpush1.bf16.msra.mxu0 0
      %2379 = vmatprep.subr.bf16.mxu0 0
      %2380 = vmatpush1.bf16.msra.mxu0 0
      %2381 = vmatprep.subr.bf16.mxu0 0
      %2382 = vmatpush1.bf16.msra.mxu0 0
      %2383 = vmatprep.subr.bf16.mxu0 0
      %2384 = vmatpush1.bf16.msra.mxu0 0
      %2385 = vmatprep.subr.bf16.mxu0 0
      %2386 = vmatpush1.bf16.msra.mxu0 %v2323
      %2387 = vmatprep.subr.bf16.mxu0 0
      %2388 = vmatpush1.bf16.msra.mxu0 %v2322
      %2389 = vmatprep.subr.bf16.mxu0 0
      %2390 = vmatpush1.bf16.msra.mxu0 %v2321
      %2391 = vmatprep.subr.bf16.mxu0 0
      %2392 = vmatpush1.bf16.msra.mxu0 %v2320
      %2393 = vmatprep.subr.bf16.mxu0 0
      %2394 = vmatpush2.bf16.msra.mxu0 0
      %2395 = vmatprep.subr.bf16.mxu0 0
      %2396 = vmatpush2.bf16.msra.mxu0 0
      %2397 = vmatprep.subr.bf16.mxu0 0
      %2398 = vmatpush2.bf16.msra.mxu0 0
      %2399 = vmatprep.subr.bf16.mxu0 0
      %2400 = vmatpush2.bf16.msra.mxu0 0
      %2401 = vmatprep.subr.bf16.mxu0 0
      %2402 = vmatpush2.bf16.msra.mxu0 0
      %2403 = vmatprep.subr.bf16.mxu0 0
      %2404 = vmatpush2.bf16.msra.mxu0 0
      %2405 = vmatprep.subr.bf16.mxu0 0
      %2406 = vmatpush2.bf16.msra.mxu0 0
      %2407 = vmatprep.subr.bf16.mxu0 0
      %2408 = vmatpush2.bf16.msra.mxu0 0
      %2409 = vmatprep.mubr.bf16.mxu0 0
      %2410 = vmatmul.mubr.bf16.gmra.mxu0 %v2330
      %v2411 = vpop.f32.mrf.mxu0
      %v2412 = vadd.f32 %v2303, %v2411
      %v2413 = vpop.f32.mrf.mxu0
      %v2414 = vpop.f32.mrf.mxu0
      %v2415 = vadd.f32 %v2303, %v2414
      %v2416 = vpop.f32.mrf.mxu0
      %2417 = vmatprep.mubr.bf16.mxu0 0
      %2418 = vmatmul.mubr.bf16.gmra.mxu0 %v2333
      %v2419 = vpop.f32.mrf.mxu0
      %v2420 = vadd.f32 %v2303, %v2419
      %v2421 = vpop.f32.mrf.mxu0
      %v2422 = vpop.f32.mrf.mxu0
      %v2423 = vadd.f32 %v2303, %v2422
      %v2424 = vpop.f32.mrf.mxu0
      %2425 = vmatprep.mubr.bf16.mxu0 0
      %2426 = vmatmul.mubr.bf16.gmra.mxu0 %v2336
      %v2427 = vpop.f32.mrf.mxu0
      %v2428 = vadd.f32 %v2303, %v2427
      %v2429 = vpop.f32.mrf.mxu0
      %v2430 = vpop.f32.mrf.mxu0
      %v2431 = vadd.f32 %v2303, %v2430
      %v2432 = vpop.f32.mrf.mxu0
      %2433 = vmatprep.mubr.bf16.mxu0 0
      %2434 = vmatmul.mubr.bf16.gmra.mxu0 %v2339
      %v2435 = vpop.f32.mrf.mxu0
      %v2436 = vadd.f32 %v2303, %v2435
      %v2437 = vpop.f32.mrf.mxu0
      %v2438 = vpop.f32.mrf.mxu0
      %v2439 = vadd.f32 %v2303, %v2438
      %v2440 = vpop.f32.mrf.mxu0
      %2441 = vmatprep.mubr.bf16.mxu0 0
      %2442 = vmatmul.mubr.bf16.gmra.mxu0 %v2342
      %v2443 = vpop.f32.mrf.mxu0
      %v2444 = vadd.f32 %v2303, %v2443
      %v2445 = vpop.f32.mrf.mxu0
      %v2446 = vpop.f32.mrf.mxu0
      %v2447 = vadd.f32 %v2303, %v2446
      %v2448 = vpop.f32.mrf.mxu0
      %2449 = vmatprep.mubr.bf16.mxu0 0
      %2450 = vmatmul.mubr.bf16.gmra.mxu0 %v2345
      %v2451 = vpop.f32.mrf.mxu0
      %v2452 = vadd.f32 %v2303, %v2451
      %v2453 = vpop.f32.mrf.mxu0
      %v2454 = vpop.f32.mrf.mxu0
      %v2455 = vadd.f32 %v2303, %v2454
      %v2456 = vpop.f32.mrf.mxu0
      %2457 = vmatprep.mubr.bf16.mxu0 0
      %2458 = vmatmul.mubr.bf16.gmra.mxu0 %v2348
      %v2459 = vpop.f32.mrf.mxu0
      %v2460 = vadd.f32 %v2303, %v2459
      %v2461 = vpop.f32.mrf.mxu0
      %v2462 = vpop.f32.mrf.mxu0
      %v2463 = vadd.f32 %v2303, %v2462
      %v2464 = vpop.f32.mrf.mxu0
      %2465 = vmatprep.mubr.bf16.mxu0 0
      %2466 = vmatmul.mubr.bf16.gmra.mxu0 %v2351
      %v2467 = vpop.f32.mrf.mxu0
      %v2468 = vadd.f32 %v2303, %v2467
      %v2469 = vpop.f32.mrf.mxu0
      %v2470 = vpop.f32.mrf.mxu0
      %v2471 = vadd.f32 %v2303, %v2470
      %v2472 = vpop.f32.mrf.mxu0
      %2473 = vmatprep.mubr.bf16.mxu0 0
      %2474 = vmatmul.mubr.bf16.gmra.mxu0 %v2354
      %v2475 = vpop.f32.mrf.mxu0
      %v2476 = vadd.f32 %v2303, %v2475
      %v2477 = vpop.f32.mrf.mxu0
      %v2478 = vpop.f32.mrf.mxu0
      %v2479 = vadd.f32 %v2303, %v2478
      %v2480 = vpop.f32.mrf.mxu0
      %2481 = vmatprep.mubr.bf16.mxu0 0
      %2482 = vmatmul.mubr.bf16.gmra.mxu0 %v2357
      %v2483 = vpop.f32.mrf.mxu0
      %v2484 = vadd.f32 %v2303, %v2483
      %v2485 = vpop.f32.mrf.mxu0
      %v2486 = vpop.f32.mrf.mxu0
      %v2487 = vadd.f32 %v2303, %v2486
      %v2488 = vpop.f32.mrf.mxu0
      %2489 = vmatprep.mubr.bf16.mxu0 0
      %2490 = vmatmul.mubr.bf16.gmra.mxu0 %v2360
      %v2491 = vpop.f32.mrf.mxu0
      %v2492 = vadd.f32 %v2303, %v2491
      %v2493 = vpop.f32.mrf.mxu0
      %v2494 = vpop.f32.mrf.mxu0
      %v2495 = vadd.f32 %v2303, %v2494
      %v2496 = vpop.f32.mrf.mxu0
      %2497 = vmatprep.mubr.bf16.mxu0 0
      %2498 = vmatmul.mubr.bf16.gmra.mxu0 %v2363
      %v2499 = vpop.f32.mrf.mxu0
      %v2500 = vadd.f32 %v2303, %v2499
      %v2501 = vpop.f32.mrf.mxu0
      %v2502 = vpop.f32.mrf.mxu0
      %v2503 = vadd.f32 %v2303, %v2502
      %v2504 = vpop.f32.mrf.mxu0
      %2505 = vmatprep.mubr.bf16.mxu0 0
      %2506 = vmatmul.mubr.bf16.gmra.mxu0 %v2366
      %v2507 = vpop.f32.mrf.mxu0
      %v2508 = vadd.f32 %v2303, %v2507
      %v2509 = vpop.f32.mrf.mxu0
      %v2510 = vpop.f32.mrf.mxu0
      %v2511 = vadd.f32 %v2303, %v2510
      %v2512 = vpop.f32.mrf.mxu0
      %2513 = vmatprep.mubr.bf16.mxu0 0
      %2514 = vmatmul.mubr.bf16.gmra.mxu0 %v2369
      %v2515 = vpop.f32.mrf.mxu0
      %v2516 = vadd.f32 %v2303, %v2515
      %v2517 = vpop.f32.mrf.mxu0
      %v2518 = vpop.f32.mrf.mxu0
      %v2519 = vadd.f32 %v2303, %v2518
      %v2520 = vpop.f32.mrf.mxu0
      %2521 = vmatprep.mubr.bf16.mxu0 0
      %2522 = vmatmul.mubr.bf16.gmra.mxu0 %v2372
      %v2523 = vpop.f32.mrf.mxu0
      %v2524 = vadd.f32 %v2303, %v2523
      %v2525 = vpop.f32.mrf.mxu0
      %v2526 = vpop.f32.mrf.mxu0
      %v2527 = vadd.f32 %v2303, %v2526
      %v2528 = vpop.f32.mrf.mxu0
      %2529 = vmatprep.mubr.bf16.mxu0 0
      %2530 = vmatmul.mubr.bf16.gmra.mxu0 %v2375
      %v2531 = vpop.f32.mrf.mxu0
      %v2532 = vadd.f32 %v2303, %v2531
      %v2533 = vpop.f32.mrf.mxu0
      %v2534 = vpop.f32.mrf.mxu0
      %v2535 = vadd.f32 %v2303, %v2534
      %v2536 = vpop.f32.mrf.mxu0
      %2537 = vdwg.mxu0
      %vm2538 = vcmp.gt.f32.partialorder %v2412, 0.0
      %vm2539 = vcmp.gt.f32.partialorder %v2415, 0.0
      %vm2540 = vcmp.gt.f32.partialorder %v2420, 0.0
      %vm2541 = vcmp.gt.f32.partialorder %v2423, 0.0
      %vm2542 = vcmp.gt.f32.partialorder %v2428, 0.0
      %vm2543 = vcmp.gt.f32.partialorder %v2431, 0.0
      %vm2544 = vcmp.gt.f32.partialorder %v2436, 0.0
      %vm2545 = vcmp.gt.f32.partialorder %v2439, 0.0
      %vm2546 = vcmp.gt.f32.partialorder %v2444, 0.0
      %vm2547 = vcmp.gt.f32.partialorder %v2447, 0.0
      %vm2548 = vcmp.gt.f32.partialorder %v2452, 0.0
      %vm2549 = vcmp.gt.f32.partialorder %v2455, 0.0
      %vm2550 = vcmp.gt.f32.partialorder %v2460, 0.0
      %vm2551 = vcmp.gt.f32.partialorder %v2463, 0.0
      %vm2552 = vcmp.gt.f32.partialorder %v2468, 0.0
      %vm2553 = vcmp.gt.f32.partialorder %v2471, 0.0
      %vm2554 = vcmp.gt.f32.partialorder %v2476, 0.0
      %vm2555 = vcmp.gt.f32.partialorder %v2479, 0.0
      %vm2556 = vcmp.gt.f32.partialorder %v2484, 0.0
      %vm2557 = vcmp.gt.f32.partialorder %v2487, 0.0
      %vm2558 = vcmp.gt.f32.partialorder %v2492, 0.0
      %vm2559 = vcmp.gt.f32.partialorder %v2495, 0.0
      %vm2560 = vcmp.gt.f32.partialorder %v2500, 0.0
      %vm2561 = vcmp.gt.f32.partialorder %v2503, 0.0
      %vm2562 = vcmp.gt.f32.partialorder %v2508, 0.0
      %vm2563 = vcmp.gt.f32.partialorder %v2511, 0.0
      %vm2564 = vcmp.gt.f32.partialorder %v2516, 0.0
      %vm2565 = vcmp.gt.f32.partialorder %v2519, 0.0
      %vm2566 = vcmp.gt.f32.partialorder %v2524, 0.0
      %vm2567 = vcmp.gt.f32.partialorder %v2527, 0.0
      %vm2568 = vcmp.gt.f32.partialorder %v2532, 0.0
      %vm2569 = vcmp.gt.f32.partialorder %v2535, 0.0
      %v2570 = vsel %vm2538, 0.5, 0.25
      %v2571 = vsel %vm2539, 0.5, 0.25
      %v2572 = vsel %vm2540, 0.5, 0.25
      %v2573 = vsel %vm2541, 0.5, 0.25
      %v2574 = vsel %vm2542, 0.5, 0.25
      %v2575 = vsel %vm2543, 0.5, 0.25
      %v2576 = vsel %vm2544, 0.5, 0.25
      %v2577 = vsel %vm2545, 0.5, 0.25
      %v2578 = vsel %vm2546, 0.5, 0.25
      %v2579 = vsel %vm2547, 0.5, 0.25
      %v2580 = vsel %vm2548, 0.5, 0.25
      %v2581 = vsel %vm2549, 0.5, 0.25
      %v2582 = vsel %vm2550, 0.5, 0.25
      %v2583 = vsel %vm2551, 0.5, 0.25
      %v2584 = vsel %vm2552, 0.5, 0.25
      %v2585 = vsel %vm2553, 0.5, 0.25
      %v2586 = vsel %vm2554, 0.5, 0.25
      %v2587 = vsel %vm2555, 0.5, 0.25
      %v2588 = vsel %vm2556, 0.5, 0.25
      %v2589 = vsel %vm2557, 0.5, 0.25
      %v2590 = vsel %vm2558, 0.5, 0.25
      %v2591 = vsel %vm2559, 0.5, 0.25
      %v2592 = vsel %vm2560, 0.5, 0.25
      %v2593 = vsel %vm2561, 0.5, 0.25
      %v2594 = vsel %vm2562, 0.5, 0.25
      %v2595 = vsel %vm2563, 0.5, 0.25
      %v2596 = vsel %vm2564, 0.5, 0.25
      %v2597 = vsel %vm2565, 0.5, 0.25
      %v2598 = vsel %vm2566, 0.5, 0.25
      %v2599 = vsel %vm2567, 0.5, 0.25
      %v2600 = vsel %vm2568, 0.5, 0.25
      %v2601 = vsel %vm2569, 0.5, 0.25
      %v2602 = vmul.f32 %v2412, %v2570
      %v2603 = vmul.f32 %v2415, %v2571
      %v2604 = vmul.f32 %v2420, %v2572
      %v2605 = vmul.f32 %v2423, %v2573
      %v2606 = vmul.f32 %v2428, %v2574
      %v2607 = vmul.f32 %v2431, %v2575
      %v2608 = vmul.f32 %v2436, %v2576
      %v2609 = vmul.f32 %v2439, %v2577
      %v2610 = vmul.f32 %v2444, %v2578
      %v2611 = vmul.f32 %v2447, %v2579
      %v2612 = vmul.f32 %v2452, %v2580
      %v2613 = vmul.f32 %v2455, %v2581
      %v2614 = vmul.f32 %v2460, %v2582
      %v2615 = vmul.f32 %v2463, %v2583
      %v2616 = vmul.f32 %v2468, %v2584
      %v2617 = vmul.f32 %v2471, %v2585
      %v2618 = vmul.f32 %v2476, %v2586
      %v2619 = vmul.f32 %v2479, %v2587
      %v2620 = vmul.f32 %v2484, %v2588
      %v2621 = vmul.f32 %v2487, %v2589
      %v2622 = vmul.f32 %v2492, %v2590
      %v2623 = vmul.f32 %v2495, %v2591
      %v2624 = vmul.f32 %v2500, %v2592
      %v2625 = vmul.f32 %v2503, %v2593
      %v2626 = vmul.f32 %v2508, %v2594
      %v2627 = vmul.f32 %v2511, %v2595
      %v2628 = vmul.f32 %v2516, %v2596
      %v2629 = vmul.f32 %v2519, %v2597
      %v2630 = vmul.f32 %v2524, %v2598
      %v2631 = vmul.f32 %v2527, %v2599
      %v2632 = vmul.f32 %v2532, %v2600
      %v2633 = vmul.f32 %v2535, %v2601
      %v2634 = vpack.c.bf16 %v2603, %v2602
      %v2635 = vpack.c.bf16 %v2605, %v2604
      %v2636 = vpack.c.bf16 %v2607, %v2606
      %v2637 = vpack.c.bf16 %v2609, %v2608
      %v2638 = vpack.c.bf16 %v2611, %v2610
      %v2639 = vpack.c.bf16 %v2613, %v2612
      %v2640 = vpack.c.bf16 %v2615, %v2614
      %v2641 = vpack.c.bf16 %v2617, %v2616
      %v2642 = vpack.c.bf16 %v2619, %v2618
      %v2643 = vpack.c.bf16 %v2621, %v2620
      %v2644 = vpack.c.bf16 %v2623, %v2622
      %v2645 = vpack.c.bf16 %v2625, %v2624
      %v2646 = vpack.c.bf16 %v2627, %v2626
      %v2647 = vpack.c.bf16 %v2629, %v2628
      %v2648 = vpack.c.bf16 %v2631, %v2630
      %v2649 = vpack.c.bf16 %v2633, %v2632
      %v2650 = vld [vmem:[%s4] sm:$0xf]
      %v2651 = vld [vmem:[%s4 + $0x4] sm:$0xf]
      %v2652 = vld [vmem:[%s4 + $0x8] sm:$0xf]
      %v2653 = vld [vmem:[%s4 + $0xc] sm:$0xf]
      %v2654 = vld [vmem:[%s4 + $0x10] sm:$0x3]
      %v2655 = vld [vmem:[%s11 + $0x3] ss:$0 sm:$0xff]
      %v2661 = vunpack.c.l.b16 %v2650
      %v2662 = vunpack.c.l.b16 %v2651
      %v2663 = vunpack.c.l.b16 %v2652
      %v2664 = vunpack.c.l.b16 %v2653
      %v2665 = vunpack.c.l.b16 %v2654
      %v2666 = vpack.c.b16 %v2662, %v2661
      %v2667 = vpack.c.b16 %v2664, %v2663
      %v2668 = vpack.c.b16 %v2665, %v2665
      %vm2671 = vcmask 293888
      %v2673 = vsel %vm2671, %v2634, 0
      %v2676 = vsel %vm2671, %v2635, 0
      %v2679 = vsel %vm2671, %v2636, 0
      %v2682 = vsel %vm2671, %v2637, 0
      %v2685 = vsel %vm2671, %v2638, 0
      %v2688 = vsel %vm2671, %v2639, 0
      %v2691 = vsel %vm2671, %v2640, 0
      %v2694 = vsel %vm2671, %v2641, 0
      %v2697 = vsel %vm2671, %v2642, 0
      %v2700 = vsel %vm2671, %v2643, 0
      %v2703 = vsel %vm2671, %v2644, 0
      %v2706 = vsel %vm2671, %v2645, 0
      %v2709 = vsel %vm2671, %v2646, 0
      %v2712 = vsel %vm2671, %v2647, 0
      %v2715 = vsel %vm2671, %v2648, 0
      %v2718 = vsel %vm2671, %v2649, 0
      %vm2720 = vcmask 1041408
      %v2722 = vsel %vm2720, %v2668, 0
      %2724 = vmatprep.subr.bf16.mxu0 0
      %2725 = vmatpush1.bf16.msra.mxu0 0
      %2726 = vmatprep.subr.bf16.mxu0 0
      %2727 = vmatpush1.bf16.msra.mxu0 0
      %2728 = vmatprep.subr.bf16.mxu0 0
      %2729 = vmatpush1.bf16.msra.mxu0 0
      %2730 = vmatprep.subr.bf16.mxu0 0
      %2731 = vmatpush1.bf16.msra.mxu0 0
      %2732 = vmatprep.subr.bf16.mxu0 0
      %2733 = vmatpush1.bf16.msra.mxu0 0
      %2734 = vmatprep.subr.bf16.mxu0 0
      %2735 = vmatpush1.bf16.msra.mxu0 %v2722
      %2736 = vmatprep.subr.bf16.mxu0 0
      %2737 = vmatpush1.bf16.msra.mxu0 %v2667
      %2738 = vmatprep.subr.bf16.mxu0 0
      %2739 = vmatpush1.bf16.msra.mxu0 %v2666
      %2740 = vmatprep.subr.bf16.mxu0 0
      %2741 = vmatpush2.bf16.msra.mxu0 0
      %2742 = vmatprep.subr.bf16.mxu0 0
      %2743 = vmatpush2.bf16.msra.mxu0 0
      %2744 = vmatprep.subr.bf16.mxu0 0
      %2745 = vmatpush2.bf16.msra.mxu0 0
      %2746 = vmatprep.subr.bf16.mxu0 0
      %2747 = vmatpush2.bf16.msra.mxu0 0
      %2748 = vmatprep.subr.bf16.mxu0 0
      %2749 = vmatpush2.bf16.msra.mxu0 0
      %2750 = vmatprep.subr.bf16.mxu0 0
      %2751 = vmatpush2.bf16.msra.mxu0 0
      %2752 = vmatprep.subr.bf16.mxu0 0
      %2753 = vmatpush2.bf16.msra.mxu0 0
      %2754 = vmatprep.subr.bf16.mxu0 0
      %2755 = vmatpush2.bf16.msra.mxu0 0
      %2756 = vmatprep.mubr.bf16.mxu0 0
      %2757 = vmatmul.mubr.bf16.gmra.mxu0 %v2673
      %v2758 = vpop.f32.mrf.mxu0
      %v2759 = vadd.f32 %v2655, %v2758
      %v2760 = vpop.f32.mrf.mxu0
      %v2761 = vpop.f32.mrf.mxu0
      %v2762 = vadd.f32 %v2655, %v2761
      %v2763 = vpop.f32.mrf.mxu0
      %2764 = vmatprep.mubr.bf16.mxu0 0
      %2765 = vmatmul.mubr.bf16.gmra.mxu0 %v2676
      %v2766 = vpop.f32.mrf.mxu0
      %v2767 = vadd.f32 %v2655, %v2766
      %v2768 = vpop.f32.mrf.mxu0
      %v2769 = vpop.f32.mrf.mxu0
      %v2770 = vadd.f32 %v2655, %v2769
      %v2771 = vpop.f32.mrf.mxu0
      %2772 = vmatprep.mubr.bf16.mxu0 0
      %2773 = vmatmul.mubr.bf16.gmra.mxu0 %v2679
      %v2774 = vpop.f32.mrf.mxu0
      %v2775 = vadd.f32 %v2655, %v2774
      %v2776 = vpop.f32.mrf.mxu0
      %v2777 = vpop.f32.mrf.mxu0
      %v2778 = vadd.f32 %v2655, %v2777
      %v2779 = vpop.f32.mrf.mxu0
      %2780 = vmatprep.mubr.bf16.mxu0 0
      %2781 = vmatmul.mubr.bf16.gmra.mxu0 %v2682
      %v2782 = vpop.f32.mrf.mxu0
      %v2783 = vadd.f32 %v2655, %v2782
      %v2784 = vpop.f32.mrf.mxu0
      %v2785 = vpop.f32.mrf.mxu0
      %v2786 = vadd.f32 %v2655, %v2785
      %v2787 = vpop.f32.mrf.mxu0
      %2788 = vmatprep.mubr.bf16.mxu0 0
      %2789 = vmatmul.mubr.bf16.gmra.mxu0 %v2685
      %v2790 = vpop.f32.mrf.mxu0
      %v2791 = vadd.f32 %v2655, %v2790
      %v2792 = vpop.f32.mrf.mxu0
      %v2793 = vpop.f32.mrf.mxu0
      %v2794 = vadd.f32 %v2655, %v2793
      %v2795 = vpop.f32.mrf.mxu0
      %2796 = vmatprep.mubr.bf16.mxu0 0
      %2797 = vmatmul.mubr.bf16.gmra.mxu0 %v2688
      %v2798 = vpop.f32.mrf.mxu0
      %v2799 = vadd.f32 %v2655, %v2798
      %v2800 = vpop.f32.mrf.mxu0
      %v2801 = vpop.f32.mrf.mxu0
      %v2802 = vadd.f32 %v2655, %v2801
      %v2803 = vpop.f32.mrf.mxu0
      %2804 = vmatprep.mubr.bf16.mxu0 0
      %2805 = vmatmul.mubr.bf16.gmra.mxu0 %v2691
      %v2806 = vpop.f32.mrf.mxu0
      %v2807 = vadd.f32 %v2655, %v2806
      %v2808 = vpop.f32.mrf.mxu0
      %v2809 = vpop.f32.mrf.mxu0
      %v2810 = vadd.f32 %v2655, %v2809
      %v2811 = vpop.f32.mrf.mxu0
      %2812 = vmatprep.mubr.bf16.mxu0 0
      %2813 = vmatmul.mubr.bf16.gmra.mxu0 %v2694
      %v2814 = vpop.f32.mrf.mxu0
      %v2815 = vadd.f32 %v2655, %v2814
      %v2816 = vpop.f32.mrf.mxu0
      %v2817 = vpop.f32.mrf.mxu0
      %v2818 = vadd.f32 %v2655, %v2817
      %v2819 = vpop.f32.mrf.mxu0
      %2820 = vmatprep.mubr.bf16.mxu0 0
      %2821 = vmatmul.mubr.bf16.gmra.mxu0 %v2697
      %v2822 = vpop.f32.mrf.mxu0
      %v2823 = vadd.f32 %v2655, %v2822
      %v2824 = vpop.f32.mrf.mxu0
      %v2825 = vpop.f32.mrf.mxu0
      %v2826 = vadd.f32 %v2655, %v2825
      %v2827 = vpop.f32.mrf.mxu0
      %2828 = vmatprep.mubr.bf16.mxu0 0
      %2829 = vmatmul.mubr.bf16.gmra.mxu0 %v2700
      %v2830 = vpop.f32.mrf.mxu0
      %v2831 = vadd.f32 %v2655, %v2830
      %v2832 = vpop.f32.mrf.mxu0
      %v2833 = vpop.f32.mrf.mxu0
      %v2834 = vadd.f32 %v2655, %v2833
      %v2835 = vpop.f32.mrf.mxu0
      %2836 = vmatprep.mubr.bf16.mxu0 0
      %2837 = vmatmul.mubr.bf16.gmra.mxu0 %v2703
      %v2838 = vpop.f32.mrf.mxu0
      %v2839 = vadd.f32 %v2655, %v2838
      %v2840 = vpop.f32.mrf.mxu0
      %v2841 = vpop.f32.mrf.mxu0
      %v2842 = vadd.f32 %v2655, %v2841
      %v2843 = vpop.f32.mrf.mxu0
      %2844 = vmatprep.mubr.bf16.mxu0 0
      %2845 = vmatmul.mubr.bf16.gmra.mxu0 %v2706
      %v2846 = vpop.f32.mrf.mxu0
      %v2847 = vadd.f32 %v2655, %v2846
      %v2848 = vpop.f32.mrf.mxu0
      %v2849 = vpop.f32.mrf.mxu0
      %v2850 = vadd.f32 %v2655, %v2849
      %v2851 = vpop.f32.mrf.mxu0
      %2852 = vmatprep.mubr.bf16.mxu0 0
      %2853 = vmatmul.mubr.bf16.gmra.mxu0 %v2709
      %v2854 = vpop.f32.mrf.mxu0
      %v2855 = vadd.f32 %v2655, %v2854
      %v2856 = vpop.f32.mrf.mxu0
      %v2857 = vpop.f32.mrf.mxu0
      %v2858 = vadd.f32 %v2655, %v2857
      %v2859 = vpop.f32.mrf.mxu0
      %2860 = vmatprep.mubr.bf16.mxu0 0
      %2861 = vmatmul.mubr.bf16.gmra.mxu0 %v2712
      %v2862 = vpop.f32.mrf.mxu0
      %v2863 = vadd.f32 %v2655, %v2862
      %v2864 = vpop.f32.mrf.mxu0
      %v2865 = vpop.f32.mrf.mxu0
      %v2866 = vadd.f32 %v2655, %v2865
      %v2867 = vpop.f32.mrf.mxu0
      %2868 = vmatprep.mubr.bf16.mxu0 0
      %2869 = vmatmul.mubr.bf16.gmra.mxu0 %v2715
      %v2870 = vpop.f32.mrf.mxu0
      %v2871 = vadd.f32 %v2655, %v2870
      %v2872 = vpop.f32.mrf.mxu0
      %v2873 = vpop.f32.mrf.mxu0
      %v2874 = vadd.f32 %v2655, %v2873
      %v2875 = vpop.f32.mrf.mxu0
      %2876 = vmatprep.mubr.bf16.mxu0 0
      %2877 = vmatmul.mubr.bf16.gmra.mxu0 %v2718
      %v2878 = vpop.f32.mrf.mxu0
      %v2879 = vadd.f32 %v2655, %v2878
      %v2880 = vpop.f32.mrf.mxu0
      %v2881 = vpop.f32.mrf.mxu0
      %v2882 = vadd.f32 %v2655, %v2881
      %v2883 = vpop.f32.mrf.mxu0
      %2884 = vdwg.mxu0
      %vm2885 = vcmp.gt.f32.partialorder %v2759, 0.0
      %vm2886 = vcmp.gt.f32.partialorder %v2762, 0.0
      %vm2887 = vcmp.gt.f32.partialorder %v2767, 0.0
      %vm2888 = vcmp.gt.f32.partialorder %v2770, 0.0
      %vm2889 = vcmp.gt.f32.partialorder %v2775, 0.0
      %vm2890 = vcmp.gt.f32.partialorder %v2778, 0.0
      %vm2891 = vcmp.gt.f32.partialorder %v2783, 0.0
      %vm2892 = vcmp.gt.f32.partialorder %v2786, 0.0
      %vm2893 = vcmp.gt.f32.partialorder %v2791, 0.0
      %vm2894 = vcmp.gt.f32.partialorder %v2794, 0.0
      %vm2895 = vcmp.gt.f32.partialorder %v2799, 0.0
      %vm2896 = vcmp.gt.f32.partialorder %v2802, 0.0
      %vm2897 = vcmp.gt.f32.partialorder %v2807, 0.0
      %vm2898 = vcmp.gt.f32.partialorder %v2810, 0.0
      %vm2899 = vcmp.gt.f32.partialorder %v2815, 0.0
      %vm2900 = vcmp.gt.f32.partialorder %v2818, 0.0
      %vm2901 = vcmp.gt.f32.partialorder %v2823, 0.0
      %vm2902 = vcmp.gt.f32.partialorder %v2826, 0.0
      %vm2903 = vcmp.gt.f32.partialorder %v2831, 0.0
      %vm2904 = vcmp.gt.f32.partialorder %v2834, 0.0
      %vm2905 = vcmp.gt.f32.partialorder %v2839, 0.0
      %vm2906 = vcmp.gt.f32.partialorder %v2842, 0.0
      %vm2907 = vcmp.gt.f32.partialorder %v2847, 0.0
      %vm2908 = vcmp.gt.f32.partialorder %v2850, 0.0
      %vm2909 = vcmp.gt.f32.partialorder %v2855, 0.0
      %vm2910 = vcmp.gt.f32.partialorder %v2858, 0.0
      %vm2911 = vcmp.gt.f32.partialorder %v2863, 0.0
      %vm2912 = vcmp.gt.f32.partialorder %v2866, 0.0
      %vm2913 = vcmp.gt.f32.partialorder %v2871, 0.0
      %vm2914 = vcmp.gt.f32.partialorder %v2874, 0.0
      %vm2915 = vcmp.gt.f32.partialorder %v2879, 0.0
      %vm2916 = vcmp.gt.f32.partialorder %v2882, 0.0
      %v2917 = vsel %vm2885, 0.5, 0.25
      %v2918 = vsel %vm2886, 0.5, 0.25
      %v2919 = vsel %vm2887, 0.5, 0.25
      %v2920 = vsel %vm2888, 0.5, 0.25
      %v2921 = vsel %vm2889, 0.5, 0.25
      %v2922 = vsel %vm2890, 0.5, 0.25
      %v2923 = vsel %vm2891, 0.5, 0.25
      %v2924 = vsel %vm2892, 0.5, 0.25
      %v2925 = vsel %vm2893, 0.5, 0.25
      %v2926 = vsel %vm2894, 0.5, 0.25
      %v2927 = vsel %vm2895, 0.5, 0.25
      %v2928 = vsel %vm2896, 0.5, 0.25
      %v2929 = vsel %vm2897, 0.5, 0.25
      %v2930 = vsel %vm2898, 0.5, 0.25
      %v2931 = vsel %vm2899, 0.5, 0.25
      %v2932 = vsel %vm2900, 0.5, 0.25
      %v2933 = vsel %vm2901, 0.5, 0.25
      %v2934 = vsel %vm2902, 0.5, 0.25
      %v2935 = vsel %vm2903, 0.5, 0.25
      %v2936 = vsel %vm2904, 0.5, 0.25
      %v2937 = vsel %vm2905, 0.5, 0.25
      %v2938 = vsel %vm2906, 0.5, 0.25
      %v2939 = vsel %vm2907, 0.5, 0.25
      %v2940 = vsel %vm2908, 0.5, 0.25
      %v2941 = vsel %vm2909, 0.5, 0.25
      %v2942 = vsel %vm2910, 0.5, 0.25
      %v2943 = vsel %vm2911, 0.5, 0.25
      %v2944 = vsel %vm2912, 0.5, 0.25
      %v2945 = vsel %vm2913, 0.5, 0.25
      %v2946 = vsel %vm2914, 0.5, 0.25
      %v2947 = vsel %vm2915, 0.5, 0.25
      %v2948 = vsel %vm2916, 0.5, 0.25
      %v2949 = vmul.f32 %v2759, %v2917
      %v2950 = vmul.f32 %v2762, %v2918
      %v2951 = vmul.f32 %v2767, %v2919
      %v2952 = vmul.f32 %v2770, %v2920
      %v2953 = vmul.f32 %v2775, %v2921
      %v2954 = vmul.f32 %v2778, %v2922
      %v2955 = vmul.f32 %v2783, %v2923
      %v2956 = vmul.f32 %v2786, %v2924
      %v2957 = vmul.f32 %v2791, %v2925
      %v2958 = vmul.f32 %v2794, %v2926
      %v2959 = vmul.f32 %v2799, %v2927
      %v2960 = vmul.f32 %v2802, %v2928
      %v2961 = vmul.f32 %v2807, %v2929
      %v2962 = vmul.f32 %v2810, %v2930
      %v2963 = vmul.f32 %v2815, %v2931
      %v2964 = vmul.f32 %v2818, %v2932
      %v2965 = vmul.f32 %v2823, %v2933
      %v2966 = vmul.f32 %v2826, %v2934
      %v2967 = vmul.f32 %v2831, %v2935
      %v2968 = vmul.f32 %v2834, %v2936
      %v2969 = vmul.f32 %v2839, %v2937
      %v2970 = vmul.f32 %v2842, %v2938
      %v2971 = vmul.f32 %v2847, %v2939
      %v2972 = vmul.f32 %v2850, %v2940
      %v2973 = vmul.f32 %v2855, %v2941
      %v2974 = vmul.f32 %v2858, %v2942
      %v2975 = vmul.f32 %v2863, %v2943
      %v2976 = vmul.f32 %v2866, %v2944
      %v2977 = vmul.f32 %v2871, %v2945
      %v2978 = vmul.f32 %v2874, %v2946
      %v2979 = vmul.f32 %v2879, %v2947
      %v2980 = vmul.f32 %v2882, %v2948
      %v2981 = vpack.c.bf16 %v2950, %v2949
      %v2982 = vpack.c.bf16 %v2952, %v2951
      %v2983 = vpack.c.bf16 %v2954, %v2953
      %v2984 = vpack.c.bf16 %v2956, %v2955
      %v2985 = vpack.c.bf16 %v2958, %v2957
      %v2986 = vpack.c.bf16 %v2960, %v2959
      %v2987 = vpack.c.bf16 %v2962, %v2961
      %v2988 = vpack.c.bf16 %v2964, %v2963
      %v2989 = vpack.c.bf16 %v2966, %v2965
      %v2990 = vpack.c.bf16 %v2968, %v2967
      %v2991 = vpack.c.bf16 %v2970, %v2969
      %v2992 = vpack.c.bf16 %v2972, %v2971
      %v2993 = vpack.c.bf16 %v2974, %v2973
      %v2994 = vpack.c.bf16 %v2976, %v2975
      %v2995 = vpack.c.bf16 %v2978, %v2977
      %v2996 = vpack.c.bf16 %v2980, %v2979
      %v2997 = vld [vmem:[%s5] sm:$0xf]
      %v2998 = vld [vmem:[%s5 + $0x4] sm:$0xf]
      %v2999 = vld [vmem:[%s5 + $0x8] sm:$0x1]
      %v3000 = vld [vmem:[%s11 + $0x4] ss:$0 sm:$0xff]
      %v3004 = vunpack.c.l.b16 %v2997
      %v3005 = vunpack.c.l.b16 %v2998
      %v3006 = vunpack.c.l.b16 %v2999
      %v3007 = vpack.c.b16 %v3005, %v3004
      %v3008 = vpack.c.b16 %v3006, %v3006
      %vm3010 = vcmask 146432
      %v3012 = vsel %vm3010, %v2981, 0
      %v3015 = vsel %vm3010, %v2982, 0
      %v3018 = vsel %vm3010, %v2983, 0
      %v3021 = vsel %vm3010, %v2984, 0
      %v3024 = vsel %vm3010, %v2985, 0
      %v3027 = vsel %vm3010, %v2986, 0
      %v3030 = vsel %vm3010, %v2987, 0
      %v3033 = vsel %vm3010, %v2988, 0
      %v3036 = vsel %vm3010, %v2989, 0
      %v3039 = vsel %vm3010, %v2990, 0
      %v3042 = vsel %vm3010, %v2991, 0
      %v3045 = vsel %vm3010, %v2992, 0
      %v3048 = vsel %vm3010, %v2993, 0
      %v3051 = vsel %vm3010, %v2994, 0
      %v3054 = vsel %vm3010, %v2995, 0
      %v3057 = vsel %vm3010, %v2996, 0
      %vm3059 = vcmask 1040384
      %v3061 = vsel %vm3059, %v3008, 0
      %3063 = vmatprep.subr.bf16.mxu0 0
      %3064 = vmatpush1.bf16.msra.mxu0 0
      %3065 = vmatprep.subr.bf16.mxu0 0
      %3066 = vmatpush1.bf16.msra.mxu0 0
      %3067 = vmatprep.subr.bf16.mxu0 0
      %3068 = vmatpush1.bf16.msra.mxu0 0
      %3069 = vmatprep.subr.bf16.mxu0 0
      %3070 = vmatpush1.bf16.msra.mxu0 0
      %3071 = vmatprep.subr.bf16.mxu0 0
      %3072 = vmatpush1.bf16.msra.mxu0 0
      %3073 = vmatprep.subr.bf16.mxu0 0
      %3074 = vmatpush1.bf16.msra.mxu0 0
      %3075 = vmatprep.subr.bf16.mxu0 0
      %3076 = vmatpush1.bf16.msra.mxu0 %v3061
      %3077 = vmatprep.subr.bf16.mxu0 0
      %3078 = vmatpush1.bf16.msra.mxu0 %v3007
      %3079 = vmatprep.subr.bf16.mxu0 0
      %3080 = vmatpush2.bf16.msra.mxu0 0
      %3081 = vmatprep.subr.bf16.mxu0 0
      %3082 = vmatpush2.bf16.msra.mxu0 0
      %3083 = vmatprep.subr.bf16.mxu0 0
      %3084 = vmatpush2.bf16.msra.mxu0 0
      %3085 = vmatprep.subr.bf16.mxu0 0
      %3086 = vmatpush2.bf16.msra.mxu0 0
      %3087 = vmatprep.subr.bf16.mxu0 0
      %3088 = vmatpush2.bf16.msra.mxu0 0
      %3089 = vmatprep.subr.bf16.mxu0 0
      %3090 = vmatpush2.bf16.msra.mxu0 0
      %3091 = vmatprep.subr.bf16.mxu0 0
      %3092 = vmatpush2.bf16.msra.mxu0 0
      %3093 = vmatprep.subr.bf16.mxu0 0
      %3094 = vmatpush2.bf16.msra.mxu0 0
      %3095 = vmatprep.mubr.bf16.mxu0 0
      %3096 = vmatmul.mubr.bf16.gmra.mxu0 %v3012
      %v3097 = vpop.f32.mrf.mxu0
      %v3098 = vadd.f32 %v3000, %v3097
      %v3099 = vpop.f32.mrf.mxu0
      %v3100 = vpop.f32.mrf.mxu0
      %v3101 = vadd.f32 %v3000, %v3100
      %v3102 = vpop.f32.mrf.mxu0
      %3103 = vmatprep.mubr.bf16.mxu0 0
      %3104 = vmatmul.mubr.bf16.gmra.mxu0 %v3015
      %v3105 = vpop.f32.mrf.mxu0
      %v3106 = vadd.f32 %v3000, %v3105
      %v3107 = vpop.f32.mrf.mxu0
      %v3108 = vpop.f32.mrf.mxu0
      %v3109 = vadd.f32 %v3000, %v3108
      %v3110 = vpop.f32.mrf.mxu0
      %3111 = vmatprep.mubr.bf16.mxu0 0
      %3112 = vmatmul.mubr.bf16.gmra.mxu0 %v3018
      %v3113 = vpop.f32.mrf.mxu0
      %v3114 = vadd.f32 %v3000, %v3113
      %v3115 = vpop.f32.mrf.mxu0
      %v3116 = vpop.f32.mrf.mxu0
      %v3117 = vadd.f32 %v3000, %v3116
      %v3118 = vpop.f32.mrf.mxu0
      %3119 = vmatprep.mubr.bf16.mxu0 0
      %3120 = vmatmul.mubr.bf16.gmra.mxu0 %v3021
      %v3121 = vpop.f32.mrf.mxu0
      %v3122 = vadd.f32 %v3000, %v3121
      %v3123 = vpop.f32.mrf.mxu0
      %v3124 = vpop.f32.mrf.mxu0
      %v3125 = vadd.f32 %v3000, %v3124
      %v3126 = vpop.f32.mrf.mxu0
      %3127 = vmatprep.mubr.bf16.mxu0 0
      %3128 = vmatmul.mubr.bf16.gmra.mxu0 %v3024
      %v3129 = vpop.f32.mrf.mxu0
      %v3130 = vadd.f32 %v3000, %v3129
      %v3131 = vpop.f32.mrf.mxu0
      %v3132 = vpop.f32.mrf.mxu0
      %v3133 = vadd.f32 %v3000, %v3132
      %v3134 = vpop.f32.mrf.mxu0
      %3135 = vmatprep.mubr.bf16.mxu0 0
      %3136 = vmatmul.mubr.bf16.gmra.mxu0 %v3027
      %v3137 = vpop.f32.mrf.mxu0
      %v3138 = vadd.f32 %v3000, %v3137
      %v3139 = vpop.f32.mrf.mxu0
      %v3140 = vpop.f32.mrf.mxu0
      %v3141 = vadd.f32 %v3000, %v3140
      %v3142 = vpop.f32.mrf.mxu0
      %3143 = vmatprep.mubr.bf16.mxu0 0
      %3144 = vmatmul.mubr.bf16.gmra.mxu0 %v3030
      %v3145 = vpop.f32.mrf.mxu0
      %v3146 = vadd.f32 %v3000, %v3145
      %v3147 = vpop.f32.mrf.mxu0
      %v3148 = vpop.f32.mrf.mxu0
      %v3149 = vadd.f32 %v3000, %v3148
      %v3150 = vpop.f32.mrf.mxu0
      %3151 = vmatprep.mubr.bf16.mxu0 0
      %3152 = vmatmul.mubr.bf16.gmra.mxu0 %v3033
      %v3153 = vpop.f32.mrf.mxu0
      %v3154 = vadd.f32 %v3000, %v3153
      %v3155 = vpop.f32.mrf.mxu0
      %v3156 = vpop.f32.mrf.mxu0
      %v3157 = vadd.f32 %v3000, %v3156
      %v3158 = vpop.f32.mrf.mxu0
      %3159 = vmatprep.mubr.bf16.mxu0 0
      %3160 = vmatmul.mubr.bf16.gmra.mxu0 %v3036
      %v3161 = vpop.f32.mrf.mxu0
      %v3162 = vadd.f32 %v3000, %v3161
      %v3163 = vpop.f32.mrf.mxu0
      %v3164 = vpop.f32.mrf.mxu0
      %v3165 = vadd.f32 %v3000, %v3164
      %v3166 = vpop.f32.mrf.mxu0
      %3167 = vmatprep.mubr.bf16.mxu0 0
      %3168 = vmatmul.mubr.bf16.gmra.mxu0 %v3039
      %v3169 = vpop.f32.mrf.mxu0
      %v3170 = vadd.f32 %v3000, %v3169
      %v3171 = vpop.f32.mrf.mxu0
      %v3172 = vpop.f32.mrf.mxu0
      %v3173 = vadd.f32 %v3000, %v3172
      %v3174 = vpop.f32.mrf.mxu0
      %3175 = vmatprep.mubr.bf16.mxu0 0
      %3176 = vmatmul.mubr.bf16.gmra.mxu0 %v3042
      %v3177 = vpop.f32.mrf.mxu0
      %v3178 = vadd.f32 %v3000, %v3177
      %v3179 = vpop.f32.mrf.mxu0
      %v3180 = vpop.f32.mrf.mxu0
      %v3181 = vadd.f32 %v3000, %v3180
      %v3182 = vpop.f32.mrf.mxu0
      %3183 = vmatprep.mubr.bf16.mxu0 0
      %3184 = vmatmul.mubr.bf16.gmra.mxu0 %v3045
      %v3185 = vpop.f32.mrf.mxu0
      %v3186 = vadd.f32 %v3000, %v3185
      %v3187 = vpop.f32.mrf.mxu0
      %v3188 = vpop.f32.mrf.mxu0
      %v3189 = vadd.f32 %v3000, %v3188
      %v3190 = vpop.f32.mrf.mxu0
      %3191 = vmatprep.mubr.bf16.mxu0 0
      %3192 = vmatmul.mubr.bf16.gmra.mxu0 %v3048
      %v3193 = vpop.f32.mrf.mxu0
      %v3194 = vadd.f32 %v3000, %v3193
      %v3195 = vpop.f32.mrf.mxu0
      %v3196 = vpop.f32.mrf.mxu0
      %v3197 = vadd.f32 %v3000, %v3196
      %v3198 = vpop.f32.mrf.mxu0
      %3199 = vmatprep.mubr.bf16.mxu0 0
      %3200 = vmatmul.mubr.bf16.gmra.mxu0 %v3051
      %v3201 = vpop.f32.mrf.mxu0
      %v3202 = vadd.f32 %v3000, %v3201
      %v3203 = vpop.f32.mrf.mxu0
      %v3204 = vpop.f32.mrf.mxu0
      %v3205 = vadd.f32 %v3000, %v3204
      %v3206 = vpop.f32.mrf.mxu0
      %3207 = vmatprep.mubr.bf16.mxu0 0
      %3208 = vmatmul.mubr.bf16.gmra.mxu0 %v3054
      %v3209 = vpop.f32.mrf.mxu0
      %v3210 = vadd.f32 %v3000, %v3209
      %v3211 = vpop.f32.mrf.mxu0
      %v3212 = vpop.f32.mrf.mxu0
      %v3213 = vadd.f32 %v3000, %v3212
      %v3214 = vpop.f32.mrf.mxu0
      %3215 = vmatprep.mubr.bf16.mxu0 0
      %3216 = vmatmul.mubr.bf16.gmra.mxu0 %v3057
      %v3217 = vpop.f32.mrf.mxu0
      %v3218 = vadd.f32 %v3000, %v3217
      %v3219 = vpop.f32.mrf.mxu0
      %v3220 = vpop.f32.mrf.mxu0
      %v3221 = vadd.f32 %v3000, %v3220
      %v3222 = vpop.f32.mrf.mxu0
      %3223 = vdwg.mxu0
      %vm3224 = vcmp.gt.f32.partialorder %v3098, 0.0
      %vm3225 = vcmp.gt.f32.partialorder %v3101, 0.0
      %vm3226 = vcmp.gt.f32.partialorder %v3106, 0.0
      %vm3227 = vcmp.gt.f32.partialorder %v3109, 0.0
      %vm3228 = vcmp.gt.f32.partialorder %v3114, 0.0
      %vm3229 = vcmp.gt.f32.partialorder %v3117, 0.0
      %vm3230 = vcmp.gt.f32.partialorder %v3122, 0.0
      %vm3231 = vcmp.gt.f32.partialorder %v3125, 0.0
      %vm3232 = vcmp.gt.f32.partialorder %v3130, 0.0
      %vm3233 = vcmp.gt.f32.partialorder %v3133, 0.0
      %vm3234 = vcmp.gt.f32.partialorder %v3138, 0.0
      %vm3235 = vcmp.gt.f32.partialorder %v3141, 0.0
      %vm3236 = vcmp.gt.f32.partialorder %v3146, 0.0
      %vm3237 = vcmp.gt.f32.partialorder %v3149, 0.0
      %vm3238 = vcmp.gt.f32.partialorder %v3154, 0.0
      %vm3239 = vcmp.gt.f32.partialorder %v3157, 0.0
      %vm3240 = vcmp.gt.f32.partialorder %v3162, 0.0
      %vm3241 = vcmp.gt.f32.partialorder %v3165, 0.0
      %vm3242 = vcmp.gt.f32.partialorder %v3170, 0.0
      %vm3243 = vcmp.gt.f32.partialorder %v3173, 0.0
      %vm3244 = vcmp.gt.f32.partialorder %v3178, 0.0
      %vm3245 = vcmp.gt.f32.partialorder %v3181, 0.0
      %vm3246 = vcmp.gt.f32.partialorder %v3186, 0.0
      %vm3247 = vcmp.gt.f32.partialorder %v3189, 0.0
      %vm3248 = vcmp.gt.f32.partialorder %v3194, 0.0
      %vm3249 = vcmp.gt.f32.partialorder %v3197, 0.0
      %vm3250 = vcmp.gt.f32.partialorder %v3202, 0.0
      %vm3251 = vcmp.gt.f32.partialorder %v3205, 0.0
      %vm3252 = vcmp.gt.f32.partialorder %v3210, 0.0
      %vm3253 = vcmp.gt.f32.partialorder %v3213, 0.0
      %vm3254 = vcmp.gt.f32.partialorder %v3218, 0.0
      %vm3255 = vcmp.gt.f32.partialorder %v3221, 0.0
      %v3256 = vsel %vm3224, 0.5, 0.25
      %v3257 = vsel %vm3225, 0.5, 0.25
      %v3258 = vsel %vm3226, 0.5, 0.25
      %v3259 = vsel %vm3227, 0.5, 0.25
      %v3260 = vsel %vm3228, 0.5, 0.25
      %v3261 = vsel %vm3229, 0.5, 0.25
      %v3262 = vsel %vm3230, 0.5, 0.25
      %v3263 = vsel %vm3231, 0.5, 0.25
      %v3264 = vsel %vm3232, 0.5, 0.25
      %v3265 = vsel %vm3233, 0.5, 0.25
      %v3266 = vsel %vm3234, 0.5, 0.25
      %v3267 = vsel %vm3235, 0.5, 0.25
      %v3268 = vsel %vm3236, 0.5, 0.25
      %v3269 = vsel %vm3237, 0.5, 0.25
      %v3270 = vsel %vm3238, 0.5, 0.25
      %v3271 = vsel %vm3239, 0.5, 0.25
      %v3272 = vsel %vm3240, 0.5, 0.25
      %v3273 = vsel %vm3241, 0.5, 0.25
      %v3274 = vsel %vm3242, 0.5, 0.25
      %v3275 = vsel %vm3243, 0.5, 0.25
      %v3276 = vsel %vm3244, 0.5, 0.25
      %v3277 = vsel %vm3245, 0.5, 0.25
      %v3278 = vsel %vm3246, 0.5, 0.25
      %v3279 = vsel %vm3247, 0.5, 0.25
      %v3280 = vsel %vm3248, 0.5, 0.25
      %v3281 = vsel %vm3249, 0.5, 0.25
      %v3282 = vsel %vm3250, 0.5, 0.25
      %v3283 = vsel %vm3251, 0.5, 0.25
      %v3284 = vsel %vm3252, 0.5, 0.25
      %v3285 = vsel %vm3253, 0.5, 0.25
      %v3286 = vsel %vm3254, 0.5, 0.25
      %v3287 = vsel %vm3255, 0.5, 0.25
      %v3288 = vmul.f32 %v3098, %v3256
      %v3289 = vmul.f32 %v3101, %v3257
      %v3290 = vmul.f32 %v3106, %v3258
      %v3291 = vmul.f32 %v3109, %v3259
      %v3292 = vmul.f32 %v3114, %v3260
      %v3293 = vmul.f32 %v3117, %v3261
      %v3294 = vmul.f32 %v3122, %v3262
      %v3295 = vmul.f32 %v3125, %v3263
      %v3296 = vmul.f32 %v3130, %v3264
      %v3297 = vmul.f32 %v3133, %v3265
      %v3298 = vmul.f32 %v3138, %v3266
      %v3299 = vmul.f32 %v3141, %v3267
      %v3300 = vmul.f32 %v3146, %v3268
      %v3301 = vmul.f32 %v3149, %v3269
      %v3302 = vmul.f32 %v3154, %v3270
      %v3303 = vmul.f32 %v3157, %v3271
      %v3304 = vmul.f32 %v3162, %v3272
      %v3305 = vmul.f32 %v3165, %v3273
      %v3306 = vmul.f32 %v3170, %v3274
      %v3307 = vmul.f32 %v3173, %v3275
      %v3308 = vmul.f32 %v3178, %v3276
      %v3309 = vmul.f32 %v3181, %v3277
      %v3310 = vmul.f32 %v3186, %v3278
      %v3311 = vmul.f32 %v3189, %v3279
      %v3312 = vmul.f32 %v3194, %v3280
      %v3313 = vmul.f32 %v3197, %v3281
      %v3314 = vmul.f32 %v3202, %v3282
      %v3315 = vmul.f32 %v3205, %v3283
      %v3316 = vmul.f32 %v3210, %v3284
      %v3317 = vmul.f32 %v3213, %v3285
      %v3318 = vmul.f32 %v3218, %v3286
      %v3319 = vmul.f32 %v3221, %v3287
      %v3320 = vpack.c.bf16 %v3289, %v3288
      %v3321 = vpack.c.bf16 %v3291, %v3290
      %v3322 = vpack.c.bf16 %v3293, %v3292
      %v3323 = vpack.c.bf16 %v3295, %v3294
      %v3324 = vpack.c.bf16 %v3297, %v3296
      %v3325 = vpack.c.bf16 %v3299, %v3298
      %v3326 = vpack.c.bf16 %v3301, %v3300
      %v3327 = vpack.c.bf16 %v3303, %v3302
      %v3328 = vpack.c.bf16 %v3305, %v3304
      %v3329 = vpack.c.bf16 %v3307, %v3306
      %v3330 = vpack.c.bf16 %v3309, %v3308
      %v3331 = vpack.c.bf16 %v3311, %v3310
      %v3332 = vpack.c.bf16 %v3313, %v3312
      %v3333 = vpack.c.bf16 %v3315, %v3314
      %v3334 = vpack.c.bf16 %v3317, %v3316
      %v3335 = vpack.c.bf16 %v3319, %v3318
      %v3336 = vld [vmem:[%s6] sm:$0xf]
      %v3337 = vld [vmem:[%s6 + $0x4] sm:$0x1]
      %v3338 = vld [vmem:[%s11 + $0x5] ss:$0 sm:$0xff]
      %v3341 = vunpack.c.l.b16 %v3336
      %v3342 = vunpack.c.l.b16 %v3337
      %v3343 = vpack.c.b16 %v3342, %v3341
      %vm3344 = vcmask 72704
      %v3346 = vsel %vm3344, %v3320, 0
      %v3349 = vsel %vm3344, %v3321, 0
      %v3352 = vsel %vm3344, %v3322, 0
      %v3355 = vsel %vm3344, %v3323, 0
      %v3358 = vsel %vm3344, %v3324, 0
      %v3361 = vsel %vm3344, %v3325, 0
      %v3364 = vsel %vm3344, %v3326, 0
      %v3367 = vsel %vm3344, %v3327, 0
      %v3370 = vsel %vm3344, %v3328, 0
      %v3373 = vsel %vm3344, %v3329, 0
      %v3376 = vsel %vm3344, %v3330, 0
      %v3379 = vsel %vm3344, %v3331, 0
      %v3382 = vsel %vm3344, %v3332, 0
      %v3385 = vsel %vm3344, %v3333, 0
      %v3388 = vsel %vm3344, %v3334, 0
      %v3391 = vsel %vm3344, %v3335, 0
      %vm3393 = vcmask 1043456
      %vm3394 = vcmask 1044480
      %v3395 = vsel %vm3393, 4294967295, 65535
      %v3396 = vsel %vm3394, %v3395, 0
      %v3398 = vand.u32 %v3343, %v3396
      %3400 = vmatprep.subr.bf16.mxu0 0
      %3401 = vmatpush1.bf16.msra.mxu0 0
      %3402 = vmatprep.subr.bf16.mxu0 0
      %3403 = vmatpush1.bf16.msra.mxu0 0
      %3404 = vmatprep.subr.bf16.mxu0 0
      %3405 = vmatpush1.bf16.msra.mxu0 0
      %3406 = vmatprep.subr.bf16.mxu0 0
      %3407 = vmatpush1.bf16.msra.mxu0 0
      %3408 = vmatprep.subr.bf16.mxu0 0
      %3409 = vmatpush1.bf16.msra.mxu0 0
      %3410 = vmatprep.subr.bf16.mxu0 0
      %3411 = vmatpush1.bf16.msra.mxu0 0
      %3412 = vmatprep.subr.bf16.mxu0 0
      %3413 = vmatpush1.bf16.msra.mxu0 0
      %3414 = vmatprep.subr.bf16.mxu0 0
      %3415 = vmatpush1.bf16.msra.mxu0 %v3398
      %3416 = vmatprep.subr.bf16.mxu0 0
      %3417 = vmatpush2.bf16.msra.mxu0 0
      %3418 = vmatprep.subr.bf16.mxu0 0
      %3419 = vmatpush2.bf16.msra.mxu0 0
      %3420 = vmatprep.subr.bf16.mxu0 0
      %3421 = vmatpush2.bf16.msra.mxu0 0
      %3422 = vmatprep.subr.bf16.mxu0 0
      %3423 = vmatpush2.bf16.msra.mxu0 0
      %3424 = vmatprep.subr.bf16.mxu0 0
      %3425 = vmatpush2.bf16.msra.mxu0 0
      %3426 = vmatprep.subr.bf16.mxu0 0
      %3427 = vmatpush2.bf16.msra.mxu0 0
      %3428 = vmatprep.subr.bf16.mxu0 0
      %3429 = vmatpush2.bf16.msra.mxu0 0
      %3430 = vmatprep.subr.bf16.mxu0 0
      %3431 = vmatpush2.bf16.msra.mxu0 0
      %3432 = vmatprep.mubr.bf16.mxu0 0
      %3433 = vmatmul.mubr.bf16.gmra.mxu0 %v3346
      %v3434 = vpop.f32.mrf.mxu0
      %v3435 = vadd.f32 %v3338, %v3434
      %v3436 = vpop.f32.mrf.mxu0
      %v3437 = vpop.f32.mrf.mxu0
      %v3438 = vadd.f32 %v3338, %v3437
      %v3439 = vpop.f32.mrf.mxu0
      %3440 = vmatprep.mubr.bf16.mxu0 0
      %3441 = vmatmul.mubr.bf16.gmra.mxu0 %v3349
      %v3442 = vpop.f32.mrf.mxu0
      %v3443 = vadd.f32 %v3338, %v3442
      %v3444 = vpop.f32.mrf.mxu0
      %v3445 = vpop.f32.mrf.mxu0
      %v3446 = vadd.f32 %v3338, %v3445
      %v3447 = vpop.f32.mrf.mxu0
      %3448 = vmatprep.mubr.bf16.mxu0 0
      %3449 = vmatmul.mubr.bf16.gmra.mxu0 %v3352
      %v3450 = vpop.f32.mrf.mxu0
      %v3451 = vadd.f32 %v3338, %v3450
      %v3452 = vpop.f32.mrf.mxu0
      %v3453 = vpop.f32.mrf.mxu0
      %v3454 = vadd.f32 %v3338, %v3453
      %v3455 = vpop.f32.mrf.mxu0
      %3456 = vmatprep.mubr.bf16.mxu0 0
      %3457 = vmatmul.mubr.bf16.gmra.mxu0 %v3355
      %v3458 = vpop.f32.mrf.mxu0
      %v3459 = vadd.f32 %v3338, %v3458
      %v3460 = vpop.f32.mrf.mxu0
      %v3461 = vpop.f32.mrf.mxu0
      %v3462 = vadd.f32 %v3338, %v3461
      %v3463 = vpop.f32.mrf.mxu0
      %3464 = vmatprep.mubr.bf16.mxu0 0
      %3465 = vmatmul.mubr.bf16.gmra.mxu0 %v3358
      %v3466 = vpop.f32.mrf.mxu0
      %v3467 = vadd.f32 %v3338, %v3466
      %v3468 = vpop.f32.mrf.mxu0
      %v3469 = vpop.f32.mrf.mxu0
      %v3470 = vadd.f32 %v3338, %v3469
      %v3471 = vpop.f32.mrf.mxu0
      %3472 = vmatprep.mubr.bf16.mxu0 0
      %3473 = vmatmul.mubr.bf16.gmra.mxu0 %v3361
      %v3474 = vpop.f32.mrf.mxu0
      %v3475 = vadd.f32 %v3338, %v3474
      %v3476 = vpop.f32.mrf.mxu0
      %v3477 = vpop.f32.mrf.mxu0
      %v3478 = vadd.f32 %v3338, %v3477
      %v3479 = vpop.f32.mrf.mxu0
      %3480 = vmatprep.mubr.bf16.mxu0 0
      %3481 = vmatmul.mubr.bf16.gmra.mxu0 %v3364
      %v3482 = vpop.f32.mrf.mxu0
      %v3483 = vadd.f32 %v3338, %v3482
      %v3484 = vpop.f32.mrf.mxu0
      %v3485 = vpop.f32.mrf.mxu0
      %v3486 = vadd.f32 %v3338, %v3485
      %v3487 = vpop.f32.mrf.mxu0
      %3488 = vmatprep.mubr.bf16.mxu0 0
      %3489 = vmatmul.mubr.bf16.gmra.mxu0 %v3367
      %v3490 = vpop.f32.mrf.mxu0
      %v3491 = vadd.f32 %v3338, %v3490
      %v3492 = vpop.f32.mrf.mxu0
      %v3493 = vpop.f32.mrf.mxu0
      %v3494 = vadd.f32 %v3338, %v3493
      %v3495 = vpop.f32.mrf.mxu0
      %3496 = vmatprep.mubr.bf16.mxu0 0
      %3497 = vmatmul.mubr.bf16.gmra.mxu0 %v3370
      %v3498 = vpop.f32.mrf.mxu0
      %v3499 = vadd.f32 %v3338, %v3498
      %v3500 = vpop.f32.mrf.mxu0
      %v3501 = vpop.f32.mrf.mxu0
      %v3502 = vadd.f32 %v3338, %v3501
      %v3503 = vpop.f32.mrf.mxu0
      %3504 = vmatprep.mubr.bf16.mxu0 0
      %3505 = vmatmul.mubr.bf16.gmra.mxu0 %v3373
      %v3506 = vpop.f32.mrf.mxu0
      %v3507 = vadd.f32 %v3338, %v3506
      %v3508 = vpop.f32.mrf.mxu0
      %v3509 = vpop.f32.mrf.mxu0
      %v3510 = vadd.f32 %v3338, %v3509
      %v3511 = vpop.f32.mrf.mxu0
      %3512 = vmatprep.mubr.bf16.mxu0 0
      %3513 = vmatmul.mubr.bf16.gmra.mxu0 %v3376
      %v3514 = vpop.f32.mrf.mxu0
      %v3515 = vadd.f32 %v3338, %v3514
      %v3516 = vpop.f32.mrf.mxu0
      %v3517 = vpop.f32.mrf.mxu0
      %v3518 = vadd.f32 %v3338, %v3517
      %v3519 = vpop.f32.mrf.mxu0
      %3520 = vmatprep.mubr.bf16.mxu0 0
      %3521 = vmatmul.mubr.bf16.gmra.mxu0 %v3379
      %v3522 = vpop.f32.mrf.mxu0
      %v3523 = vadd.f32 %v3338, %v3522
      %v3524 = vpop.f32.mrf.mxu0
      %v3525 = vpop.f32.mrf.mxu0
      %v3526 = vadd.f32 %v3338, %v3525
      %v3527 = vpop.f32.mrf.mxu0
      %3528 = vmatprep.mubr.bf16.mxu0 0
      %3529 = vmatmul.mubr.bf16.gmra.mxu0 %v3382
      %v3530 = vpop.f32.mrf.mxu0
      %v3531 = vadd.f32 %v3338, %v3530
      %v3532 = vpop.f32.mrf.mxu0
      %v3533 = vpop.f32.mrf.mxu0
      %v3534 = vadd.f32 %v3338, %v3533
      %v3535 = vpop.f32.mrf.mxu0
      %3536 = vmatprep.mubr.bf16.mxu0 0
      %3537 = vmatmul.mubr.bf16.gmra.mxu0 %v3385
      %v3538 = vpop.f32.mrf.mxu0
      %v3539 = vadd.f32 %v3338, %v3538
      %v3540 = vpop.f32.mrf.mxu0
      %v3541 = vpop.f32.mrf.mxu0
      %v3542 = vadd.f32 %v3338, %v3541
      %v3543 = vpop.f32.mrf.mxu0
      %3544 = vmatprep.mubr.bf16.mxu0 0
      %3545 = vmatmul.mubr.bf16.gmra.mxu0 %v3388
      %v3546 = vpop.f32.mrf.mxu0
      %v3547 = vadd.f32 %v3338, %v3546
      %v3548 = vpop.f32.mrf.mxu0
      %v3549 = vpop.f32.mrf.mxu0
      %v3550 = vadd.f32 %v3338, %v3549
      %v3551 = vpop.f32.mrf.mxu0
      %3552 = vmatprep.mubr.bf16.mxu0 0
      %3553 = vmatmul.mubr.bf16.gmra.mxu0 %v3391
      %v3554 = vpop.f32.mrf.mxu0
      %v3555 = vadd.f32 %v3338, %v3554
      %v3556 = vpop.f32.mrf.mxu0
      %v3557 = vpop.f32.mrf.mxu0
      %v3558 = vadd.f32 %v3338, %v3557
      %v3559 = vpop.f32.mrf.mxu0
      %3560 = vdwg.mxu0
      %vm3561 = vcmp.gt.f32.partialorder %v3435, 0.0
      %vm3562 = vcmp.gt.f32.partialorder %v3438, 0.0
      %vm3563 = vcmp.gt.f32.partialorder %v3443, 0.0
      %vm3564 = vcmp.gt.f32.partialorder %v3446, 0.0
      %vm3565 = vcmp.gt.f32.partialorder %v3451, 0.0
      %vm3566 = vcmp.gt.f32.partialorder %v3454, 0.0
      %vm3567 = vcmp.gt.f32.partialorder %v3459, 0.0
      %vm3568 = vcmp.gt.f32.partialorder %v3462, 0.0
      %vm3569 = vcmp.gt.f32.partialorder %v3467, 0.0
      %vm3570 = vcmp.gt.f32.partialorder %v3470, 0.0
      %vm3571 = vcmp.gt.f32.partialorder %v3475, 0.0
      %vm3572 = vcmp.gt.f32.partialorder %v3478, 0.0
      %vm3573 = vcmp.gt.f32.partialorder %v3483, 0.0
      %vm3574 = vcmp.gt.f32.partialorder %v3486, 0.0
      %vm3575 = vcmp.gt.f32.partialorder %v3491, 0.0
      %vm3576 = vcmp.gt.f32.partialorder %v3494, 0.0
      %vm3577 = vcmp.gt.f32.partialorder %v3499, 0.0
      %vm3578 = vcmp.gt.f32.partialorder %v3502, 0.0
      %vm3579 = vcmp.gt.f32.partialorder %v3507, 0.0
      %vm3580 = vcmp.gt.f32.partialorder %v3510, 0.0
      %vm3581 = vcmp.gt.f32.partialorder %v3515, 0.0
      %vm3582 = vcmp.gt.f32.partialorder %v3518, 0.0
      %vm3583 = vcmp.gt.f32.partialorder %v3523, 0.0
      %vm3584 = vcmp.gt.f32.partialorder %v3526, 0.0
      %vm3585 = vcmp.gt.f32.partialorder %v3531, 0.0
      %vm3586 = vcmp.gt.f32.partialorder %v3534, 0.0
      %vm3587 = vcmp.gt.f32.partialorder %v3539, 0.0
      %vm3588 = vcmp.gt.f32.partialorder %v3542, 0.0
      %vm3589 = vcmp.gt.f32.partialorder %v3547, 0.0
      %vm3590 = vcmp.gt.f32.partialorder %v3550, 0.0
      %vm3591 = vcmp.gt.f32.partialorder %v3555, 0.0
      %vm3592 = vcmp.gt.f32.partialorder %v3558, 0.0
      %v3593 = vsel %vm3561, 0.5, 0.25
      %v3594 = vsel %vm3562, 0.5, 0.25
      %v3595 = vsel %vm3563, 0.5, 0.25
      %v3596 = vsel %vm3564, 0.5, 0.25
      %v3597 = vsel %vm3565, 0.5, 0.25
      %v3598 = vsel %vm3566, 0.5, 0.25
      %v3599 = vsel %vm3567, 0.5, 0.25
      %v3600 = vsel %vm3568, 0.5, 0.25
      %v3601 = vsel %vm3569, 0.5, 0.25
      %v3602 = vsel %vm3570, 0.5, 0.25
      %v3603 = vsel %vm3571, 0.5, 0.25
      %v3604 = vsel %vm3572, 0.5, 0.25
      %v3605 = vsel %vm3573, 0.5, 0.25
      %v3606 = vsel %vm3574, 0.5, 0.25
      %v3607 = vsel %vm3575, 0.5, 0.25
      %v3608 = vsel %vm3576, 0.5, 0.25
      %v3609 = vsel %vm3577, 0.5, 0.25
      %v3610 = vsel %vm3578, 0.5, 0.25
      %v3611 = vsel %vm3579, 0.5, 0.25
      %v3612 = vsel %vm3580, 0.5, 0.25
      %v3613 = vsel %vm3581, 0.5, 0.25
      %v3614 = vsel %vm3582, 0.5, 0.25
      %v3615 = vsel %vm3583, 0.5, 0.25
      %v3616 = vsel %vm3584, 0.5, 0.25
      %v3617 = vsel %vm3585, 0.5, 0.25
      %v3618 = vsel %vm3586, 0.5, 0.25
      %v3619 = vsel %vm3587, 0.5, 0.25
      %v3620 = vsel %vm3588, 0.5, 0.25
      %v3621 = vsel %vm3589, 0.5, 0.25
      %v3622 = vsel %vm3590, 0.5, 0.25
      %v3623 = vsel %vm3591, 0.5, 0.25
      %v3624 = vsel %vm3592, 0.5, 0.25
      %v3625 = vmul.f32 %v3435, %v3593
      %v3626 = vmul.f32 %v3438, %v3594
      %v3627 = vmul.f32 %v3443, %v3595
      %v3628 = vmul.f32 %v3446, %v3596
      %v3629 = vmul.f32 %v3451, %v3597
      %v3630 = vmul.f32 %v3454, %v3598
      %v3631 = vmul.f32 %v3459, %v3599
      %v3632 = vmul.f32 %v3462, %v3600
      %v3633 = vmul.f32 %v3467, %v3601
      %v3634 = vmul.f32 %v3470, %v3602
      %v3635 = vmul.f32 %v3475, %v3603
      %v3636 = vmul.f32 %v3478, %v3604
      %v3637 = vmul.f32 %v3483, %v3605
      %v3638 = vmul.f32 %v3486, %v3606
      %v3639 = vmul.f32 %v3491, %v3607
      %v3640 = vmul.f32 %v3494, %v3608
      %v3641 = vmul.f32 %v3499, %v3609
      %v3642 = vmul.f32 %v3502, %v3610
      %v3643 = vmul.f32 %v3507, %v3611
      %v3644 = vmul.f32 %v3510, %v3612
      %v3645 = vmul.f32 %v3515, %v3613
      %v3646 = vmul.f32 %v3518, %v3614
      %v3647 = vmul.f32 %v3523, %v3615
      %v3648 = vmul.f32 %v3526, %v3616
      %v3649 = vmul.f32 %v3531, %v3617
      %v3650 = vmul.f32 %v3534, %v3618
      %v3651 = vmul.f32 %v3539, %v3619
      %v3652 = vmul.f32 %v3542, %v3620
      %v3653 = vmul.f32 %v3547, %v3621
      %v3654 = vmul.f32 %v3550, %v3622
      %v3655 = vmul.f32 %v3555, %v3623
      %v3656 = vmul.f32 %v3558, %v3624
      %v3657 = vpack.c.bf16 %v3626, %v3625
      %v3658 = vpack.c.bf16 %v3628, %v3627
      %v3659 = vpack.c.bf16 %v3630, %v3629
      %v3660 = vpack.c.bf16 %v3632, %v3631
      %v3661 = vpack.c.bf16 %v3634, %v3633
      %v3662 = vpack.c.bf16 %v3636, %v3635
      %v3663 = vpack.c.bf16 %v3638, %v3637
      %v3664 = vpack.c.bf16 %v3640, %v3639
      %v3665 = vpack.c.bf16 %v3642, %v3641
      %v3666 = vpack.c.bf16 %v3644, %v3643
      %v3667 = vpack.c.bf16 %v3646, %v3645
      %v3668 = vpack.c.bf16 %v3648, %v3647
      %v3669 = vpack.c.bf16 %v3650, %v3649
      %v3670 = vpack.c.bf16 %v3652, %v3651
      %v3671 = vpack.c.bf16 %v3654, %v3653
      %v3672 = vpack.c.bf16 %v3656, %v3655
      %v3673 = vld [vmem:[%s7] sm:$0xf]
      %v3674 = vld [vmem:[%s7 + $0x4] sm:$0xf]
      %v3675 = vld [vmem:[%s7 + $0x8] sm:$0x1]
      %v3676 = vld [vmem:[%s11 + $0x6] ss:$0 sm:$0xff]
      %v3680 = vunpack.c.l.b16 %v3673
      %v3681 = vunpack.c.l.b16 %v3674
      %v3682 = vunpack.c.l.b16 %v3675
      %v3683 = vpack.c.b16 %v3681, %v3680
      %v3684 = vpack.c.b16 %v3682, %v3682
      %v3687 = vsel %vm3010, %v3657, 0
      %v3690 = vsel %vm3010, %v3658, 0
      %v3693 = vsel %vm3010, %v3659, 0
      %v3696 = vsel %vm3010, %v3660, 0
      %v3699 = vsel %vm3010, %v3661, 0
      %v3702 = vsel %vm3010, %v3662, 0
      %v3705 = vsel %vm3010, %v3663, 0
      %v3708 = vsel %vm3010, %v3664, 0
      %v3711 = vsel %vm3010, %v3665, 0
      %v3714 = vsel %vm3010, %v3666, 0
      %v3717 = vsel %vm3010, %v3667, 0
      %v3720 = vsel %vm3010, %v3668, 0
      %v3723 = vsel %vm3010, %v3669, 0
      %v3726 = vsel %vm3010, %v3670, 0
      %v3729 = vsel %vm3010, %v3671, 0
      %v3732 = vsel %vm3010, %v3672, 0
      %v3735 = vsel %vm3059, %v3684, 0
      %3737 = vmatprep.subr.bf16.mxu0 0
      %3738 = vmatpush1.bf16.msra.mxu0 0
      %3739 = vmatprep.subr.bf16.mxu0 0
      %3740 = vmatpush1.bf16.msra.mxu0 0
      %3741 = vmatprep.subr.bf16.mxu0 0
      %3742 = vmatpush1.bf16.msra.mxu0 0
      %3743 = vmatprep.subr.bf16.mxu0 0
      %3744 = vmatpush1.bf16.msra.mxu0 0
      %3745 = vmatprep.subr.bf16.mxu0 0
      %3746 = vmatpush1.bf16.msra.mxu0 0
      %3747 = vmatprep.subr.bf16.mxu0 0
      %3748 = vmatpush1.bf16.msra.mxu0 0
      %3749 = vmatprep.subr.bf16.mxu0 0
      %3750 = vmatpush1.bf16.msra.mxu0 %v3735
      %3751 = vmatprep.subr.bf16.mxu0 0
      %3752 = vmatpush1.bf16.msra.mxu0 %v3683
      %3753 = vmatprep.subr.bf16.mxu0 0
      %3754 = vmatpush2.bf16.msra.mxu0 0
      %3755 = vmatprep.subr.bf16.mxu0 0
      %3756 = vmatpush2.bf16.msra.mxu0 0
      %3757 = vmatprep.subr.bf16.mxu0 0
      %3758 = vmatpush2.bf16.msra.mxu0 0
      %3759 = vmatprep.subr.bf16.mxu0 0
      %3760 = vmatpush2.bf16.msra.mxu0 0
      %3761 = vmatprep.subr.bf16.mxu0 0
      %3762 = vmatpush2.bf16.msra.mxu0 0
      %3763 = vmatprep.subr.bf16.mxu0 0
      %3764 = vmatpush2.bf16.msra.mxu0 0
      %3765 = vmatprep.subr.bf16.mxu0 0
      %3766 = vmatpush2.bf16.msra.mxu0 0
      %3767 = vmatprep.subr.bf16.mxu0 0
      %3768 = vmatpush2.bf16.msra.mxu0 0
      %3769 = vmatprep.mubr.bf16.mxu0 0
      %3770 = vmatmul.mubr.bf16.gmra.mxu0 %v3687
      %v3771 = vpop.f32.mrf.mxu0
      %v3772 = vadd.f32 %v3676, %v3771
      %v3773 = vpop.f32.mrf.mxu0
      %v3774 = vpop.f32.mrf.mxu0
      %v3775 = vadd.f32 %v3676, %v3774
      %v3776 = vpop.f32.mrf.mxu0
      %3777 = vmatprep.mubr.bf16.mxu0 0
      %3778 = vmatmul.mubr.bf16.gmra.mxu0 %v3690
      %v3779 = vpop.f32.mrf.mxu0
      %v3780 = vadd.f32 %v3676, %v3779
      %v3781 = vpop.f32.mrf.mxu0
      %v3782 = vpop.f32.mrf.mxu0
      %v3783 = vadd.f32 %v3676, %v3782
      %v3784 = vpop.f32.mrf.mxu0
      %3785 = vmatprep.mubr.bf16.mxu0 0
      %3786 = vmatmul.mubr.bf16.gmra.mxu0 %v3693
      %v3787 = vpop.f32.mrf.mxu0
      %v3788 = vadd.f32 %v3676, %v3787
      %v3789 = vpop.f32.mrf.mxu0
      %v3790 = vpop.f32.mrf.mxu0
      %v3791 = vadd.f32 %v3676, %v3790
      %v3792 = vpop.f32.mrf.mxu0
      %3793 = vmatprep.mubr.bf16.mxu0 0
      %3794 = vmatmul.mubr.bf16.gmra.mxu0 %v3696
      %v3795 = vpop.f32.mrf.mxu0
      %v3796 = vadd.f32 %v3676, %v3795
      %v3797 = vpop.f32.mrf.mxu0
      %v3798 = vpop.f32.mrf.mxu0
      %v3799 = vadd.f32 %v3676, %v3798
      %v3800 = vpop.f32.mrf.mxu0
      %3801 = vmatprep.mubr.bf16.mxu0 0
      %3802 = vmatmul.mubr.bf16.gmra.mxu0 %v3699
      %v3803 = vpop.f32.mrf.mxu0
      %v3804 = vadd.f32 %v3676, %v3803
      %v3805 = vpop.f32.mrf.mxu0
      %v3806 = vpop.f32.mrf.mxu0
      %v3807 = vadd.f32 %v3676, %v3806
      %v3808 = vpop.f32.mrf.mxu0
      %3809 = vmatprep.mubr.bf16.mxu0 0
      %3810 = vmatmul.mubr.bf16.gmra.mxu0 %v3702
      %v3811 = vpop.f32.mrf.mxu0
      %v3812 = vadd.f32 %v3676, %v3811
      %v3813 = vpop.f32.mrf.mxu0
      %v3814 = vpop.f32.mrf.mxu0
      %v3815 = vadd.f32 %v3676, %v3814
      %v3816 = vpop.f32.mrf.mxu0
      %3817 = vmatprep.mubr.bf16.mxu0 0
      %3818 = vmatmul.mubr.bf16.gmra.mxu0 %v3705
      %v3819 = vpop.f32.mrf.mxu0
      %v3820 = vadd.f32 %v3676, %v3819
      %v3821 = vpop.f32.mrf.mxu0
      %v3822 = vpop.f32.mrf.mxu0
      %v3823 = vadd.f32 %v3676, %v3822
      %v3824 = vpop.f32.mrf.mxu0
      %3825 = vmatprep.mubr.bf16.mxu0 0
      %3826 = vmatmul.mubr.bf16.gmra.mxu0 %v3708
      %v3827 = vpop.f32.mrf.mxu0
      %v3828 = vadd.f32 %v3676, %v3827
      %v3829 = vpop.f32.mrf.mxu0
      %v3830 = vpop.f32.mrf.mxu0
      %v3831 = vadd.f32 %v3676, %v3830
      %v3832 = vpop.f32.mrf.mxu0
      %3833 = vmatprep.mubr.bf16.mxu0 0
      %3834 = vmatmul.mubr.bf16.gmra.mxu0 %v3711
      %v3835 = vpop.f32.mrf.mxu0
      %v3836 = vadd.f32 %v3676, %v3835
      %v3837 = vpop.f32.mrf.mxu0
      %v3838 = vpop.f32.mrf.mxu0
      %v3839 = vadd.f32 %v3676, %v3838
      %v3840 = vpop.f32.mrf.mxu0
      %3841 = vmatprep.mubr.bf16.mxu0 0
      %3842 = vmatmul.mubr.bf16.gmra.mxu0 %v3714
      %v3843 = vpop.f32.mrf.mxu0
      %v3844 = vadd.f32 %v3676, %v3843
      %v3845 = vpop.f32.mrf.mxu0
      %v3846 = vpop.f32.mrf.mxu0
      %v3847 = vadd.f32 %v3676, %v3846
      %v3848 = vpop.f32.mrf.mxu0
      %3849 = vmatprep.mubr.bf16.mxu0 0
      %3850 = vmatmul.mubr.bf16.gmra.mxu0 %v3717
      %v3851 = vpop.f32.mrf.mxu0
      %v3852 = vadd.f32 %v3676, %v3851
      %v3853 = vpop.f32.mrf.mxu0
      %v3854 = vpop.f32.mrf.mxu0
      %v3855 = vadd.f32 %v3676, %v3854
      %v3856 = vpop.f32.mrf.mxu0
      %3857 = vmatprep.mubr.bf16.mxu0 0
      %3858 = vmatmul.mubr.bf16.gmra.mxu0 %v3720
      %v3859 = vpop.f32.mrf.mxu0
      %v3860 = vadd.f32 %v3676, %v3859
      %v3861 = vpop.f32.mrf.mxu0
      %v3862 = vpop.f32.mrf.mxu0
      %v3863 = vadd.f32 %v3676, %v3862
      %v3864 = vpop.f32.mrf.mxu0
      %3865 = vmatprep.mubr.bf16.mxu0 0
      %3866 = vmatmul.mubr.bf16.gmra.mxu0 %v3723
      %v3867 = vpop.f32.mrf.mxu0
      %v3868 = vadd.f32 %v3676, %v3867
      %v3869 = vpop.f32.mrf.mxu0
      %v3870 = vpop.f32.mrf.mxu0
      %v3871 = vadd.f32 %v3676, %v3870
      %v3872 = vpop.f32.mrf.mxu0
      %3873 = vmatprep.mubr.bf16.mxu0 0
      %3874 = vmatmul.mubr.bf16.gmra.mxu0 %v3726
      %v3875 = vpop.f32.mrf.mxu0
      %v3876 = vadd.f32 %v3676, %v3875
      %v3877 = vpop.f32.mrf.mxu0
      %v3878 = vpop.f32.mrf.mxu0
      %v3879 = vadd.f32 %v3676, %v3878
      %v3880 = vpop.f32.mrf.mxu0
      %3881 = vmatprep.mubr.bf16.mxu0 0
      %3882 = vmatmul.mubr.bf16.gmra.mxu0 %v3729
      %v3883 = vpop.f32.mrf.mxu0
      %v3884 = vadd.f32 %v3676, %v3883
      %v3885 = vpop.f32.mrf.mxu0
      %v3886 = vpop.f32.mrf.mxu0
      %v3887 = vadd.f32 %v3676, %v3886
      %v3888 = vpop.f32.mrf.mxu0
      %3889 = vmatprep.mubr.bf16.mxu0 0
      %3890 = vmatmul.mubr.bf16.gmra.mxu0 %v3732
      %v3891 = vpop.f32.mrf.mxu0
      %v3892 = vadd.f32 %v3676, %v3891
      %v3893 = vpop.f32.mrf.mxu0
      %v3894 = vpop.f32.mrf.mxu0
      %v3895 = vadd.f32 %v3676, %v3894
      %v3896 = vpop.f32.mrf.mxu0
      %3897 = vdwg.mxu0
      %vm3898 = vcmp.gt.f32.partialorder %v3772, 0.0
      %vm3899 = vcmp.gt.f32.partialorder %v3775, 0.0
      %vm3900 = vcmp.gt.f32.partialorder %v3780, 0.0
      %vm3901 = vcmp.gt.f32.partialorder %v3783, 0.0
      %vm3902 = vcmp.gt.f32.partialorder %v3788, 0.0
      %vm3903 = vcmp.gt.f32.partialorder %v3791, 0.0
      %vm3904 = vcmp.gt.f32.partialorder %v3796, 0.0
      %vm3905 = vcmp.gt.f32.partialorder %v3799, 0.0
      %vm3906 = vcmp.gt.f32.partialorder %v3804, 0.0
      %vm3907 = vcmp.gt.f32.partialorder %v3807, 0.0
      %vm3908 = vcmp.gt.f32.partialorder %v3812, 0.0
      %vm3909 = vcmp.gt.f32.partialorder %v3815, 0.0
      %vm3910 = vcmp.gt.f32.partialorder %v3820, 0.0
      %vm3911 = vcmp.gt.f32.partialorder %v3823, 0.0
      %vm3912 = vcmp.gt.f32.partialorder %v3828, 0.0
      %vm3913 = vcmp.gt.f32.partialorder %v3831, 0.0
      %vm3914 = vcmp.gt.f32.partialorder %v3836, 0.0
      %vm3915 = vcmp.gt.f32.partialorder %v3839, 0.0
      %vm3916 = vcmp.gt.f32.partialorder %v3844, 0.0
      %vm3917 = vcmp.gt.f32.partialorder %v3847, 0.0
      %vm3918 = vcmp.gt.f32.partialorder %v3852, 0.0
      %vm3919 = vcmp.gt.f32.partialorder %v3855, 0.0
      %vm3920 = vcmp.gt.f32.partialorder %v3860, 0.0
      %vm3921 = vcmp.gt.f32.partialorder %v3863, 0.0
      %vm3922 = vcmp.gt.f32.partialorder %v3868, 0.0
      %vm3923 = vcmp.gt.f32.partialorder %v3871, 0.0
      %vm3924 = vcmp.gt.f32.partialorder %v3876, 0.0
      %vm3925 = vcmp.gt.f32.partialorder %v3879, 0.0
      %vm3926 = vcmp.gt.f32.partialorder %v3884, 0.0
      %vm3927 = vcmp.gt.f32.partialorder %v3887, 0.0
      %vm3928 = vcmp.gt.f32.partialorder %v3892, 0.0
      %vm3929 = vcmp.gt.f32.partialorder %v3895, 0.0
      %v3930 = vsel %vm3898, 0.5, 0.25
      %v3931 = vsel %vm3899, 0.5, 0.25
      %v3932 = vsel %vm3900, 0.5, 0.25
      %v3933 = vsel %vm3901, 0.5, 0.25
      %v3934 = vsel %vm3902, 0.5, 0.25
      %v3935 = vsel %vm3903, 0.5, 0.25
      %v3936 = vsel %vm3904, 0.5, 0.25
      %v3937 = vsel %vm3905, 0.5, 0.25
      %v3938 = vsel %vm3906, 0.5, 0.25
      %v3939 = vsel %vm3907, 0.5, 0.25
      %v3940 = vsel %vm3908, 0.5, 0.25
      %v3941 = vsel %vm3909, 0.5, 0.25
      %v3942 = vsel %vm3910, 0.5, 0.25
      %v3943 = vsel %vm3911, 0.5, 0.25
      %v3944 = vsel %vm3912, 0.5, 0.25
      %v3945 = vsel %vm3913, 0.5, 0.25
      %v3946 = vsel %vm3914, 0.5, 0.25
      %v3947 = vsel %vm3915, 0.5, 0.25
      %v3948 = vsel %vm3916, 0.5, 0.25
      %v3949 = vsel %vm3917, 0.5, 0.25
      %v3950 = vsel %vm3918, 0.5, 0.25
      %v3951 = vsel %vm3919, 0.5, 0.25
      %v3952 = vsel %vm3920, 0.5, 0.25
      %v3953 = vsel %vm3921, 0.5, 0.25
      %v3954 = vsel %vm3922, 0.5, 0.25
      %v3955 = vsel %vm3923, 0.5, 0.25
      %v3956 = vsel %vm3924, 0.5, 0.25
      %v3957 = vsel %vm3925, 0.5, 0.25
      %v3958 = vsel %vm3926, 0.5, 0.25
      %v3959 = vsel %vm3927, 0.5, 0.25
      %v3960 = vsel %vm3928, 0.5, 0.25
      %v3961 = vsel %vm3929, 0.5, 0.25
      %v3962 = vmul.f32 %v3772, %v3930
      %v3963 = vmul.f32 %v3775, %v3931
      %v3964 = vmul.f32 %v3780, %v3932
      %v3965 = vmul.f32 %v3783, %v3933
      %v3966 = vmul.f32 %v3788, %v3934
      %v3967 = vmul.f32 %v3791, %v3935
      %v3968 = vmul.f32 %v3796, %v3936
      %v3969 = vmul.f32 %v3799, %v3937
      %v3970 = vmul.f32 %v3804, %v3938
      %v3971 = vmul.f32 %v3807, %v3939
      %v3972 = vmul.f32 %v3812, %v3940
      %v3973 = vmul.f32 %v3815, %v3941
      %v3974 = vmul.f32 %v3820, %v3942
      %v3975 = vmul.f32 %v3823, %v3943
      %v3976 = vmul.f32 %v3828, %v3944
      %v3977 = vmul.f32 %v3831, %v3945
      %v3978 = vmul.f32 %v3836, %v3946
      %v3979 = vmul.f32 %v3839, %v3947
      %v3980 = vmul.f32 %v3844, %v3948
      %v3981 = vmul.f32 %v3847, %v3949
      %v3982 = vmul.f32 %v3852, %v3950
      %v3983 = vmul.f32 %v3855, %v3951
      %v3984 = vmul.f32 %v3860, %v3952
      %v3985 = vmul.f32 %v3863, %v3953
      %v3986 = vmul.f32 %v3868, %v3954
      %v3987 = vmul.f32 %v3871, %v3955
      %v3988 = vmul.f32 %v3876, %v3956
      %v3989 = vmul.f32 %v3879, %v3957
      %v3990 = vmul.f32 %v3884, %v3958
      %v3991 = vmul.f32 %v3887, %v3959
      %v3992 = vmul.f32 %v3892, %v3960
      %v3993 = vmul.f32 %v3895, %v3961
      %v3994 = vpack.c.bf16 %v3963, %v3962
      %v3995 = vpack.c.bf16 %v3965, %v3964
      %v3996 = vpack.c.bf16 %v3967, %v3966
      %v3997 = vpack.c.bf16 %v3969, %v3968
      %v3998 = vpack.c.bf16 %v3971, %v3970
      %v3999 = vpack.c.bf16 %v3973, %v3972
      %v4000 = vpack.c.bf16 %v3975, %v3974
      %v4001 = vpack.c.bf16 %v3977, %v3976
      %v4002 = vpack.c.bf16 %v3979, %v3978
      %v4003 = vpack.c.bf16 %v3981, %v3980
      %v4004 = vpack.c.bf16 %v3983, %v3982
      %v4005 = vpack.c.bf16 %v3985, %v3984
      %v4006 = vpack.c.bf16 %v3987, %v3986
      %v4007 = vpack.c.bf16 %v3989, %v3988
      %v4008 = vpack.c.bf16 %v3991, %v3990
      %v4009 = vpack.c.bf16 %v3993, %v3992
      %v4010 = vld [vmem:[%s8] sm:$0xf]
      %v4011 = vld [vmem:[%s8 + $0x4] sm:$0xf]
      %v4012 = vld [vmem:[%s8 + $0x8] sm:$0xf]
      %v4013 = vld [vmem:[%s8 + $0xc] sm:$0xf]
      %v4014 = vld [vmem:[%s8 + $0x10] sm:$0x3]
      %v4015 = vld [vmem:[%s11 + $0x7] ss:$0 sm:$0xff]
      %v4021 = vunpack.c.l.b16 %v4010
      %v4022 = vunpack.c.l.b16 %v4011
      %v4023 = vunpack.c.l.b16 %v4012
      %v4024 = vunpack.c.l.b16 %v4013
      %v4025 = vunpack.c.l.b16 %v4014
      %v4026 = vpack.c.b16 %v4022, %v4021
      %v4027 = vpack.c.b16 %v4024, %v4023
      %v4028 = vpack.c.b16 %v4025, %v4025
      %v4032 = vsel %vm2671, %v3994, 0
      %v4035 = vsel %vm2671, %v3995, 0
      %v4038 = vsel %vm2671, %v3996, 0
      %v4041 = vsel %vm2671, %v3997, 0
      %v4044 = vsel %vm2671, %v3998, 0
      %v4047 = vsel %vm2671, %v3999, 0
      %v4050 = vsel %vm2671, %v4000, 0
      %v4053 = vsel %vm2671, %v4001, 0
      %v4056 = vsel %vm2671, %v4002, 0
      %v4059 = vsel %vm2671, %v4003, 0
      %v4062 = vsel %vm2671, %v4004, 0
      %v4065 = vsel %vm2671, %v4005, 0
      %v4068 = vsel %vm2671, %v4006, 0
      %v4071 = vsel %vm2671, %v4007, 0
      %v4074 = vsel %vm2671, %v4008, 0
      %v4077 = vsel %vm2671, %v4009, 0
      %v4080 = vsel %vm2720, %v4028, 0
      %4082 = vmatprep.subr.bf16.mxu0 0
      %4083 = vmatpush1.bf16.msra.mxu0 0
      %4084 = vmatprep.subr.bf16.mxu0 0
      %4085 = vmatpush1.bf16.msra.mxu0 0
      %4086 = vmatprep.subr.bf16.mxu0 0
      %4087 = vmatpush1.bf16.msra.mxu0 0
      %4088 = vmatprep.subr.bf16.mxu0 0
      %4089 = vmatpush1.bf16.msra.mxu0 0
      %4090 = vmatprep.subr.bf16.mxu0 0
      %4091 = vmatpush1.bf16.msra.mxu0 0
      %4092 = vmatprep.subr.bf16.mxu0 0
      %4093 = vmatpush1.bf16.msra.mxu0 %v4080
      %4094 = vmatprep.subr.bf16.mxu0 0
      %4095 = vmatpush1.bf16.msra.mxu0 %v4027
      %4096 = vmatprep.subr.bf16.mxu0 0
      %4097 = vmatpush1.bf16.msra.mxu0 %v4026
      %4098 = vmatprep.subr.bf16.mxu0 0
      %4099 = vmatpush2.bf16.msra.mxu0 0
      %4100 = vmatprep.subr.bf16.mxu0 0
      %4101 = vmatpush2.bf16.msra.mxu0 0
      %4102 = vmatprep.subr.bf16.mxu0 0
      %4103 = vmatpush2.bf16.msra.mxu0 0
      %4104 = vmatprep.subr.bf16.mxu0 0
      %4105 = vmatpush2.bf16.msra.mxu0 0
      %4106 = vmatprep.subr.bf16.mxu0 0
      %4107 = vmatpush2.bf16.msra.mxu0 0
      %4108 = vmatprep.subr.bf16.mxu0 0
      %4109 = vmatpush2.bf16.msra.mxu0 0
      %4110 = vmatprep.subr.bf16.mxu0 0
      %4111 = vmatpush2.bf16.msra.mxu0 0
      %4112 = vmatprep.subr.bf16.mxu0 0
      %4113 = vmatpush2.bf16.msra.mxu0 0
      %4114 = vmatprep.mubr.bf16.mxu0 0
      %4115 = vmatmul.mubr.bf16.gmra.mxu0 %v4032
      %v4116 = vpop.f32.mrf.mxu0
      %v4117 = vadd.f32 %v4015, %v4116
      %v4118 = vpop.f32.mrf.mxu0
      %v4119 = vpop.f32.mrf.mxu0
      %v4120 = vadd.f32 %v4015, %v4119
      %v4121 = vpop.f32.mrf.mxu0
      %4122 = vmatprep.mubr.bf16.mxu0 0
      %4123 = vmatmul.mubr.bf16.gmra.mxu0 %v4035
      %v4124 = vpop.f32.mrf.mxu0
      %v4125 = vadd.f32 %v4015, %v4124
      %v4126 = vpop.f32.mrf.mxu0
      %v4127 = vpop.f32.mrf.mxu0
      %v4128 = vadd.f32 %v4015, %v4127
      %v4129 = vpop.f32.mrf.mxu0
      %4130 = vmatprep.mubr.bf16.mxu0 0
      %4131 = vmatmul.mubr.bf16.gmra.mxu0 %v4038
      %v4132 = vpop.f32.mrf.mxu0
      %v4133 = vadd.f32 %v4015, %v4132
      %v4134 = vpop.f32.mrf.mxu0
      %v4135 = vpop.f32.mrf.mxu0
      %v4136 = vadd.f32 %v4015, %v4135
      %v4137 = vpop.f32.mrf.mxu0
      %4138 = vmatprep.mubr.bf16.mxu0 0
      %4139 = vmatmul.mubr.bf16.gmra.mxu0 %v4041
      %v4140 = vpop.f32.mrf.mxu0
      %v4141 = vadd.f32 %v4015, %v4140
      %v4142 = vpop.f32.mrf.mxu0
      %v4143 = vpop.f32.mrf.mxu0
      %v4144 = vadd.f32 %v4015, %v4143
      %v4145 = vpop.f32.mrf.mxu0
      %4146 = vmatprep.mubr.bf16.mxu0 0
      %4147 = vmatmul.mubr.bf16.gmra.mxu0 %v4044
      %v4148 = vpop.f32.mrf.mxu0
      %v4149 = vadd.f32 %v4015, %v4148
      %v4150 = vpop.f32.mrf.mxu0
      %v4151 = vpop.f32.mrf.mxu0
      %v4152 = vadd.f32 %v4015, %v4151
      %v4153 = vpop.f32.mrf.mxu0
      %4154 = vmatprep.mubr.bf16.mxu0 0
      %4155 = vmatmul.mubr.bf16.gmra.mxu0 %v4047
      %v4156 = vpop.f32.mrf.mxu0
      %v4157 = vadd.f32 %v4015, %v4156
      %v4158 = vpop.f32.mrf.mxu0
      %v4159 = vpop.f32.mrf.mxu0
      %v4160 = vadd.f32 %v4015, %v4159
      %v4161 = vpop.f32.mrf.mxu0
      %4162 = vmatprep.mubr.bf16.mxu0 0
      %4163 = vmatmul.mubr.bf16.gmra.mxu0 %v4050
      %v4164 = vpop.f32.mrf.mxu0
      %v4165 = vadd.f32 %v4015, %v4164
      %v4166 = vpop.f32.mrf.mxu0
      %v4167 = vpop.f32.mrf.mxu0
      %v4168 = vadd.f32 %v4015, %v4167
      %v4169 = vpop.f32.mrf.mxu0
      %4170 = vmatprep.mubr.bf16.mxu0 0
      %4171 = vmatmul.mubr.bf16.gmra.mxu0 %v4053
      %v4172 = vpop.f32.mrf.mxu0
      %v4173 = vadd.f32 %v4015, %v4172
      %v4174 = vpop.f32.mrf.mxu0
      %v4175 = vpop.f32.mrf.mxu0
      %v4176 = vadd.f32 %v4015, %v4175
      %v4177 = vpop.f32.mrf.mxu0
      %4178 = vmatprep.mubr.bf16.mxu0 0
      %4179 = vmatmul.mubr.bf16.gmra.mxu0 %v4056
      %v4180 = vpop.f32.mrf.mxu0
      %v4181 = vadd.f32 %v4015, %v4180
      %v4182 = vpop.f32.mrf.mxu0
      %v4183 = vpop.f32.mrf.mxu0
      %v4184 = vadd.f32 %v4015, %v4183
      %v4185 = vpop.f32.mrf.mxu0
      %4186 = vmatprep.mubr.bf16.mxu0 0
      %4187 = vmatmul.mubr.bf16.gmra.mxu0 %v4059
      %v4188 = vpop.f32.mrf.mxu0
      %v4189 = vadd.f32 %v4015, %v4188
      %v4190 = vpop.f32.mrf.mxu0
      %v4191 = vpop.f32.mrf.mxu0
      %v4192 = vadd.f32 %v4015, %v4191
      %v4193 = vpop.f32.mrf.mxu0
      %4194 = vmatprep.mubr.bf16.mxu0 0
      %4195 = vmatmul.mubr.bf16.gmra.mxu0 %v4062
      %v4196 = vpop.f32.mrf.mxu0
      %v4197 = vadd.f32 %v4015, %v4196
      %v4198 = vpop.f32.mrf.mxu0
      %v4199 = vpop.f32.mrf.mxu0
      %v4200 = vadd.f32 %v4015, %v4199
      %v4201 = vpop.f32.mrf.mxu0
      %4202 = vmatprep.mubr.bf16.mxu0 0
      %4203 = vmatmul.mubr.bf16.gmra.mxu0 %v4065
      %v4204 = vpop.f32.mrf.mxu0
      %v4205 = vadd.f32 %v4015, %v4204
      %v4206 = vpop.f32.mrf.mxu0
      %v4207 = vpop.f32.mrf.mxu0
      %v4208 = vadd.f32 %v4015, %v4207
      %v4209 = vpop.f32.mrf.mxu0
      %4210 = vmatprep.mubr.bf16.mxu0 0
      %4211 = vmatmul.mubr.bf16.gmra.mxu0 %v4068
      %v4212 = vpop.f32.mrf.mxu0
      %v4213 = vadd.f32 %v4015, %v4212
      %v4214 = vpop.f32.mrf.mxu0
      %v4215 = vpop.f32.mrf.mxu0
      %v4216 = vadd.f32 %v4015, %v4215
      %v4217 = vpop.f32.mrf.mxu0
      %4218 = vmatprep.mubr.bf16.mxu0 0
      %4219 = vmatmul.mubr.bf16.gmra.mxu0 %v4071
      %v4220 = vpop.f32.mrf.mxu0
      %v4221 = vadd.f32 %v4015, %v4220
      %v4222 = vpop.f32.mrf.mxu0
      %v4223 = vpop.f32.mrf.mxu0
      %v4224 = vadd.f32 %v4015, %v4223
      %v4225 = vpop.f32.mrf.mxu0
      %4226 = vmatprep.mubr.bf16.mxu0 0
      %4227 = vmatmul.mubr.bf16.gmra.mxu0 %v4074
      %v4228 = vpop.f32.mrf.mxu0
      %v4229 = vadd.f32 %v4015, %v4228
      %v4230 = vpop.f32.mrf.mxu0
      %v4231 = vpop.f32.mrf.mxu0
      %v4232 = vadd.f32 %v4015, %v4231
      %v4233 = vpop.f32.mrf.mxu0
      %4234 = vmatprep.mubr.bf16.mxu0 0
      %4235 = vmatmul.mubr.bf16.gmra.mxu0 %v4077
      %v4236 = vpop.f32.mrf.mxu0
      %v4237 = vadd.f32 %v4015, %v4236
      %v4238 = vpop.f32.mrf.mxu0
      %v4239 = vpop.f32.mrf.mxu0
      %v4240 = vadd.f32 %v4015, %v4239
      %v4241 = vpop.f32.mrf.mxu0
      %4242 = vdwg.mxu0
      %vm4243 = vcmp.gt.f32.partialorder %v4117, 0.0
      %vm4244 = vcmp.gt.f32.partialorder %v4120, 0.0
      %vm4245 = vcmp.gt.f32.partialorder %v4125, 0.0
      %vm4246 = vcmp.gt.f32.partialorder %v4128, 0.0
      %vm4247 = vcmp.gt.f32.partialorder %v4133, 0.0
      %vm4248 = vcmp.gt.f32.partialorder %v4136, 0.0
      %vm4249 = vcmp.gt.f32.partialorder %v4141, 0.0
      %vm4250 = vcmp.gt.f32.partialorder %v4144, 0.0
      %vm4251 = vcmp.gt.f32.partialorder %v4149, 0.0
      %vm4252 = vcmp.gt.f32.partialorder %v4152, 0.0
      %vm4253 = vcmp.gt.f32.partialorder %v4157, 0.0
      %vm4254 = vcmp.gt.f32.partialorder %v4160, 0.0
      %vm4255 = vcmp.gt.f32.partialorder %v4165, 0.0
      %vm4256 = vcmp.gt.f32.partialorder %v4168, 0.0
      %vm4257 = vcmp.gt.f32.partialorder %v4173, 0.0
      %vm4258 = vcmp.gt.f32.partialorder %v4176, 0.0
      %vm4259 = vcmp.gt.f32.partialorder %v4181, 0.0
      %vm4260 = vcmp.gt.f32.partialorder %v4184, 0.0
      %vm4261 = vcmp.gt.f32.partialorder %v4189, 0.0
      %vm4262 = vcmp.gt.f32.partialorder %v4192, 0.0
      %vm4263 = vcmp.gt.f32.partialorder %v4197, 0.0
      %vm4264 = vcmp.gt.f32.partialorder %v4200, 0.0
      %vm4265 = vcmp.gt.f32.partialorder %v4205, 0.0
      %vm4266 = vcmp.gt.f32.partialorder %v4208, 0.0
      %vm4267 = vcmp.gt.f32.partialorder %v4213, 0.0
      %vm4268 = vcmp.gt.f32.partialorder %v4216, 0.0
      %vm4269 = vcmp.gt.f32.partialorder %v4221, 0.0
      %vm4270 = vcmp.gt.f32.partialorder %v4224, 0.0
      %vm4271 = vcmp.gt.f32.partialorder %v4229, 0.0
      %vm4272 = vcmp.gt.f32.partialorder %v4232, 0.0
      %vm4273 = vcmp.gt.f32.partialorder %v4237, 0.0
      %vm4274 = vcmp.gt.f32.partialorder %v4240, 0.0
      %v4275 = vsel %vm4243, 0.5, 0.25
      %v4276 = vsel %vm4244, 0.5, 0.25
      %v4277 = vsel %vm4245, 0.5, 0.25
      %v4278 = vsel %vm4246, 0.5, 0.25
      %v4279 = vsel %vm4247, 0.5, 0.25
      %v4280 = vsel %vm4248, 0.5, 0.25
      %v4281 = vsel %vm4249, 0.5, 0.25
      %v4282 = vsel %vm4250, 0.5, 0.25
      %v4283 = vsel %vm4251, 0.5, 0.25
      %v4284 = vsel %vm4252, 0.5, 0.25
      %v4285 = vsel %vm4253, 0.5, 0.25
      %v4286 = vsel %vm4254, 0.5, 0.25
      %v4287 = vsel %vm4255, 0.5, 0.25
      %v4288 = vsel %vm4256, 0.5, 0.25
      %v4289 = vsel %vm4257, 0.5, 0.25
      %v4290 = vsel %vm4258, 0.5, 0.25
      %v4291 = vsel %vm4259, 0.5, 0.25
      %v4292 = vsel %vm4260, 0.5, 0.25
      %v4293 = vsel %vm4261, 0.5, 0.25
      %v4294 = vsel %vm4262, 0.5, 0.25
      %v4295 = vsel %vm4263, 0.5, 0.25
      %v4296 = vsel %vm4264, 0.5, 0.25
      %v4297 = vsel %vm4265, 0.5, 0.25
      %v4298 = vsel %vm4266, 0.5, 0.25
      %v4299 = vsel %vm4267, 0.5, 0.25
      %v4300 = vsel %vm4268, 0.5, 0.25
      %v4301 = vsel %vm4269, 0.5, 0.25
      %v4302 = vsel %vm4270, 0.5, 0.25
      %v4303 = vsel %vm4271, 0.5, 0.25
      %v4304 = vsel %vm4272, 0.5, 0.25
      %v4305 = vsel %vm4273, 0.5, 0.25
      %v4306 = vsel %vm4274, 0.5, 0.25
      %v4307 = vmul.f32 %v4117, %v4275
      %v4308 = vmul.f32 %v4120, %v4276
      %v4309 = vmul.f32 %v4125, %v4277
      %v4310 = vmul.f32 %v4128, %v4278
      %v4311 = vmul.f32 %v4133, %v4279
      %v4312 = vmul.f32 %v4136, %v4280
      %v4313 = vmul.f32 %v4141, %v4281
      %v4314 = vmul.f32 %v4144, %v4282
      %v4315 = vmul.f32 %v4149, %v4283
      %v4316 = vmul.f32 %v4152, %v4284
      %v4317 = vmul.f32 %v4157, %v4285
      %v4318 = vmul.f32 %v4160, %v4286
      %v4319 = vmul.f32 %v4165, %v4287
      %v4320 = vmul.f32 %v4168, %v4288
      %v4321 = vmul.f32 %v4173, %v4289
      %v4322 = vmul.f32 %v4176, %v4290
      %v4323 = vmul.f32 %v4181, %v4291
      %v4324 = vmul.f32 %v4184, %v4292
      %v4325 = vmul.f32 %v4189, %v4293
      %v4326 = vmul.f32 %v4192, %v4294
      %v4327 = vmul.f32 %v4197, %v4295
      %v4328 = vmul.f32 %v4200, %v4296
      %v4329 = vmul.f32 %v4205, %v4297
      %v4330 = vmul.f32 %v4208, %v4298
      %v4331 = vmul.f32 %v4213, %v4299
      %v4332 = vmul.f32 %v4216, %v4300
      %v4333 = vmul.f32 %v4221, %v4301
      %v4334 = vmul.f32 %v4224, %v4302
      %v4335 = vmul.f32 %v4229, %v4303
      %v4336 = vmul.f32 %v4232, %v4304
      %v4337 = vmul.f32 %v4237, %v4305
      %v4338 = vmul.f32 %v4240, %v4306
      %v4339 = vpack.c.bf16 %v4308, %v4307
      %v4340 = vpack.c.bf16 %v4310, %v4309
      %v4341 = vpack.c.bf16 %v4312, %v4311
      %v4342 = vpack.c.bf16 %v4314, %v4313
      %v4343 = vpack.c.bf16 %v4316, %v4315
      %v4344 = vpack.c.bf16 %v4318, %v4317
      %v4345 = vpack.c.bf16 %v4320, %v4319
      %v4346 = vpack.c.bf16 %v4322, %v4321
      %v4347 = vpack.c.bf16 %v4324, %v4323
      %v4348 = vpack.c.bf16 %v4326, %v4325
      %v4349 = vpack.c.bf16 %v4328, %v4327
      %v4350 = vpack.c.bf16 %v4330, %v4329
      %v4351 = vpack.c.bf16 %v4332, %v4331
      %v4352 = vpack.c.bf16 %v4334, %v4333
      %v4353 = vpack.c.bf16 %v4336, %v4335
      %v4354 = vpack.c.bf16 %v4338, %v4337
      %v4355 = vld [vmem:[%s9] sm:$0xf]
      %v4356 = vld [vmem:[%s9 + $0x4] sm:$0xf]
      %v4357 = vld [vmem:[%s9 + $0x8] sm:$0xf]
      %v4358 = vld [vmem:[%s9 + $0xc] sm:$0xf]
      %v4359 = vld [vmem:[%s9 + $0x10] sm:$0xf]
      %v4360 = vld [vmem:[%s9 + $0x14] sm:$0xf]
      %v4361 = vld [vmem:[%s9 + $0x18] sm:$0xf]
      %v4362 = vld [vmem:[%s9 + $0x1c] sm:$0xf]
      %v4363 = vld [vmem:[%s11 + $0x38] ss:$0 sm:$0xff]
      %v4372 = vunpack.c.l.b16 %v4355
      %v4373 = vunpack.c.l.b16 %v4356
      %v4374 = vunpack.c.l.b16 %v4357
      %v4375 = vunpack.c.l.b16 %v4358
      %v4376 = vunpack.c.l.b16 %v4359
      %v4377 = vunpack.c.l.b16 %v4360
      %v4378 = vunpack.c.l.b16 %v4361
      %v4379 = vunpack.c.l.b16 %v4362
      %v4380 = vpack.c.b16 %v4373, %v4372
      %v4381 = vpack.c.b16 %v4375, %v4374
      %v4382 = vpack.c.b16 %v4377, %v4376
      %v4383 = vpack.c.b16 %v4379, %v4378
      %v4389 = vsel %vm2328, %v4339, 0
      %v4392 = vsel %vm2328, %v4340, 0
      %v4395 = vsel %vm2328, %v4341, 0
      %v4398 = vsel %vm2328, %v4342, 0
      %v4401 = vsel %vm2328, %v4343, 0
      %v4404 = vsel %vm2328, %v4344, 0
      %v4407 = vsel %vm2328, %v4345, 0
      %v4410 = vsel %vm2328, %v4346, 0
      %v4413 = vsel %vm2328, %v4347, 0
      %v4416 = vsel %vm2328, %v4348, 0
      %v4419 = vsel %vm2328, %v4349, 0
      %v4422 = vsel %vm2328, %v4350, 0
      %v4425 = vsel %vm2328, %v4351, 0
      %v4428 = vsel %vm2328, %v4352, 0
      %v4431 = vsel %vm2328, %v4353, 0
      %v4434 = vsel %vm2328, %v4354, 0
      %4436 = vmatprep.subr.bf16.mxu0 0
      %4437 = vmatpush1.bf16.msra.mxu0 0
      %4438 = vmatprep.subr.bf16.mxu0 0
      %4439 = vmatpush1.bf16.msra.mxu0 0
      %4440 = vmatprep.subr.bf16.mxu0 0
      %4441 = vmatpush1.bf16.msra.mxu0 0
      %4442 = vmatprep.subr.bf16.mxu0 0
      %4443 = vmatpush1.bf16.msra.mxu0 0
      %4444 = vmatprep.subr.bf16.mxu0 0
      %4445 = vmatpush1.bf16.msra.mxu0 %v4383
      %4446 = vmatprep.subr.bf16.mxu0 0
      %4447 = vmatpush1.bf16.msra.mxu0 %v4382
      %4448 = vmatprep.subr.bf16.mxu0 0
      %4449 = vmatpush1.bf16.msra.mxu0 %v4381
      %4450 = vmatprep.subr.bf16.mxu0 0
      %4451 = vmatpush1.bf16.msra.mxu0 %v4380
      %4452 = vmatprep.subr.bf16.mxu0 0
      %4453 = vmatpush2.bf16.msra.mxu0 0
      %4454 = vmatprep.subr.bf16.mxu0 0
      %4455 = vmatpush2.bf16.msra.mxu0 0
      %4456 = vmatprep.subr.bf16.mxu0 0
      %4457 = vmatpush2.bf16.msra.mxu0 0
      %4458 = vmatprep.subr.bf16.mxu0 0
      %4459 = vmatpush2.bf16.msra.mxu0 0
      %4460 = vmatprep.subr.bf16.mxu0 0
      %4461 = vmatpush2.bf16.msra.mxu0 0
      %4462 = vmatprep.subr.bf16.mxu0 0
      %4463 = vmatpush2.bf16.msra.mxu0 0
      %4464 = vmatprep.subr.bf16.mxu0 0
      %4465 = vmatpush2.bf16.msra.mxu0 0
      %4466 = vmatprep.subr.bf16.mxu0 0
      %4467 = vmatpush2.bf16.msra.mxu0 0
      %4468 = vmatprep.mubr.bf16.mxu0 0
      %4469 = vmatmul.mubr.bf16.gmra.mxu0 %v4389
      %v4470 = vpop.f32.mrf.mxu0
      %v4471 = vadd.f32 %v4363, %v4470
      %v4472 = vpop.f32.mrf.mxu0
      %v4473 = vpop.f32.mrf.mxu0
      %v4474 = vadd.f32 %v4363, %v4473
      %v4475 = vpop.f32.mrf.mxu0
      %4476 = vmatprep.mubr.bf16.mxu0 0
      %4477 = vmatmul.mubr.bf16.gmra.mxu0 %v4392
      %v4478 = vpop.f32.mrf.mxu0
      %v4479 = vadd.f32 %v4363, %v4478
      %v4480 = vpop.f32.mrf.mxu0
      %v4481 = vpop.f32.mrf.mxu0
      %v4482 = vadd.f32 %v4363, %v4481
      %v4483 = vpop.f32.mrf.mxu0
      %4484 = vmatprep.mubr.bf16.mxu0 0
      %4485 = vmatmul.mubr.bf16.gmra.mxu0 %v4395
      %v4486 = vpop.f32.mrf.mxu0
      %v4487 = vadd.f32 %v4363, %v4486
      %v4488 = vpop.f32.mrf.mxu0
      %v4489 = vpop.f32.mrf.mxu0
      %v4490 = vadd.f32 %v4363, %v4489
      %v4491 = vpop.f32.mrf.mxu0
      %4492 = vmatprep.mubr.bf16.mxu0 0
      %4493 = vmatmul.mubr.bf16.gmra.mxu0 %v4398
      %v4494 = vpop.f32.mrf.mxu0
      %v4495 = vadd.f32 %v4363, %v4494
      %v4496 = vpop.f32.mrf.mxu0
      %v4497 = vpop.f32.mrf.mxu0
      %v4498 = vadd.f32 %v4363, %v4497
      %v4499 = vpop.f32.mrf.mxu0
      %4500 = vmatprep.mubr.bf16.mxu0 0
      %4501 = vmatmul.mubr.bf16.gmra.mxu0 %v4401
      %v4502 = vpop.f32.mrf.mxu0
      %v4503 = vadd.f32 %v4363, %v4502
      %v4504 = vpop.f32.mrf.mxu0
      %v4505 = vpop.f32.mrf.mxu0
      %v4506 = vadd.f32 %v4363, %v4505
      %v4507 = vpop.f32.mrf.mxu0
      %4508 = vmatprep.mubr.bf16.mxu0 0
      %4509 = vmatmul.mubr.bf16.gmra.mxu0 %v4404
      %v4510 = vpop.f32.mrf.mxu0
      %v4511 = vadd.f32 %v4363, %v4510
      %v4512 = vpop.f32.mrf.mxu0
      %v4513 = vpop.f32.mrf.mxu0
      %v4514 = vadd.f32 %v4363, %v4513
      %v4515 = vpop.f32.mrf.mxu0
      %4516 = vmatprep.mubr.bf16.mxu0 0
      %4517 = vmatmul.mubr.bf16.gmra.mxu0 %v4407
      %v4518 = vpop.f32.mrf.mxu0
      %v4519 = vadd.f32 %v4363, %v4518
      %v4520 = vpop.f32.mrf.mxu0
      %v4521 = vpop.f32.mrf.mxu0
      %v4522 = vadd.f32 %v4363, %v4521
      %v4523 = vpop.f32.mrf.mxu0
      %4524 = vmatprep.mubr.bf16.mxu0 0
      %4525 = vmatmul.mubr.bf16.gmra.mxu0 %v4410
      %v4526 = vpop.f32.mrf.mxu0
      %v4527 = vadd.f32 %v4363, %v4526
      %v4528 = vpop.f32.mrf.mxu0
      %v4529 = vpop.f32.mrf.mxu0
      %v4530 = vadd.f32 %v4363, %v4529
      %v4531 = vpop.f32.mrf.mxu0
      %4532 = vmatprep.mubr.bf16.mxu0 0
      %4533 = vmatmul.mubr.bf16.gmra.mxu0 %v4413
      %v4534 = vpop.f32.mrf.mxu0
      %v4535 = vadd.f32 %v4363, %v4534
      %v4536 = vpop.f32.mrf.mxu0
      %v4537 = vpop.f32.mrf.mxu0
      %v4538 = vadd.f32 %v4363, %v4537
      %v4539 = vpop.f32.mrf.mxu0
      %4540 = vmatprep.mubr.bf16.mxu0 0
      %4541 = vmatmul.mubr.bf16.gmra.mxu0 %v4416
      %v4542 = vpop.f32.mrf.mxu0
      %v4543 = vadd.f32 %v4363, %v4542
      %v4544 = vpop.f32.mrf.mxu0
      %v4545 = vpop.f32.mrf.mxu0
      %v4546 = vadd.f32 %v4363, %v4545
      %v4547 = vpop.f32.mrf.mxu0
      %4548 = vmatprep.mubr.bf16.mxu0 0
      %4549 = vmatmul.mubr.bf16.gmra.mxu0 %v4419
      %v4550 = vpop.f32.mrf.mxu0
      %v4551 = vadd.f32 %v4363, %v4550
      %v4552 = vpop.f32.mrf.mxu0
      %v4553 = vpop.f32.mrf.mxu0
      %v4554 = vadd.f32 %v4363, %v4553
      %v4555 = vpop.f32.mrf.mxu0
      %4556 = vmatprep.mubr.bf16.mxu0 0
      %4557 = vmatmul.mubr.bf16.gmra.mxu0 %v4422
      %v4558 = vpop.f32.mrf.mxu0
      %v4559 = vadd.f32 %v4363, %v4558
      %v4560 = vpop.f32.mrf.mxu0
      %v4561 = vpop.f32.mrf.mxu0
      %v4562 = vadd.f32 %v4363, %v4561
      %v4563 = vpop.f32.mrf.mxu0
      %4564 = vmatprep.mubr.bf16.mxu0 0
      %4565 = vmatmul.mubr.bf16.gmra.mxu0 %v4425
      %v4566 = vpop.f32.mrf.mxu0
      %v4567 = vadd.f32 %v4363, %v4566
      %v4568 = vpop.f32.mrf.mxu0
      %v4569 = vpop.f32.mrf.mxu0
      %v4570 = vadd.f32 %v4363, %v4569
      %v4571 = vpop.f32.mrf.mxu0
      %4572 = vmatprep.mubr.bf16.mxu0 0
      %4573 = vmatmul.mubr.bf16.gmra.mxu0 %v4428
      %v4574 = vpop.f32.mrf.mxu0
      %v4575 = vadd.f32 %v4363, %v4574
      %v4576 = vpop.f32.mrf.mxu0
      %v4577 = vpop.f32.mrf.mxu0
      %v4578 = vadd.f32 %v4363, %v4577
      %v4579 = vpop.f32.mrf.mxu0
      %4580 = vmatprep.mubr.bf16.mxu0 0
      %4581 = vmatmul.mubr.bf16.gmra.mxu0 %v4431
      %v4582 = vpop.f32.mrf.mxu0
      %v4583 = vadd.f32 %v4363, %v4582
      %v4584 = vpop.f32.mrf.mxu0
      %v4585 = vpop.f32.mrf.mxu0
      %v4586 = vadd.f32 %v4363, %v4585
      %v4587 = vpop.f32.mrf.mxu0
      %4588 = vmatprep.mubr.bf16.mxu0 0
      %4589 = vmatmul.mubr.bf16.gmra.mxu0 %v4434
      %v4590 = vpop.f32.mrf.mxu0
      %v4591 = vadd.f32 %v4363, %v4590
      %v4592 = vpop.f32.mrf.mxu0
      %v4593 = vpop.f32.mrf.mxu0
      %v4594 = vadd.f32 %v4363, %v4593
      %v4595 = vpop.f32.mrf.mxu0
      %4596 = vdwg.mxu0
      %vm4597 = vcmp.gt.f32.partialorder %v4471, 0.0
      %vm4598 = vcmp.gt.f32.partialorder %v4474, 0.0
      %vm4599 = vcmp.gt.f32.partialorder %v4479, 0.0
      %vm4600 = vcmp.gt.f32.partialorder %v4482, 0.0
      %vm4601 = vcmp.gt.f32.partialorder %v4487, 0.0
      %vm4602 = vcmp.gt.f32.partialorder %v4490, 0.0
      %vm4603 = vcmp.gt.f32.partialorder %v4495, 0.0
      %vm4604 = vcmp.gt.f32.partialorder %v4498, 0.0
      %vm4605 = vcmp.gt.f32.partialorder %v4503, 0.0
      %vm4606 = vcmp.gt.f32.partialorder %v4506, 0.0
      %vm4607 = vcmp.gt.f32.partialorder %v4511, 0.0
      %vm4608 = vcmp.gt.f32.partialorder %v4514, 0.0
      %vm4609 = vcmp.gt.f32.partialorder %v4519, 0.0
      %vm4610 = vcmp.gt.f32.partialorder %v4522, 0.0
      %vm4611 = vcmp.gt.f32.partialorder %v4527, 0.0
      %vm4612 = vcmp.gt.f32.partialorder %v4530, 0.0
      %vm4613 = vcmp.gt.f32.partialorder %v4535, 0.0
      %vm4614 = vcmp.gt.f32.partialorder %v4538, 0.0
      %vm4615 = vcmp.gt.f32.partialorder %v4543, 0.0
      %vm4616 = vcmp.gt.f32.partialorder %v4546, 0.0
      %vm4617 = vcmp.gt.f32.partialorder %v4551, 0.0
      %vm4618 = vcmp.gt.f32.partialorder %v4554, 0.0
      %vm4619 = vcmp.gt.f32.partialorder %v4559, 0.0
      %vm4620 = vcmp.gt.f32.partialorder %v4562, 0.0
      %vm4621 = vcmp.gt.f32.partialorder %v4567, 0.0
      %vm4622 = vcmp.gt.f32.partialorder %v4570, 0.0
      %vm4623 = vcmp.gt.f32.partialorder %v4575, 0.0
      %vm4624 = vcmp.gt.f32.partialorder %v4578, 0.0
      %vm4625 = vcmp.gt.f32.partialorder %v4583, 0.0
      %vm4626 = vcmp.gt.f32.partialorder %v4586, 0.0
      %vm4627 = vcmp.gt.f32.partialorder %v4591, 0.0
      %vm4628 = vcmp.gt.f32.partialorder %v4594, 0.0
      %v4629 = vsel %vm4597, 0.5, 0.25
      %v4630 = vsel %vm4598, 0.5, 0.25
      %v4631 = vsel %vm4599, 0.5, 0.25
      %v4632 = vsel %vm4600, 0.5, 0.25
      %v4633 = vsel %vm4601, 0.5, 0.25
      %v4634 = vsel %vm4602, 0.5, 0.25
      %v4635 = vsel %vm4603, 0.5, 0.25
      %v4636 = vsel %vm4604, 0.5, 0.25
      %v4637 = vsel %vm4605, 0.5, 0.25
      %v4638 = vsel %vm4606, 0.5, 0.25
      %v4639 = vsel %vm4607, 0.5, 0.25
      %v4640 = vsel %vm4608, 0.5, 0.25
      %v4641 = vsel %vm4609, 0.5, 0.25
      %v4642 = vsel %vm4610, 0.5, 0.25
      %v4643 = vsel %vm4611, 0.5, 0.25
      %v4644 = vsel %vm4612, 0.5, 0.25
      %v4645 = vsel %vm4613, 0.5, 0.25
      %v4646 = vsel %vm4614, 0.5, 0.25
      %v4647 = vsel %vm4615, 0.5, 0.25
      %v4648 = vsel %vm4616, 0.5, 0.25
      %v4649 = vsel %vm4617, 0.5, 0.25
      %v4650 = vsel %vm4618, 0.5, 0.25
      %v4651 = vsel %vm4619, 0.5, 0.25
      %v4652 = vsel %vm4620, 0.5, 0.25
      %v4653 = vsel %vm4621, 0.5, 0.25
      %v4654 = vsel %vm4622, 0.5, 0.25
      %v4655 = vsel %vm4623, 0.5, 0.25
      %v4656 = vsel %vm4624, 0.5, 0.25
      %v4657 = vsel %vm4625, 0.5, 0.25
      %v4658 = vsel %vm4626, 0.5, 0.25
      %v4659 = vsel %vm4627, 0.5, 0.25
      %v4660 = vsel %vm4628, 0.5, 0.25
      %v4661 = vmul.f32 %v4471, %v4629
      %v4662 = vmul.f32 %v4474, %v4630
      %v4663 = vmul.f32 %v4479, %v4631
      %v4664 = vmul.f32 %v4482, %v4632
      %v4665 = vmul.f32 %v4487, %v4633
      %v4666 = vmul.f32 %v4490, %v4634
      %v4667 = vmul.f32 %v4495, %v4635
      %v4668 = vmul.f32 %v4498, %v4636
      %v4669 = vmul.f32 %v4503, %v4637
      %v4670 = vmul.f32 %v4506, %v4638
      %v4671 = vmul.f32 %v4511, %v4639
      %v4672 = vmul.f32 %v4514, %v4640
      %v4673 = vmul.f32 %v4519, %v4641
      %v4674 = vmul.f32 %v4522, %v4642
      %v4675 = vmul.f32 %v4527, %v4643
      %v4676 = vmul.f32 %v4530, %v4644
      %v4677 = vmul.f32 %v4535, %v4645
      %v4678 = vmul.f32 %v4538, %v4646
      %v4679 = vmul.f32 %v4543, %v4647
      %v4680 = vmul.f32 %v4546, %v4648
      %v4681 = vmul.f32 %v4551, %v4649
      %v4682 = vmul.f32 %v4554, %v4650
      %v4683 = vmul.f32 %v4559, %v4651
      %v4684 = vmul.f32 %v4562, %v4652
      %v4685 = vmul.f32 %v4567, %v4653
      %v4686 = vmul.f32 %v4570, %v4654
      %v4687 = vmul.f32 %v4575, %v4655
      %v4688 = vmul.f32 %v4578, %v4656
      %v4689 = vmul.f32 %v4583, %v4657
      %v4690 = vmul.f32 %v4586, %v4658
      %v4691 = vmul.f32 %v4591, %v4659
      %v4692 = vmul.f32 %v4594, %v4660
      %v4693 = vpack.c.bf16 %v4662, %v4661
      %v4694 = vpack.c.bf16 %v4664, %v4663
      %v4695 = vpack.c.bf16 %v4666, %v4665
      %v4696 = vpack.c.bf16 %v4668, %v4667
      %v4697 = vpack.c.bf16 %v4670, %v4669
      %v4698 = vpack.c.bf16 %v4672, %v4671
      %v4699 = vpack.c.bf16 %v4674, %v4673
      %v4700 = vpack.c.bf16 %v4676, %v4675
      %v4701 = vpack.c.bf16 %v4678, %v4677
      %v4702 = vpack.c.bf16 %v4680, %v4679
      %v4703 = vpack.c.bf16 %v4682, %v4681
      %v4704 = vpack.c.bf16 %v4684, %v4683
      %v4705 = vpack.c.bf16 %v4686, %v4685
      %v4706 = vpack.c.bf16 %v4688, %v4687
      %v4707 = vpack.c.bf16 %v4690, %v4689
      %v4708 = vpack.c.bf16 %v4692, %v4691
      %v4709 = vld [vmem:[%s10] sm:$0xff]
      %v4710 = vld [vmem:[%s10 + $0x8] sm:$0xff]
      %v4711 = vld [vmem:[%s10 + $0x10] sm:$0xff]
      %v4712 = vld [vmem:[%s10 + $0x18] sm:$0xf]
      %v4713 = vld [vmem:[%s10 + $0x1c] sm:$0xff]
      %v4714 = vld [vmem:[%s10 + $0x24] sm:$0xff]
      %v4715 = vld [vmem:[%s10 + $0x2c] sm:$0xff]
      %v4716 = vld [vmem:[%s10 + $0x34] sm:$0xf]
      %v4717 = vld [vmem:[%s10 + $0x38] sm:$0xff]
      %v4718 = vld [vmem:[%s10 + $0x40] sm:$0xff]
      %v4719 = vld [vmem:[%s10 + $0x48] sm:$0xff]
      %v4720 = vld [vmem:[%s10 + $0x50] sm:$0xf]
      %v4721 = vld [vmem:[%s10 + $0x54] sm:$0xff]
      %v4722 = vld [vmem:[%s10 + $0x5c] sm:$0xff]
      %v4723 = vld [vmem:[%s10 + $0x64] sm:$0xff]
      %v4724 = vld [vmem:[%s10 + $0x6c] sm:$0xf]
      %v4725 = vld [vmem:[%s10 + $0x70] sm:$0xff]
      %v4726 = vld [vmem:[%s10 + $0x78] sm:$0xff]
      %v4727 = vld [vmem:[%s10 + $0x80] sm:$0xff]
      %v4728 = vld [vmem:[%s10 + $0x88] sm:$0xf]
      %v4729 = vld [vmem:[%s10 + $0x8c] sm:$0xff]
      %v4730 = vld [vmem:[%s10 + $0x94] sm:$0xff]
      %v4731 = vld [vmem:[%s10 + $0x9c] sm:$0xff]
      %v4732 = vld [vmem:[%s10 + $0xa4] sm:$0xf]
      %v4733 = vld [vmem:[%s10 + $0xa8] sm:$0xff]
      %v4734 = vld [vmem:[%s10 + $0xb0] sm:$0xff]
      %v4735 = vld [vmem:[%s10 + $0xb8] sm:$0xff]
      %v4736 = vld [vmem:[%s10 + $0xc0] sm:$0xf]
      %v4737 = vld [vmem:[%s10 + $0xc4] sm:$0xff]
      %v4738 = vld [vmem:[%s10 + $0xcc] sm:$0xff]
      %v4739 = vld [vmem:[%s10 + $0xd4] sm:$0xff]
      %v4740 = vld [vmem:[%s10 + $0xdc] sm:$0xf]
      %v4741 = vld [vmem:[%s10 + $0xe0] sm:$0xff]
      %v4742 = vld [vmem:[%s10 + $0xe8] sm:$0xff]
      %v4743 = vld [vmem:[%s10 + $0xf0] sm:$0xff]
      %v4744 = vld [vmem:[%s10 + $0xf8] sm:$0xf]
      %v4745 = vld [vmem:[%s10 + $0xfc] sm:$0xff]
      %v4746 = vld [vmem:[%s10 + $0x104] sm:$0xff]
      %v4747 = vld [vmem:[%s10 + $0x10c] sm:$0xff]
      %v4748 = vld [vmem:[%s10 + $0x114] sm:$0xf]
      %v4749 = vld [vmem:[%s10 + $0x118] sm:$0xff]
      %v4750 = vld [vmem:[%s10 + $0x120] sm:$0xff]
      %v4751 = vld [vmem:[%s10 + $0x128] sm:$0xff]
      %v4752 = vld [vmem:[%s10 + $0x130] sm:$0xf]
      %v4753 = vld [vmem:[%s10 + $0x134] sm:$0xff]
      %v4754 = vld [vmem:[%s10 + $0x13c] sm:$0xff]
      %v4755 = vld [vmem:[%s10 + $0x144] sm:$0xff]
      %v4756 = vld [vmem:[%s10 + $0x14c] sm:$0xf]
      %v4757 = vld [vmem:[%s10 + $0x150] sm:$0xff]
      %v4758 = vld [vmem:[%s10 + $0x158] sm:$0xff]
      %v4759 = vld [vmem:[%s10 + $0x160] sm:$0xff]
      %v4760 = vld [vmem:[%s10 + $0x168] sm:$0xf]
      %v4761 = vld [vmem:[%s10 + $0x16c] sm:$0xff]
      %v4762 = vld [vmem:[%s10 + $0x174] sm:$0xff]
      %v4763 = vld [vmem:[%s10 + $0x17c] sm:$0xff]
      %v4764 = vld [vmem:[%s10 + $0x184] sm:$0xf]
      %v4765 = vld [vmem:[%s10 + $0x188] sm:$0xff]
      %v4766 = vld [vmem:[%s10 + $0x190] sm:$0xff]
      %v4767 = vld [vmem:[%s10 + $0x198] sm:$0xff]
      %v4768 = vld [vmem:[%s10 + $0x1a0] sm:$0xf]
      %v4769 = vld [vmem:[%s10 + $0x1a4] sm:$0xff]
      %v4770 = vld [vmem:[%s10 + $0x1ac] sm:$0xff]
      %v4771 = vld [vmem:[%s10 + $0x1b4] sm:$0xff]
      %v4772 = vld [vmem:[%s10 + $0x1bc] sm:$0xf]
      %s4773 = scalar_lea.vmem %s11, 57
      %v4774 = vld [vmem:[%s4773] ss:$8 sm:$0xf]
      %v4775 = vld [vmem:[%s4773] ss:$8 sm:$0x70]
      %v4776 = vor.u32 %v4774, %v4775
      %v4778 = vlaneseq
      %v4779 = vshrl.u32 %v4778, 7
      %v4780 = vsub.s32 0, %v4779
      %v4781 = vrot.slane %v4776, %v4780
      %v4782 = vlaneseq
      %v4783 = vshrl.u32 %v4782, 7
      %v4784 = vsub.s32 1, %v4783
      %v4785 = vrot.slane %v4776, %v4784
      %v4786 = vlaneseq
      %v4787 = vshrl.u32 %v4786, 7
      %v4788 = vsub.s32 2, %v4787
      %v4789 = vrot.slane %v4776, %v4788
      %v4790 = vlaneseq
      %v4791 = vshrl.u32 %v4790, 7
      %v4792 = vsub.s32 3, %v4791
      %v4793 = vrot.slane %v4776, %v4792
      %v4794 = vlaneseq
      %v4795 = vshrl.u32 %v4794, 7
      %v4796 = vsub.s32 4, %v4795
      %v4797 = vrot.slane %v4776, %v4796
      %v4798 = vlaneseq
      %v4799 = vshrl.u32 %v4798, 7
      %v4800 = vsub.s32 5, %v4799
      %v4801 = vrot.slane %v4776, %v4800
      %v4802 = vlaneseq
      %v4803 = vshrl.u32 %v4802, 7
      %v4804 = vsub.s32 6, %v4803
      %v4805 = vrot.slane %v4776, %v4804
      %v4877 = vunpack.c.l.b16 %v4709
      %v4878 = vunpack.c.h.b16 %v4709
      %v4879 = vunpack.c.l.b16 %v4710
      %v4880 = vunpack.c.h.b16 %v4710
      %v4881 = vunpack.c.l.b16 %v4711
      %v4882 = vunpack.c.h.b16 %v4711
      %v4883 = vunpack.c.l.b16 %v4712
      %v4884 = vunpack.c.l.b16 %v4713
      %v4885 = vunpack.c.h.b16 %v4713
      %v4886 = vunpack.c.l.b16 %v4714
      %v4887 = vunpack.c.h.b16 %v4714
      %v4888 = vunpack.c.l.b16 %v4715
      %v4889 = vunpack.c.h.b16 %v4715
      %v4890 = vunpack.c.l.b16 %v4716
      %v4891 = vunpack.c.l.b16 %v4717
      %v4892 = vunpack.c.h.b16 %v4717
      %v4893 = vunpack.c.l.b16 %v4718
      %v4894 = vunpack.c.h.b16 %v4718
      %v4895 = vunpack.c.l.b16 %v4719
      %v4896 = vunpack.c.h.b16 %v4719
      %v4897 = vunpack.c.l.b16 %v4720
      %v4898 = vunpack.c.l.b16 %v4721
      %v4899 = vunpack.c.h.b16 %v4721
      %v4900 = vunpack.c.l.b16 %v4722
      %v4901 = vunpack.c.h.b16 %v4722
      %v4902 = vunpack.c.l.b16 %v4723
      %v4903 = vunpack.c.h.b16 %v4723
      %v4904 = vunpack.c.l.b16 %v4724
      %v4905 = vunpack.c.l.b16 %v4725
      %v4906 = vunpack.c.h.b16 %v4725
      %v4907 = vunpack.c.l.b16 %v4726
      %v4908 = vunpack.c.h.b16 %v4726
      %v4909 = vunpack.c.l.b16 %v4727
      %v4910 = vunpack.c.h.b16 %v4727
      %v4911 = vunpack.c.l.b16 %v4728
      %v4912 = vunpack.c.l.b16 %v4729
      %v4913 = vunpack.c.h.b16 %v4729
      %v4914 = vunpack.c.l.b16 %v4730
      %v4915 = vunpack.c.h.b16 %v4730
      %v4916 = vunpack.c.l.b16 %v4731
      %v4917 = vunpack.c.h.b16 %v4731
      %v4918 = vunpack.c.l.b16 %v4732
      %v4919 = vunpack.c.l.b16 %v4733
      %v4920 = vunpack.c.h.b16 %v4733
      %v4921 = vunpack.c.l.b16 %v4734
      %v4922 = vunpack.c.h.b16 %v4734
      %v4923 = vunpack.c.l.b16 %v4735
      %v4924 = vunpack.c.h.b16 %v4735
      %v4925 = vunpack.c.l.b16 %v4736
      %v4926 = vunpack.c.l.b16 %v4737
      %v4927 = vunpack.c.h.b16 %v4737
      %v4928 = vunpack.c.l.b16 %v4738
      %v4929 = vunpack.c.h.b16 %v4738
      %v4930 = vunpack.c.l.b16 %v4739
      %v4931 = vunpack.c.h.b16 %v4739
      %v4932 = vunpack.c.l.b16 %v4740
      %v4933 = vunpack.c.l.b16 %v4741
      %v4934 = vunpack.c.h.b16 %v4741
      %v4935 = vunpack.c.l.b16 %v4742
      %v4936 = vunpack.c.h.b16 %v4742
      %v4937 = vunpack.c.l.b16 %v4743
      %v4938 = vunpack.c.h.b16 %v4743
      %v4939 = vunpack.c.l.b16 %v4744
      %v4940 = vunpack.c.l.b16 %v4745
      %v4941 = vunpack.c.h.b16 %v4745
      %v4942 = vunpack.c.l.b16 %v4746
      %v4943 = vunpack.c.h.b16 %v4746
      %v4944 = vunpack.c.l.b16 %v4747
      %v4945 = vunpack.c.h.b16 %v4747
      %v4946 = vunpack.c.l.b16 %v4748
      %v4947 = vunpack.c.l.b16 %v4749
      %v4948 = vunpack.c.h.b16 %v4749
      %v4949 = vunpack.c.l.b16 %v4750
      %v4950 = vunpack.c.h.b16 %v4750
      %v4951 = vunpack.c.l.b16 %v4751
      %v4952 = vunpack.c.h.b16 %v4751
      %v4953 = vunpack.c.l.b16 %v4752
      %v4954 = vunpack.c.l.b16 %v4753
      %v4955 = vunpack.c.h.b16 %v4753
      %v4956 = vunpack.c.l.b16 %v4754
      %v4957 = vunpack.c.h.b16 %v4754
      %v4958 = vunpack.c.l.b16 %v4755
      %v4959 = vunpack.c.h.b16 %v4755
      %v4960 = vunpack.c.l.b16 %v4756
      %v4961 = vunpack.c.l.b16 %v4757
      %v4962 = vunpack.c.h.b16 %v4757
      %v4963 = vunpack.c.l.b16 %v4758
      %v4964 = vunpack.c.h.b16 %v4758
      %v4965 = vunpack.c.l.b16 %v4759
      %v4966 = vunpack.c.h.b16 %v4759
      %v4967 = vunpack.c.l.b16 %v4760
      %v4968 = vunpack.c.l.b16 %v4761
      %v4969 = vunpack.c.h.b16 %v4761
      %v4970 = vunpack.c.l.b16 %v4762
      %v4971 = vunpack.c.h.b16 %v4762
      %v4972 = vunpack.c.l.b16 %v4763
      %v4973 = vunpack.c.h.b16 %v4763
      %v4974 = vunpack.c.l.b16 %v4764
      %v4975 = vunpack.c.l.b16 %v4765
      %v4976 = vunpack.c.h.b16 %v4765
      %v4977 = vunpack.c.l.b16 %v4766
      %v4978 = vunpack.c.h.b16 %v4766
      %v4979 = vunpack.c.l.b16 %v4767
      %v4980 = vunpack.c.h.b16 %v4767
      %v4981 = vunpack.c.l.b16 %v4768
      %v4982 = vunpack.c.l.b16 %v4769
      %v4983 = vunpack.c.h.b16 %v4769
      %v4984 = vunpack.c.l.b16 %v4770
      %v4985 = vunpack.c.h.b16 %v4770
      %v4986 = vunpack.c.l.b16 %v4771
      %v4987 = vunpack.c.h.b16 %v4771
      %v4988 = vunpack.c.l.b16 %v4772
      %v4989 = vpack.c.b16 %v4884, %v4877
      %v4990 = vpack.c.b16 %v4885, %v4878
      %v4991 = vpack.c.b16 %v4886, %v4879
      %v4992 = vpack.c.b16 %v4887, %v4880
      %v4993 = vpack.c.b16 %v4888, %v4881
      %v4994 = vpack.c.b16 %v4889, %v4882
      %v4995 = vpack.c.b16 %v4890, %v4883
      %v4996 = vpack.c.b16 %v4898, %v4891
      %v4997 = vpack.c.b16 %v4899, %v4892
      %v4998 = vpack.c.b16 %v4900, %v4893
      %v4999 = vpack.c.b16 %v4901, %v4894
      %v5000 = vpack.c.b16 %v4902, %v4895
      %v5001 = vpack.c.b16 %v4903, %v4896
      %v5002 = vpack.c.b16 %v4904, %v4897
      %v5003 = vpack.c.b16 %v4912, %v4905
      %v5004 = vpack.c.b16 %v4913, %v4906
      %v5005 = vpack.c.b16 %v4914, %v4907
      %v5006 = vpack.c.b16 %v4915, %v4908
      %v5007 = vpack.c.b16 %v4916, %v4909
      %v5008 = vpack.c.b16 %v4917, %v4910
      %v5009 = vpack.c.b16 %v4918, %v4911
      %v5010 = vpack.c.b16 %v4926, %v4919
      %v5011 = vpack.c.b16 %v4927, %v4920
      %v5012 = vpack.c.b16 %v4928, %v4921
      %v5013 = vpack.c.b16 %v4929, %v4922
      %v5014 = vpack.c.b16 %v4930, %v4923
      %v5015 = vpack.c.b16 %v4931, %v4924
      %v5016 = vpack.c.b16 %v4932, %v4925
      %v5017 = vpack.c.b16 %v4940, %v4933
      %v5018 = vpack.c.b16 %v4941, %v4934
      %v5019 = vpack.c.b16 %v4942, %v4935
      %v5020 = vpack.c.b16 %v4943, %v4936
      %v5021 = vpack.c.b16 %v4944, %v4937
      %v5022 = vpack.c.b16 %v4945, %v4938
      %v5023 = vpack.c.b16 %v4946, %v4939
      %v5024 = vpack.c.b16 %v4954, %v4947
      %v5025 = vpack.c.b16 %v4955, %v4948
      %v5026 = vpack.c.b16 %v4956, %v4949
      %v5027 = vpack.c.b16 %v4957, %v4950
      %v5028 = vpack.c.b16 %v4958, %v4951
      %v5029 = vpack.c.b16 %v4959, %v4952
      %v5030 = vpack.c.b16 %v4960, %v4953
      %v5031 = vpack.c.b16 %v4968, %v4961
      %v5032 = vpack.c.b16 %v4969, %v4962
      %v5033 = vpack.c.b16 %v4970, %v4963
      %v5034 = vpack.c.b16 %v4971, %v4964
      %v5035 = vpack.c.b16 %v4972, %v4965
      %v5036 = vpack.c.b16 %v4973, %v4966
      %v5037 = vpack.c.b16 %v4974, %v4967
      %v5038 = vpack.c.b16 %v4982, %v4975
      %v5039 = vpack.c.b16 %v4983, %v4976
      %v5040 = vpack.c.b16 %v4984, %v4977
      %v5041 = vpack.c.b16 %v4985, %v4978
      %v5042 = vpack.c.b16 %v4986, %v4979
      %v5043 = vpack.c.b16 %v4987, %v4980
      %v5044 = vpack.c.b16 %v4988, %v4981
      %5101 = vmatprep.subr.bf16.mxu0 %v5039
      %5102 = vmatpush1.bf16.msra.mxu0 %v5038
      %5103 = vmatprep.subr.bf16.mxu0 %v5032
      %5104 = vmatpush1.bf16.msra.mxu0 %v5031
      %5105 = vmatprep.subr.bf16.mxu0 %v5025
      %5106 = vmatpush1.bf16.msra.mxu0 %v5024
      %5107 = vmatprep.subr.bf16.mxu0 %v5018
      %5108 = vmatpush1.bf16.msra.mxu0 %v5017
      %5109 = vmatprep.subr.bf16.mxu0 %v5011
      %5110 = vmatpush1.bf16.msra.mxu0 %v5010
      %5111 = vmatprep.subr.bf16.mxu0 %v5004
      %5112 = vmatpush1.bf16.msra.mxu0 %v5003
      %5113 = vmatprep.subr.bf16.mxu0 %v4997
      %5114 = vmatpush1.bf16.msra.mxu0 %v4996
      %5115 = vmatprep.subr.bf16.mxu0 %v4990
      %5116 = vmatpush1.bf16.msra.mxu0 %v4989
      %5117 = vmatprep.subr.bf16.mxu0 0
      %5118 = vmatpush2.bf16.msra.mxu0 0
      %5119 = vmatprep.subr.bf16.mxu0 0
      %5120 = vmatpush2.bf16.msra.mxu0 0
      %5121 = vmatprep.subr.bf16.mxu0 0
      %5122 = vmatpush2.bf16.msra.mxu0 0
      %5123 = vmatprep.subr.bf16.mxu0 0
      %5124 = vmatpush2.bf16.msra.mxu0 0
      %5125 = vmatprep.subr.bf16.mxu0 0
      %5126 = vmatpush2.bf16.msra.mxu0 0
      %5127 = vmatprep.subr.bf16.mxu0 0
      %5128 = vmatpush2.bf16.msra.mxu0 0
      %5129 = vmatprep.subr.bf16.mxu0 0
      %5130 = vmatpush2.bf16.msra.mxu0 0
      %5131 = vmatprep.subr.bf16.mxu0 0
      %5132 = vmatpush2.bf16.msra.mxu0 0
      %5133 = vmatprep.mubr.bf16.mxu0 0
      %5134 = vmatmul.mubr.bf16.gmra.mxu0 %v4693
      %v5135 = vpop.f32.mrf.mxu0
      %v5136 = vadd.f32 %v4781, %v5135
      %v5137 = vpop.f32.mrf.mxu0
      %v5138 = vadd.f32 %v4785, %v5137
      %v5139 = vpop.f32.mrf.mxu0
      %v5140 = vadd.f32 %v4781, %v5139
      %v5141 = vpop.f32.mrf.mxu0
      %v5142 = vadd.f32 %v4785, %v5141
      %5143 = vmatprep.mubr.bf16.mxu0 0
      %5144 = vmatmul.mubr.bf16.gmra.mxu0 %v4694
      %v5145 = vpop.f32.mrf.mxu0
      %v5146 = vadd.f32 %v4781, %v5145
      %v5147 = vpop.f32.mrf.mxu0
      %v5148 = vadd.f32 %v4785, %v5147
      %v5149 = vpop.f32.mrf.mxu0
      %v5150 = vadd.f32 %v4781, %v5149
      %v5151 = vpop.f32.mrf.mxu0
      %v5152 = vadd.f32 %v4785, %v5151
      %5153 = vmatprep.mubr.bf16.mxu0 0
      %5154 = vmatmul.mubr.bf16.gmra.mxu0 %v4695
      %v5155 = vpop.f32.mrf.mxu0
      %v5156 = vadd.f32 %v4781, %v5155
      %v5157 = vpop.f32.mrf.mxu0
      %v5158 = vadd.f32 %v4785, %v5157
      %v5159 = vpop.f32.mrf.mxu0
      %v5160 = vadd.f32 %v4781, %v5159
      %v5161 = vpop.f32.mrf.mxu0
      %v5162 = vadd.f32 %v4785, %v5161
      %5163 = vmatprep.mubr.bf16.mxu0 0
      %5164 = vmatmul.mubr.bf16.gmra.mxu0 %v4696
      %v5165 = vpop.f32.mrf.mxu0
      %v5166 = vadd.f32 %v4781, %v5165
      %v5167 = vpop.f32.mrf.mxu0
      %v5168 = vadd.f32 %v4785, %v5167
      %v5169 = vpop.f32.mrf.mxu0
      %v5170 = vadd.f32 %v4781, %v5169
      %v5171 = vpop.f32.mrf.mxu0
      %v5172 = vadd.f32 %v4785, %v5171
      %5173 = vmatprep.mubr.bf16.mxu0 0
      %5174 = vmatmul.mubr.bf16.gmra.mxu0 %v4697
      %v5175 = vpop.f32.mrf.mxu0
      %v5176 = vadd.f32 %v4781, %v5175
      %v5177 = vpop.f32.mrf.mxu0
      %v5178 = vadd.f32 %v4785, %v5177
      %v5179 = vpop.f32.mrf.mxu0
      %v5180 = vadd.f32 %v4781, %v5179
      %v5181 = vpop.f32.mrf.mxu0
      %v5182 = vadd.f32 %v4785, %v5181
      %5183 = vmatprep.mubr.bf16.mxu0 0
      %5184 = vmatmul.mubr.bf16.gmra.mxu0 %v4698
      %v5185 = vpop.f32.mrf.mxu0
      %v5186 = vadd.f32 %v4781, %v5185
      %v5187 = vpop.f32.mrf.mxu0
      %v5188 = vadd.f32 %v4785, %v5187
      %v5189 = vpop.f32.mrf.mxu0
      %v5190 = vadd.f32 %v4781, %v5189
      %v5191 = vpop.f32.mrf.mxu0
      %v5192 = vadd.f32 %v4785, %v5191
      %5193 = vmatprep.mubr.bf16.mxu0 0
      %5194 = vmatmul.mubr.bf16.gmra.mxu0 %v4699
      %v5195 = vpop.f32.mrf.mxu0
      %v5196 = vadd.f32 %v4781, %v5195
      %v5197 = vpop.f32.mrf.mxu0
      %v5198 = vadd.f32 %v4785, %v5197
      %v5199 = vpop.f32.mrf.mxu0
      %v5200 = vadd.f32 %v4781, %v5199
      %v5201 = vpop.f32.mrf.mxu0
      %v5202 = vadd.f32 %v4785, %v5201
      %5203 = vmatprep.mubr.bf16.mxu0 0
      %5204 = vmatmul.mubr.bf16.gmra.mxu0 %v4700
      %v5205 = vpop.f32.mrf.mxu0
      %v5206 = vadd.f32 %v4781, %v5205
      %v5207 = vpop.f32.mrf.mxu0
      %v5208 = vadd.f32 %v4785, %v5207
      %v5209 = vpop.f32.mrf.mxu0
      %v5210 = vadd.f32 %v4781, %v5209
      %v5211 = vpop.f32.mrf.mxu0
      %v5212 = vadd.f32 %v4785, %v5211
      %5213 = vmatprep.mubr.bf16.mxu0 0
      %5214 = vmatmul.mubr.bf16.gmra.mxu0 %v4701
      %v5215 = vpop.f32.mrf.mxu0
      %v5216 = vadd.f32 %v4781, %v5215
      %v5217 = vpop.f32.mrf.mxu0
      %v5218 = vadd.f32 %v4785, %v5217
      %v5219 = vpop.f32.mrf.mxu0
      %v5220 = vadd.f32 %v4781, %v5219
      %v5221 = vpop.f32.mrf.mxu0
      %v5222 = vadd.f32 %v4785, %v5221
      %5223 = vmatprep.mubr.bf16.mxu0 0
      %5224 = vmatmul.mubr.bf16.gmra.mxu0 %v4702
      %v5225 = vpop.f32.mrf.mxu0
      %v5226 = vadd.f32 %v4781, %v5225
      %v5227 = vpop.f32.mrf.mxu0
      %v5228 = vadd.f32 %v4785, %v5227
      %v5229 = vpop.f32.mrf.mxu0
      %v5230 = vadd.f32 %v4781, %v5229
      %v5231 = vpop.f32.mrf.mxu0
      %v5232 = vadd.f32 %v4785, %v5231
      %5233 = vmatprep.mubr.bf16.mxu0 0
      %5234 = vmatmul.mubr.bf16.gmra.mxu0 %v4703
      %v5235 = vpop.f32.mrf.mxu0
      %v5236 = vadd.f32 %v4781, %v5235
      %v5237 = vpop.f32.mrf.mxu0
      %v5238 = vadd.f32 %v4785, %v5237
      %v5239 = vpop.f32.mrf.mxu0
      %v5240 = vadd.f32 %v4781, %v5239
      %v5241 = vpop.f32.mrf.mxu0
      %v5242 = vadd.f32 %v4785, %v5241
      %5243 = vmatprep.mubr.bf16.mxu0 0
      %5244 = vmatmul.mubr.bf16.gmra.mxu0 %v4704
      %v5245 = vpop.f32.mrf.mxu0
      %v5246 = vadd.f32 %v4781, %v5245
      %v5247 = vpop.f32.mrf.mxu0
      %v5248 = vadd.f32 %v4785, %v5247
      %v5249 = vpop.f32.mrf.mxu0
      %v5250 = vadd.f32 %v4781, %v5249
      %v5251 = vpop.f32.mrf.mxu0
      %v5252 = vadd.f32 %v4785, %v5251
      %5253 = vmatprep.mubr.bf16.mxu0 0
      %5254 = vmatmul.mubr.bf16.gmra.mxu0 %v4705
      %v5255 = vpop.f32.mrf.mxu0
      %v5256 = vadd.f32 %v4781, %v5255
      %v5257 = vpop.f32.mrf.mxu0
      %v5258 = vadd.f32 %v4785, %v5257
      %v5259 = vpop.f32.mrf.mxu0
      %v5260 = vadd.f32 %v4781, %v5259
      %v5261 = vpop.f32.mrf.mxu0
      %v5262 = vadd.f32 %v4785, %v5261
      %5263 = vmatprep.mubr.bf16.mxu0 0
      %5264 = vmatmul.mubr.bf16.gmra.mxu0 %v4706
      %v5265 = vpop.f32.mrf.mxu0
      %v5266 = vadd.f32 %v4781, %v5265
      %v5267 = vpop.f32.mrf.mxu0
      %v5268 = vadd.f32 %v4785, %v5267
      %v5269 = vpop.f32.mrf.mxu0
      %v5270 = vadd.f32 %v4781, %v5269
      %v5271 = vpop.f32.mrf.mxu0
      %v5272 = vadd.f32 %v4785, %v5271
      %5273 = vmatprep.mubr.bf16.mxu0 0
      %5274 = vmatmul.mubr.bf16.gmra.mxu0 %v4707
      %v5275 = vpop.f32.mrf.mxu0
      %v5276 = vadd.f32 %v4781, %v5275
      %v5277 = vpop.f32.mrf.mxu0
      %v5278 = vadd.f32 %v4785, %v5277
      %v5279 = vpop.f32.mrf.mxu0
      %v5280 = vadd.f32 %v4781, %v5279
      %v5281 = vpop.f32.mrf.mxu0
      %v5282 = vadd.f32 %v4785, %v5281
      %5283 = vmatprep.mubr.bf16.mxu0 0
      %5284 = vmatmul.mubr.bf16.gmra.mxu0 %v4708
      %v5285 = vpop.f32.mrf.mxu0
      %v5286 = vadd.f32 %v4781, %v5285
      %v5287 = vpop.f32.mrf.mxu0
      %v5288 = vadd.f32 %v4785, %v5287
      %v5289 = vpop.f32.mrf.mxu0
      %v5290 = vadd.f32 %v4781, %v5289
      %v5291 = vpop.f32.mrf.mxu0
      %v5292 = vadd.f32 %v4785, %v5291
      %5293 = vdwg.mxu0
      %5294 = vmatprep.subr.bf16.mxu0 %v5041
      %5295 = vmatpush1.bf16.msra.mxu0 %v5040
      %5296 = vmatprep.subr.bf16.mxu0 %v5034
      %5297 = vmatpush1.bf16.msra.mxu0 %v5033
      %5298 = vmatprep.subr.bf16.mxu0 %v5027
      %5299 = vmatpush1.bf16.msra.mxu0 %v5026
      %5300 = vmatprep.subr.bf16.mxu0 %v5020
      %5301 = vmatpush1.bf16.msra.mxu0 %v5019
      %5302 = vmatprep.subr.bf16.mxu0 %v5013
      %5303 = vmatpush1.bf16.msra.mxu0 %v5012
      %5304 = vmatprep.subr.bf16.mxu0 %v5006
      %5305 = vmatpush1.bf16.msra.mxu0 %v5005
      %5306 = vmatprep.subr.bf16.mxu0 %v4999
      %5307 = vmatpush1.bf16.msra.mxu0 %v4998
      %5308 = vmatprep.subr.bf16.mxu0 %v4992
      %5309 = vmatpush1.bf16.msra.mxu0 %v4991
      %5310 = vmatprep.subr.bf16.mxu0 0
      %5311 = vmatpush2.bf16.msra.mxu0 0
      %5312 = vmatprep.subr.bf16.mxu0 0
      %5313 = vmatpush2.bf16.msra.mxu0 0
      %5314 = vmatprep.subr.bf16.mxu0 0
      %5315 = vmatpush2.bf16.msra.mxu0 0
      %5316 = vmatprep.subr.bf16.mxu0 0
      %5317 = vmatpush2.bf16.msra.mxu0 0
      %5318 = vmatprep.subr.bf16.mxu0 0
      %5319 = vmatpush2.bf16.msra.mxu0 0
      %5320 = vmatprep.subr.bf16.mxu0 0
      %5321 = vmatpush2.bf16.msra.mxu0 0
      %5322 = vmatprep.subr.bf16.mxu0 0
      %5323 = vmatpush2.bf16.msra.mxu0 0
      %5324 = vmatprep.subr.bf16.mxu0 0
      %5325 = vmatpush2.bf16.msra.mxu0 0
      %5326 = vmatprep.mubr.bf16.mxu0 0
      %5327 = vmatmul.mubr.bf16.gmra.mxu0 %v4693
      %v5328 = vpop.f32.mrf.mxu0
      %v5329 = vadd.f32 %v4789, %v5328
      %v5330 = vpop.f32.mrf.mxu0
      %v5331 = vadd.f32 %v4793, %v5330
      %v5332 = vpop.f32.mrf.mxu0
      %v5333 = vadd.f32 %v4789, %v5332
      %v5334 = vpop.f32.mrf.mxu0
      %v5335 = vadd.f32 %v4793, %v5334
      %5336 = vmatprep.mubr.bf16.mxu0 0
      %5337 = vmatmul.mubr.bf16.gmra.mxu0 %v4694
      %v5338 = vpop.f32.mrf.mxu0
      %v5339 = vadd.f32 %v4789, %v5338
      %v5340 = vpop.f32.mrf.mxu0
      %v5341 = vadd.f32 %v4793, %v5340
      %v5342 = vpop.f32.mrf.mxu0
      %v5343 = vadd.f32 %v4789, %v5342
      %v5344 = vpop.f32.mrf.mxu0
      %v5345 = vadd.f32 %v4793, %v5344
      %5346 = vmatprep.mubr.bf16.mxu0 0
      %5347 = vmatmul.mubr.bf16.gmra.mxu0 %v4695
      %v5348 = vpop.f32.mrf.mxu0
      %v5349 = vadd.f32 %v4789, %v5348
      %v5350 = vpop.f32.mrf.mxu0
      %v5351 = vadd.f32 %v4793, %v5350
      %v5352 = vpop.f32.mrf.mxu0
      %v5353 = vadd.f32 %v4789, %v5352
      %v5354 = vpop.f32.mrf.mxu0
      %v5355 = vadd.f32 %v4793, %v5354
      %5356 = vmatprep.mubr.bf16.mxu0 0
      %5357 = vmatmul.mubr.bf16.gmra.mxu0 %v4696
      %v5358 = vpop.f32.mrf.mxu0
      %v5359 = vadd.f32 %v4789, %v5358
      %v5360 = vpop.f32.mrf.mxu0
      %v5361 = vadd.f32 %v4793, %v5360
      %v5362 = vpop.f32.mrf.mxu0
      %v5363 = vadd.f32 %v4789, %v5362
      %v5364 = vpop.f32.mrf.mxu0
      %v5365 = vadd.f32 %v4793, %v5364
      %5366 = vmatprep.mubr.bf16.mxu0 0
      %5367 = vmatmul.mubr.bf16.gmra.mxu0 %v4697
      %v5368 = vpop.f32.mrf.mxu0
      %v5369 = vadd.f32 %v4789, %v5368
      %v5370 = vpop.f32.mrf.mxu0
      %v5371 = vadd.f32 %v4793, %v5370
      %v5372 = vpop.f32.mrf.mxu0
      %v5373 = vadd.f32 %v4789, %v5372
      %v5374 = vpop.f32.mrf.mxu0
      %v5375 = vadd.f32 %v4793, %v5374
      %5376 = vmatprep.mubr.bf16.mxu0 0
      %5377 = vmatmul.mubr.bf16.gmra.mxu0 %v4698
      %v5378 = vpop.f32.mrf.mxu0
      %v5379 = vadd.f32 %v4789, %v5378
      %v5380 = vpop.f32.mrf.mxu0
      %v5381 = vadd.f32 %v4793, %v5380
      %v5382 = vpop.f32.mrf.mxu0
      %v5383 = vadd.f32 %v4789, %v5382
      %v5384 = vpop.f32.mrf.mxu0
      %v5385 = vadd.f32 %v4793, %v5384
      %5386 = vmatprep.mubr.bf16.mxu0 0
      %5387 = vmatmul.mubr.bf16.gmra.mxu0 %v4699
      %v5388 = vpop.f32.mrf.mxu0
      %v5389 = vadd.f32 %v4789, %v5388
      %v5390 = vpop.f32.mrf.mxu0
      %v5391 = vadd.f32 %v4793, %v5390
      %v5392 = vpop.f32.mrf.mxu0
      %v5393 = vadd.f32 %v4789, %v5392
      %v5394 = vpop.f32.mrf.mxu0
      %v5395 = vadd.f32 %v4793, %v5394
      %5396 = vmatprep.mubr.bf16.mxu0 0
      %5397 = vmatmul.mubr.bf16.gmra.mxu0 %v4700
      %v5398 = vpop.f32.mrf.mxu0
      %v5399 = vadd.f32 %v4789, %v5398
      %v5400 = vpop.f32.mrf.mxu0
      %v5401 = vadd.f32 %v4793, %v5400
      %v5402 = vpop.f32.mrf.mxu0
      %v5403 = vadd.f32 %v4789, %v5402
      %v5404 = vpop.f32.mrf.mxu0
      %v5405 = vadd.f32 %v4793, %v5404
      %5406 = vmatprep.mubr.bf16.mxu0 0
      %5407 = vmatmul.mubr.bf16.gmra.mxu0 %v4701
      %v5408 = vpop.f32.mrf.mxu0
      %v5409 = vadd.f32 %v4789, %v5408
      %v5410 = vpop.f32.mrf.mxu0
      %v5411 = vadd.f32 %v4793, %v5410
      %v5412 = vpop.f32.mrf.mxu0
      %v5413 = vadd.f32 %v4789, %v5412
      %v5414 = vpop.f32.mrf.mxu0
      %v5415 = vadd.f32 %v4793, %v5414
      %5416 = vmatprep.mubr.bf16.mxu0 0
      %5417 = vmatmul.mubr.bf16.gmra.mxu0 %v4702
      %v5418 = vpop.f32.mrf.mxu0
      %v5419 = vadd.f32 %v4789, %v5418
      %v5420 = vpop.f32.mrf.mxu0
      %v5421 = vadd.f32 %v4793, %v5420
      %v5422 = vpop.f32.mrf.mxu0
      %v5423 = vadd.f32 %v4789, %v5422
      %v5424 = vpop.f32.mrf.mxu0
      %v5425 = vadd.f32 %v4793, %v5424
      %5426 = vmatprep.mubr.bf16.mxu0 0
      %5427 = vmatmul.mubr.bf16.gmra.mxu0 %v4703
      %v5428 = vpop.f32.mrf.mxu0
      %v5429 = vadd.f32 %v4789, %v5428
      %v5430 = vpop.f32.mrf.mxu0
      %v5431 = vadd.f32 %v4793, %v5430
      %v5432 = vpop.f32.mrf.mxu0
      %v5433 = vadd.f32 %v4789, %v5432
      %v5434 = vpop.f32.mrf.mxu0
      %v5435 = vadd.f32 %v4793, %v5434
      %5436 = vmatprep.mubr.bf16.mxu0 0
      %5437 = vmatmul.mubr.bf16.gmra.mxu0 %v4704
      %v5438 = vpop.f32.mrf.mxu0
      %v5439 = vadd.f32 %v4789, %v5438
      %v5440 = vpop.f32.mrf.mxu0
      %v5441 = vadd.f32 %v4793, %v5440
      %v5442 = vpop.f32.mrf.mxu0
      %v5443 = vadd.f32 %v4789, %v5442
      %v5444 = vpop.f32.mrf.mxu0
      %v5445 = vadd.f32 %v4793, %v5444
      %5446 = vmatprep.mubr.bf16.mxu0 0
      %5447 = vmatmul.mubr.bf16.gmra.mxu0 %v4705
      %v5448 = vpop.f32.mrf.mxu0
      %v5449 = vadd.f32 %v4789, %v5448
      %v5450 = vpop.f32.mrf.mxu0
      %v5451 = vadd.f32 %v4793, %v5450
      %v5452 = vpop.f32.mrf.mxu0
      %v5453 = vadd.f32 %v4789, %v5452
      %v5454 = vpop.f32.mrf.mxu0
      %v5455 = vadd.f32 %v4793, %v5454
      %5456 = vmatprep.mubr.bf16.mxu0 0
      %5457 = vmatmul.mubr.bf16.gmra.mxu0 %v4706
      %v5458 = vpop.f32.mrf.mxu0
      %v5459 = vadd.f32 %v4789, %v5458
      %v5460 = vpop.f32.mrf.mxu0
      %v5461 = vadd.f32 %v4793, %v5460
      %v5462 = vpop.f32.mrf.mxu0
      %v5463 = vadd.f32 %v4789, %v5462
      %v5464 = vpop.f32.mrf.mxu0
      %v5465 = vadd.f32 %v4793, %v5464
      %5466 = vmatprep.mubr.bf16.mxu0 0
      %5467 = vmatmul.mubr.bf16.gmra.mxu0 %v4707
      %v5468 = vpop.f32.mrf.mxu0
      %v5469 = vadd.f32 %v4789, %v5468
      %v5470 = vpop.f32.mrf.mxu0
      %v5471 = vadd.f32 %v4793, %v5470
      %v5472 = vpop.f32.mrf.mxu0
      %v5473 = vadd.f32 %v4789, %v5472
      %v5474 = vpop.f32.mrf.mxu0
      %v5475 = vadd.f32 %v4793, %v5474
      %5476 = vmatprep.mubr.bf16.mxu0 0
      %5477 = vmatmul.mubr.bf16.gmra.mxu0 %v4708
      %v5478 = vpop.f32.mrf.mxu0
      %v5479 = vadd.f32 %v4789, %v5478
      %v5480 = vpop.f32.mrf.mxu0
      %v5481 = vadd.f32 %v4793, %v5480
      %v5482 = vpop.f32.mrf.mxu0
      %v5483 = vadd.f32 %v4789, %v5482
      %v5484 = vpop.f32.mrf.mxu0
      %v5485 = vadd.f32 %v4793, %v5484
      %5486 = vdwg.mxu0
      %5487 = vmatprep.subr.bf16.mxu0 %v5043
      %5488 = vmatpush1.bf16.msra.mxu0 %v5042
      %5489 = vmatprep.subr.bf16.mxu0 %v5036
      %5490 = vmatpush1.bf16.msra.mxu0 %v5035
      %5491 = vmatprep.subr.bf16.mxu0 %v5029
      %5492 = vmatpush1.bf16.msra.mxu0 %v5028
      %5493 = vmatprep.subr.bf16.mxu0 %v5022
      %5494 = vmatpush1.bf16.msra.mxu0 %v5021
      %5495 = vmatprep.subr.bf16.mxu0 %v5015
      %5496 = vmatpush1.bf16.msra.mxu0 %v5014
      %5497 = vmatprep.subr.bf16.mxu0 %v5008
      %5498 = vmatpush1.bf16.msra.mxu0 %v5007
      %5499 = vmatprep.subr.bf16.mxu0 %v5001
      %5500 = vmatpush1.bf16.msra.mxu0 %v5000
      %5501 = vmatprep.subr.bf16.mxu0 %v4994
      %5502 = vmatpush1.bf16.msra.mxu0 %v4993
      %5503 = vmatprep.subr.bf16.mxu0 0
      %5504 = vmatpush2.bf16.msra.mxu0 0
      %5505 = vmatprep.subr.bf16.mxu0 0
      %5506 = vmatpush2.bf16.msra.mxu0 0
      %5507 = vmatprep.subr.bf16.mxu0 0
      %5508 = vmatpush2.bf16.msra.mxu0 0
      %5509 = vmatprep.subr.bf16.mxu0 0
      %5510 = vmatpush2.bf16.msra.mxu0 0
      %5511 = vmatprep.subr.bf16.mxu0 0
      %5512 = vmatpush2.bf16.msra.mxu0 0
      %5513 = vmatprep.subr.bf16.mxu0 0
      %5514 = vmatpush2.bf16.msra.mxu0 0
      %5515 = vmatprep.subr.bf16.mxu0 0
      %5516 = vmatpush2.bf16.msra.mxu0 0
      %5517 = vmatprep.subr.bf16.mxu0 0
      %5518 = vmatpush2.bf16.msra.mxu0 0
      %5519 = vmatprep.mubr.bf16.mxu0 0
      %5520 = vmatmul.mubr.bf16.gmra.mxu0 %v4693
      %v5521 = vpop.f32.mrf.mxu0
      %v5522 = vadd.f32 %v4797, %v5521
      %v5523 = vpop.f32.mrf.mxu0
      %v5524 = vadd.f32 %v4801, %v5523
      %v5525 = vpop.f32.mrf.mxu0
      %v5526 = vadd.f32 %v4797, %v5525
      %v5527 = vpop.f32.mrf.mxu0
      %v5528 = vadd.f32 %v4801, %v5527
      %5529 = vmatprep.mubr.bf16.mxu0 0
      %5530 = vmatmul.mubr.bf16.gmra.mxu0 %v4694
      %v5531 = vpop.f32.mrf.mxu0
      %v5532 = vadd.f32 %v4797, %v5531
      %v5533 = vpop.f32.mrf.mxu0
      %v5534 = vadd.f32 %v4801, %v5533
      %v5535 = vpop.f32.mrf.mxu0
      %v5536 = vadd.f32 %v4797, %v5535
      %v5537 = vpop.f32.mrf.mxu0
      %v5538 = vadd.f32 %v4801, %v5537
      %5539 = vmatprep.mubr.bf16.mxu0 0
      %5540 = vmatmul.mubr.bf16.gmra.mxu0 %v4695
      %v5541 = vpop.f32.mrf.mxu0
      %v5542 = vadd.f32 %v4797, %v5541
      %v5543 = vpop.f32.mrf.mxu0
      %v5544 = vadd.f32 %v4801, %v5543
      %v5545 = vpop.f32.mrf.mxu0
      %v5546 = vadd.f32 %v4797, %v5545
      %v5547 = vpop.f32.mrf.mxu0
      %v5548 = vadd.f32 %v4801, %v5547
      %5549 = vmatprep.mubr.bf16.mxu0 0
      %5550 = vmatmul.mubr.bf16.gmra.mxu0 %v4696
      %v5551 = vpop.f32.mrf.mxu0
      %v5552 = vadd.f32 %v4797, %v5551
      %v5553 = vpop.f32.mrf.mxu0
      %v5554 = vadd.f32 %v4801, %v5553
      %v5555 = vpop.f32.mrf.mxu0
      %v5556 = vadd.f32 %v4797, %v5555
      %v5557 = vpop.f32.mrf.mxu0
      %v5558 = vadd.f32 %v4801, %v5557
      %5559 = vmatprep.mubr.bf16.mxu0 0
      %5560 = vmatmul.mubr.bf16.gmra.mxu0 %v4697
      %v5561 = vpop.f32.mrf.mxu0
      %v5562 = vadd.f32 %v4797, %v5561
      %v5563 = vpop.f32.mrf.mxu0
      %v5564 = vadd.f32 %v4801, %v5563
      %v5565 = vpop.f32.mrf.mxu0
      %v5566 = vadd.f32 %v4797, %v5565
      %v5567 = vpop.f32.mrf.mxu0
      %v5568 = vadd.f32 %v4801, %v5567
      %5569 = vmatprep.mubr.bf16.mxu0 0
      %5570 = vmatmul.mubr.bf16.gmra.mxu0 %v4698
      %v5571 = vpop.f32.mrf.mxu0
      %v5572 = vadd.f32 %v4797, %v5571
      %v5573 = vpop.f32.mrf.mxu0
      %v5574 = vadd.f32 %v4801, %v5573
      %v5575 = vpop.f32.mrf.mxu0
      %v5576 = vadd.f32 %v4797, %v5575
      %v5577 = vpop.f32.mrf.mxu0
      %v5578 = vadd.f32 %v4801, %v5577
      %5579 = vmatprep.mubr.bf16.mxu0 0
      %5580 = vmatmul.mubr.bf16.gmra.mxu0 %v4699
      %v5581 = vpop.f32.mrf.mxu0
      %v5582 = vadd.f32 %v4797, %v5581
      %v5583 = vpop.f32.mrf.mxu0
      %v5584 = vadd.f32 %v4801, %v5583
      %v5585 = vpop.f32.mrf.mxu0
      %v5586 = vadd.f32 %v4797, %v5585
      %v5587 = vpop.f32.mrf.mxu0
      %v5588 = vadd.f32 %v4801, %v5587
      %5589 = vmatprep.mubr.bf16.mxu0 0
      %5590 = vmatmul.mubr.bf16.gmra.mxu0 %v4700
      %v5591 = vpop.f32.mrf.mxu0
      %v5592 = vadd.f32 %v4797, %v5591
      %v5593 = vpop.f32.mrf.mxu0
      %v5594 = vadd.f32 %v4801, %v5593
      %v5595 = vpop.f32.mrf.mxu0
      %v5596 = vadd.f32 %v4797, %v5595
      %v5597 = vpop.f32.mrf.mxu0
      %v5598 = vadd.f32 %v4801, %v5597
      %5599 = vmatprep.mubr.bf16.mxu0 0
      %5600 = vmatmul.mubr.bf16.gmra.mxu0 %v4701
      %v5601 = vpop.f32.mrf.mxu0
      %v5602 = vadd.f32 %v4797, %v5601
      %v5603 = vpop.f32.mrf.mxu0
      %v5604 = vadd.f32 %v4801, %v5603
      %v5605 = vpop.f32.mrf.mxu0
      %v5606 = vadd.f32 %v4797, %v5605
      %v5607 = vpop.f32.mrf.mxu0
      %v5608 = vadd.f32 %v4801, %v5607
      %5609 = vmatprep.mubr.bf16.mxu0 0
      %5610 = vmatmul.mubr.bf16.gmra.mxu0 %v4702
      %v5611 = vpop.f32.mrf.mxu0
      %v5612 = vadd.f32 %v4797, %v5611
      %v5613 = vpop.f32.mrf.mxu0
      %v5614 = vadd.f32 %v4801, %v5613
      %v5615 = vpop.f32.mrf.mxu0
      %v5616 = vadd.f32 %v4797, %v5615
      %v5617 = vpop.f32.mrf.mxu0
      %v5618 = vadd.f32 %v4801, %v5617
      %5619 = vmatprep.mubr.bf16.mxu0 0
      %5620 = vmatmul.mubr.bf16.gmra.mxu0 %v4703
      %v5621 = vpop.f32.mrf.mxu0
      %v5622 = vadd.f32 %v4797, %v5621
      %v5623 = vpop.f32.mrf.mxu0
      %v5624 = vadd.f32 %v4801, %v5623
      %v5625 = vpop.f32.mrf.mxu0
      %v5626 = vadd.f32 %v4797, %v5625
      %v5627 = vpop.f32.mrf.mxu0
      %v5628 = vadd.f32 %v4801, %v5627
      %5629 = vmatprep.mubr.bf16.mxu0 0
      %5630 = vmatmul.mubr.bf16.gmra.mxu0 %v4704
      %v5631 = vpop.f32.mrf.mxu0
      %v5632 = vadd.f32 %v4797, %v5631
      %v5633 = vpop.f32.mrf.mxu0
      %v5634 = vadd.f32 %v4801, %v5633
      %v5635 = vpop.f32.mrf.mxu0
      %v5636 = vadd.f32 %v4797, %v5635
      %v5637 = vpop.f32.mrf.mxu0
      %v5638 = vadd.f32 %v4801, %v5637
      %5639 = vmatprep.mubr.bf16.mxu0 0
      %5640 = vmatmul.mubr.bf16.gmra.mxu0 %v4705
      %v5641 = vpop.f32.mrf.mxu0
      %v5642 = vadd.f32 %v4797, %v5641
      %v5643 = vpop.f32.mrf.mxu0
      %v5644 = vadd.f32 %v4801, %v5643
      %v5645 = vpop.f32.mrf.mxu0
      %v5646 = vadd.f32 %v4797, %v5645
      %v5647 = vpop.f32.mrf.mxu0
      %v5648 = vadd.f32 %v4801, %v5647
      %5649 = vmatprep.mubr.bf16.mxu0 0
      %5650 = vmatmul.mubr.bf16.gmra.mxu0 %v4706
      %v5651 = vpop.f32.mrf.mxu0
      %v5652 = vadd.f32 %v4797, %v5651
      %v5653 = vpop.f32.mrf.mxu0
      %v5654 = vadd.f32 %v4801, %v5653
      %v5655 = vpop.f32.mrf.mxu0
      %v5656 = vadd.f32 %v4797, %v5655
      %v5657 = vpop.f32.mrf.mxu0
      %v5658 = vadd.f32 %v4801, %v5657
      %5659 = vmatprep.mubr.bf16.mxu0 0
      %5660 = vmatmul.mubr.bf16.gmra.mxu0 %v4707
      %v5661 = vpop.f32.mrf.mxu0
      %v5662 = vadd.f32 %v4797, %v5661
      %v5663 = vpop.f32.mrf.mxu0
      %v5664 = vadd.f32 %v4801, %v5663
      %v5665 = vpop.f32.mrf.mxu0
      %v5666 = vadd.f32 %v4797, %v5665
      %v5667 = vpop.f32.mrf.mxu0
      %v5668 = vadd.f32 %v4801, %v5667
      %5669 = vmatprep.mubr.bf16.mxu0 0
      %5670 = vmatmul.mubr.bf16.gmra.mxu0 %v4708
      %v5671 = vpop.f32.mrf.mxu0
      %v5672 = vadd.f32 %v4797, %v5671
      %v5673 = vpop.f32.mrf.mxu0
      %v5674 = vadd.f32 %v4801, %v5673
      %v5675 = vpop.f32.mrf.mxu0
      %v5676 = vadd.f32 %v4797, %v5675
      %v5677 = vpop.f32.mrf.mxu0
      %v5678 = vadd.f32 %v4801, %v5677
      %5679 = vdwg.mxu0
      %5680 = vmatprep.subr.bf16.mxu0 0
      %5681 = vmatpush1.bf16.msra.mxu0 %v5044
      %5682 = vmatprep.subr.bf16.mxu0 0
      %5683 = vmatpush1.bf16.msra.mxu0 %v5037
      %5684 = vmatprep.subr.bf16.mxu0 0
      %5685 = vmatpush1.bf16.msra.mxu0 %v5030
      %5686 = vmatprep.subr.bf16.mxu0 0
      %5687 = vmatpush1.bf16.msra.mxu0 %v5023
      %5688 = vmatprep.subr.bf16.mxu0 0
      %5689 = vmatpush1.bf16.msra.mxu0 %v5016
      %5690 = vmatprep.subr.bf16.mxu0 0
      %5691 = vmatpush1.bf16.msra.mxu0 %v5009
      %5692 = vmatprep.subr.bf16.mxu0 0
      %5693 = vmatpush1.bf16.msra.mxu0 %v5002
      %5694 = vmatprep.subr.bf16.mxu0 0
      %5695 = vmatpush1.bf16.msra.mxu0 %v4995
      %5696 = vmatprep.subr.bf16.mxu0 0
      %5697 = vmatpush2.bf16.msra.mxu0 0
      %5698 = vmatprep.subr.bf16.mxu0 0
      %5699 = vmatpush2.bf16.msra.mxu0 0
      %5700 = vmatprep.subr.bf16.mxu0 0
      %5701 = vmatpush2.bf16.msra.mxu0 0
      %5702 = vmatprep.subr.bf16.mxu0 0
      %5703 = vmatpush2.bf16.msra.mxu0 0
      %5704 = vmatprep.subr.bf16.mxu0 0
      %5705 = vmatpush2.bf16.msra.mxu0 0
      %5706 = vmatprep.subr.bf16.mxu0 0
      %5707 = vmatpush2.bf16.msra.mxu0 0
      %5708 = vmatprep.subr.bf16.mxu0 0
      %5709 = vmatpush2.bf16.msra.mxu0 0
      %5710 = vmatprep.subr.bf16.mxu0 0
      %5711 = vmatpush2.bf16.msra.mxu0 0
      %5712 = vmatprep.mubr.bf16.mxu0 0
      %5713 = vmatmul.mubr.bf16.gmra.mxu0 %v4693
      %v5714 = vpop.f32.mrf.mxu0
      %v5715 = vadd.f32 %v4805, %v5714
      %v5716 = vpop.f32.mrf.mxu0
      %v5717 = vpop.f32.mrf.mxu0
      %v5718 = vadd.f32 %v4805, %v5717
      %v5719 = vpop.f32.mrf.mxu0
      %5720 = vmatprep.mubr.bf16.mxu0 0
      %5721 = vmatmul.mubr.bf16.gmra.mxu0 %v4694
      %v5722 = vpop.f32.mrf.mxu0
      %v5723 = vadd.f32 %v4805, %v5722
      %v5724 = vpop.f32.mrf.mxu0
      %v5725 = vpop.f32.mrf.mxu0
      %v5726 = vadd.f32 %v4805, %v5725
      %v5727 = vpop.f32.mrf.mxu0
      %5728 = vmatprep.mubr.bf16.mxu0 0
      %5729 = vmatmul.mubr.bf16.gmra.mxu0 %v4695
      %v5730 = vpop.f32.mrf.mxu0
      %v5731 = vadd.f32 %v4805, %v5730
      %v5732 = vpop.f32.mrf.mxu0
      %v5733 = vpop.f32.mrf.mxu0
      %v5734 = vadd.f32 %v4805, %v5733
      %v5735 = vpop.f32.mrf.mxu0
      %5736 = vmatprep.mubr.bf16.mxu0 0
      %5737 = vmatmul.mubr.bf16.gmra.mxu0 %v4696
      %v5738 = vpop.f32.mrf.mxu0
      %v5739 = vadd.f32 %v4805, %v5738
      %v5740 = vpop.f32.mrf.mxu0
      %v5741 = vpop.f32.mrf.mxu0
      %v5742 = vadd.f32 %v4805, %v5741
      %v5743 = vpop.f32.mrf.mxu0
      %5744 = vmatprep.mubr.bf16.mxu0 0
      %5745 = vmatmul.mubr.bf16.gmra.mxu0 %v4697
      %v5746 = vpop.f32.mrf.mxu0
      %v5747 = vadd.f32 %v4805, %v5746
      %v5748 = vpop.f32.mrf.mxu0
      %v5749 = vpop.f32.mrf.mxu0
      %v5750 = vadd.f32 %v4805, %v5749
      %v5751 = vpop.f32.mrf.mxu0
      %5752 = vmatprep.mubr.bf16.mxu0 0
      %5753 = vmatmul.mubr.bf16.gmra.mxu0 %v4698
      %v5754 = vpop.f32.mrf.mxu0
      %v5755 = vadd.f32 %v4805, %v5754
      %v5756 = vpop.f32.mrf.mxu0
      %v5757 = vpop.f32.mrf.mxu0
      %v5758 = vadd.f32 %v4805, %v5757
      %v5759 = vpop.f32.mrf.mxu0
      %5760 = vmatprep.mubr.bf16.mxu0 0
      %5761 = vmatmul.mubr.bf16.gmra.mxu0 %v4699
      %v5762 = vpop.f32.mrf.mxu0
      %v5763 = vadd.f32 %v4805, %v5762
      %v5764 = vpop.f32.mrf.mxu0
      %v5765 = vpop.f32.mrf.mxu0
      %v5766 = vadd.f32 %v4805, %v5765
      %v5767 = vpop.f32.mrf.mxu0
      %5768 = vmatprep.mubr.bf16.mxu0 0
      %5769 = vmatmul.mubr.bf16.gmra.mxu0 %v4700
      %v5770 = vpop.f32.mrf.mxu0
      %v5771 = vadd.f32 %v4805, %v5770
      %v5772 = vpop.f32.mrf.mxu0
      %v5773 = vpop.f32.mrf.mxu0
      %v5774 = vadd.f32 %v4805, %v5773
      %v5775 = vpop.f32.mrf.mxu0
      %5776 = vmatprep.mubr.bf16.mxu0 0
      %5777 = vmatmul.mubr.bf16.gmra.mxu0 %v4701
      %v5778 = vpop.f32.mrf.mxu0
      %v5779 = vadd.f32 %v4805, %v5778
      %v5780 = vpop.f32.mrf.mxu0
      %v5781 = vpop.f32.mrf.mxu0
      %v5782 = vadd.f32 %v4805, %v5781
      %v5783 = vpop.f32.mrf.mxu0
      %5784 = vmatprep.mubr.bf16.mxu0 0
      %5785 = vmatmul.mubr.bf16.gmra.mxu0 %v4702
      %v5786 = vpop.f32.mrf.mxu0
      %v5787 = vadd.f32 %v4805, %v5786
      %v5788 = vpop.f32.mrf.mxu0
      %v5789 = vpop.f32.mrf.mxu0
      %v5790 = vadd.f32 %v4805, %v5789
      %v5791 = vpop.f32.mrf.mxu0
      %5792 = vmatprep.mubr.bf16.mxu0 0
      %5793 = vmatmul.mubr.bf16.gmra.mxu0 %v4703
      %v5794 = vpop.f32.mrf.mxu0
      %v5795 = vadd.f32 %v4805, %v5794
      %v5796 = vpop.f32.mrf.mxu0
      %v5797 = vpop.f32.mrf.mxu0
      %v5798 = vadd.f32 %v4805, %v5797
      %v5799 = vpop.f32.mrf.mxu0
      %5800 = vmatprep.mubr.bf16.mxu0 0
      %5801 = vmatmul.mubr.bf16.gmra.mxu0 %v4704
      %v5802 = vpop.f32.mrf.mxu0
      %v5803 = vadd.f32 %v4805, %v5802
      %v5804 = vpop.f32.mrf.mxu0
      %v5805 = vpop.f32.mrf.mxu0
      %v5806 = vadd.f32 %v4805, %v5805
      %v5807 = vpop.f32.mrf.mxu0
      %5808 = vmatprep.mubr.bf16.mxu0 0
      %5809 = vmatmul.mubr.bf16.gmra.mxu0 %v4705
      %v5810 = vpop.f32.mrf.mxu0
      %v5811 = vadd.f32 %v4805, %v5810
      %v5812 = vpop.f32.mrf.mxu0
      %v5813 = vpop.f32.mrf.mxu0
      %v5814 = vadd.f32 %v4805, %v5813
      %v5815 = vpop.f32.mrf.mxu0
      %5816 = vmatprep.mubr.bf16.mxu0 0
      %5817 = vmatmul.mubr.bf16.gmra.mxu0 %v4706
      %v5818 = vpop.f32.mrf.mxu0
      %v5819 = vadd.f32 %v4805, %v5818
      %v5820 = vpop.f32.mrf.mxu0
      %v5821 = vpop.f32.mrf.mxu0
      %v5822 = vadd.f32 %v4805, %v5821
      %v5823 = vpop.f32.mrf.mxu0
      %5824 = vmatprep.mubr.bf16.mxu0 0
      %5825 = vmatmul.mubr.bf16.gmra.mxu0 %v4707
      %v5826 = vpop.f32.mrf.mxu0
      %v5827 = vadd.f32 %v4805, %v5826
      %v5828 = vpop.f32.mrf.mxu0
      %v5829 = vpop.f32.mrf.mxu0
      %v5830 = vadd.f32 %v4805, %v5829
      %v5831 = vpop.f32.mrf.mxu0
      %5832 = vmatprep.mubr.bf16.mxu0 0
      %5833 = vmatmul.mubr.bf16.gmra.mxu0 %v4708
      %v5834 = vpop.f32.mrf.mxu0
      %v5835 = vadd.f32 %v4805, %v5834
      %v5836 = vpop.f32.mrf.mxu0
      %v5837 = vpop.f32.mrf.mxu0
      %v5838 = vadd.f32 %v4805, %v5837
      %v5839 = vpop.f32.mrf.mxu0
      %5840 = vdwg.mxu0
      %v5841 = vmul.f32 %v5136, 0.5
      %v5842 = vmul.f32 %v5138, 0.5
      %v5843 = vmul.f32 %v5329, 0.5
      %v5844 = vmul.f32 %v5331, 0.5
      %v5845 = vmul.f32 %v5522, 0.5
      %v5846 = vmul.f32 %v5524, 0.5
      %v5847 = vmul.f32 %v5715, 0.5
      %v5848 = vmul.f32 %v5140, 0.5
      %v5849 = vmul.f32 %v5142, 0.5
      %v5850 = vmul.f32 %v5333, 0.5
      %v5851 = vmul.f32 %v5335, 0.5
      %v5852 = vmul.f32 %v5526, 0.5
      %v5853 = vmul.f32 %v5528, 0.5
      %v5854 = vmul.f32 %v5718, 0.5
      %v5855 = vmul.f32 %v5146, 0.5
      %v5856 = vmul.f32 %v5148, 0.5
      %v5857 = vmul.f32 %v5339, 0.5
      %v5858 = vmul.f32 %v5341, 0.5
      %v5859 = vmul.f32 %v5532, 0.5
      %v5860 = vmul.f32 %v5534, 0.5
      %v5861 = vmul.f32 %v5723, 0.5
      %v5862 = vmul.f32 %v5150, 0.5
      %v5863 = vmul.f32 %v5152, 0.5
      %v5864 = vmul.f32 %v5343, 0.5
      %v5865 = vmul.f32 %v5345, 0.5
      %v5866 = vmul.f32 %v5536, 0.5
      %v5867 = vmul.f32 %v5538, 0.5
      %v5868 = vmul.f32 %v5726, 0.5
      %v5869 = vmul.f32 %v5156, 0.5
      %v5870 = vmul.f32 %v5158, 0.5
      %v5871 = vmul.f32 %v5349, 0.5
      %v5872 = vmul.f32 %v5351, 0.5
      %v5873 = vmul.f32 %v5542, 0.5
      %v5874 = vmul.f32 %v5544, 0.5
      %v5875 = vmul.f32 %v5731, 0.5
      %v5876 = vmul.f32 %v5160, 0.5
      %v5877 = vmul.f32 %v5162, 0.5
      %v5878 = vmul.f32 %v5353, 0.5
      %v5879 = vmul.f32 %v5355, 0.5
      %v5880 = vmul.f32 %v5546, 0.5
      %v5881 = vmul.f32 %v5548, 0.5
      %v5882 = vmul.f32 %v5734, 0.5
      %v5883 = vmul.f32 %v5166, 0.5
      %v5884 = vmul.f32 %v5168, 0.5
      %v5885 = vmul.f32 %v5359, 0.5
      %v5886 = vmul.f32 %v5361, 0.5
      %v5887 = vmul.f32 %v5552, 0.5
      %v5888 = vmul.f32 %v5554, 0.5
      %v5889 = vmul.f32 %v5739, 0.5
      %v5890 = vmul.f32 %v5170, 0.5
      %v5891 = vmul.f32 %v5172, 0.5
      %v5892 = vmul.f32 %v5363, 0.5
      %v5893 = vmul.f32 %v5365, 0.5
      %v5894 = vmul.f32 %v5556, 0.5
      %v5895 = vmul.f32 %v5558, 0.5
      %v5896 = vmul.f32 %v5742, 0.5
      %v5897 = vmul.f32 %v5176, 0.5
      %v5898 = vmul.f32 %v5178, 0.5
      %v5899 = vmul.f32 %v5369, 0.5
      %v5900 = vmul.f32 %v5371, 0.5
      %v5901 = vmul.f32 %v5562, 0.5
      %v5902 = vmul.f32 %v5564, 0.5
      %v5903 = vmul.f32 %v5747, 0.5
      %v5904 = vmul.f32 %v5180, 0.5
      %v5905 = vmul.f32 %v5182, 0.5
      %v5906 = vmul.f32 %v5373, 0.5
      %v5907 = vmul.f32 %v5375, 0.5
      %v5908 = vmul.f32 %v5566, 0.5
      %v5909 = vmul.f32 %v5568, 0.5
      %v5910 = vmul.f32 %v5750, 0.5
      %v5911 = vmul.f32 %v5186, 0.5
      %v5912 = vmul.f32 %v5188, 0.5
      %v5913 = vmul.f32 %v5379, 0.5
      %v5914 = vmul.f32 %v5381, 0.5
      %v5915 = vmul.f32 %v5572, 0.5
      %v5916 = vmul.f32 %v5574, 0.5
      %v5917 = vmul.f32 %v5755, 0.5
      %v5918 = vmul.f32 %v5190, 0.5
      %v5919 = vmul.f32 %v5192, 0.5
      %v5920 = vmul.f32 %v5383, 0.5
      %v5921 = vmul.f32 %v5385, 0.5
      %v5922 = vmul.f32 %v5576, 0.5
      %v5923 = vmul.f32 %v5578, 0.5
      %v5924 = vmul.f32 %v5758, 0.5
      %v5925 = vmul.f32 %v5196, 0.5
      %v5926 = vmul.f32 %v5198, 0.5
      %v5927 = vmul.f32 %v5389, 0.5
      %v5928 = vmul.f32 %v5391, 0.5
      %v5929 = vmul.f32 %v5582, 0.5
      %v5930 = vmul.f32 %v5584, 0.5
      %v5931 = vmul.f32 %v5763, 0.5
      %v5932 = vmul.f32 %v5200, 0.5
      %v5933 = vmul.f32 %v5202, 0.5
      %v5934 = vmul.f32 %v5393, 0.5
      %v5935 = vmul.f32 %v5395, 0.5
      %v5936 = vmul.f32 %v5586, 0.5
      %v5937 = vmul.f32 %v5588, 0.5
      %v5938 = vmul.f32 %v5766, 0.5
      %v5939 = vmul.f32 %v5206, 0.5
      %v5940 = vmul.f32 %v5208, 0.5
      %v5941 = vmul.f32 %v5399, 0.5
      %v5942 = vmul.f32 %v5401, 0.5
      %v5943 = vmul.f32 %v5592, 0.5
      %v5944 = vmul.f32 %v5594, 0.5
      %v5945 = vmul.f32 %v5771, 0.5
      %v5946 = vmul.f32 %v5210, 0.5
      %v5947 = vmul.f32 %v5212, 0.5
      %v5948 = vmul.f32 %v5403, 0.5
      %v5949 = vmul.f32 %v5405, 0.5
      %v5950 = vmul.f32 %v5596, 0.5
      %v5951 = vmul.f32 %v5598, 0.5
      %v5952 = vmul.f32 %v5774, 0.5
      %v5953 = vmul.f32 %v5216, 0.5
      %v5954 = vmul.f32 %v5218, 0.5
      %v5955 = vmul.f32 %v5409, 0.5
      %v5956 = vmul.f32 %v5411, 0.5
      %v5957 = vmul.f32 %v5602, 0.5
      %v5958 = vmul.f32 %v5604, 0.5
      %v5959 = vmul.f32 %v5779, 0.5
      %v5960 = vmul.f32 %v5220, 0.5
      %v5961 = vmul.f32 %v5222, 0.5
      %v5962 = vmul.f32 %v5413, 0.5
      %v5963 = vmul.f32 %v5415, 0.5
      %v5964 = vmul.f32 %v5606, 0.5
      %v5965 = vmul.f32 %v5608, 0.5
      %v5966 = vmul.f32 %v5782, 0.5
      %v5967 = vmul.f32 %v5226, 0.5
      %v5968 = vmul.f32 %v5228, 0.5
      %v5969 = vmul.f32 %v5419, 0.5
      %v5970 = vmul.f32 %v5421, 0.5
      %v5971 = vmul.f32 %v5612, 0.5
      %v5972 = vmul.f32 %v5614, 0.5
      %v5973 = vmul.f32 %v5787, 0.5
      %v5974 = vmul.f32 %v5230, 0.5
      %v5975 = vmul.f32 %v5232, 0.5
      %v5976 = vmul.f32 %v5423, 0.5
      %v5977 = vmul.f32 %v5425, 0.5
      %v5978 = vmul.f32 %v5616, 0.5
      %v5979 = vmul.f32 %v5618, 0.5
      %v5980 = vmul.f32 %v5790, 0.5
      %v5981 = vmul.f32 %v5236, 0.5
      %v5982 = vmul.f32 %v5238, 0.5
      %v5983 = vmul.f32 %v5429, 0.5
      %v5984 = vmul.f32 %v5431, 0.5
      %v5985 = vmul.f32 %v5622, 0.5
      %v5986 = vmul.f32 %v5624, 0.5
      %v5987 = vmul.f32 %v5795, 0.5
      %v5988 = vmul.f32 %v5240, 0.5
      %v5989 = vmul.f32 %v5242, 0.5
      %v5990 = vmul.f32 %v5433, 0.5
      %v5991 = vmul.f32 %v5435, 0.5
      %v5992 = vmul.f32 %v5626, 0.5
      %v5993 = vmul.f32 %v5628, 0.5
      %v5994 = vmul.f32 %v5798, 0.5
      %v5995 = vmul.f32 %v5246, 0.5
      %v5996 = vmul.f32 %v5248, 0.5
      %v5997 = vmul.f32 %v5439, 0.5
      %v5998 = vmul.f32 %v5441, 0.5
      %v5999 = vmul.f32 %v5632, 0.5
      %v6000 = vmul.f32 %v5634, 0.5
      %v6001 = vmul.f32 %v5803, 0.5
      %v6002 = vmul.f32 %v5250, 0.5
      %v6003 = vmul.f32 %v5252, 0.5
      %v6004 = vmul.f32 %v5443, 0.5
      %v6005 = vmul.f32 %v5445, 0.5
      %v6006 = vmul.f32 %v5636, 0.5
      %v6007 = vmul.f32 %v5638, 0.5
      %v6008 = vmul.f32 %v5806, 0.5
      %v6009 = vmul.f32 %v5256, 0.5
      %v6010 = vmul.f32 %v5258, 0.5
      %v6011 = vmul.f32 %v5449, 0.5
      %v6012 = vmul.f32 %v5451, 0.5
      %v6013 = vmul.f32 %v5642, 0.5
      %v6014 = vmul.f32 %v5644, 0.5
      %v6015 = vmul.f32 %v5811, 0.5
      %v6016 = vmul.f32 %v5260, 0.5
      %v6017 = vmul.f32 %v5262, 0.5
      %v6018 = vmul.f32 %v5453, 0.5
      %v6019 = vmul.f32 %v5455, 0.5
      %v6020 = vmul.f32 %v5646, 0.5
      %v6021 = vmul.f32 %v5648, 0.5
      %v6022 = vmul.f32 %v5814, 0.5
      %v6023 = vmul.f32 %v5266, 0.5
      %v6024 = vmul.f32 %v5268, 0.5
      %v6025 = vmul.f32 %v5459, 0.5
      %v6026 = vmul.f32 %v5461, 0.5
      %v6027 = vmul.f32 %v5652, 0.5
      %v6028 = vmul.f32 %v5654, 0.5
      %v6029 = vmul.f32 %v5819, 0.5
      %v6030 = vmul.f32 %v5270, 0.5
      %v6031 = vmul.f32 %v5272, 0.5
      %v6032 = vmul.f32 %v5463, 0.5
      %v6033 = vmul.f32 %v5465, 0.5
      %v6034 = vmul.f32 %v5656, 0.5
      %v6035 = vmul.f32 %v5658, 0.5
      %v6036 = vmul.f32 %v5822, 0.5
      %v6037 = vmul.f32 %v5276, 0.5
      %v6038 = vmul.f32 %v5278, 0.5
      %v6039 = vmul.f32 %v5469, 0.5
      %v6040 = vmul.f32 %v5471, 0.5
      %v6041 = vmul.f32 %v5662, 0.5
      %v6042 = vmul.f32 %v5664, 0.5
      %v6043 = vmul.f32 %v5827, 0.5
      %v6044 = vmul.f32 %v5280, 0.5
      %v6045 = vmul.f32 %v5282, 0.5
      %v6046 = vmul.f32 %v5473, 0.5
      %v6047 = vmul.f32 %v5475, 0.5
      %v6048 = vmul.f32 %v5666, 0.5
      %v6049 = vmul.f32 %v5668, 0.5
      %v6050 = vmul.f32 %v5830, 0.5
      %v6051 = vmul.f32 %v5286, 0.5
      %v6052 = vmul.f32 %v5288, 0.5
      %v6053 = vmul.f32 %v5479, 0.5
      %v6054 = vmul.f32 %v5481, 0.5
      %v6055 = vmul.f32 %v5672, 0.5
      %v6056 = vmul.f32 %v5674, 0.5
      %v6057 = vmul.f32 %v5835, 0.5
      %v6058 = vmul.f32 %v5290, 0.5
      %v6059 = vmul.f32 %v5292, 0.5
      %v6060 = vmul.f32 %v5483, 0.5
      %v6061 = vmul.f32 %v5485, 0.5
      %v6062 = vmul.f32 %v5676, 0.5
      %v6063 = vmul.f32 %v5678, 0.5
      %v6064 = vmul.f32 %v5838, 0.5
      %v6065 = vtanh.pop %v5841
      %v6066 = vtanh.pop %v5842
      %v6067 = vtanh.pop %v5843
      %v6068 = vtanh.pop %v5844
      %v6069 = vtanh.pop %v5845
      %v6070 = vtanh.pop %v5846
      %v6071 = vtanh.pop %v5847
      %v6072 = vtanh.pop %v5848
      %v6073 = vtanh.pop %v5849
      %v6074 = vtanh.pop %v5850
      %v6075 = vtanh.pop %v5851
      %v6076 = vtanh.pop %v5852
      %v6077 = vtanh.pop %v5853
      %v6078 = vtanh.pop %v5854
      %v6079 = vtanh.pop %v5855
      %v6080 = vtanh.pop %v5856
      %v6081 = vtanh.pop %v5857
      %v6082 = vtanh.pop %v5858
      %v6083 = vtanh.pop %v5859
      %v6084 = vtanh.pop %v5860
      %v6085 = vtanh.pop %v5861
      %v6086 = vtanh.pop %v5862
      %v6087 = vtanh.pop %v5863
      %v6088 = vtanh.pop %v5864
      %v6089 = vtanh.pop %v5865
      %v6090 = vtanh.pop %v5866
      %v6091 = vtanh.pop %v5867
      %v6092 = vtanh.pop %v5868
      %v6093 = vtanh.pop %v5869
      %v6094 = vtanh.pop %v5870
      %v6095 = vtanh.pop %v5871
      %v6096 = vtanh.pop %v5872
      %v6097 = vtanh.pop %v5873
      %v6098 = vtanh.pop %v5874
      %v6099 = vtanh.pop %v5875
      %v6100 = vtanh.pop %v5876
      %v6101 = vtanh.pop %v5877
      %v6102 = vtanh.pop %v5878
      %v6103 = vtanh.pop %v5879
      %v6104 = vtanh.pop %v5880
      %v6105 = vtanh.pop %v5881
      %v6106 = vtanh.pop %v5882
      %v6107 = vtanh.pop %v5883
      %v6108 = vtanh.pop %v5884
      %v6109 = vtanh.pop %v5885
      %v6110 = vtanh.pop %v5886
      %v6111 = vtanh.pop %v5887
      %v6112 = vtanh.pop %v5888
      %v6113 = vtanh.pop %v5889
      %v6114 = vtanh.pop %v5890
      %v6115 = vtanh.pop %v5891
      %v6116 = vtanh.pop %v5892
      %v6117 = vtanh.pop %v5893
      %v6118 = vtanh.pop %v5894
      %v6119 = vtanh.pop %v5895
      %v6120 = vtanh.pop %v5896
      %v6121 = vtanh.pop %v5897
      %v6122 = vtanh.pop %v5898
      %v6123 = vtanh.pop %v5899
      %v6124 = vtanh.pop %v5900
      %v6125 = vtanh.pop %v5901
      %v6126 = vtanh.pop %v5902
      %v6127 = vtanh.pop %v5903
      %v6128 = vtanh.pop %v5904
      %v6129 = vtanh.pop %v5905
      %v6130 = vtanh.pop %v5906
      %v6131 = vtanh.pop %v5907
      %v6132 = vtanh.pop %v5908
      %v6133 = vtanh.pop %v5909
      %v6134 = vtanh.pop %v5910
      %v6135 = vtanh.pop %v5911
      %v6136 = vtanh.pop %v5912
      %v6137 = vtanh.pop %v5913
      %v6138 = vtanh.pop %v5914
      %v6139 = vtanh.pop %v5915
      %v6140 = vtanh.pop %v5916
      %v6141 = vtanh.pop %v5917
      %v6142 = vtanh.pop %v5918
      %v6143 = vtanh.pop %v5919
      %v6144 = vtanh.pop %v5920
      %v6145 = vtanh.pop %v5921
      %v6146 = vtanh.pop %v5922
      %v6147 = vtanh.pop %v5923
      %v6148 = vtanh.pop %v5924
      %v6149 = vtanh.pop %v5925
      %v6150 = vtanh.pop %v5926
      %v6151 = vtanh.pop %v5927
      %v6152 = vtanh.pop %v5928
      %v6153 = vtanh.pop %v5929
      %v6154 = vtanh.pop %v5930
      %v6155 = vtanh.pop %v5931
      %v6156 = vtanh.pop %v5932
      %v6157 = vtanh.pop %v5933
      %v6158 = vtanh.pop %v5934
      %v6159 = vtanh.pop %v5935
      %v6160 = vtanh.pop %v5936
      %v6161 = vtanh.pop %v5937
      %v6162 = vtanh.pop %v5938
      %v6163 = vtanh.pop %v5939
      %v6164 = vtanh.pop %v5940
      %v6165 = vtanh.pop %v5941
      %v6166 = vtanh.pop %v5942
      %v6167 = vtanh.pop %v5943
      %v6168 = vtanh.pop %v5944
      %v6169 = vtanh.pop %v5945
      %v6170 = vtanh.pop %v5946
      %v6171 = vtanh.pop %v5947
      %v6172 = vtanh.pop %v5948
      %v6173 = vtanh.pop %v5949
      %v6174 = vtanh.pop %v5950
      %v6175 = vtanh.pop %v5951
      %v6176 = vtanh.pop %v5952
      %v6177 = vtanh.pop %v5953
      %v6178 = vtanh.pop %v5954
      %v6179 = vtanh.pop %v5955
      %v6180 = vtanh.pop %v5956
      %v6181 = vtanh.pop %v5957
      %v6182 = vtanh.pop %v5958
      %v6183 = vtanh.pop %v5959
      %v6184 = vtanh.pop %v5960
      %v6185 = vtanh.pop %v5961
      %v6186 = vtanh.pop %v5962
      %v6187 = vtanh.pop %v5963
      %v6188 = vtanh.pop %v5964
      %v6189 = vtanh.pop %v5965
      %v6190 = vtanh.pop %v5966
      %v6191 = vtanh.pop %v5967
      %v6192 = vtanh.pop %v5968
      %v6193 = vtanh.pop %v5969
      %v6194 = vtanh.pop %v5970
      %v6195 = vtanh.pop %v5971
      %v6196 = vtanh.pop %v5972
      %v6197 = vtanh.pop %v5973
      %v6198 = vtanh.pop %v5974
      %v6199 = vtanh.pop %v5975
      %v6200 = vtanh.pop %v5976
      %v6201 = vtanh.pop %v5977
      %v6202 = vtanh.pop %v5978
      %v6203 = vtanh.pop %v5979
      %v6204 = vtanh.pop %v5980
      %v6205 = vtanh.pop %v5981
      %v6206 = vtanh.pop %v5982
      %v6207 = vtanh.pop %v5983
      %v6208 = vtanh.pop %v5984
      %v6209 = vtanh.pop %v5985
      %v6210 = vtanh.pop %v5986
      %v6211 = vtanh.pop %v5987
      %v6212 = vtanh.pop %v5988
      %v6213 = vtanh.pop %v5989
      %v6214 = vtanh.pop %v5990
      %v6215 = vtanh.pop %v5991
      %v6216 = vtanh.pop %v5992
      %v6217 = vtanh.pop %v5993
      %v6218 = vtanh.pop %v5994
      %v6219 = vtanh.pop %v5995
      %v6220 = vtanh.pop %v5996
      %v6221 = vtanh.pop %v5997
      %v6222 = vtanh.pop %v5998
      %v6223 = vtanh.pop %v5999
      %v6224 = vtanh.pop %v6000
      %v6225 = vtanh.pop %v6001
      %v6226 = vtanh.pop %v6002
      %v6227 = vtanh.pop %v6003
      %v6228 = vtanh.pop %v6004
      %v6229 = vtanh.pop %v6005
      %v6230 = vtanh.pop %v6006
      %v6231 = vtanh.pop %v6007
      %v6232 = vtanh.pop %v6008
      %v6233 = vtanh.pop %v6009
      %v6234 = vtanh.pop %v6010
      %v6235 = vtanh.pop %v6011
      %v6236 = vtanh.pop %v6012
      %v6237 = vtanh.pop %v6013
      %v6238 = vtanh.pop %v6014
      %v6239 = vtanh.pop %v6015
      %v6240 = vtanh.pop %v6016
      %v6241 = vtanh.pop %v6017
      %v6242 = vtanh.pop %v6018
      %v6243 = vtanh.pop %v6019
      %v6244 = vtanh.pop %v6020
      %v6245 = vtanh.pop %v6021
      %v6246 = vtanh.pop %v6022
      %v6247 = vtanh.pop %v6023
      %v6248 = vtanh.pop %v6024
      %v6249 = vtanh.pop %v6025
      %v6250 = vtanh.pop %v6026
      %v6251 = vtanh.pop %v6027
      %v6252 = vtanh.pop %v6028
      %v6253 = vtanh.pop %v6029
      %v6254 = vtanh.pop %v6030
      %v6255 = vtanh.pop %v6031
      %v6256 = vtanh.pop %v6032
      %v6257 = vtanh.pop %v6033
      %v6258 = vtanh.pop %v6034
      %v6259 = vtanh.pop %v6035
      %v6260 = vtanh.pop %v6036
      %v6261 = vtanh.pop %v6037
      %v6262 = vtanh.pop %v6038
      %v6263 = vtanh.pop %v6039
      %v6264 = vtanh.pop %v6040
      %v6265 = vtanh.pop %v6041
      %v6266 = vtanh.pop %v6042
      %v6267 = vtanh.pop %v6043
      %v6268 = vtanh.pop %v6044
      %v6269 = vtanh.pop %v6045
      %v6270 = vtanh.pop %v6046
      %v6271 = vtanh.pop %v6047
      %v6272 = vtanh.pop %v6048
      %v6273 = vtanh.pop %v6049
      %v6274 = vtanh.pop %v6050
      %v6275 = vtanh.pop %v6051
      %v6276 = vtanh.pop %v6052
      %v6277 = vtanh.pop %v6053
      %v6278 = vtanh.pop %v6054
      %v6279 = vtanh.pop %v6055
      %v6280 = vtanh.pop %v6056
      %v6281 = vtanh.pop %v6057
      %v6282 = vtanh.pop %v6058
      %v6283 = vtanh.pop %v6059
      %v6284 = vtanh.pop %v6060
      %v6285 = vtanh.pop %v6061
      %v6286 = vtanh.pop %v6062
      %v6287 = vtanh.pop %v6063
      %v6288 = vtanh.pop %v6064
      %v6289 = vadd.f32 %v6065, 1.0
      %v6290 = vadd.f32 %v6066, 1.0
      %v6291 = vadd.f32 %v6067, 1.0
      %v6292 = vadd.f32 %v6068, 1.0
      %v6293 = vadd.f32 %v6069, 1.0
      %v6294 = vadd.f32 %v6070, 1.0
      %v6295 = vadd.f32 %v6071, 1.0
      %v6296 = vadd.f32 %v6072, 1.0
      %v6297 = vadd.f32 %v6073, 1.0
      %v6298 = vadd.f32 %v6074, 1.0
      %v6299 = vadd.f32 %v6075, 1.0
      %v6300 = vadd.f32 %v6076, 1.0
      %v6301 = vadd.f32 %v6077, 1.0
      %v6302 = vadd.f32 %v6078, 1.0
      %v6303 = vadd.f32 %v6079, 1.0
      %v6304 = vadd.f32 %v6080, 1.0
      %v6305 = vadd.f32 %v6081, 1.0
      %v6306 = vadd.f32 %v6082, 1.0
      %v6307 = vadd.f32 %v6083, 1.0
      %v6308 = vadd.f32 %v6084, 1.0
      %v6309 = vadd.f32 %v6085, 1.0
      %v6310 = vadd.f32 %v6086, 1.0
      %v6311 = vadd.f32 %v6087, 1.0
      %v6312 = vadd.f32 %v6088, 1.0
      %v6313 = vadd.f32 %v6089, 1.0
      %v6314 = vadd.f32 %v6090, 1.0
      %v6315 = vadd.f32 %v6091, 1.0
      %v6316 = vadd.f32 %v6092, 1.0
      %v6317 = vadd.f32 %v6093, 1.0
      %v6318 = vadd.f32 %v6094, 1.0
      %v6319 = vadd.f32 %v6095, 1.0
      %v6320 = vadd.f32 %v6096, 1.0
      %v6321 = vadd.f32 %v6097, 1.0
      %v6322 = vadd.f32 %v6098, 1.0
      %v6323 = vadd.f32 %v6099, 1.0
      %v6324 = vadd.f32 %v6100, 1.0
      %v6325 = vadd.f32 %v6101, 1.0
      %v6326 = vadd.f32 %v6102, 1.0
      %v6327 = vadd.f32 %v6103, 1.0
      %v6328 = vadd.f32 %v6104, 1.0
      %v6329 = vadd.f32 %v6105, 1.0
      %v6330 = vadd.f32 %v6106, 1.0
      %v6331 = vadd.f32 %v6107, 1.0
      %v6332 = vadd.f32 %v6108, 1.0
      %v6333 = vadd.f32 %v6109, 1.0
      %v6334 = vadd.f32 %v6110, 1.0
      %v6335 = vadd.f32 %v6111, 1.0
      %v6336 = vadd.f32 %v6112, 1.0
      %v6337 = vadd.f32 %v6113, 1.0
      %v6338 = vadd.f32 %v6114, 1.0
      %v6339 = vadd.f32 %v6115, 1.0
      %v6340 = vadd.f32 %v6116, 1.0
      %v6341 = vadd.f32 %v6117, 1.0
      %v6342 = vadd.f32 %v6118, 1.0
      %v6343 = vadd.f32 %v6119, 1.0
      %v6344 = vadd.f32 %v6120, 1.0
      %v6345 = vadd.f32 %v6121, 1.0
      %v6346 = vadd.f32 %v6122, 1.0
      %v6347 = vadd.f32 %v6123, 1.0
      %v6348 = vadd.f32 %v6124, 1.0
      %v6349 = vadd.f32 %v6125, 1.0
      %v6350 = vadd.f32 %v6126, 1.0
      %v6351 = vadd.f32 %v6127, 1.0
      %v6352 = vadd.f32 %v6128, 1.0
      %v6353 = vadd.f32 %v6129, 1.0
      %v6354 = vadd.f32 %v6130, 1.0
      %v6355 = vadd.f32 %v6131, 1.0
      %v6356 = vadd.f32 %v6132, 1.0
      %v6357 = vadd.f32 %v6133, 1.0
      %v6358 = vadd.f32 %v6134, 1.0
      %v6359 = vadd.f32 %v6135, 1.0
      %v6360 = vadd.f32 %v6136, 1.0
      %v6361 = vadd.f32 %v6137, 1.0
      %v6362 = vadd.f32 %v6138, 1.0
      %v6363 = vadd.f32 %v6139, 1.0
      %v6364 = vadd.f32 %v6140, 1.0
      %v6365 = vadd.f32 %v6141, 1.0
      %v6366 = vadd.f32 %v6142, 1.0
      %v6367 = vadd.f32 %v6143, 1.0
      %v6368 = vadd.f32 %v6144, 1.0
      %v6369 = vadd.f32 %v6145, 1.0
      %v6370 = vadd.f32 %v6146, 1.0
      %v6371 = vadd.f32 %v6147, 1.0
      %v6372 = vadd.f32 %v6148, 1.0
      %v6373 = vadd.f32 %v6149, 1.0
      %v6374 = vadd.f32 %v6150, 1.0
      %v6375 = vadd.f32 %v6151, 1.0
      %v6376 = vadd.f32 %v6152, 1.0
      %v6377 = vadd.f32 %v6153, 1.0
      %v6378 = vadd.f32 %v6154, 1.0
      %v6379 = vadd.f32 %v6155, 1.0
      %v6380 = vadd.f32 %v6156, 1.0
      %v6381 = vadd.f32 %v6157, 1.0
      %v6382 = vadd.f32 %v6158, 1.0
      %v6383 = vadd.f32 %v6159, 1.0
      %v6384 = vadd.f32 %v6160, 1.0
      %v6385 = vadd.f32 %v6161, 1.0
      %v6386 = vadd.f32 %v6162, 1.0
      %v6387 = vadd.f32 %v6163, 1.0
      %v6388 = vadd.f32 %v6164, 1.0
      %v6389 = vadd.f32 %v6165, 1.0
      %v6390 = vadd.f32 %v6166, 1.0
      %v6391 = vadd.f32 %v6167, 1.0
      %v6392 = vadd.f32 %v6168, 1.0
      %v6393 = vadd.f32 %v6169, 1.0
      %v6394 = vadd.f32 %v6170, 1.0
      %v6395 = vadd.f32 %v6171, 1.0
      %v6396 = vadd.f32 %v6172, 1.0
      %v6397 = vadd.f32 %v6173, 1.0
      %v6398 = vadd.f32 %v6174, 1.0
      %v6399 = vadd.f32 %v6175, 1.0
      %v6400 = vadd.f32 %v6176, 1.0
      %v6401 = vadd.f32 %v6177, 1.0
      %v6402 = vadd.f32 %v6178, 1.0
      %v6403 = vadd.f32 %v6179, 1.0
      %v6404 = vadd.f32 %v6180, 1.0
      %v6405 = vadd.f32 %v6181, 1.0
      %v6406 = vadd.f32 %v6182, 1.0
      %v6407 = vadd.f32 %v6183, 1.0
      %v6408 = vadd.f32 %v6184, 1.0
      %v6409 = vadd.f32 %v6185, 1.0
      %v6410 = vadd.f32 %v6186, 1.0
      %v6411 = vadd.f32 %v6187, 1.0
      %v6412 = vadd.f32 %v6188, 1.0
      %v6413 = vadd.f32 %v6189, 1.0
      %v6414 = vadd.f32 %v6190, 1.0
      %v6415 = vadd.f32 %v6191, 1.0
      %v6416 = vadd.f32 %v6192, 1.0
      %v6417 = vadd.f32 %v6193, 1.0
      %v6418 = vadd.f32 %v6194, 1.0
      %v6419 = vadd.f32 %v6195, 1.0
      %v6420 = vadd.f32 %v6196, 1.0
      %v6421 = vadd.f32 %v6197, 1.0
      %v6422 = vadd.f32 %v6198, 1.0
      %v6423 = vadd.f32 %v6199, 1.0
      %v6424 = vadd.f32 %v6200, 1.0
      %v6425 = vadd.f32 %v6201, 1.0
      %v6426 = vadd.f32 %v6202, 1.0
      %v6427 = vadd.f32 %v6203, 1.0
      %v6428 = vadd.f32 %v6204, 1.0
      %v6429 = vadd.f32 %v6205, 1.0
      %v6430 = vadd.f32 %v6206, 1.0
      %v6431 = vadd.f32 %v6207, 1.0
      %v6432 = vadd.f32 %v6208, 1.0
      %v6433 = vadd.f32 %v6209, 1.0
      %v6434 = vadd.f32 %v6210, 1.0
      %v6435 = vadd.f32 %v6211, 1.0
      %v6436 = vadd.f32 %v6212, 1.0
      %v6437 = vadd.f32 %v6213, 1.0
      %v6438 = vadd.f32 %v6214, 1.0
      %v6439 = vadd.f32 %v6215, 1.0
      %v6440 = vadd.f32 %v6216, 1.0
      %v6441 = vadd.f32 %v6217, 1.0
      %v6442 = vadd.f32 %v6218, 1.0
      %v6443 = vadd.f32 %v6219, 1.0
      %v6444 = vadd.f32 %v6220, 1.0
      %v6445 = vadd.f32 %v6221, 1.0
      %v6446 = vadd.f32 %v6222, 1.0
      %v6447 = vadd.f32 %v6223, 1.0
      %v6448 = vadd.f32 %v6224, 1.0
      %v6449 = vadd.f32 %v6225, 1.0
      %v6450 = vadd.f32 %v6226, 1.0
      %v6451 = vadd.f32 %v6227, 1.0
      %v6452 = vadd.f32 %v6228, 1.0
      %v6453 = vadd.f32 %v6229, 1.0
      %v6454 = vadd.f32 %v6230, 1.0
      %v6455 = vadd.f32 %v6231, 1.0
      %v6456 = vadd.f32 %v6232, 1.0
      %v6457 = vadd.f32 %v6233, 1.0
      %v6458 = vadd.f32 %v6234, 1.0
      %v6459 = vadd.f32 %v6235, 1.0
      %v6460 = vadd.f32 %v6236, 1.0
      %v6461 = vadd.f32 %v6237, 1.0
      %v6462 = vadd.f32 %v6238, 1.0
      %v6463 = vadd.f32 %v6239, 1.0
      %v6464 = vadd.f32 %v6240, 1.0
      %v6465 = vadd.f32 %v6241, 1.0
      %v6466 = vadd.f32 %v6242, 1.0
      %v6467 = vadd.f32 %v6243, 1.0
      %v6468 = vadd.f32 %v6244, 1.0
      %v6469 = vadd.f32 %v6245, 1.0
      %v6470 = vadd.f32 %v6246, 1.0
      %v6471 = vadd.f32 %v6247, 1.0
      %v6472 = vadd.f32 %v6248, 1.0
      %v6473 = vadd.f32 %v6249, 1.0
      %v6474 = vadd.f32 %v6250, 1.0
      %v6475 = vadd.f32 %v6251, 1.0
      %v6476 = vadd.f32 %v6252, 1.0
      %v6477 = vadd.f32 %v6253, 1.0
      %v6478 = vadd.f32 %v6254, 1.0
      %v6479 = vadd.f32 %v6255, 1.0
      %v6480 = vadd.f32 %v6256, 1.0
      %v6481 = vadd.f32 %v6257, 1.0
      %v6482 = vadd.f32 %v6258, 1.0
      %v6483 = vadd.f32 %v6259, 1.0
      %v6484 = vadd.f32 %v6260, 1.0
      %v6485 = vadd.f32 %v6261, 1.0
      %v6486 = vadd.f32 %v6262, 1.0
      %v6487 = vadd.f32 %v6263, 1.0
      %v6488 = vadd.f32 %v6264, 1.0
      %v6489 = vadd.f32 %v6265, 1.0
      %v6490 = vadd.f32 %v6266, 1.0
      %v6491 = vadd.f32 %v6267, 1.0
      %v6492 = vadd.f32 %v6268, 1.0
      %v6493 = vadd.f32 %v6269, 1.0
      %v6494 = vadd.f32 %v6270, 1.0
      %v6495 = vadd.f32 %v6271, 1.0
      %v6496 = vadd.f32 %v6272, 1.0
      %v6497 = vadd.f32 %v6273, 1.0
      %v6498 = vadd.f32 %v6274, 1.0
      %v6499 = vadd.f32 %v6275, 1.0
      %v6500 = vadd.f32 %v6276, 1.0
      %v6501 = vadd.f32 %v6277, 1.0
      %v6502 = vadd.f32 %v6278, 1.0
      %v6503 = vadd.f32 %v6279, 1.0
      %v6504 = vadd.f32 %v6280, 1.0
      %v6505 = vadd.f32 %v6281, 1.0
      %v6506 = vadd.f32 %v6282, 1.0
      %v6507 = vadd.f32 %v6283, 1.0
      %v6508 = vadd.f32 %v6284, 1.0
      %v6509 = vadd.f32 %v6285, 1.0
      %v6510 = vadd.f32 %v6286, 1.0
      %v6511 = vadd.f32 %v6287, 1.0
      %v6512 = vadd.f32 %v6288, 1.0
      %v6513 = vmul.f32 %v6289, 0.5
      %v6514 = vmul.f32 %v6290, 0.5
      %v6515 = vmul.f32 %v6291, 0.5
      %v6516 = vmul.f32 %v6292, 0.5
      %v6517 = vmul.f32 %v6293, 0.5
      %v6518 = vmul.f32 %v6294, 0.5
      %v6519 = vmul.f32 %v6295, 0.5
      %v6520 = vmul.f32 %v6296, 0.5
      %v6521 = vmul.f32 %v6297, 0.5
      %v6522 = vmul.f32 %v6298, 0.5
      %v6523 = vmul.f32 %v6299, 0.5
      %v6524 = vmul.f32 %v6300, 0.5
      %v6525 = vmul.f32 %v6301, 0.5
      %v6526 = vmul.f32 %v6302, 0.5
      %v6527 = vmul.f32 %v6303, 0.5
      %v6528 = vmul.f32 %v6304, 0.5
      %v6529 = vmul.f32 %v6305, 0.5
      %v6530 = vmul.f32 %v6306, 0.5
      %v6531 = vmul.f32 %v6307, 0.5
      %v6532 = vmul.f32 %v6308, 0.5
      %v6533 = vmul.f32 %v6309, 0.5
      %v6534 = vmul.f32 %v6310, 0.5
      %v6535 = vmul.f32 %v6311, 0.5
      %v6536 = vmul.f32 %v6312, 0.5
      %v6537 = vmul.f32 %v6313, 0.5
      %v6538 = vmul.f32 %v6314, 0.5
      %v6539 = vmul.f32 %v6315, 0.5
      %v6540 = vmul.f32 %v6316, 0.5
      %v6541 = vmul.f32 %v6317, 0.5
      %v6542 = vmul.f32 %v6318, 0.5
      %v6543 = vmul.f32 %v6319, 0.5
      %v6544 = vmul.f32 %v6320, 0.5
      %v6545 = vmul.f32 %v6321, 0.5
      %v6546 = vmul.f32 %v6322, 0.5
      %v6547 = vmul.f32 %v6323, 0.5
      %v6548 = vmul.f32 %v6324, 0.5
      %v6549 = vmul.f32 %v6325, 0.5
      %v6550 = vmul.f32 %v6326, 0.5
      %v6551 = vmul.f32 %v6327, 0.5
      %v6552 = vmul.f32 %v6328, 0.5
      %v6553 = vmul.f32 %v6329, 0.5
      %v6554 = vmul.f32 %v6330, 0.5
      %v6555 = vmul.f32 %v6331, 0.5
      %v6556 = vmul.f32 %v6332, 0.5
      %v6557 = vmul.f32 %v6333, 0.5
      %v6558 = vmul.f32 %v6334, 0.5
      %v6559 = vmul.f32 %v6335, 0.5
      %v6560 = vmul.f32 %v6336, 0.5
      %v6561 = vmul.f32 %v6337, 0.5
      %v6562 = vmul.f32 %v6338, 0.5
      %v6563 = vmul.f32 %v6339, 0.5
      %v6564 = vmul.f32 %v6340, 0.5
      %v6565 = vmul.f32 %v6341, 0.5
      %v6566 = vmul.f32 %v6342, 0.5
      %v6567 = vmul.f32 %v6343, 0.5
      %v6568 = vmul.f32 %v6344, 0.5
      %v6569 = vmul.f32 %v6345, 0.5
      %v6570 = vmul.f32 %v6346, 0.5
      %v6571 = vmul.f32 %v6347, 0.5
      %v6572 = vmul.f32 %v6348, 0.5
      %v6573 = vmul.f32 %v6349, 0.5
      %v6574 = vmul.f32 %v6350, 0.5
      %v6575 = vmul.f32 %v6351, 0.5
      %v6576 = vmul.f32 %v6352, 0.5
      %v6577 = vmul.f32 %v6353, 0.5
      %v6578 = vmul.f32 %v6354, 0.5
      %v6579 = vmul.f32 %v6355, 0.5
      %v6580 = vmul.f32 %v6356, 0.5
      %v6581 = vmul.f32 %v6357, 0.5
      %v6582 = vmul.f32 %v6358, 0.5
      %v6583 = vmul.f32 %v6359, 0.5
      %v6584 = vmul.f32 %v6360, 0.5
      %v6585 = vmul.f32 %v6361, 0.5
      %v6586 = vmul.f32 %v6362, 0.5
      %v6587 = vmul.f32 %v6363, 0.5
      %v6588 = vmul.f32 %v6364, 0.5
      %v6589 = vmul.f32 %v6365, 0.5
      %v6590 = vmul.f32 %v6366, 0.5
      %v6591 = vmul.f32 %v6367, 0.5
      %v6592 = vmul.f32 %v6368, 0.5
      %v6593 = vmul.f32 %v6369, 0.5
      %v6594 = vmul.f32 %v6370, 0.5
      %v6595 = vmul.f32 %v6371, 0.5
      %v6596 = vmul.f32 %v6372, 0.5
      %v6597 = vmul.f32 %v6373, 0.5
      %v6598 = vmul.f32 %v6374, 0.5
      %v6599 = vmul.f32 %v6375, 0.5
      %v6600 = vmul.f32 %v6376, 0.5
      %v6601 = vmul.f32 %v6377, 0.5
      %v6602 = vmul.f32 %v6378, 0.5
      %v6603 = vmul.f32 %v6379, 0.5
      %v6604 = vmul.f32 %v6380, 0.5
      %v6605 = vmul.f32 %v6381, 0.5
      %v6606 = vmul.f32 %v6382, 0.5
      %v6607 = vmul.f32 %v6383, 0.5
      %v6608 = vmul.f32 %v6384, 0.5
      %v6609 = vmul.f32 %v6385, 0.5
      %v6610 = vmul.f32 %v6386, 0.5
      %v6611 = vmul.f32 %v6387, 0.5
      %v6612 = vmul.f32 %v6388, 0.5
      %v6613 = vmul.f32 %v6389, 0.5
      %v6614 = vmul.f32 %v6390, 0.5
      %v6615 = vmul.f32 %v6391, 0.5
      %v6616 = vmul.f32 %v6392, 0.5
      %v6617 = vmul.f32 %v6393, 0.5
      %v6618 = vmul.f32 %v6394, 0.5
      %v6619 = vmul.f32 %v6395, 0.5
      %v6620 = vmul.f32 %v6396, 0.5
      %v6621 = vmul.f32 %v6397, 0.5
      %v6622 = vmul.f32 %v6398, 0.5
      %v6623 = vmul.f32 %v6399, 0.5
      %v6624 = vmul.f32 %v6400, 0.5
      %v6625 = vmul.f32 %v6401, 0.5
      %v6626 = vmul.f32 %v6402, 0.5
      %v6627 = vmul.f32 %v6403, 0.5
      %v6628 = vmul.f32 %v6404, 0.5
      %v6629 = vmul.f32 %v6405, 0.5
      %v6630 = vmul.f32 %v6406, 0.5
      %v6631 = vmul.f32 %v6407, 0.5
      %v6632 = vmul.f32 %v6408, 0.5
      %v6633 = vmul.f32 %v6409, 0.5
      %v6634 = vmul.f32 %v6410, 0.5
      %v6635 = vmul.f32 %v6411, 0.5
      %v6636 = vmul.f32 %v6412, 0.5
      %v6637 = vmul.f32 %v6413, 0.5
      %v6638 = vmul.f32 %v6414, 0.5
      %v6639 = vmul.f32 %v6415, 0.5
      %v6640 = vmul.f32 %v6416, 0.5
      %v6641 = vmul.f32 %v6417, 0.5
      %v6642 = vmul.f32 %v6418, 0.5
      %v6643 = vmul.f32 %v6419, 0.5
      %v6644 = vmul.f32 %v6420, 0.5
      %v6645 = vmul.f32 %v6421, 0.5
      %v6646 = vmul.f32 %v6422, 0.5
      %v6647 = vmul.f32 %v6423, 0.5
      %v6648 = vmul.f32 %v6424, 0.5
      %v6649 = vmul.f32 %v6425, 0.5
      %v6650 = vmul.f32 %v6426, 0.5
      %v6651 = vmul.f32 %v6427, 0.5
      %v6652 = vmul.f32 %v6428, 0.5
      %v6653 = vmul.f32 %v6429, 0.5
      %v6654 = vmul.f32 %v6430, 0.5
      %v6655 = vmul.f32 %v6431, 0.5
      %v6656 = vmul.f32 %v6432, 0.5
      %v6657 = vmul.f32 %v6433, 0.5
      %v6658 = vmul.f32 %v6434, 0.5
      %v6659 = vmul.f32 %v6435, 0.5
      %v6660 = vmul.f32 %v6436, 0.5
      %v6661 = vmul.f32 %v6437, 0.5
      %v6662 = vmul.f32 %v6438, 0.5
      %v6663 = vmul.f32 %v6439, 0.5
      %v6664 = vmul.f32 %v6440, 0.5
      %v6665 = vmul.f32 %v6441, 0.5
      %v6666 = vmul.f32 %v6442, 0.5
      %v6667 = vmul.f32 %v6443, 0.5
      %v6668 = vmul.f32 %v6444, 0.5
      %v6669 = vmul.f32 %v6445, 0.5
      %v6670 = vmul.f32 %v6446, 0.5
      %v6671 = vmul.f32 %v6447, 0.5
      %v6672 = vmul.f32 %v6448, 0.5
      %v6673 = vmul.f32 %v6449, 0.5
      %v6674 = vmul.f32 %v6450, 0.5
      %v6675 = vmul.f32 %v6451, 0.5
      %v6676 = vmul.f32 %v6452, 0.5
      %v6677 = vmul.f32 %v6453, 0.5
      %v6678 = vmul.f32 %v6454, 0.5
      %v6679 = vmul.f32 %v6455, 0.5
      %v6680 = vmul.f32 %v6456, 0.5
      %v6681 = vmul.f32 %v6457, 0.5
      %v6682 = vmul.f32 %v6458, 0.5
      %v6683 = vmul.f32 %v6459, 0.5
      %v6684 = vmul.f32 %v6460, 0.5
      %v6685 = vmul.f32 %v6461, 0.5
      %v6686 = vmul.f32 %v6462, 0.5
      %v6687 = vmul.f32 %v6463, 0.5
      %v6688 = vmul.f32 %v6464, 0.5
      %v6689 = vmul.f32 %v6465, 0.5
      %v6690 = vmul.f32 %v6466, 0.5
      %v6691 = vmul.f32 %v6467, 0.5
      %v6692 = vmul.f32 %v6468, 0.5
      %v6693 = vmul.f32 %v6469, 0.5
      %v6694 = vmul.f32 %v6470, 0.5
      %v6695 = vmul.f32 %v6471, 0.5
      %v6696 = vmul.f32 %v6472, 0.5
      %v6697 = vmul.f32 %v6473, 0.5
      %v6698 = vmul.f32 %v6474, 0.5
      %v6699 = vmul.f32 %v6475, 0.5
      %v6700 = vmul.f32 %v6476, 0.5
      %v6701 = vmul.f32 %v6477, 0.5
      %v6702 = vmul.f32 %v6478, 0.5
      %v6703 = vmul.f32 %v6479, 0.5
      %v6704 = vmul.f32 %v6480, 0.5
      %v6705 = vmul.f32 %v6481, 0.5
      %v6706 = vmul.f32 %v6482, 0.5
      %v6707 = vmul.f32 %v6483, 0.5
      %v6708 = vmul.f32 %v6484, 0.5
      %v6709 = vmul.f32 %v6485, 0.5
      %v6710 = vmul.f32 %v6486, 0.5
      %v6711 = vmul.f32 %v6487, 0.5
      %v6712 = vmul.f32 %v6488, 0.5
      %v6713 = vmul.f32 %v6489, 0.5
      %v6714 = vmul.f32 %v6490, 0.5
      %v6715 = vmul.f32 %v6491, 0.5
      %v6716 = vmul.f32 %v6492, 0.5
      %v6717 = vmul.f32 %v6493, 0.5
      %v6718 = vmul.f32 %v6494, 0.5
      %v6719 = vmul.f32 %v6495, 0.5
      %v6720 = vmul.f32 %v6496, 0.5
      %v6721 = vmul.f32 %v6497, 0.5
      %v6722 = vmul.f32 %v6498, 0.5
      %v6723 = vmul.f32 %v6499, 0.5
      %v6724 = vmul.f32 %v6500, 0.5
      %v6725 = vmul.f32 %v6501, 0.5
      %v6726 = vmul.f32 %v6502, 0.5
      %v6727 = vmul.f32 %v6503, 0.5
      %v6728 = vmul.f32 %v6504, 0.5
      %v6729 = vmul.f32 %v6505, 0.5
      %v6730 = vmul.f32 %v6506, 0.5
      %v6731 = vmul.f32 %v6507, 0.5
      %v6732 = vmul.f32 %v6508, 0.5
      %v6733 = vmul.f32 %v6509, 0.5
      %v6734 = vmul.f32 %v6510, 0.5
      %v6735 = vmul.f32 %v6511, 0.5
      %v6736 = vmul.f32 %v6512, 0.5
      %6737 = vst [vmem:[%s420] sm:$0xff] %v6513
      %6738 = vst [vmem:[%s420 + $0x8] sm:$0xff] %v6514
      %6739 = vst [vmem:[%s420 + $0x10] sm:$0xff] %v6515
      %6740 = vst [vmem:[%s420 + $0x18] sm:$0xff] %v6516
      %6741 = vst [vmem:[%s420 + $0x20] sm:$0xff] %v6517
      %6742 = vst [vmem:[%s420 + $0x28] sm:$0xff] %v6518
      %6743 = vst.msk [vmem:[%s420 + $0x30] sm:$0xff] %vm1152, %v6519
      %6744 = vst [vmem:[%s420 + $0x38] sm:$0xff] %v6520
      %6745 = vst [vmem:[%s420 + $0x40] sm:$0xff] %v6521
      %6746 = vst [vmem:[%s420 + $0x48] sm:$0xff] %v6522
      %6747 = vst [vmem:[%s420 + $0x50] sm:$0xff] %v6523
      %6748 = vst [vmem:[%s420 + $0x58] sm:$0xff] %v6524
      %6749 = vst [vmem:[%s420 + $0x60] sm:$0xff] %v6525
      %6750 = vst.msk [vmem:[%s420 + $0x68] sm:$0xff] %vm1152, %v6526
      %6751 = vst [vmem:[%s420 + $0x70] sm:$0xff] %v6527
      %6752 = vst [vmem:[%s420 + $0x78] sm:$0xff] %v6528
      %6753 = vst [vmem:[%s420 + $0x80] sm:$0xff] %v6529
      %6754 = vst [vmem:[%s420 + $0x88] sm:$0xff] %v6530
      %6755 = vst [vmem:[%s420 + $0x90] sm:$0xff] %v6531
      %6756 = vst [vmem:[%s420 + $0x98] sm:$0xff] %v6532
      %6757 = vst.msk [vmem:[%s420 + $0xa0] sm:$0xff] %vm1152, %v6533
      %6758 = vst [vmem:[%s420 + $0xa8] sm:$0xff] %v6534
      %6759 = vst [vmem:[%s420 + $0xb0] sm:$0xff] %v6535
      %6760 = vst [vmem:[%s420 + $0xb8] sm:$0xff] %v6536
      %6761 = vst [vmem:[%s420 + $0xc0] sm:$0xff] %v6537
      %6762 = vst [vmem:[%s420 + $0xc8] sm:$0xff] %v6538
      %6763 = vst [vmem:[%s420 + $0xd0] sm:$0xff] %v6539
      %6764 = vst.msk [vmem:[%s420 + $0xd8] sm:$0xff] %vm1152, %v6540
      %6765 = vst [vmem:[%s420 + $0xe0] sm:$0xff] %v6541
      %6766 = vst [vmem:[%s420 + $0xe8] sm:$0xff] %v6542
      %6767 = vst [vmem:[%s420 + $0xf0] sm:$0xff] %v6543
      %6768 = vst [vmem:[%s420 + $0xf8] sm:$0xff] %v6544
      %6769 = vst [vmem:[%s420 + $0x100] sm:$0xff] %v6545
      %6770 = vst [vmem:[%s420 + $0x108] sm:$0xff] %v6546
      %6771 = vst.msk [vmem:[%s420 + $0x110] sm:$0xff] %vm1152, %v6547
      %6772 = vst [vmem:[%s420 + $0x118] sm:$0xff] %v6548
      %6773 = vst [vmem:[%s420 + $0x120] sm:$0xff] %v6549
      %6774 = vst [vmem:[%s420 + $0x128] sm:$0xff] %v6550
      %6775 = vst [vmem:[%s420 + $0x130] sm:$0xff] %v6551
      %6776 = vst [vmem:[%s420 + $0x138] sm:$0xff] %v6552
      %6777 = vst [vmem:[%s420 + $0x140] sm:$0xff] %v6553
      %6778 = vst.msk [vmem:[%s420 + $0x148] sm:$0xff] %vm1152, %v6554
      %6779 = vst [vmem:[%s420 + $0x150] sm:$0xff] %v6555
      %6780 = vst [vmem:[%s420 + $0x158] sm:$0xff] %v6556
      %6781 = vst [vmem:[%s420 + $0x160] sm:$0xff] %v6557
      %6782 = vst [vmem:[%s420 + $0x168] sm:$0xff] %v6558
      %6783 = vst [vmem:[%s420 + $0x170] sm:$0xff] %v6559
      %6784 = vst [vmem:[%s420 + $0x178] sm:$0xff] %v6560
      %6785 = vst.msk [vmem:[%s420 + $0x180] sm:$0xff] %vm1152, %v6561
      %6786 = vst [vmem:[%s420 + $0x188] sm:$0xff] %v6562
      %6787 = vst [vmem:[%s420 + $0x190] sm:$0xff] %v6563
      %6788 = vst [vmem:[%s420 + $0x198] sm:$0xff] %v6564
      %6789 = vst [vmem:[%s420 + $0x1a0] sm:$0xff] %v6565
      %6790 = vst [vmem:[%s420 + $0x1a8] sm:$0xff] %v6566
      %6791 = vst [vmem:[%s420 + $0x1b0] sm:$0xff] %v6567
      %6792 = vst.msk [vmem:[%s420 + $0x1b8] sm:$0xff] %vm1152, %v6568
      %6793 = vst [vmem:[%s420 + $0x1c0] sm:$0xff] %v6569
      %6794 = vst [vmem:[%s420 + $0x1c8] sm:$0xff] %v6570
      %6795 = vst [vmem:[%s420 + $0x1d0] sm:$0xff] %v6571
      %6796 = vst [vmem:[%s420 + $0x1d8] sm:$0xff] %v6572
      %6797 = vst [vmem:[%s420 + $0x1e0] sm:$0xff] %v6573
      %6798 = vst [vmem:[%s420 + $0x1e8] sm:$0xff] %v6574
      %6799 = vst.msk [vmem:[%s420 + $0x1f0] sm:$0xff] %vm1152, %v6575
      %6800 = vst [vmem:[%s420 + $0x1f8] sm:$0xff] %v6576
      %6801 = vst [vmem:[%s420 + $0x200] sm:$0xff] %v6577
      %6802 = vst [vmem:[%s420 + $0x208] sm:$0xff] %v6578
      %6803 = vst [vmem:[%s420 + $0x210] sm:$0xff] %v6579
      %6804 = vst [vmem:[%s420 + $0x218] sm:$0xff] %v6580
      %6805 = vst [vmem:[%s420 + $0x220] sm:$0xff] %v6581
      %6806 = vst.msk [vmem:[%s420 + $0x228] sm:$0xff] %vm1152, %v6582
      %6807 = vst [vmem:[%s420 + $0x230] sm:$0xff] %v6583
      %6808 = vst [vmem:[%s420 + $0x238] sm:$0xff] %v6584
      %6809 = vst [vmem:[%s420 + $0x240] sm:$0xff] %v6585
      %6810 = vst [vmem:[%s420 + $0x248] sm:$0xff] %v6586
      %6811 = vst [vmem:[%s420 + $0x250] sm:$0xff] %v6587
      %6812 = vst [vmem:[%s420 + $0x258] sm:$0xff] %v6588
      %6813 = vst.msk [vmem:[%s420 + $0x260] sm:$0xff] %vm1152, %v6589
      %6814 = vst [vmem:[%s420 + $0x268] sm:$0xff] %v6590
      %6815 = vst [vmem:[%s420 + $0x270] sm:$0xff] %v6591
      %6816 = vst [vmem:[%s420 + $0x278] sm:$0xff] %v6592
      %6817 = vst [vmem:[%s420 + $0x280] sm:$0xff] %v6593
      %6818 = vst [vmem:[%s420 + $0x288] sm:$0xff] %v6594
      %6819 = vst [vmem:[%s420 + $0x290] sm:$0xff] %v6595
      %6820 = vst.msk [vmem:[%s420 + $0x298] sm:$0xff] %vm1152, %v6596
      %6821 = vst [vmem:[%s420 + $0x2a0] sm:$0xff] %v6597
      %6822 = vst [vmem:[%s420 + $0x2a8] sm:$0xff] %v6598
      %6823 = vst [vmem:[%s420 + $0x2b0] sm:$0xff] %v6599
      %6824 = vst [vmem:[%s420 + $0x2b8] sm:$0xff] %v6600
      %6825 = vst [vmem:[%s420 + $0x2c0] sm:$0xff] %v6601
      %6826 = vst [vmem:[%s420 + $0x2c8] sm:$0xff] %v6602
      %6827 = vst.msk [vmem:[%s420 + $0x2d0] sm:$0xff] %vm1152, %v6603
      %6828 = vst [vmem:[%s420 + $0x2d8] sm:$0xff] %v6604
      %6829 = vst [vmem:[%s420 + $0x2e0] sm:$0xff] %v6605
      %6830 = vst [vmem:[%s420 + $0x2e8] sm:$0xff] %v6606
      %6831 = vst [vmem:[%s420 + $0x2f0] sm:$0xff] %v6607
      %6832 = vst [vmem:[%s420 + $0x2f8] sm:$0xff] %v6608
      %6833 = vst [vmem:[%s420 + $0x300] sm:$0xff] %v6609
      %6834 = vst.msk [vmem:[%s420 + $0x308] sm:$0xff] %vm1152, %v6610
      %6835 = vst [vmem:[%s420 + $0x310] sm:$0xff] %v6611
      %6836 = vst [vmem:[%s420 + $0x318] sm:$0xff] %v6612
      %6837 = vst [vmem:[%s420 + $0x320] sm:$0xff] %v6613
      %6838 = vst [vmem:[%s420 + $0x328] sm:$0xff] %v6614
      %6839 = vst [vmem:[%s420 + $0x330] sm:$0xff] %v6615
      %6840 = vst [vmem:[%s420 + $0x338] sm:$0xff] %v6616
      %6841 = vst.msk [vmem:[%s420 + $0x340] sm:$0xff] %vm1152, %v6617
      %6842 = vst [vmem:[%s420 + $0x348] sm:$0xff] %v6618
      %6843 = vst [vmem:[%s420 + $0x350] sm:$0xff] %v6619
      %6844 = vst [vmem:[%s420 + $0x358] sm:$0xff] %v6620
      %6845 = vst [vmem:[%s420 + $0x360] sm:$0xff] %v6621
      %6846 = vst [vmem:[%s420 + $0x368] sm:$0xff] %v6622
      %6847 = vst [vmem:[%s420 + $0x370] sm:$0xff] %v6623
      %6848 = vst.msk [vmem:[%s420 + $0x378] sm:$0xff] %vm1152, %v6624
      %6849 = vst [vmem:[%s420 + $0x380] sm:$0xff] %v6625
      %6850 = vst [vmem:[%s420 + $0x388] sm:$0xff] %v6626
      %6851 = vst [vmem:[%s420 + $0x390] sm:$0xff] %v6627
      %6852 = vst [vmem:[%s420 + $0x398] sm:$0xff] %v6628
      %6853 = vst [vmem:[%s420 + $0x3a0] sm:$0xff] %v6629
      %6854 = vst [vmem:[%s420 + $0x3a8] sm:$0xff] %v6630
      %6855 = vst.msk [vmem:[%s420 + $0x3b0] sm:$0xff] %vm1152, %v6631
      %6856 = vst [vmem:[%s420 + $0x3b8] sm:$0xff] %v6632
      %6857 = vst [vmem:[%s420 + $0x3c0] sm:$0xff] %v6633
      %6858 = vst [vmem:[%s420 + $0x3c8] sm:$0xff] %v6634
      %6859 = vst [vmem:[%s420 + $0x3d0] sm:$0xff] %v6635
      %6860 = vst [vmem:[%s420 + $0x3d8] sm:$0xff] %v6636
      %6861 = vst [vmem:[%s420 + $0x3e0] sm:$0xff] %v6637
      %6862 = vst.msk [vmem:[%s420 + $0x3e8] sm:$0xff] %vm1152, %v6638
      %6863 = vst [vmem:[%s420 + $0x3f0] sm:$0xff] %v6639
      %6864 = vst [vmem:[%s420 + $0x3f8] sm:$0xff] %v6640
      %6865 = vst [vmem:[%s420 + $0x400] sm:$0xff] %v6641
      %6866 = vst [vmem:[%s420 + $0x408] sm:$0xff] %v6642
      %6867 = vst [vmem:[%s420 + $0x410] sm:$0xff] %v6643
      %6868 = vst [vmem:[%s420 + $0x418] sm:$0xff] %v6644
      %6869 = vst.msk [vmem:[%s420 + $0x420] sm:$0xff] %vm1152, %v6645
      %6870 = vst [vmem:[%s420 + $0x428] sm:$0xff] %v6646
      %6871 = vst [vmem:[%s420 + $0x430] sm:$0xff] %v6647
      %6872 = vst [vmem:[%s420 + $0x438] sm:$0xff] %v6648
      %6873 = vst [vmem:[%s420 + $0x440] sm:$0xff] %v6649
      %6874 = vst [vmem:[%s420 + $0x448] sm:$0xff] %v6650
      %6875 = vst [vmem:[%s420 + $0x450] sm:$0xff] %v6651
      %6876 = vst.msk [vmem:[%s420 + $0x458] sm:$0xff] %vm1152, %v6652
      %6877 = vst [vmem:[%s420 + $0x460] sm:$0xff] %v6653
      %6878 = vst [vmem:[%s420 + $0x468] sm:$0xff] %v6654
      %6879 = vst [vmem:[%s420 + $0x470] sm:$0xff] %v6655
      %6880 = vst [vmem:[%s420 + $0x478] sm:$0xff] %v6656
      %6881 = vst [vmem:[%s420 + $0x480] sm:$0xff] %v6657
      %6882 = vst [vmem:[%s420 + $0x488] sm:$0xff] %v6658
      %6883 = vst.msk [vmem:[%s420 + $0x490] sm:$0xff] %vm1152, %v6659
      %6884 = vst [vmem:[%s420 + $0x498] sm:$0xff] %v6660
      %6885 = vst [vmem:[%s420 + $0x4a0] sm:$0xff] %v6661
      %6886 = vst [vmem:[%s420 + $0x4a8] sm:$0xff] %v6662
      %6887 = vst [vmem:[%s420 + $0x4b0] sm:$0xff] %v6663
      %6888 = vst [vmem:[%s420 + $0x4b8] sm:$0xff] %v6664
      %6889 = vst [vmem:[%s420 + $0x4c0] sm:$0xff] %v6665
      %6890 = vst.msk [vmem:[%s420 + $0x4c8] sm:$0xff] %vm1152, %v6666
      %6891 = vst [vmem:[%s420 + $0x4d0] sm:$0xff] %v6667
      %6892 = vst [vmem:[%s420 + $0x4d8] sm:$0xff] %v6668
      %6893 = vst [vmem:[%s420 + $0x4e0] sm:$0xff] %v6669
      %6894 = vst [vmem:[%s420 + $0x4e8] sm:$0xff] %v6670
      %6895 = vst [vmem:[%s420 + $0x4f0] sm:$0xff] %v6671
      %6896 = vst [vmem:[%s420 + $0x4f8] sm:$0xff] %v6672
      %6897 = vst.msk [vmem:[%s420 + $0x500] sm:$0xff] %vm1152, %v6673
      %6898 = vst [vmem:[%s420 + $0x508] sm:$0xff] %v6674
      %6899 = vst [vmem:[%s420 + $0x510] sm:$0xff] %v6675
      %6900 = vst [vmem:[%s420 + $0x518] sm:$0xff] %v6676
      %6901 = vst [vmem:[%s420 + $0x520] sm:$0xff] %v6677
      %6902 = vst [vmem:[%s420 + $0x528] sm:$0xff] %v6678
      %6903 = vst [vmem:[%s420 + $0x530] sm:$0xff] %v6679
      %6904 = vst.msk [vmem:[%s420 + $0x538] sm:$0xff] %vm1152, %v6680
      %6905 = vst [vmem:[%s420 + $0x540] sm:$0xff] %v6681
      %6906 = vst [vmem:[%s420 + $0x548] sm:$0xff] %v6682
      %6907 = vst [vmem:[%s420 + $0x550] sm:$0xff] %v6683
      %6908 = vst [vmem:[%s420 + $0x558] sm:$0xff] %v6684
      %6909 = vst [vmem:[%s420 + $0x560] sm:$0xff] %v6685
      %6910 = vst [vmem:[%s420 + $0x568] sm:$0xff] %v6686
      %6911 = vst.msk [vmem:[%s420 + $0x570] sm:$0xff] %vm1152, %v6687
      %6912 = vst [vmem:[%s420 + $0x578] sm:$0xff] %v6688
      %6913 = vst [vmem:[%s420 + $0x580] sm:$0xff] %v6689
      %6914 = vst [vmem:[%s420 + $0x588] sm:$0xff] %v6690
      %6915 = vst [vmem:[%s420 + $0x590] sm:$0xff] %v6691
      %6916 = vst [vmem:[%s420 + $0x598] sm:$0xff] %v6692
      %6917 = vst [vmem:[%s420 + $0x5a0] sm:$0xff] %v6693
      %6918 = vst.msk [vmem:[%s420 + $0x5a8] sm:$0xff] %vm1152, %v6694
      %6919 = vst [vmem:[%s420 + $0x5b0] sm:$0xff] %v6695
      %6920 = vst [vmem:[%s420 + $0x5b8] sm:$0xff] %v6696
      %6921 = vst [vmem:[%s420 + $0x5c0] sm:$0xff] %v6697
      %6922 = vst [vmem:[%s420 + $0x5c8] sm:$0xff] %v6698
      %6923 = vst [vmem:[%s420 + $0x5d0] sm:$0xff] %v6699
      %6924 = vst [vmem:[%s420 + $0x5d8] sm:$0xff] %v6700
      %6925 = vst.msk [vmem:[%s420 + $0x5e0] sm:$0xff] %vm1152, %v6701
      %6926 = vst [vmem:[%s420 + $0x5e8] sm:$0xff] %v6702
      %6927 = vst [vmem:[%s420 + $0x5f0] sm:$0xff] %v6703
      %6928 = vst [vmem:[%s420 + $0x5f8] sm:$0xff] %v6704
      %6929 = vst [vmem:[%s420 + $0x600] sm:$0xff] %v6705
      %6930 = vst [vmem:[%s420 + $0x608] sm:$0xff] %v6706
      %6931 = vst [vmem:[%s420 + $0x610] sm:$0xff] %v6707
      %6932 = vst.msk [vmem:[%s420 + $0x618] sm:$0xff] %vm1152, %v6708
      %6933 = vst [vmem:[%s420 + $0x620] sm:$0xff] %v6709
      %6934 = vst [vmem:[%s420 + $0x628] sm:$0xff] %v6710
      %6935 = vst [vmem:[%s420 + $0x630] sm:$0xff] %v6711
      %6936 = vst [vmem:[%s420 + $0x638] sm:$0xff] %v6712
      %6937 = vst [vmem:[%s420 + $0x640] sm:$0xff] %v6713
      %6938 = vst [vmem:[%s420 + $0x648] sm:$0xff] %v6714
      %6939 = vst.msk [vmem:[%s420 + $0x650] sm:$0xff] %vm1152, %v6715
      %6940 = vst [vmem:[%s420 + $0x658] sm:$0xff] %v6716
      %6941 = vst [vmem:[%s420 + $0x660] sm:$0xff] %v6717
      %6942 = vst [vmem:[%s420 + $0x668] sm:$0xff] %v6718
      %6943 = vst [vmem:[%s420 + $0x670] sm:$0xff] %v6719
      %6944 = vst [vmem:[%s420 + $0x678] sm:$0xff] %v6720
      %6945 = vst [vmem:[%s420 + $0x680] sm:$0xff] %v6721
      %6946 = vst.msk [vmem:[%s420 + $0x688] sm:$0xff] %vm1152, %v6722
      %6947 = vst [vmem:[%s420 + $0x690] sm:$0xff] %v6723
      %6948 = vst [vmem:[%s420 + $0x698] sm:$0xff] %v6724
      %6949 = vst [vmem:[%s420 + $0x6a0] sm:$0xff] %v6725
      %6950 = vst [vmem:[%s420 + $0x6a8] sm:$0xff] %v6726
      %6951 = vst [vmem:[%s420 + $0x6b0] sm:$0xff] %v6727
      %6952 = vst [vmem:[%s420 + $0x6b8] sm:$0xff] %v6728
      %6953 = vst.msk [vmem:[%s420 + $0x6c0] sm:$0xff] %vm1152, %v6729
      %6954 = vst [vmem:[%s420 + $0x6c8] sm:$0xff] %v6730
      %6955 = vst [vmem:[%s420 + $0x6d0] sm:$0xff] %v6731
      %6956 = vst [vmem:[%s420 + $0x6d8] sm:$0xff] %v6732
      %6957 = vst [vmem:[%s420 + $0x6e0] sm:$0xff] %v6733
      %6958 = vst [vmem:[%s420 + $0x6e8] sm:$0xff] %v6734
      %6959 = vst [vmem:[%s420 + $0x6f0] sm:$0xff] %v6735
      %6960 = vst.msk [vmem:[%s420 + $0x6f8] sm:$0xff] %vm1152, %v6736
      %s6961 = smul.u32 32, %s23
      %p6962 = scmp.lt.s32.totalorder %s6961, 63
      %s6963 = scalar_select %p6962, %s6961, 63
      %s6964 = smul.addr %s6963, 7
      %s6965 = smul.addr %s6964, 8
      %s6966 = scalar_lea.vmem %s12, %s6965
      // Predicated region
      $region69: #{tpu_custom_call.1} parent=67 // pred_check
        %p6967 = pneg %p298
      $region70: #{tpu_custom_call.1} parent=67 // pred_check_branch
        %6969 = sbr.rel (%p6967) target = $region72
      $region71: #{tpu_custom_call.1} parent=67 // pred_region
        %s6970 = smul.u32 32, %s23
      $region72: #{tpu_custom_call.1} parent=67 // pred_fallthru
        _
    $region68: #{tpu_custom_call.1} parent=5 // pred_fallthru
      _
    %p6971 = scmp.le.s32.totalorder 2, %s18
    // Predicated region
    $region73: #{tpu_custom_call.1} parent=5 // pred_check
      %p6972 = pneg %p6971
    $region74: #{tpu_custom_call.1} parent=5 // pred_check_branch
      %6974 = sbr.rel (%p6972) target = $region76
    $region75: #{tpu_custom_call.1} parent=5 // pred_region
      %s6975 = ssub.s32 %s18, 2
      // Predicated region
      $region77: #{tpu_custom_call.1} parent=75 // pred_check
        %p6976 = pneg %p304
      $region78: #{tpu_custom_call.1} parent=75 // pred_check_branch
        %6978 = sbr.rel (%p6976) target = $region80
      $region79: #{tpu_custom_call.1} parent=75 // pred_region
        %s6979 = smul.u32 32, %s24
        %p6980 = scmp.lt.s32.totalorder %s6979, 63
        %s6981 = scalar_select %p6980, %s6979, 63
        %s6982 = smul.addr %s6981, 7
        %s6983 = smul.addr %s6982, 8
        %s6984 = scalar_lea.vmem %s12, %s6983
      $region80: #{tpu_custom_call.1} parent=75 // pred_fallthru
        _
    $region76: #{tpu_custom_call.1} parent=5 // pred_fallthru
      _
  $region6: #{tpu_custom_call.1} parent=0 // loop_footer
    %s22 = sadd.s32 1, %s18
  $region7: #{tpu_custom_call.1} parent=0 // loop_footer_branch
    %17 = sbr.rel target = $region3
  $region8: #{tpu_custom_call.1} parent=0 // loop_exit
    _

</llo_original>
